<compile_context>
chip_gen: v7x
topology: tpu7x:2x2x1
jax: 0.10.0
libtpu: 0.0.40
codegen_flags: <defaults>
</compile_context>

<pallas_src>
import functools
import math

import numpy as np

import jax
import jax.numpy as jnp
from jax.experimental import pallas as pl
from jax.experimental.pallas import tpu as pltpu

EPS = 1e-9

# ---- small deterministic config (mirrors the module's __init__ fields) -----
SAMPLING_RATE = 35              # process_config['audio']['or_sample_rate']
N_FFT = 14                      # process_config['mel']['n_fft']
HOP_LENGTH = 7                  # process_config['mel']['hop_length']
WIN_LENGTH = 14                 # process_config['mel']['win_length']
WIN_DIM = N_FFT // 2 + 1        # 8
WD2 = WIN_DIM // 2              # 4
MSG_LENGTH = 8
HIDDEN_DIM = 8                  # model_config['conv2']['hidden_dim']
LAYERS_CE = 2
LAYERS_EM = 2
EM_INPUT_DIM = HIDDEN_DIM + 3   # 11
FUTURE_AMT_WAVEFORM = 70        # train_config['watermark']['future_amt_waveform']
FUTURE_AMT = FUTURE_AMT_WAVEFORM // HOP_LENGTH + 1   # 11
VAD_THRESHOLD = 0.5
LEAKY_SLOPE = 0.01

BATCH = 2
NUM_SAMPLES = 315               # -> 46 center-padded STFT frames


# ----------------------------- helpers ---------------------------------------
def _const_spec(shape):
    """Full-array block that stays resident across all grid steps."""
    nd = len(shape)
    return pl.BlockSpec(tuple(shape), lambda *_: (0,) * nd)


def _hann_np(n):
    i = np.arange(n, dtype=np.float32)
    return (0.5 - 0.5 * np.cos(2.0 * np.pi * i / n)).astype(np.float32)


def _conv_consts(vp, batch, n_iters, width):
    """Packed constants: msg->freq selector rows + interior mask (one operand).

    Lane q encodes (window i, batch b, padded-freq f, padded-time t) of the
    zero-framed folded layout: q = i*B*Fp*Tp + b*Fp*Tp + f*Tp + t.
    """
    fpad, tpad = WIN_DIM + 2, vp + 2
    blk = fpad * tpad
    data_len = n_iters * batch * blk
    q = np.arange(width)
    r = q % blk
    b = (q // blk) % batch
    f = r // tpad
    t = r % tpad
    interior = (q < data_len) & (f >= 1) & (f <= WIN_DIM) & (t >= 1) & (t <= vp)
    imask = interior.astype(np.float32)[None, :]                   # (1, W)
    sel = np.zeros((batch * WD2, width), np.float32)
    # wm feature value at freq f = fc_out[f % (win_dim//2)]  (the .repeat(...,2,.))
    rows = b * WD2 + (f - 1) % WD2
    sel[rows[interior], q[interior]] = 1.0                         # (B*4, W)
    return np.concatenate([sel, imask], axis=0)                    # (B*4+1, W)


# --------------------------- Pallas kernel ------------------------------------
def fused_embed_kernel(x0_ref, msg_ref, fcbd_ref, consts_ref, wall_ref,
                       ball_ref, out_ref, *, tpad, width, batch):
    """Whole embed pipeline: ENc (2 convs) -> msg FC + selector -> EM (2 convs).

    Layout: every activation is (channels, W) with all watermark windows
    folded onto the lane axis (W = n_iters*B*Fp*Tp padded to a multiple of
    128).  A 3x3 tap of a zero-framed slab is just pltpu.roll by a static lane
    offset, so each conv is 9 accumulated tiny MXU dots — no scratch planes,
    no im2col stores, no misaligned writebacks.
    """
    sel = consts_ref[0:batch * WD2, :]                     # (B*4, W)
    imask = consts_ref[batch * WD2:batch * WD2 + 1, :]     # (1, W)
    x0 = x0_ref[...]                                       # (2, W) framed stft

    def conv(srcs, layer, cout, act, mask):
        # "same" 3x3 conv; channel concat of multiple sources is folded into
        # the weight's cin ranges (srcs = [(value, cin), ...] in concat order).
        acc = None
        for kh in range(3):
            for kw in range(3):
                off = (kh - 1) * tpad + (kw - 1)
                shift = (-off) % width
                w_full = wall_ref[layer * 9 + kh * 3 + kw]  # (8, 11) tap weights
                c0 = 0
                for x, cin in srcs:
                    xs = x if off == 0 else pltpu.roll(x, shift, axis=1)
                    w_tap = w_full[0:cout, c0:c0 + cin]
                    if cin == 1:
                        d = w_tap * xs                      # (cout,1)*(1,W)
                    else:
                        d = jnp.dot(w_tap, xs,
                                    preferred_element_type=jnp.float32)
                    acc = d if acc is None else acc + d
                    c0 += cin
        acc = acc + ball_ref[layer][0:cout, :]              # (cout,1) bias
        if act:
            acc = jnp.where(acc > 0, acc, LEAKY_SLOPE * acc)
        if mask:
            acc = acc * imask       # re-zero halo / lane-pad for the next conv
        return acc                  # (cout, W)

    # ---- Conv2Encoder: conv3x3+LeakyReLU (2 -> 8), conv3x3+LeakyReLU (8 -> 8)
    h = conv([(x0, 2)], 0, HIDDEN_DIM, act=True, mask=True)
    carrier = conv([(h, HIDDEN_DIM)], 1, HIDDEN_DIM, act=True, mask=True)

    # ---- FCBlock (msg_linear_in, bias folded into block-diag weight) +
    #      repeat over freq / broadcast over time via the selector matmul.
    y = jnp.dot(msg_ref[...], fcbd_ref[...],
                preferred_element_type=jnp.float32)         # (1, B*win_dim//2)
    y = jnp.where(y > 0, y, LEAKY_SLOPE * y)
    wm = jnp.dot(y, sel, preferred_element_type=jnp.float32)   # (1, W)

    # ---- WatermarkEmbedder on [carrier | stft | wm] (11 -> 8 -> 2)
    g = conv([(carrier, HIDDEN_DIM), (x0, 2), (wm, 1)], 2, HIDDEN_DIM,
             act=True, mask=True)
    out_ref[...] = conv([(g, HIDDEN_DIM)], 3, 2, act=False, mask=False)


# --------------------------- kernel wrapper -----------------------------------
def fused_watermark_embed(stft_result, msg, params, vp, n_iters):
    """Run the whole ENc/FC/EM pipeline for all n_iters windows in one call."""
    B = stft_result.shape[0]
    F = WIN_DIM
    fpad, tpad = F + 2, vp + 2
    blk = fpad * tpad
    data_len = n_iters * B * blk
    width = ((data_len + 127) // 128) * 128        # lane-dense / aligned slab

    # Gather + zero-frame the overlapping stft windows, folded onto lanes.
    step = FUTURE_AMT + 1
    slices = jnp.stack([stft_result[:, :, :, i * step:i * step + vp]
                        for i in range(n_iters)], axis=0)            # (I,B,2,F,vp)
    sp = jnp.pad(slices, ((0, 0), (0, 0), (0, 0), (1, 1), (1, 1)))   # conv halo
    sp = jnp.transpose(sp, (2, 0, 1, 3, 4)).reshape(2, data_len)
    x0 = jnp.pad(sp, ((0, 0), (0, width - data_len)))                # (2, W)

    # msg path: augment with a ones column so the FC bias folds into the
    # block-diagonal weight -> one (1, B*(M+1)) @ (B*(M+1), B*4) matmul.
    msg2d = msg.reshape(B, MSG_LENGTH).astype(jnp.float32)
    msg_aug = jnp.concatenate([msg2d, jnp.ones((B, 1), jnp.float32)], axis=1)
    msg_flat = msg_aug.reshape(1, B * (MSG_LENGTH + 1))
    fcwb = jnp.concatenate([params["fc_w"], params["fc_b"]], axis=0)  # (9, 4)
    fc_bd = jnp.kron(jnp.eye(B, dtype=jnp.float32), fcwb)             # (B*9, B*4)

    # Packed constants (selector + interior mask) — one operand.
    consts = jnp.asarray(_conv_consts(vp, B, n_iters, width))         # (B*4+1, W)

    # Pack the 4 conv layers' weights/biases into two operands (zero-padded to
    # the max (cout, cin) = (8, 11); padded entries never contribute).
    # NOTE: Conv2Encoder / WatermarkEmbedder internals are not in the provided
    # source; modeled as 2 + 2 stacked 3x3 same-convs (+LeakyReLU except the
    # final EM layer) with the declared channel counts.
    layers = list(params["enc"]) + list(params["em"])
    w_all = jnp.zeros((4 * 9, HIDDEN_DIM, EM_INPUT_DIM), jnp.float32)
    b_all = jnp.zeros((4, HIDDEN_DIM, 1), jnp.float32)
    for l, (w, b) in enumerate(layers):
        cin, cout = w.shape[1], w.shape[2]
        w_all = w_all.at[l * 9:(l + 1) * 9, :cout, :cin].set(
            jnp.transpose(w, (0, 2, 1)))
        b_all = b_all.at[l, :cout, 0].set(b[0])

    conv_dims = [(w.shape[1], w.shape[2]) for w, _ in layers]
    flops = int(sum(2 * 9 * ci * co * width for ci, co in conv_dims)
                + 2 * msg_flat.size * fc_bd.shape[1] + 2 * consts.size)
    bytes_accessed = int(4 * (x0.size + msg_flat.size + fc_bd.size
                              + consts.size + w_all.size + b_all.size
                              + 2 * width))

    kern = functools.partial(fused_embed_kernel, tpad=tpad, width=width,
                             batch=B)
    out = pl.pallas_call(
        kern,
        grid=(1,),
        in_specs=[_const_spec(x0.shape), _const_spec(msg_flat.shape),
                  _const_spec(fc_bd.shape), _const_spec(consts.shape),
                  _const_spec(w_all.shape), _const_spec(b_all.shape)],
        out_specs=_const_spec((2, width)),
        out_shape=jax.ShapeDtypeStruct((2, width), jnp.float32),
        compiler_params=pltpu.CompilerParams(
            dimension_semantics=("arbitrary",)),
        cost_estimate=pl.CostEstimate(flops=flops, transcendentals=0,
                                      bytes_accessed=bytes_accessed),
    )(x0, msg_flat, fc_bd, consts, w_all, b_all)

    # Crop the framed interior -> (B, 2, F, n_iters*vp)  (== the
    # torch.cat(list_of_watermarks, dim=-1) result).
    o = out[:, :data_len].reshape(2, n_iters, B, fpad, tpad)[
        :, :, :, 1:1 + F, 1:1 + vp]
    watermark = jnp.transpose(o, (2, 0, 3, 1, 4)).reshape(B, 2, F, n_iters * vp)
    return watermark


# ------------------------------ STFT glue -------------------------------------
def stft_transform(x):
    """fixed_STFT.transform -> (spect (B,F,T) magnitude, stft_result (B,2,F,T))."""
    B, N = x.shape
    pad = N_FFT // 2
    xp = jnp.pad(x, ((0, 0), (pad, pad)), mode="reflect")
    T = (xp.shape[1] - N_FFT) // HOP_LENGTH + 1
    idx = np.arange(T)[:, None] * HOP_LENGTH + np.arange(N_FFT)[None, :]
    frames = xp[:, idx] * jnp.asarray(_hann_np(WIN_LENGTH))[None, None, :]
    k = np.arange(WIN_DIM, dtype=np.float32)[:, None]
    n = np.arange(N_FFT, dtype=np.float32)[None, :]
    ang = 2.0 * np.pi * k * n / N_FFT
    cos_m = jnp.asarray(np.cos(ang).astype(np.float32))
    sin_m = jnp.asarray(np.sin(ang).astype(np.float32))
    re = jnp.einsum("btn,fn->bft", frames, cos_m)
    im = -jnp.einsum("btn,fn->bft", frames, sin_m)
    spect = jnp.sqrt(re * re + im * im)
    return spect, jnp.stack([re, im], axis=1)


def stft_inverse(mag, phase, num_samples):
    """fixed_STFT.inverse: iSTFT of mag*exp(i*phase); overlap-add via one matmul."""
    B, F, T = mag.shape
    re = mag * jnp.cos(phase)
    im = mag * jnp.sin(phase)
    k = np.arange(WIN_DIM, dtype=np.float32)[:, None]
    n = np.arange(N_FFT, dtype=np.float32)[None, :]
    ang = 2.0 * np.pi * k * n / N_FFT
    coef = np.ones((WIN_DIM, 1), np.float32)
    coef[1:WIN_DIM - 1] = 2.0                       # DC / Nyquist not doubled
    cos_m = jnp.asarray((coef * np.cos(ang)).astype(np.float32))
    sin_m = jnp.asarray((coef * np.sin(ang)).astype(np.float32))
    frames = (jnp.einsum("bft,fn->btn", re, cos_m)
              - jnp.einsum("bft,fn->btn", im, sin_m)) / N_FFT
    win = _hann_np(WIN_LENGTH)
    frames = frames * jnp.asarray(win)[None, None, :]

    out_len = (T - 1) * HOP_LENGTH + N_FFT
    rows = np.arange(T * N_FFT)
    scat = np.zeros((T * N_FFT, out_len), np.float32)
    scat[rows, (rows // N_FFT) * HOP_LENGTH + rows % N_FFT] = 1.0
    y = frames.reshape(B, T * N_FFT) @ jnp.asarray(scat)
    norm = np.tile(win * win, T) @ scat
    norm = np.where(norm > 1e-8, norm, 1.0).astype(np.float32)
    y = y / jnp.asarray(norm)[None, :]
    pad = N_FFT // 2
    return y[:, pad:pad + num_samples]


# ------------------------------ Encoder.forward -------------------------------
def encoder_forward(params, x, msg, global_step=0):
    num_samples = x.shape[-1]
    spect, stft_result = stft_transform(x)                 # (B,F,T), (B,2,F,T)
    B, freq_bin, time_frames = spect.shape

    # Same integer arithmetic as the reference (float floor-div then int()).
    voice_prefilling = int(2.05 * SAMPLING_RATE // HOP_LENGTH + 1)
    max_start = time_frames - (voice_prefilling + FUTURE_AMT)
    if int(max_start / FUTURE_AMT + 1) <= 0:
        return None
    n_iters = int((time_frames - (voice_prefilling + FUTURE_AMT))
                  / (FUTURE_AMT + 1))
    if n_iters <= 0:
        print("Not enough watermarking!!!!")
        return None

    # ---- single fused Pallas kernel over all watermark windows
    watermark = fused_watermark_embed(stft_result, msg, params,
                                      voice_prefilling, n_iters)   # (B,2,F,I*vp)

    # pad_w_zero_stft + exact float-zero mask + double epsilon + mag/phase —
    # plain jnp (fuses with the adjacent pad/arctan2 ops; no extra launch).
    chunk = voice_prefilling + FUTURE_AMT
    right = max(time_frames - watermark.shape[-1] - chunk, 0)
    wm_padded = jnp.pad(watermark, ((0, 0), (0, 0), (0, 0), (chunk, right)))
    mask = (spect[:, None, :, :] != 0.0).astype(jnp.float32)
    all_wm = (wm_padded + EPS) * mask + 1e-7                 # (B,2,F,T)
    mag = jnp.sqrt(all_wm[:, 0] ** 2 + all_wm[:, 1] ** 2)
    phase = jnp.arctan2(all_wm[:, 1], all_wm[:, 0])
    y = stft_inverse(mag, phase, num_samples)

    # TODO(synk): silero VAD (load_silero_vad / vad.audio_forward) has no
    # Pallas/JAX equivalent here; substitute a per-512-sample RMS energy gate.
    n_chunks = -(-num_samples // 512)
    xpad = jnp.pad(x, ((0, 0), (0, n_chunks * 512 - num_samples)))
    chunk_probs = jnp.sqrt(jnp.mean(xpad.reshape(B, n_chunks, 512) ** 2, axis=-1))
    chunk_mask = (chunk_probs > VAD_THRESHOLD).astype(jnp.float32)
    sample_masks = jnp.repeat(chunk_mask, 512, axis=1)[:, :num_samples]
    masked_y = y * sample_masks
    return masked_y, all_wm


# ------------------------------ parameters -------------------------------------
def init_params(key):
    kit = iter(jax.random.split(key, 64))

    def nrm(shape, scale):
        return jax.random.normal(next(kit), shape, jnp.float32) * scale

    params = {
        "fc_w": nrm((MSG_LENGTH, WD2), 1.0 / math.sqrt(MSG_LENGTH)),
        "fc_b": nrm((1, WD2), 0.01),
    }
    enc, cin = [], 2
    for _ in range(LAYERS_CE):
        enc.append((nrm((9, cin, HIDDEN_DIM), 1.0 / math.sqrt(9 * cin)),
                    nrm((1, HIDDEN_DIM), 0.01)))
        cin = HIDDEN_DIM
    params["enc"] = enc
    em, cin = [], EM_INPUT_DIM
    for _ in range(LAYERS_EM - 1):
        em.append((nrm((9, cin, HIDDEN_DIM), 1.0 / math.sqrt(9 * cin)),
                   nrm((1, HIDDEN_DIM), 0.01)))
        cin = HIDDEN_DIM
    em.append((nrm((9, cin, 2), 1.0 / math.sqrt(9 * cin)), nrm((1, 2), 0.01)))
    params["em"] = em
    return params


if __name__ == "__main__":
    key = jax.random.PRNGKey(0)
    kx, km, kp = jax.random.split(key, 3)
    x = jax.random.normal(kx, (BATCH, NUM_SAMPLES), jnp.float32)
    msg = jax.random.uniform(km, (BATCH, 1, MSG_LENGTH), jnp.float32) * 2.0 - 1.0
    params = init_params(kp)

    fwd = jax.jit(lambda p, xx, mm: encoder_forward(p, xx, mm, global_step=0))
    out = fwd(params, x, msg)
    assert out is not None
    masked_y, all_watermark_stft = out
    jax.block_until_ready(masked_y)
    jax.block_until_ready(all_watermark_stft)

    T = NUM_SAMPLES // HOP_LENGTH + 1
    assert masked_y.shape == (BATCH, NUM_SAMPLES)
    assert all_watermark_stft.shape == (BATCH, 2, WIN_DIM, T)
    assert bool(jnp.all(jnp.isfinite(masked_y)))
    assert bool(jnp.all(jnp.isfinite(all_watermark_stft)))
    print("KERNEL_OK")
</pallas_src>

<mosaic_0001>
module attributes {stable_mosaic.version = 11 : i64} {
  func.func @fused_embed_kernel(%arg0: i32, %arg1: memref<2x640xf32, #tpu.memory_space<vmem>>, %arg2: memref<1x18xf32, #tpu.memory_space<vmem>>, %arg3: memref<18x8xf32, #tpu.memory_space<vmem>>, %arg4: memref<9x640xf32, #tpu.memory_space<vmem>>, %arg5: memref<36x8x11xf32, #tpu.memory_space<vmem>>, %arg6: memref<4x8x1xf32, #tpu.memory_space<vmem>>, %arg7: memref<2x640xf32, #tpu.memory_space<vmem>>) attributes {dimension_semantics = [#tpu.dimension_semantics<arbitrary>], iteration_bounds = array<i64: 1>, scalar_prefetch = 0 : i64, scratch_operands = 0 : i64, tpu.core_type = #tpu.core_type<tc>, window_params = [{pipeline_mode = #tpu.pipeline_mode<synchronous>, transform_indices = @transform_0, window_bounds = array<i64: 2, 640>}, {pipeline_mode = #tpu.pipeline_mode<synchronous>, transform_indices = @transform_1, window_bounds = array<i64: 1, 18>}, {pipeline_mode = #tpu.pipeline_mode<synchronous>, transform_indices = @transform_2, window_bounds = array<i64: 18, 8>}, {pipeline_mode = #tpu.pipeline_mode<synchronous>, transform_indices = @transform_3, window_bounds = array<i64: 9, 640>}, {pipeline_mode = #tpu.pipeline_mode<synchronous>, transform_indices = @transform_4, window_bounds = array<i64: 36, 8, 11>}, {pipeline_mode = #tpu.pipeline_mode<synchronous>, transform_indices = @transform_5, window_bounds = array<i64: 4, 8, 1>}, {pipeline_mode = #tpu.pipeline_mode<synchronous>, transform_indices = @transform_6, window_bounds = array<i64: 2, 640>}]} {
    %c0 = arith.constant 0 : index
    %c0_0 = arith.constant 0 : index
    %0 = vector.load %arg4[%c0, %c0_0] : memref<9x640xf32, #tpu.memory_space<vmem>>, vector<8x640xf32>
    %c8 = arith.constant 8 : index
    %c0_1 = arith.constant 0 : index
    %1 = vector.load %arg4[%c8, %c0_1] : memref<9x640xf32, #tpu.memory_space<vmem>>, vector<1x640xf32>
    %c0_2 = arith.constant 0 : index
    %c0_3 = arith.constant 0 : index
    %2 = vector.load %arg1[%c0_2, %c0_3] : memref<2x640xf32, #tpu.memory_space<vmem>>, vector<2x640xf32>
    %c0_4 = arith.constant 0 : index
    %c0_5 = arith.constant 0 : index
    %c0_6 = arith.constant 0 : index
    %3 = vector.load %arg5[%c0_4, %c0_5, %c0_6] : memref<36x8x11xf32, #tpu.memory_space<vmem>>, vector<1x8x11xf32>
    %4 = vector.shape_cast %3 : vector<1x8x11xf32> to vector<8x11xf32>
    %c14_i32 = arith.constant 14 : i32
    %5 = tpu.dynamic_rotate %2 by %c14_i32 dim 1 : vector<2x640xf32>, i32 -> vector<2x640xf32>
    %6 = vector.extract_strided_slice %4 {offsets = [0, 0], sizes = [8, 2], strides = [1, 1]} : vector<8x11xf32> to vector<8x2xf32>
    %cst = arith.constant dense<0.000000e+00> : vector<8x640xf32>
    %7 = tpu.matmul %6, %5, %cst {dimension_numbers = #tpu.dot_dimension_numbers<[1], [0], [0], [1], [0, 0, 1, 1], [], []>} : vector<8x2xf32>, vector<2x640xf32>, vector<8x640xf32> -> vector<8x640xf32>
    %c1 = arith.constant 1 : index
    %c0_7 = arith.constant 0 : index
    %c0_8 = arith.constant 0 : index
    %8 = vector.load %arg5[%c1, %c0_7, %c0_8] : memref<36x8x11xf32, #tpu.memory_space<vmem>>, vector<1x8x11xf32>
    %9 = vector.shape_cast %8 : vector<1x8x11xf32> to vector<8x11xf32>
    %c13_i32 = arith.constant 13 : i32
    %10 = tpu.dynamic_rotate %2 by %c13_i32 dim 1 : vector<2x640xf32>, i32 -> vector<2x640xf32>
    %11 = vector.extract_strided_slice %9 {offsets = [0, 0], sizes = [8, 2], strides = [1, 1]} : vector<8x11xf32> to vector<8x2xf32>
    %cst_9 = arith.constant dense<0.000000e+00> : vector<8x640xf32>
    %12 = tpu.matmul %11, %10, %cst_9 {dimension_numbers = #tpu.dot_dimension_numbers<[1], [0], [0], [1], [0, 0, 1, 1], [], []>} : vector<8x2xf32>, vector<2x640xf32>, vector<8x640xf32> -> vector<8x640xf32>
    %13 = arith.addf %7, %12 : vector<8x640xf32>
    %c2 = arith.constant 2 : index
    %c0_10 = arith.constant 0 : index
    %c0_11 = arith.constant 0 : index
    %14 = vector.load %arg5[%c2, %c0_10, %c0_11] : memref<36x8x11xf32, #tpu.memory_space<vmem>>, vector<1x8x11xf32>
    %15 = vector.shape_cast %14 : vector<1x8x11xf32> to vector<8x11xf32>
    %c12_i32 = arith.constant 12 : i32
    %16 = tpu.dynamic_rotate %2 by %c12_i32 dim 1 : vector<2x640xf32>, i32 -> vector<2x640xf32>
    %17 = vector.extract_strided_slice %15 {offsets = [0, 0], sizes = [8, 2], strides = [1, 1]} : vector<8x11xf32> to vector<8x2xf32>
    %cst_12 = arith.constant dense<0.000000e+00> : vector<8x640xf32>
    %18 = tpu.matmul %17, %16, %cst_12 {dimension_numbers = #tpu.dot_dimension_numbers<[1], [0], [0], [1], [0, 0, 1, 1], [], []>} : vector<8x2xf32>, vector<2x640xf32>, vector<8x640xf32> -> vector<8x640xf32>
    %19 = arith.addf %13, %18 : vector<8x640xf32>
    %c3 = arith.constant 3 : index
    %c0_13 = arith.constant 0 : index
    %c0_14 = arith.constant 0 : index
    %20 = vector.load %arg5[%c3, %c0_13, %c0_14] : memref<36x8x11xf32, #tpu.memory_space<vmem>>, vector<1x8x11xf32>
    %21 = vector.shape_cast %20 : vector<1x8x11xf32> to vector<8x11xf32>
    %c1_i32 = arith.constant 1 : i32
    %22 = tpu.dynamic_rotate %2 by %c1_i32 dim 1 : vector<2x640xf32>, i32 -> vector<2x640xf32>
    %23 = vector.extract_strided_slice %21 {offsets = [0, 0], sizes = [8, 2], strides = [1, 1]} : vector<8x11xf32> to vector<8x2xf32>
    %cst_15 = arith.constant dense<0.000000e+00> : vector<8x640xf32>
    %24 = tpu.matmul %23, %22, %cst_15 {dimension_numbers = #tpu.dot_dimension_numbers<[1], [0], [0], [1], [0, 0, 1, 1], [], []>} : vector<8x2xf32>, vector<2x640xf32>, vector<8x640xf32> -> vector<8x640xf32>
    %25 = arith.addf %19, %24 : vector<8x640xf32>
    %c4 = arith.constant 4 : index
    %c0_16 = arith.constant 0 : index
    %c0_17 = arith.constant 0 : index
    %26 = vector.load %arg5[%c4, %c0_16, %c0_17] : memref<36x8x11xf32, #tpu.memory_space<vmem>>, vector<1x8x11xf32>
    %27 = vector.shape_cast %26 : vector<1x8x11xf32> to vector<8x11xf32>
    %28 = vector.extract_strided_slice %27 {offsets = [0, 0], sizes = [8, 2], strides = [1, 1]} : vector<8x11xf32> to vector<8x2xf32>
    %cst_18 = arith.constant dense<0.000000e+00> : vector<8x640xf32>
    %29 = tpu.matmul %28, %2, %cst_18 {dimension_numbers = #tpu.dot_dimension_numbers<[1], [0], [0], [1], [0, 0, 1, 1], [], []>} : vector<8x2xf32>, vector<2x640xf32>, vector<8x640xf32> -> vector<8x640xf32>
    %30 = arith.addf %25, %29 : vector<8x640xf32>
    %c5 = arith.constant 5 : index
    %c0_19 = arith.constant 0 : index
    %c0_20 = arith.constant 0 : index
    %31 = vector.load %arg5[%c5, %c0_19, %c0_20] : memref<36x8x11xf32, #tpu.memory_space<vmem>>, vector<1x8x11xf32>
    %32 = vector.shape_cast %31 : vector<1x8x11xf32> to vector<8x11xf32>
    %c639_i32 = arith.constant 639 : i32
    %33 = tpu.dynamic_rotate %2 by %c639_i32 dim 1 : vector<2x640xf32>, i32 -> vector<2x640xf32>
    %34 = vector.extract_strided_slice %32 {offsets = [0, 0], sizes = [8, 2], strides = [1, 1]} : vector<8x11xf32> to vector<8x2xf32>
    %cst_21 = arith.constant dense<0.000000e+00> : vector<8x640xf32>
    %35 = tpu.matmul %34, %33, %cst_21 {dimension_numbers = #tpu.dot_dimension_numbers<[1], [0], [0], [1], [0, 0, 1, 1], [], []>} : vector<8x2xf32>, vector<2x640xf32>, vector<8x640xf32> -> vector<8x640xf32>
    %36 = arith.addf %30, %35 : vector<8x640xf32>
    %c6 = arith.constant 6 : index
    %c0_22 = arith.constant 0 : index
    %c0_23 = arith.constant 0 : index
    %37 = vector.load %arg5[%c6, %c0_22, %c0_23] : memref<36x8x11xf32, #tpu.memory_space<vmem>>, vector<1x8x11xf32>
    %38 = vector.shape_cast %37 : vector<1x8x11xf32> to vector<8x11xf32>
    %c628_i32 = arith.constant 628 : i32
    %39 = tpu.dynamic_rotate %2 by %c628_i32 dim 1 : vector<2x640xf32>, i32 -> vector<2x640xf32>
    %40 = vector.extract_strided_slice %38 {offsets = [0, 0], sizes = [8, 2], strides = [1, 1]} : vector<8x11xf32> to vector<8x2xf32>
    %cst_24 = arith.constant dense<0.000000e+00> : vector<8x640xf32>
    %41 = tpu.matmul %40, %39, %cst_24 {dimension_numbers = #tpu.dot_dimension_numbers<[1], [0], [0], [1], [0, 0, 1, 1], [], []>} : vector<8x2xf32>, vector<2x640xf32>, vector<8x640xf32> -> vector<8x640xf32>
    %42 = arith.addf %36, %41 : vector<8x640xf32>
    %c7 = arith.constant 7 : index
    %c0_25 = arith.constant 0 : index
    %c0_26 = arith.constant 0 : index
    %43 = vector.load %arg5[%c7, %c0_25, %c0_26] : memref<36x8x11xf32, #tpu.memory_space<vmem>>, vector<1x8x11xf32>
    %44 = vector.shape_cast %43 : vector<1x8x11xf32> to vector<8x11xf32>
    %c627_i32 = arith.constant 627 : i32
    %45 = tpu.dynamic_rotate %2 by %c627_i32 dim 1 : vector<2x640xf32>, i32 -> vector<2x640xf32>
    %46 = vector.extract_strided_slice %44 {offsets = [0, 0], sizes = [8, 2], strides = [1, 1]} : vector<8x11xf32> to vector<8x2xf32>
    %cst_27 = arith.constant dense<0.000000e+00> : vector<8x640xf32>
    %47 = tpu.matmul %46, %45, %cst_27 {dimension_numbers = #tpu.dot_dimension_numbers<[1], [0], [0], [1], [0, 0, 1, 1], [], []>} : vector<8x2xf32>, vector<2x640xf32>, vector<8x640xf32> -> vector<8x640xf32>
    %48 = arith.addf %42, %47 : vector<8x640xf32>
    %c8_28 = arith.constant 8 : index
    %c0_29 = arith.constant 0 : index
    %c0_30 = arith.constant 0 : index
    %49 = vector.load %arg5[%c8_28, %c0_29, %c0_30] : memref<36x8x11xf32, #tpu.memory_space<vmem>>, vector<1x8x11xf32>
    %50 = vector.shape_cast %49 : vector<1x8x11xf32> to vector<8x11xf32>
    %c626_i32 = arith.constant 626 : i32
    %51 = tpu.dynamic_rotate %2 by %c626_i32 dim 1 : vector<2x640xf32>, i32 -> vector<2x640xf32>
    %52 = vector.extract_strided_slice %50 {offsets = [0, 0], sizes = [8, 2], strides = [1, 1]} : vector<8x11xf32> to vector<8x2xf32>
    %cst_31 = arith.constant dense<0.000000e+00> : vector<8x640xf32>
    %53 = tpu.matmul %52, %51, %cst_31 {dimension_numbers = #tpu.dot_dimension_numbers<[1], [0], [0], [1], [0, 0, 1, 1], [], []>} : vector<8x2xf32>, vector<2x640xf32>, vector<8x640xf32> -> vector<8x640xf32>
    %54 = arith.addf %48, %53 : vector<8x640xf32>
    %c0_32 = arith.constant 0 : index
    %c0_33 = arith.constant 0 : index
    %c0_34 = arith.constant 0 : index
    %55 = vector.load %arg6[%c0_32, %c0_33, %c0_34] : memref<4x8x1xf32, #tpu.memory_space<vmem>>, vector<1x8x1xf32>
    %56 = vector.shape_cast %55 : vector<1x8x1xf32> to vector<8x1xf32>
    %57 = vector.broadcast %56 : vector<8x1xf32> to vector<8x640xf32>
    %58 = arith.addf %54, %57 : vector<8x640xf32>
    %cst_35 = arith.constant 0.000000e+00 : f32
    %59 = vector.broadcast %cst_35 : f32 to vector<8x640xf32>
    %60 = arith.cmpf ogt, %58, %59 : vector<8x640xf32>
    %cst_36 = arith.constant 0.00999999977 : f32
    %61 = vector.broadcast %cst_36 : f32 to vector<8x640xf32>
    %62 = arith.mulf %61, %58 : vector<8x640xf32>
    %63 = arith.select %60, %58, %62 : vector<8x640xi1>, vector<8x640xf32>
    %64 = vector.broadcast %1 : vector<1x640xf32> to vector<8x640xf32>
    %65 = arith.mulf %63, %64 : vector<8x640xf32>
    %c9 = arith.constant 9 : index
    %c0_37 = arith.constant 0 : index
    %c0_38 = arith.constant 0 : index
    %66 = vector.load %arg5[%c9, %c0_37, %c0_38] : memref<36x8x11xf32, #tpu.memory_space<vmem>>, vector<1x8x11xf32>
    %67 = vector.shape_cast %66 : vector<1x8x11xf32> to vector<8x11xf32>
    %c14_i32_39 = arith.constant 14 : i32
    %68 = tpu.dynamic_rotate %65 by %c14_i32_39 dim 1 : vector<8x640xf32>, i32 -> vector<8x640xf32>
    %69 = vector.extract_strided_slice %67 {offsets = [0, 0], sizes = [8, 8], strides = [1, 1]} : vector<8x11xf32> to vector<8x8xf32>
    %cst_40 = arith.constant dense<0.000000e+00> : vector<8x640xf32>
    %70 = tpu.matmul %69, %68, %cst_40 {dimension_numbers = #tpu.dot_dimension_numbers<[1], [0], [0], [1], [0, 0, 1, 1], [], []>} : vector<8x8xf32>, vector<8x640xf32>, vector<8x640xf32> -> vector<8x640xf32>
    %c10 = arith.constant 10 : index
    %c0_41 = arith.constant 0 : index
    %c0_42 = arith.constant 0 : index
    %71 = vector.load %arg5[%c10, %c0_41, %c0_42] : memref<36x8x11xf32, #tpu.memory_space<vmem>>, vector<1x8x11xf32>
    %72 = vector.shape_cast %71 : vector<1x8x11xf32> to vector<8x11xf32>
    %c13_i32_43 = arith.constant 13 : i32
    %73 = tpu.dynamic_rotate %65 by %c13_i32_43 dim 1 : vector<8x640xf32>, i32 -> vector<8x640xf32>
    %74 = vector.extract_strided_slice %72 {offsets = [0, 0], sizes = [8, 8], strides = [1, 1]} : vector<8x11xf32> to vector<8x8xf32>
    %cst_44 = arith.constant dense<0.000000e+00> : vector<8x640xf32>
    %75 = tpu.matmul %74, %73, %cst_44 {dimension_numbers = #tpu.dot_dimension_numbers<[1], [0], [0], [1], [0, 0, 1, 1], [], []>} : vector<8x8xf32>, vector<8x640xf32>, vector<8x640xf32> -> vector<8x640xf32>
    %76 = arith.addf %70, %75 : vector<8x640xf32>
    %c11 = arith.constant 11 : index
    %c0_45 = arith.constant 0 : index
    %c0_46 = arith.constant 0 : index
    %77 = vector.load %arg5[%c11, %c0_45, %c0_46] : memref<36x8x11xf32, #tpu.memory_space<vmem>>, vector<1x8x11xf32>
    %78 = vector.shape_cast %77 : vector<1x8x11xf32> to vector<8x11xf32>
    %c12_i32_47 = arith.constant 12 : i32
    %79 = tpu.dynamic_rotate %65 by %c12_i32_47 dim 1 : vector<8x640xf32>, i32 -> vector<8x640xf32>
    %80 = vector.extract_strided_slice %78 {offsets = [0, 0], sizes = [8, 8], strides = [1, 1]} : vector<8x11xf32> to vector<8x8xf32>
    %cst_48 = arith.constant dense<0.000000e+00> : vector<8x640xf32>
    %81 = tpu.matmul %80, %79, %cst_48 {dimension_numbers = #tpu.dot_dimension_numbers<[1], [0], [0], [1], [0, 0, 1, 1], [], []>} : vector<8x8xf32>, vector<8x640xf32>, vector<8x640xf32> -> vector<8x640xf32>
    %82 = arith.addf %76, %81 : vector<8x640xf32>
    %c12 = arith.constant 12 : index
    %c0_49 = arith.constant 0 : index
    %c0_50 = arith.constant 0 : index
    %83 = vector.load %arg5[%c12, %c0_49, %c0_50] : memref<36x8x11xf32, #tpu.memory_space<vmem>>, vector<1x8x11xf32>
    %84 = vector.shape_cast %83 : vector<1x8x11xf32> to vector<8x11xf32>
    %c1_i32_51 = arith.constant 1 : i32
    %85 = tpu.dynamic_rotate %65 by %c1_i32_51 dim 1 : vector<8x640xf32>, i32 -> vector<8x640xf32>
    %86 = vector.extract_strided_slice %84 {offsets = [0, 0], sizes = [8, 8], strides = [1, 1]} : vector<8x11xf32> to vector<8x8xf32>
    %cst_52 = arith.constant dense<0.000000e+00> : vector<8x640xf32>
    %87 = tpu.matmul %86, %85, %cst_52 {dimension_numbers = #tpu.dot_dimension_numbers<[1], [0], [0], [1], [0, 0, 1, 1], [], []>} : vector<8x8xf32>, vector<8x640xf32>, vector<8x640xf32> -> vector<8x640xf32>
    %88 = arith.addf %82, %87 : vector<8x640xf32>
    %c13 = arith.constant 13 : index
    %c0_53 = arith.constant 0 : index
    %c0_54 = arith.constant 0 : index
    %89 = vector.load %arg5[%c13, %c0_53, %c0_54] : memref<36x8x11xf32, #tpu.memory_space<vmem>>, vector<1x8x11xf32>
    %90 = vector.shape_cast %89 : vector<1x8x11xf32> to vector<8x11xf32>
    %91 = vector.extract_strided_slice %90 {offsets = [0, 0], sizes = [8, 8], strides = [1, 1]} : vector<8x11xf32> to vector<8x8xf32>
    %cst_55 = arith.constant dense<0.000000e+00> : vector<8x640xf32>
    %92 = tpu.matmul %91, %65, %cst_55 {dimension_numbers = #tpu.dot_dimension_numbers<[1], [0], [0], [1], [0, 0, 1, 1], [], []>} : vector<8x8xf32>, vector<8x640xf32>, vector<8x640xf32> -> vector<8x640xf32>
    %93 = arith.addf %88, %92 : vector<8x640xf32>
    %c14 = arith.constant 14 : index
    %c0_56 = arith.constant 0 : index
    %c0_57 = arith.constant 0 : index
    %94 = vector.load %arg5[%c14, %c0_56, %c0_57] : memref<36x8x11xf32, #tpu.memory_space<vmem>>, vector<1x8x11xf32>
    %95 = vector.shape_cast %94 : vector<1x8x11xf32> to vector<8x11xf32>
    %c639_i32_58 = arith.constant 639 : i32
    %96 = tpu.dynamic_rotate %65 by %c639_i32_58 dim 1 : vector<8x640xf32>, i32 -> vector<8x640xf32>
    %97 = vector.extract_strided_slice %95 {offsets = [0, 0], sizes = [8, 8], strides = [1, 1]} : vector<8x11xf32> to vector<8x8xf32>
    %cst_59 = arith.constant dense<0.000000e+00> : vector<8x640xf32>
    %98 = tpu.matmul %97, %96, %cst_59 {dimension_numbers = #tpu.dot_dimension_numbers<[1], [0], [0], [1], [0, 0, 1, 1], [], []>} : vector<8x8xf32>, vector<8x640xf32>, vector<8x640xf32> -> vector<8x640xf32>
    %99 = arith.addf %93, %98 : vector<8x640xf32>
    %c15 = arith.constant 15 : index
    %c0_60 = arith.constant 0 : index
    %c0_61 = arith.constant 0 : index
    %100 = vector.load %arg5[%c15, %c0_60, %c0_61] : memref<36x8x11xf32, #tpu.memory_space<vmem>>, vector<1x8x11xf32>
    %101 = vector.shape_cast %100 : vector<1x8x11xf32> to vector<8x11xf32>
    %c628_i32_62 = arith.constant 628 : i32
    %102 = tpu.dynamic_rotate %65 by %c628_i32_62 dim 1 : vector<8x640xf32>, i32 -> vector<8x640xf32>
    %103 = vector.extract_strided_slice %101 {offsets = [0, 0], sizes = [8, 8], strides = [1, 1]} : vector<8x11xf32> to vector<8x8xf32>
    %cst_63 = arith.constant dense<0.000000e+00> : vector<8x640xf32>
    %104 = tpu.matmul %103, %102, %cst_63 {dimension_numbers = #tpu.dot_dimension_numbers<[1], [0], [0], [1], [0, 0, 1, 1], [], []>} : vector<8x8xf32>, vector<8x640xf32>, vector<8x640xf32> -> vector<8x640xf32>
    %105 = arith.addf %99, %104 : vector<8x640xf32>
    %c16 = arith.constant 16 : index
    %c0_64 = arith.constant 0 : index
    %c0_65 = arith.constant 0 : index
    %106 = vector.load %arg5[%c16, %c0_64, %c0_65] : memref<36x8x11xf32, #tpu.memory_space<vmem>>, vector<1x8x11xf32>
    %107 = vector.shape_cast %106 : vector<1x8x11xf32> to vector<8x11xf32>
    %c627_i32_66 = arith.constant 627 : i32
    %108 = tpu.dynamic_rotate %65 by %c627_i32_66 dim 1 : vector<8x640xf32>, i32 -> vector<8x640xf32>
    %109 = vector.extract_strided_slice %107 {offsets = [0, 0], sizes = [8, 8], strides = [1, 1]} : vector<8x11xf32> to vector<8x8xf32>
    %cst_67 = arith.constant dense<0.000000e+00> : vector<8x640xf32>
    %110 = tpu.matmul %109, %108, %cst_67 {dimension_numbers = #tpu.dot_dimension_numbers<[1], [0], [0], [1], [0, 0, 1, 1], [], []>} : vector<8x8xf32>, vector<8x640xf32>, vector<8x640xf32> -> vector<8x640xf32>
    %111 = arith.addf %105, %110 : vector<8x640xf32>
    %c17 = arith.constant 17 : index
    %c0_68 = arith.constant 0 : index
    %c0_69 = arith.constant 0 : index
    %112 = vector.load %arg5[%c17, %c0_68, %c0_69] : memref<36x8x11xf32, #tpu.memory_space<vmem>>, vector<1x8x11xf32>
    %113 = vector.shape_cast %112 : vector<1x8x11xf32> to vector<8x11xf32>
    %c626_i32_70 = arith.constant 626 : i32
    %114 = tpu.dynamic_rotate %65 by %c626_i32_70 dim 1 : vector<8x640xf32>, i32 -> vector<8x640xf32>
    %115 = vector.extract_strided_slice %113 {offsets = [0, 0], sizes = [8, 8], strides = [1, 1]} : vector<8x11xf32> to vector<8x8xf32>
    %cst_71 = arith.constant dense<0.000000e+00> : vector<8x640xf32>
    %116 = tpu.matmul %115, %114, %cst_71 {dimension_numbers = #tpu.dot_dimension_numbers<[1], [0], [0], [1], [0, 0, 1, 1], [], []>} : vector<8x8xf32>, vector<8x640xf32>, vector<8x640xf32> -> vector<8x640xf32>
    %117 = arith.addf %111, %116 : vector<8x640xf32>
    %c1_72 = arith.constant 1 : index
    %c0_73 = arith.constant 0 : index
    %c0_74 = arith.constant 0 : index
    %118 = vector.load %arg6[%c1_72, %c0_73, %c0_74] : memref<4x8x1xf32, #tpu.memory_space<vmem>>, vector<1x8x1xf32>
    %119 = vector.shape_cast %118 : vector<1x8x1xf32> to vector<8x1xf32>
    %120 = vector.broadcast %119 : vector<8x1xf32> to vector<8x640xf32>
    %121 = arith.addf %117, %120 : vector<8x640xf32>
    %cst_75 = arith.constant 0.000000e+00 : f32
    %122 = vector.broadcast %cst_75 : f32 to vector<8x640xf32>
    %123 = arith.cmpf ogt, %121, %122 : vector<8x640xf32>
    %cst_76 = arith.constant 0.00999999977 : f32
    %124 = vector.broadcast %cst_76 : f32 to vector<8x640xf32>
    %125 = arith.mulf %124, %121 : vector<8x640xf32>
    %126 = arith.select %123, %121, %125 : vector<8x640xi1>, vector<8x640xf32>
    %127 = vector.broadcast %1 : vector<1x640xf32> to vector<8x640xf32>
    %128 = arith.mulf %126, %127 : vector<8x640xf32>
    %c0_77 = arith.constant 0 : index
    %c0_78 = arith.constant 0 : index
    %129 = vector.load %arg2[%c0_77, %c0_78] : memref<1x18xf32, #tpu.memory_space<vmem>>, vector<1x18xf32>
    %c0_79 = arith.constant 0 : index
    %c0_80 = arith.constant 0 : index
    %130 = vector.load %arg3[%c0_79, %c0_80] : memref<18x8xf32, #tpu.memory_space<vmem>>, vector<18x8xf32>
    %cst_81 = arith.constant dense<0.000000e+00> : vector<1x8xf32>
    %131 = tpu.matmul %129, %130, %cst_81 {dimension_numbers = #tpu.dot_dimension_numbers<[1], [0], [0], [1], [0, 0, 1, 1], [], []>} : vector<1x18xf32>, vector<18x8xf32>, vector<1x8xf32> -> vector<1x8xf32>
    %cst_82 = arith.constant 0.000000e+00 : f32
    %132 = vector.broadcast %cst_82 : f32 to vector<1x8xf32>
    %133 = arith.cmpf ogt, %131, %132 : vector<1x8xf32>
    %cst_83 = arith.constant 0.00999999977 : f32
    %134 = vector.broadcast %cst_83 : f32 to vector<1x8xf32>
    %135 = arith.mulf %134, %131 : vector<1x8xf32>
    %136 = arith.select %133, %131, %135 : vector<1x8xi1>, vector<1x8xf32>
    %cst_84 = arith.constant dense<0.000000e+00> : vector<1x640xf32>
    %137 = tpu.matmul %136, %0, %cst_84 {dimension_numbers = #tpu.dot_dimension_numbers<[1], [0], [0], [1], [0, 0, 1, 1], [], []>} : vector<1x8xf32>, vector<8x640xf32>, vector<1x640xf32> -> vector<1x640xf32>
    %c18 = arith.constant 18 : index
    %c0_85 = arith.constant 0 : index
    %c0_86 = arith.constant 0 : index
    %138 = vector.load %arg5[%c18, %c0_85, %c0_86] : memref<36x8x11xf32, #tpu.memory_space<vmem>>, vector<1x8x11xf32>
    %139 = vector.shape_cast %138 : vector<1x8x11xf32> to vector<8x11xf32>
    %c14_i32_87 = arith.constant 14 : i32
    %140 = tpu.dynamic_rotate %128 by %c14_i32_87 dim 1 : vector<8x640xf32>, i32 -> vector<8x640xf32>
    %141 = vector.extract_strided_slice %139 {offsets = [0, 0], sizes = [8, 8], strides = [1, 1]} : vector<8x11xf32> to vector<8x8xf32>
    %cst_88 = arith.constant dense<0.000000e+00> : vector<8x640xf32>
    %142 = tpu.matmul %141, %140, %cst_88 {dimension_numbers = #tpu.dot_dimension_numbers<[1], [0], [0], [1], [0, 0, 1, 1], [], []>} : vector<8x8xf32>, vector<8x640xf32>, vector<8x640xf32> -> vector<8x640xf32>
    %c14_i32_89 = arith.constant 14 : i32
    %143 = tpu.dynamic_rotate %2 by %c14_i32_89 dim 1 : vector<2x640xf32>, i32 -> vector<2x640xf32>
    %144 = vector.extract_strided_slice %139 {offsets = [0, 8], sizes = [8, 2], strides = [1, 1]} : vector<8x11xf32> to vector<8x2xf32>
    %cst_90 = arith.constant dense<0.000000e+00> : vector<8x640xf32>
    %145 = tpu.matmul %144, %143, %cst_90 {dimension_numbers = #tpu.dot_dimension_numbers<[1], [0], [0], [1], [0, 0, 1, 1], [], []>} : vector<8x2xf32>, vector<2x640xf32>, vector<8x640xf32> -> vector<8x640xf32>
    %146 = arith.addf %142, %145 : vector<8x640xf32>
    %c14_i32_91 = arith.constant 14 : i32
    %147 = tpu.dynamic_rotate %137 by %c14_i32_91 dim 1 : vector<1x640xf32>, i32 -> vector<1x640xf32>
    %148 = vector.extract_strided_slice %139 {offsets = [0, 10], sizes = [8, 1], strides = [1, 1]} : vector<8x11xf32> to vector<8x1xf32>
    %149 = vector.broadcast %148 : vector<8x1xf32> to vector<8x640xf32>
    %150 = vector.broadcast %147 : vector<1x640xf32> to vector<8x640xf32>
    %151 = arith.mulf %149, %150 : vector<8x640xf32>
    %152 = arith.addf %146, %151 : vector<8x640xf32>
    %c19 = arith.constant 19 : index
    %c0_92 = arith.constant 0 : index
    %c0_93 = arith.constant 0 : index
    %153 = vector.load %arg5[%c19, %c0_92, %c0_93] : memref<36x8x11xf32, #tpu.memory_space<vmem>>, vector<1x8x11xf32>
    %154 = vector.shape_cast %153 : vector<1x8x11xf32> to vector<8x11xf32>
    %c13_i32_94 = arith.constant 13 : i32
    %155 = tpu.dynamic_rotate %128 by %c13_i32_94 dim 1 : vector<8x640xf32>, i32 -> vector<8x640xf32>
    %156 = vector.extract_strided_slice %154 {offsets = [0, 0], sizes = [8, 8], strides = [1, 1]} : vector<8x11xf32> to vector<8x8xf32>
    %cst_95 = arith.constant dense<0.000000e+00> : vector<8x640xf32>
    %157 = tpu.matmul %156, %155, %cst_95 {dimension_numbers = #tpu.dot_dimension_numbers<[1], [0], [0], [1], [0, 0, 1, 1], [], []>} : vector<8x8xf32>, vector<8x640xf32>, vector<8x640xf32> -> vector<8x640xf32>
    %158 = arith.addf %152, %157 : vector<8x640xf32>
    %c13_i32_96 = arith.constant 13 : i32
    %159 = tpu.dynamic_rotate %2 by %c13_i32_96 dim 1 : vector<2x640xf32>, i32 -> vector<2x640xf32>
    %160 = vector.extract_strided_slice %154 {offsets = [0, 8], sizes = [8, 2], strides = [1, 1]} : vector<8x11xf32> to vector<8x2xf32>
    %cst_97 = arith.constant dense<0.000000e+00> : vector<8x640xf32>
    %161 = tpu.matmul %160, %159, %cst_97 {dimension_numbers = #tpu.dot_dimension_numbers<[1], [0], [0], [1], [0, 0, 1, 1], [], []>} : vector<8x2xf32>, vector<2x640xf32>, vector<8x640xf32> -> vector<8x640xf32>
    %162 = arith.addf %158, %161 : vector<8x640xf32>
    %c13_i32_98 = arith.constant 13 : i32
    %163 = tpu.dynamic_rotate %137 by %c13_i32_98 dim 1 : vector<1x640xf32>, i32 -> vector<1x640xf32>
    %164 = vector.extract_strided_slice %154 {offsets = [0, 10], sizes = [8, 1], strides = [1, 1]} : vector<8x11xf32> to vector<8x1xf32>
    %165 = vector.broadcast %164 : vector<8x1xf32> to vector<8x640xf32>
    %166 = vector.broadcast %163 : vector<1x640xf32> to vector<8x640xf32>
    %167 = arith.mulf %165, %166 : vector<8x640xf32>
    %168 = arith.addf %162, %167 : vector<8x640xf32>
    %c20 = arith.constant 20 : index
    %c0_99 = arith.constant 0 : index
    %c0_100 = arith.constant 0 : index
    %169 = vector.load %arg5[%c20, %c0_99, %c0_100] : memref<36x8x11xf32, #tpu.memory_space<vmem>>, vector<1x8x11xf32>
    %170 = vector.shape_cast %169 : vector<1x8x11xf32> to vector<8x11xf32>
    %c12_i32_101 = arith.constant 12 : i32
    %171 = tpu.dynamic_rotate %128 by %c12_i32_101 dim 1 : vector<8x640xf32>, i32 -> vector<8x640xf32>
    %172 = vector.extract_strided_slice %170 {offsets = [0, 0], sizes = [8, 8], strides = [1, 1]} : vector<8x11xf32> to vector<8x8xf32>
    %cst_102 = arith.constant dense<0.000000e+00> : vector<8x640xf32>
    %173 = tpu.matmul %172, %171, %cst_102 {dimension_numbers = #tpu.dot_dimension_numbers<[1], [0], [0], [1], [0, 0, 1, 1], [], []>} : vector<8x8xf32>, vector<8x640xf32>, vector<8x640xf32> -> vector<8x640xf32>
    %174 = arith.addf %168, %173 : vector<8x640xf32>
    %c12_i32_103 = arith.constant 12 : i32
    %175 = tpu.dynamic_rotate %2 by %c12_i32_103 dim 1 : vector<2x640xf32>, i32 -> vector<2x640xf32>
    %176 = vector.extract_strided_slice %170 {offsets = [0, 8], sizes = [8, 2], strides = [1, 1]} : vector<8x11xf32> to vector<8x2xf32>
    %cst_104 = arith.constant dense<0.000000e+00> : vector<8x640xf32>
    %177 = tpu.matmul %176, %175, %cst_104 {dimension_numbers = #tpu.dot_dimension_numbers<[1], [0], [0], [1], [0, 0, 1, 1], [], []>} : vector<8x2xf32>, vector<2x640xf32>, vector<8x640xf32> -> vector<8x640xf32>
    %178 = arith.addf %174, %177 : vector<8x640xf32>
    %c12_i32_105 = arith.constant 12 : i32
    %179 = tpu.dynamic_rotate %137 by %c12_i32_105 dim 1 : vector<1x640xf32>, i32 -> vector<1x640xf32>
    %180 = vector.extract_strided_slice %170 {offsets = [0, 10], sizes = [8, 1], strides = [1, 1]} : vector<8x11xf32> to vector<8x1xf32>
    %181 = vector.broadcast %180 : vector<8x1xf32> to vector<8x640xf32>
    %182 = vector.broadcast %179 : vector<1x640xf32> to vector<8x640xf32>
    %183 = arith.mulf %181, %182 : vector<8x640xf32>
    %184 = arith.addf %178, %183 : vector<8x640xf32>
    %c21 = arith.constant 21 : index
    %c0_106 = arith.constant 0 : index
    %c0_107 = arith.constant 0 : index
    %185 = vector.load %arg5[%c21, %c0_106, %c0_107] : memref<36x8x11xf32, #tpu.memory_space<vmem>>, vector<1x8x11xf32>
    %186 = vector.shape_cast %185 : vector<1x8x11xf32> to vector<8x11xf32>
    %c1_i32_108 = arith.constant 1 : i32
    %187 = tpu.dynamic_rotate %128 by %c1_i32_108 dim 1 : vector<8x640xf32>, i32 -> vector<8x640xf32>
    %188 = vector.extract_strided_slice %186 {offsets = [0, 0], sizes = [8, 8], strides = [1, 1]} : vector<8x11xf32> to vector<8x8xf32>
    %cst_109 = arith.constant dense<0.000000e+00> : vector<8x640xf32>
    %189 = tpu.matmul %188, %187, %cst_109 {dimension_numbers = #tpu.dot_dimension_numbers<[1], [0], [0], [1], [0, 0, 1, 1], [], []>} : vector<8x8xf32>, vector<8x640xf32>, vector<8x640xf32> -> vector<8x640xf32>
    %190 = arith.addf %184, %189 : vector<8x640xf32>
    %c1_i32_110 = arith.constant 1 : i32
    %191 = tpu.dynamic_rotate %2 by %c1_i32_110 dim 1 : vector<2x640xf32>, i32 -> vector<2x640xf32>
    %192 = vector.extract_strided_slice %186 {offsets = [0, 8], sizes = [8, 2], strides = [1, 1]} : vector<8x11xf32> to vector<8x2xf32>
    %cst_111 = arith.constant dense<0.000000e+00> : vector<8x640xf32>
    %193 = tpu.matmul %192, %191, %cst_111 {dimension_numbers = #tpu.dot_dimension_numbers<[1], [0], [0], [1], [0, 0, 1, 1], [], []>} : vector<8x2xf32>, vector<2x640xf32>, vector<8x640xf32> -> vector<8x640xf32>
    %194 = arith.addf %190, %193 : vector<8x640xf32>
    %c1_i32_112 = arith.constant 1 : i32
    %195 = tpu.dynamic_rotate %137 by %c1_i32_112 dim 1 : vector<1x640xf32>, i32 -> vector<1x640xf32>
    %196 = vector.extract_strided_slice %186 {offsets = [0, 10], sizes = [8, 1], strides = [1, 1]} : vector<8x11xf32> to vector<8x1xf32>
    %197 = vector.broadcast %196 : vector<8x1xf32> to vector<8x640xf32>
    %198 = vector.broadcast %195 : vector<1x640xf32> to vector<8x640xf32>
    %199 = arith.mulf %197, %198 : vector<8x640xf32>
    %200 = arith.addf %194, %199 : vector<8x640xf32>
    %c22 = arith.constant 22 : index
    %c0_113 = arith.constant 0 : index
    %c0_114 = arith.constant 0 : index
    %201 = vector.load %arg5[%c22, %c0_113, %c0_114] : memref<36x8x11xf32, #tpu.memory_space<vmem>>, vector<1x8x11xf32>
    %202 = vector.shape_cast %201 : vector<1x8x11xf32> to vector<8x11xf32>
    %203 = vector.extract_strided_slice %202 {offsets = [0, 0], sizes = [8, 8], strides = [1, 1]} : vector<8x11xf32> to vector<8x8xf32>
    %cst_115 = arith.constant dense<0.000000e+00> : vector<8x640xf32>
    %204 = tpu.matmul %203, %128, %cst_115 {dimension_numbers = #tpu.dot_dimension_numbers<[1], [0], [0], [1], [0, 0, 1, 1], [], []>} : vector<8x8xf32>, vector<8x640xf32>, vector<8x640xf32> -> vector<8x640xf32>
    %205 = arith.addf %200, %204 : vector<8x640xf32>
    %206 = vector.extract_strided_slice %202 {offsets = [0, 8], sizes = [8, 2], strides = [1, 1]} : vector<8x11xf32> to vector<8x2xf32>
    %cst_116 = arith.constant dense<0.000000e+00> : vector<8x640xf32>
    %207 = tpu.matmul %206, %2, %cst_116 {dimension_numbers = #tpu.dot_dimension_numbers<[1], [0], [0], [1], [0, 0, 1, 1], [], []>} : vector<8x2xf32>, vector<2x640xf32>, vector<8x640xf32> -> vector<8x640xf32>
    %208 = arith.addf %205, %207 : vector<8x640xf32>
    %209 = vector.extract_strided_slice %202 {offsets = [0, 10], sizes = [8, 1], strides = [1, 1]} : vector<8x11xf32> to vector<8x1xf32>
    %210 = vector.broadcast %209 : vector<8x1xf32> to vector<8x640xf32>
    %211 = vector.broadcast %137 : vector<1x640xf32> to vector<8x640xf32>
    %212 = arith.mulf %210, %211 : vector<8x640xf32>
    %213 = arith.addf %208, %212 : vector<8x640xf32>
    %c23 = arith.constant 23 : index
    %c0_117 = arith.constant 0 : index
    %c0_118 = arith.constant 0 : index
    %214 = vector.load %arg5[%c23, %c0_117, %c0_118] : memref<36x8x11xf32, #tpu.memory_space<vmem>>, vector<1x8x11xf32>
    %215 = vector.shape_cast %214 : vector<1x8x11xf32> to vector<8x11xf32>
    %c639_i32_119 = arith.constant 639 : i32
    %216 = tpu.dynamic_rotate %128 by %c639_i32_119 dim 1 : vector<8x640xf32>, i32 -> vector<8x640xf32>
    %217 = vector.extract_strided_slice %215 {offsets = [0, 0], sizes = [8, 8], strides = [1, 1]} : vector<8x11xf32> to vector<8x8xf32>
    %cst_120 = arith.constant dense<0.000000e+00> : vector<8x640xf32>
    %218 = tpu.matmul %217, %216, %cst_120 {dimension_numbers = #tpu.dot_dimension_numbers<[1], [0], [0], [1], [0, 0, 1, 1], [], []>} : vector<8x8xf32>, vector<8x640xf32>, vector<8x640xf32> -> vector<8x640xf32>
    %219 = arith.addf %213, %218 : vector<8x640xf32>
    %c639_i32_121 = arith.constant 639 : i32
    %220 = tpu.dynamic_rotate %2 by %c639_i32_121 dim 1 : vector<2x640xf32>, i32 -> vector<2x640xf32>
    %221 = vector.extract_strided_slice %215 {offsets = [0, 8], sizes = [8, 2], strides = [1, 1]} : vector<8x11xf32> to vector<8x2xf32>
    %cst_122 = arith.constant dense<0.000000e+00> : vector<8x640xf32>
    %222 = tpu.matmul %221, %220, %cst_122 {dimension_numbers = #tpu.dot_dimension_numbers<[1], [0], [0], [1], [0, 0, 1, 1], [], []>} : vector<8x2xf32>, vector<2x640xf32>, vector<8x640xf32> -> vector<8x640xf32>
    %223 = arith.addf %219, %222 : vector<8x640xf32>
    %c639_i32_123 = arith.constant 639 : i32
    %224 = tpu.dynamic_rotate %137 by %c639_i32_123 dim 1 : vector<1x640xf32>, i32 -> vector<1x640xf32>
    %225 = vector.extract_strided_slice %215 {offsets = [0, 10], sizes = [8, 1], strides = [1, 1]} : vector<8x11xf32> to vector<8x1xf32>
    %226 = vector.broadcast %225 : vector<8x1xf32> to vector<8x640xf32>
    %227 = vector.broadcast %224 : vector<1x640xf32> to vector<8x640xf32>
    %228 = arith.mulf %226, %227 : vector<8x640xf32>
    %229 = arith.addf %223, %228 : vector<8x640xf32>
    %c24 = arith.constant 24 : index
    %c0_124 = arith.constant 0 : index
    %c0_125 = arith.constant 0 : index
    %230 = vector.load %arg5[%c24, %c0_124, %c0_125] : memref<36x8x11xf32, #tpu.memory_space<vmem>>, vector<1x8x11xf32>
    %231 = vector.shape_cast %230 : vector<1x8x11xf32> to vector<8x11xf32>
    %c628_i32_126 = arith.constant 628 : i32
    %232 = tpu.dynamic_rotate %128 by %c628_i32_126 dim 1 : vector<8x640xf32>, i32 -> vector<8x640xf32>
    %233 = vector.extract_strided_slice %231 {offsets = [0, 0], sizes = [8, 8], strides = [1, 1]} : vector<8x11xf32> to vector<8x8xf32>
    %cst_127 = arith.constant dense<0.000000e+00> : vector<8x640xf32>
    %234 = tpu.matmul %233, %232, %cst_127 {dimension_numbers = #tpu.dot_dimension_numbers<[1], [0], [0], [1], [0, 0, 1, 1], [], []>} : vector<8x8xf32>, vector<8x640xf32>, vector<8x640xf32> -> vector<8x640xf32>
    %235 = arith.addf %229, %234 : vector<8x640xf32>
    %c628_i32_128 = arith.constant 628 : i32
    %236 = tpu.dynamic_rotate %2 by %c628_i32_128 dim 1 : vector<2x640xf32>, i32 -> vector<2x640xf32>
    %237 = vector.extract_strided_slice %231 {offsets = [0, 8], sizes = [8, 2], strides = [1, 1]} : vector<8x11xf32> to vector<8x2xf32>
    %cst_129 = arith.constant dense<0.000000e+00> : vector<8x640xf32>
    %238 = tpu.matmul %237, %236, %cst_129 {dimension_numbers = #tpu.dot_dimension_numbers<[1], [0], [0], [1], [0, 0, 1, 1], [], []>} : vector<8x2xf32>, vector<2x640xf32>, vector<8x640xf32> -> vector<8x640xf32>
    %239 = arith.addf %235, %238 : vector<8x640xf32>
    %c628_i32_130 = arith.constant 628 : i32
    %240 = tpu.dynamic_rotate %137 by %c628_i32_130 dim 1 : vector<1x640xf32>, i32 -> vector<1x640xf32>
    %241 = vector.extract_strided_slice %231 {offsets = [0, 10], sizes = [8, 1], strides = [1, 1]} : vector<8x11xf32> to vector<8x1xf32>
    %242 = vector.broadcast %241 : vector<8x1xf32> to vector<8x640xf32>
    %243 = vector.broadcast %240 : vector<1x640xf32> to vector<8x640xf32>
    %244 = arith.mulf %242, %243 : vector<8x640xf32>
    %245 = arith.addf %239, %244 : vector<8x640xf32>
    %c25 = arith.constant 25 : index
    %c0_131 = arith.constant 0 : index
    %c0_132 = arith.constant 0 : index
    %246 = vector.load %arg5[%c25, %c0_131, %c0_132] : memref<36x8x11xf32, #tpu.memory_space<vmem>>, vector<1x8x11xf32>
    %247 = vector.shape_cast %246 : vector<1x8x11xf32> to vector<8x11xf32>
    %c627_i32_133 = arith.constant 627 : i32
    %248 = tpu.dynamic_rotate %128 by %c627_i32_133 dim 1 : vector<8x640xf32>, i32 -> vector<8x640xf32>
    %249 = vector.extract_strided_slice %247 {offsets = [0, 0], sizes = [8, 8], strides = [1, 1]} : vector<8x11xf32> to vector<8x8xf32>
    %cst_134 = arith.constant dense<0.000000e+00> : vector<8x640xf32>
    %250 = tpu.matmul %249, %248, %cst_134 {dimension_numbers = #tpu.dot_dimension_numbers<[1], [0], [0], [1], [0, 0, 1, 1], [], []>} : vector<8x8xf32>, vector<8x640xf32>, vector<8x640xf32> -> vector<8x640xf32>
    %251 = arith.addf %245, %250 : vector<8x640xf32>
    %c627_i32_135 = arith.constant 627 : i32
    %252 = tpu.dynamic_rotate %2 by %c627_i32_135 dim 1 : vector<2x640xf32>, i32 -> vector<2x640xf32>
    %253 = vector.extract_strided_slice %247 {offsets = [0, 8], sizes = [8, 2], strides = [1, 1]} : vector<8x11xf32> to vector<8x2xf32>
    %cst_136 = arith.constant dense<0.000000e+00> : vector<8x640xf32>
    %254 = tpu.matmul %253, %252, %cst_136 {dimension_numbers = #tpu.dot_dimension_numbers<[1], [0], [0], [1], [0, 0, 1, 1], [], []>} : vector<8x2xf32>, vector<2x640xf32>, vector<8x640xf32> -> vector<8x640xf32>
    %255 = arith.addf %251, %254 : vector<8x640xf32>
    %c627_i32_137 = arith.constant 627 : i32
    %256 = tpu.dynamic_rotate %137 by %c627_i32_137 dim 1 : vector<1x640xf32>, i32 -> vector<1x640xf32>
    %257 = vector.extract_strided_slice %247 {offsets = [0, 10], sizes = [8, 1], strides = [1, 1]} : vector<8x11xf32> to vector<8x1xf32>
    %258 = vector.broadcast %257 : vector<8x1xf32> to vector<8x640xf32>
    %259 = vector.broadcast %256 : vector<1x640xf32> to vector<8x640xf32>
    %260 = arith.mulf %258, %259 : vector<8x640xf32>
    %261 = arith.addf %255, %260 : vector<8x640xf32>
    %c26 = arith.constant 26 : index
    %c0_138 = arith.constant 0 : index
    %c0_139 = arith.constant 0 : index
    %262 = vector.load %arg5[%c26, %c0_138, %c0_139] : memref<36x8x11xf32, #tpu.memory_space<vmem>>, vector<1x8x11xf32>
    %263 = vector.shape_cast %262 : vector<1x8x11xf32> to vector<8x11xf32>
    %c626_i32_140 = arith.constant 626 : i32
    %264 = tpu.dynamic_rotate %128 by %c626_i32_140 dim 1 : vector<8x640xf32>, i32 -> vector<8x640xf32>
    %265 = vector.extract_strided_slice %263 {offsets = [0, 0], sizes = [8, 8], strides = [1, 1]} : vector<8x11xf32> to vector<8x8xf32>
    %cst_141 = arith.constant dense<0.000000e+00> : vector<8x640xf32>
    %266 = tpu.matmul %265, %264, %cst_141 {dimension_numbers = #tpu.dot_dimension_numbers<[1], [0], [0], [1], [0, 0, 1, 1], [], []>} : vector<8x8xf32>, vector<8x640xf32>, vector<8x640xf32> -> vector<8x640xf32>
    %267 = arith.addf %261, %266 : vector<8x640xf32>
    %c626_i32_142 = arith.constant 626 : i32
    %268 = tpu.dynamic_rotate %2 by %c626_i32_142 dim 1 : vector<2x640xf32>, i32 -> vector<2x640xf32>
    %269 = vector.extract_strided_slice %263 {offsets = [0, 8], sizes = [8, 2], strides = [1, 1]} : vector<8x11xf32> to vector<8x2xf32>
    %cst_143 = arith.constant dense<0.000000e+00> : vector<8x640xf32>
    %270 = tpu.matmul %269, %268, %cst_143 {dimension_numbers = #tpu.dot_dimension_numbers<[1], [0], [0], [1], [0, 0, 1, 1], [], []>} : vector<8x2xf32>, vector<2x640xf32>, vector<8x640xf32> -> vector<8x640xf32>
    %271 = arith.addf %267, %270 : vector<8x640xf32>
    %c626_i32_144 = arith.constant 626 : i32
    %272 = tpu.dynamic_rotate %137 by %c626_i32_144 dim 1 : vector<1x640xf32>, i32 -> vector<1x640xf32>
    %273 = vector.extract_strided_slice %263 {offsets = [0, 10], sizes = [8, 1], strides = [1, 1]} : vector<8x11xf32> to vector<8x1xf32>
    %274 = vector.broadcast %273 : vector<8x1xf32> to vector<8x640xf32>
    %275 = vector.broadcast %272 : vector<1x640xf32> to vector<8x640xf32>
    %276 = arith.mulf %274, %275 : vector<8x640xf32>
    %277 = arith.addf %271, %276 : vector<8x640xf32>
    %c2_145 = arith.constant 2 : index
    %c0_146 = arith.constant 0 : index
    %c0_147 = arith.constant 0 : index
    %278 = vector.load %arg6[%c2_145, %c0_146, %c0_147] : memref<4x8x1xf32, #tpu.memory_space<vmem>>, vector<1x8x1xf32>
    %279 = vector.shape_cast %278 : vector<1x8x1xf32> to vector<8x1xf32>
    %280 = vector.broadcast %279 : vector<8x1xf32> to vector<8x640xf32>
    %281 = arith.addf %277, %280 : vector<8x640xf32>
    %cst_148 = arith.constant 0.000000e+00 : f32
    %282 = vector.broadcast %cst_148 : f32 to vector<8x640xf32>
    %283 = arith.cmpf ogt, %281, %282 : vector<8x640xf32>
    %cst_149 = arith.constant 0.00999999977 : f32
    %284 = vector.broadcast %cst_149 : f32 to vector<8x640xf32>
    %285 = arith.mulf %284, %281 : vector<8x640xf32>
    %286 = arith.select %283, %281, %285 : vector<8x640xi1>, vector<8x640xf32>
    %287 = vector.broadcast %1 : vector<1x640xf32> to vector<8x640xf32>
    %288 = arith.mulf %286, %287 : vector<8x640xf32>
    %c27 = arith.constant 27 : index
    %c0_150 = arith.constant 0 : index
    %c0_151 = arith.constant 0 : index
    %289 = vector.load %arg5[%c27, %c0_150, %c0_151] : memref<36x8x11xf32, #tpu.memory_space<vmem>>, vector<1x8x11xf32>
    %290 = vector.shape_cast %289 : vector<1x8x11xf32> to vector<8x11xf32>
    %c14_i32_152 = arith.constant 14 : i32
    %291 = tpu.dynamic_rotate %288 by %c14_i32_152 dim 1 : vector<8x640xf32>, i32 -> vector<8x640xf32>
    %292 = vector.extract_strided_slice %290 {offsets = [0, 0], sizes = [2, 8], strides = [1, 1]} : vector<8x11xf32> to vector<2x8xf32>
    %cst_153 = arith.constant dense<0.000000e+00> : vector<2x640xf32>
    %293 = tpu.matmul %292, %291, %cst_153 {dimension_numbers = #tpu.dot_dimension_numbers<[1], [0], [0], [1], [0, 0, 1, 1], [], []>} : vector<2x8xf32>, vector<8x640xf32>, vector<2x640xf32> -> vector<2x640xf32>
    %c28 = arith.constant 28 : index
    %c0_154 = arith.constant 0 : index
    %c0_155 = arith.constant 0 : index
    %294 = vector.load %arg5[%c28, %c0_154, %c0_155] : memref<36x8x11xf32, #tpu.memory_space<vmem>>, vector<1x8x11xf32>
    %295 = vector.shape_cast %294 : vector<1x8x11xf32> to vector<8x11xf32>
    %c13_i32_156 = arith.constant 13 : i32
    %296 = tpu.dynamic_rotate %288 by %c13_i32_156 dim 1 : vector<8x640xf32>, i32 -> vector<8x640xf32>
    %297 = vector.extract_strided_slice %295 {offsets = [0, 0], sizes = [2, 8], strides = [1, 1]} : vector<8x11xf32> to vector<2x8xf32>
    %cst_157 = arith.constant dense<0.000000e+00> : vector<2x640xf32>
    %298 = tpu.matmul %297, %296, %cst_157 {dimension_numbers = #tpu.dot_dimension_numbers<[1], [0], [0], [1], [0, 0, 1, 1], [], []>} : vector<2x8xf32>, vector<8x640xf32>, vector<2x640xf32> -> vector<2x640xf32>
    %299 = arith.addf %293, %298 : vector<2x640xf32>
    %c29 = arith.constant 29 : index
    %c0_158 = arith.constant 0 : index
    %c0_159 = arith.constant 0 : index
    %300 = vector.load %arg5[%c29, %c0_158, %c0_159] : memref<36x8x11xf32, #tpu.memory_space<vmem>>, vector<1x8x11xf32>
    %301 = vector.shape_cast %300 : vector<1x8x11xf32> to vector<8x11xf32>
    %c12_i32_160 = arith.constant 12 : i32
    %302 = tpu.dynamic_rotate %288 by %c12_i32_160 dim 1 : vector<8x640xf32>, i32 -> vector<8x640xf32>
    %303 = vector.extract_strided_slice %301 {offsets = [0, 0], sizes = [2, 8], strides = [1, 1]} : vector<8x11xf32> to vector<2x8xf32>
    %cst_161 = arith.constant dense<0.000000e+00> : vector<2x640xf32>
    %304 = tpu.matmul %303, %302, %cst_161 {dimension_numbers = #tpu.dot_dimension_numbers<[1], [0], [0], [1], [0, 0, 1, 1], [], []>} : vector<2x8xf32>, vector<8x640xf32>, vector<2x640xf32> -> vector<2x640xf32>
    %305 = arith.addf %299, %304 : vector<2x640xf32>
    %c30 = arith.constant 30 : index
    %c0_162 = arith.constant 0 : index
    %c0_163 = arith.constant 0 : index
    %306 = vector.load %arg5[%c30, %c0_162, %c0_163] : memref<36x8x11xf32, #tpu.memory_space<vmem>>, vector<1x8x11xf32>
    %307 = vector.shape_cast %306 : vector<1x8x11xf32> to vector<8x11xf32>
    %c1_i32_164 = arith.constant 1 : i32
    %308 = tpu.dynamic_rotate %288 by %c1_i32_164 dim 1 : vector<8x640xf32>, i32 -> vector<8x640xf32>
    %309 = vector.extract_strided_slice %307 {offsets = [0, 0], sizes = [2, 8], strides = [1, 1]} : vector<8x11xf32> to vector<2x8xf32>
    %cst_165 = arith.constant dense<0.000000e+00> : vector<2x640xf32>
    %310 = tpu.matmul %309, %308, %cst_165 {dimension_numbers = #tpu.dot_dimension_numbers<[1], [0], [0], [1], [0, 0, 1, 1], [], []>} : vector<2x8xf32>, vector<8x640xf32>, vector<2x640xf32> -> vector<2x640xf32>
    %311 = arith.addf %305, %310 : vector<2x640xf32>
    %c31 = arith.constant 31 : index
    %c0_166 = arith.constant 0 : index
    %c0_167 = arith.constant 0 : index
    %312 = vector.load %arg5[%c31, %c0_166, %c0_167] : memref<36x8x11xf32, #tpu.memory_space<vmem>>, vector<1x8x11xf32>
    %313 = vector.shape_cast %312 : vector<1x8x11xf32> to vector<8x11xf32>
    %314 = vector.extract_strided_slice %313 {offsets = [0, 0], sizes = [2, 8], strides = [1, 1]} : vector<8x11xf32> to vector<2x8xf32>
    %cst_168 = arith.constant dense<0.000000e+00> : vector<2x640xf32>
    %315 = tpu.matmul %314, %288, %cst_168 {dimension_numbers = #tpu.dot_dimension_numbers<[1], [0], [0], [1], [0, 0, 1, 1], [], []>} : vector<2x8xf32>, vector<8x640xf32>, vector<2x640xf32> -> vector<2x640xf32>
    %316 = arith.addf %311, %315 : vector<2x640xf32>
    %c32 = arith.constant 32 : index
    %c0_169 = arith.constant 0 : index
    %c0_170 = arith.constant 0 : index
    %317 = vector.load %arg5[%c32, %c0_169, %c0_170] : memref<36x8x11xf32, #tpu.memory_space<vmem>>, vector<1x8x11xf32>
    %318 = vector.shape_cast %317 : vector<1x8x11xf32> to vector<8x11xf32>
    %c639_i32_171 = arith.constant 639 : i32
    %319 = tpu.dynamic_rotate %288 by %c639_i32_171 dim 1 : vector<8x640xf32>, i32 -> vector<8x640xf32>
    %320 = vector.extract_strided_slice %318 {offsets = [0, 0], sizes = [2, 8], strides = [1, 1]} : vector<8x11xf32> to vector<2x8xf32>
    %cst_172 = arith.constant dense<0.000000e+00> : vector<2x640xf32>
    %321 = tpu.matmul %320, %319, %cst_172 {dimension_numbers = #tpu.dot_dimension_numbers<[1], [0], [0], [1], [0, 0, 1, 1], [], []>} : vector<2x8xf32>, vector<8x640xf32>, vector<2x640xf32> -> vector<2x640xf32>
    %322 = arith.addf %316, %321 : vector<2x640xf32>
    %c33 = arith.constant 33 : index
    %c0_173 = arith.constant 0 : index
    %c0_174 = arith.constant 0 : index
    %323 = vector.load %arg5[%c33, %c0_173, %c0_174] : memref<36x8x11xf32, #tpu.memory_space<vmem>>, vector<1x8x11xf32>
    %324 = vector.shape_cast %323 : vector<1x8x11xf32> to vector<8x11xf32>
    %c628_i32_175 = arith.constant 628 : i32
    %325 = tpu.dynamic_rotate %288 by %c628_i32_175 dim 1 : vector<8x640xf32>, i32 -> vector<8x640xf32>
    %326 = vector.extract_strided_slice %324 {offsets = [0, 0], sizes = [2, 8], strides = [1, 1]} : vector<8x11xf32> to vector<2x8xf32>
    %cst_176 = arith.constant dense<0.000000e+00> : vector<2x640xf32>
    %327 = tpu.matmul %326, %325, %cst_176 {dimension_numbers = #tpu.dot_dimension_numbers<[1], [0], [0], [1], [0, 0, 1, 1], [], []>} : vector<2x8xf32>, vector<8x640xf32>, vector<2x640xf32> -> vector<2x640xf32>
    %328 = arith.addf %322, %327 : vector<2x640xf32>
    %c34 = arith.constant 34 : index
    %c0_177 = arith.constant 0 : index
    %c0_178 = arith.constant 0 : index
    %329 = vector.load %arg5[%c34, %c0_177, %c0_178] : memref<36x8x11xf32, #tpu.memory_space<vmem>>, vector<1x8x11xf32>
    %330 = vector.shape_cast %329 : vector<1x8x11xf32> to vector<8x11xf32>
    %c627_i32_179 = arith.constant 627 : i32
    %331 = tpu.dynamic_rotate %288 by %c627_i32_179 dim 1 : vector<8x640xf32>, i32 -> vector<8x640xf32>
    %332 = vector.extract_strided_slice %330 {offsets = [0, 0], sizes = [2, 8], strides = [1, 1]} : vector<8x11xf32> to vector<2x8xf32>
    %cst_180 = arith.constant dense<0.000000e+00> : vector<2x640xf32>
    %333 = tpu.matmul %332, %331, %cst_180 {dimension_numbers = #tpu.dot_dimension_numbers<[1], [0], [0], [1], [0, 0, 1, 1], [], []>} : vector<2x8xf32>, vector<8x640xf32>, vector<2x640xf32> -> vector<2x640xf32>
    %334 = arith.addf %328, %333 : vector<2x640xf32>
    %c35 = arith.constant 35 : index
    %c0_181 = arith.constant 0 : index
    %c0_182 = arith.constant 0 : index
    %335 = vector.load %arg5[%c35, %c0_181, %c0_182] : memref<36x8x11xf32, #tpu.memory_space<vmem>>, vector<1x8x11xf32>
    %336 = vector.shape_cast %335 : vector<1x8x11xf32> to vector<8x11xf32>
    %c626_i32_183 = arith.constant 626 : i32
    %337 = tpu.dynamic_rotate %288 by %c626_i32_183 dim 1 : vector<8x640xf32>, i32 -> vector<8x640xf32>
    %338 = vector.extract_strided_slice %336 {offsets = [0, 0], sizes = [2, 8], strides = [1, 1]} : vector<8x11xf32> to vector<2x8xf32>
    %cst_184 = arith.constant dense<0.000000e+00> : vector<2x640xf32>
    %339 = tpu.matmul %338, %337, %cst_184 {dimension_numbers = #tpu.dot_dimension_numbers<[1], [0], [0], [1], [0, 0, 1, 1], [], []>} : vector<2x8xf32>, vector<8x640xf32>, vector<2x640xf32> -> vector<2x640xf32>
    %340 = arith.addf %334, %339 : vector<2x640xf32>
    %c3_185 = arith.constant 3 : index
    %c0_186 = arith.constant 0 : index
    %c0_187 = arith.constant 0 : index
    %341 = vector.load %arg6[%c3_185, %c0_186, %c0_187] : memref<4x8x1xf32, #tpu.memory_space<vmem>>, vector<1x8x1xf32>
    %342 = vector.shape_cast %341 : vector<1x8x1xf32> to vector<8x1xf32>
    %343 = vector.extract_strided_slice %342 {offsets = [0, 0], sizes = [2, 1], strides = [1, 1]} : vector<8x1xf32> to vector<2x1xf32>
    %344 = vector.broadcast %343 : vector<2x1xf32> to vector<2x640xf32>
    %345 = arith.addf %340, %344 : vector<2x640xf32>
    %c0_188 = arith.constant 0 : index
    %c0_189 = arith.constant 0 : index
    %346 = vector.load %arg7[%c0_188, %c0_189] : memref<2x640xf32, #tpu.memory_space<vmem>>, vector<2x640xf32>
    tpu.vector_store %arg7[%c0_188, %c0_189], %345 {strides = array<i32>} : memref<2x640xf32, #tpu.memory_space<vmem>>, vector<2x640xf32>,
    return
  }
  func.func @transform_0(%arg0: i32) -> (i32, i32) {
    %c0_i32 = arith.constant 0 : i32
    %c0_i32_0 = arith.constant 0 : i32
    %c0_i32_1 = arith.constant 0 : i32
    return %c0_i32, %c0_i32_0 : i32, i32
  }
  func.func @transform_1(%arg0: i32) -> (i32, i32) {
    %c0_i32 = arith.constant 0 : i32
    %c0_i32_0 = arith.constant 0 : i32
    %c0_i32_1 = arith.constant 0 : i32
    return %c0_i32, %c0_i32_0 : i32, i32
  }
  func.func @transform_2(%arg0: i32) -> (i32, i32) {
    %c0_i32 = arith.constant 0 : i32
    %c0_i32_0 = arith.constant 0 : i32
    %c0_i32_1 = arith.constant 0 : i32
    return %c0_i32, %c0_i32_0 : i32, i32
  }
  func.func @transform_3(%arg0: i32) -> (i32, i32) {
    %c0_i32 = arith.constant 0 : i32
    %c0_i32_0 = arith.constant 0 : i32
    %c0_i32_1 = arith.constant 0 : i32
    return %c0_i32, %c0_i32_0 : i32, i32
  }
  func.func @transform_4(%arg0: i32) -> (i32, i32, i32) {
    %c0_i32 = arith.constant 0 : i32
    %c0_i32_0 = arith.constant 0 : i32
    %c0_i32_1 = arith.constant 0 : i32
    %c0_i32_2 = arith.constant 0 : i32
    return %c0_i32, %c0_i32_0, %c0_i32_1 : i32, i32, i32
  }
  func.func @transform_5(%arg0: i32) -> (i32, i32, i32) {
    %c0_i32 = arith.constant 0 : i32
    %c0_i32_0 = arith.constant 0 : i32
    %c0_i32_1 = arith.constant 0 : i32
    %c0_i32_2 = arith.constant 0 : i32
    return %c0_i32, %c0_i32_0, %c0_i32_1 : i32, i32, i32
  }
  func.func @transform_6(%arg0: i32) -> (i32, i32) {
    %c0_i32 = arith.constant 0 : i32
    %c0_i32_0 = arith.constant 0 : i32
    %c0_i32_1 = arith.constant 0 : i32
    return %c0_i32, %c0_i32_0 : i32, i32
  }
}

</mosaic_0001>

<llo_original>
// kernel: _lambda_.1
$region0: #{_lambda_.1}
  #allocation0 [shape = 'u32[]', space=smem, size = 0x4, offset = 0x4, fixed_abs, tag = 'smem constant byte address 0x4 - core index']
  #allocation1 [shape = 'u32[144,128]{1,0:T(1,128)}', space=vmem, size = 0x12000, scoped, tag = 'internal scratch']
  %s0 = inlined_call_operand.vmem [shape: f32[2,640], index: 0, kind: input, shape index: {}]
  %s1 = inlined_call_operand.vmem [shape: f32[1,18], index: 1, kind: input, shape index: {}]
  %s2 = inlined_call_operand.vmem [shape: f32[18,8], index: 2, kind: input, shape index: {}]
  %s3 = inlined_call_operand.vmem [shape: f32[9,640], index: 3, kind: input, shape index: {}]
  %s4 = inlined_call_operand.vmem [shape: f32[36,8,11], index: 4, kind: input, shape index: {}]
  %s5 = inlined_call_operand.vmem [shape: f32[4,8,1], index: 5, kind: input, shape index: {}]
  %s6 = inlined_call_operand.vmem [shape: f32[2,640], index: 6, kind: output, shape index: {}]
  %s7 = sld [smem:[#allocation0]]
  $region34: #{_lambda_.1} parent=0
    _
  %s9 = ssub.s32 1, %s7
  %s10 = scalar_select 0, %s9, %s7
  // Predicated region
  $region2: #{_lambda_.1} parent=0 // pred_check
    _
  $region3: #{_lambda_.1} parent=0 // pred_check_branch
    %12 = sbr.rel (0) target = $region5
  $region4: #{_lambda_.1} parent=0 // pred_region
    _
  $region5: #{_lambda_.1} parent=0 // pred_fallthru
    _
  // Predicated region
  $region6: #{_lambda_.1} parent=0 // pred_check
    _
  $region7: #{_lambda_.1} parent=0 // pred_check_branch
    %14 = sbr.rel (0) target = $region9
  $region8: #{_lambda_.1} parent=0 // pred_region
    _
  $region9: #{_lambda_.1} parent=0 // pred_fallthru
    _
  // Predicated region
  $region10: #{_lambda_.1} parent=0 // pred_check
    _
  $region11: #{_lambda_.1} parent=0 // pred_check_branch
    %16 = sbr.rel (0) target = $region13
  $region12: #{_lambda_.1} parent=0 // pred_region
    _
  $region13: #{_lambda_.1} parent=0 // pred_fallthru
    _
  // Predicated region
  $region14: #{_lambda_.1} parent=0 // pred_check
    _
  $region15: #{_lambda_.1} parent=0 // pred_check_branch
    %18 = sbr.rel (0) target = $region17
  $region16: #{_lambda_.1} parent=0 // pred_region
    _
  $region17: #{_lambda_.1} parent=0 // pred_fallthru
    _
  // Predicated region
  $region18: #{_lambda_.1} parent=0 // pred_check
    _
  $region19: #{_lambda_.1} parent=0 // pred_check_branch
    %20 = sbr.rel (0) target = $region21
  $region20: #{_lambda_.1} parent=0 // pred_region
    _
  $region21: #{_lambda_.1} parent=0 // pred_fallthru
    _
  // Predicated region
  $region22: #{_lambda_.1} parent=0 // pred_check
    _
  $region23: #{_lambda_.1} parent=0 // pred_check_branch
    %22 = sbr.rel (0) target = $region25
  $region24: #{_lambda_.1} parent=0 // pred_region
    _
  $region25: #{_lambda_.1} parent=0 // pred_fallthru
    _
  %v23 = vld [vmem:[%s3] sm:$0xff]
  %v24 = vld [vmem:[%s3 + $0x8] sm:$0xff]
  %v25 = vld [vmem:[%s3 + $0x10] sm:$0xff]
  %v26 = vld [vmem:[%s3 + $0x18] sm:$0xff]
  %v27 = vld [vmem:[%s3 + $0x20] sm:$0xff]
  %s28 = scalar_lea.vmem %s3, 40
  %v29 = vld [vmem:[%s28] ss:$8 sm:$0xf]
  %v30 = vld [vmem:[%s28] ss:$8 sm:$0x10]
  %v31 = vor.u32 %v29, %v30
  %v32 = vld [vmem:[%s0] sm:$0xff]
  %v33 = vld [vmem:[%s0 + $0x8] sm:$0x3]
  %v34 = vld [vmem:[%s4] sm:$0xff]
  %v37 = vcombine.high %v32, %v32
  %v39 = vunpack.c.l.s4 1983009808
  %v40 = vunpack.c.0.s8 %v39
  %v41 = vlaneseq
  %v42 = vshrl.u32 %v41, 7
  %v43 = vsub.s32 %v40, %v42
  %v44 = vrot.slane %v32, %v43
  %v46 = vunpack.c.l.s4 1983009808
  %v47 = vunpack.c.0.s8 %v46
  %v48 = vlaneseq
  %v49 = vshrl.u32 %v48, 7
  %v50 = vsub.s32 %v47, %v49
  %v51 = vrot.slane %v37, %v50
  %v52 = vcombine.high %v44, %v44
  %v53 = vcombine.high %v51, %v51
  %v55 = vunpack.c.l.s4 1983009808
  %v56 = vunpack.c.0.s8 %v55
  %v57 = vlaneseq
  %v58 = vshrl.u32 %v57, 7
  %v59 = vsub.s32 %v56, %v58
  %v60 = vrot.slane %v33, %v59
  %66 = vrot.lane.b32.xlu0 %v44, 14
  %v67 = vpop.permute.xlu0 %66
  %68 = vrot.lane.b32.xlu0 %v52, 14
  %v69 = vpop.permute.xlu0 %68
  %70 = vrot.lane.b32.xlu0 %v51, 14
  %v71 = vpop.permute.xlu0 %70
  %72 = vrot.lane.b32.xlu0 %v53, 14
  %v73 = vpop.permute.xlu0 %72
  %74 = vrot.lane.b32.xlu0 %v60, 14
  %v75 = vpop.permute.xlu0 %74
  %v76 = vlaneseq
  %v77 = vand.u32 %v76, 127
  %vm78 = vcmp.lt.s32.totalorder %v77, 14
  %v79 = vsel %vm78, %v73, %v75
  %v80 = vsel %vm78, %v71, %v73
  %v81 = vsel %vm78, %v69, %v71
  %v82 = vsel %vm78, %v67, %v69
  %v83 = vsel %vm78, %v75, %v67
  %s84 = scalar_lea.vmem %s4, 8
  %v85 = vld [vmem:[%s84] sm:$0xff]
  %86 = vrot.lane.b32.xlu0 %v44, 13
  %v87 = vpop.permute.xlu0 %86
  %88 = vrot.lane.b32.xlu0 %v52, 13
  %v89 = vpop.permute.xlu0 %88
  %90 = vrot.lane.b32.xlu0 %v51, 13
  %v91 = vpop.permute.xlu0 %90
  %92 = vrot.lane.b32.xlu0 %v53, 13
  %v93 = vpop.permute.xlu0 %92
  %94 = vrot.lane.b32.xlu0 %v60, 13
  %v95 = vpop.permute.xlu0 %94
  %vm96 = vcmp.lt.s32.totalorder %v77, 13
  %v97 = vsel %vm96, %v93, %v95
  %v98 = vsel %vm96, %v91, %v93
  %v99 = vsel %vm96, %v89, %v91
  %v100 = vsel %vm96, %v87, %v89
  %v101 = vsel %vm96, %v95, %v87
  %vm102 = vcmask 15360
  %v104 = vsel %vm102, %v85, 0
  %vm106 = vcmask 1041408
  %v108 = vsel %vm106, %v101, 0
  %v111 = vsel %vm106, %v100, 0
  %v114 = vsel %vm106, %v99, 0
  %v117 = vsel %vm106, %v98, 0
  %v120 = vsel %vm106, %v97, 0
  %122 = vmatprep.subr.mxu0 %v111
  %123 = vmatpush1.msra.mxu0 %v108
  %124 = vmatprep.subr.mxu0 0.0
  %125 = vmatpush1.msra.mxu0 0.0
  %126 = vmatprep.subr.mxu0 0.0
  %127 = vmatpush1.msra.mxu0 0.0
  %128 = vmatprep.subr.mxu0 0.0
  %129 = vmatpush1.msra.mxu0 0.0
  %130 = vmatprep.subr.mxu0 0.0
  %131 = vmatpush1.msra.mxu0 0.0
  %132 = vmatprep.subr.mxu0 0.0
  %133 = vmatpush1.msra.mxu0 0.0
  %134 = vmatprep.subr.mxu0 0.0
  %135 = vmatpush1.msra.mxu0 0.0
  %136 = vmatprep.subr.mxu0 0.0
  %137 = vmatpush1.msra.mxu0 0.0
  %138 = vmatprep.subr.mxu0 0.0
  %139 = vmatpush1.msra.mxu0 0.0
  %140 = vmatprep.subr.mxu0 0.0
  %141 = vmatpush1.msra.mxu0 0.0
  %142 = vmatprep.subr.mxu0 0.0
  %143 = vmatpush1.msra.mxu0 0.0
  %144 = vmatprep.subr.mxu0 0.0
  %145 = vmatpush1.msra.mxu0 0.0
  %146 = vmatprep.subr.mxu0 0.0
  %147 = vmatpush1.msra.mxu0 0.0
  %148 = vmatprep.subr.mxu0 0.0
  %149 = vmatpush1.msra.mxu0 0.0
  %150 = vmatprep.subr.mxu0 0.0
  %151 = vmatpush1.msra.mxu0 0.0
  %152 = vmatprep.subr.mxu0 0.0
  %153 = vmatpush1.msra.mxu0 0.0
  %154 = vmatprep.subr.mxu0 0.0
  %155 = vmatpush1.msra.mxu0 0.0
  %156 = vmatprep.subr.mxu0 0.0
  %157 = vmatpush1.msra.mxu0 0.0
  %158 = vmatprep.subr.mxu0 0.0
  %159 = vmatpush1.msra.mxu0 0.0
  %160 = vmatprep.subr.mxu0 0.0
  %161 = vmatpush1.msra.mxu0 0.0
  %162 = vmatprep.subr.mxu0 0.0
  %163 = vmatpush1.msra.mxu0 0.0
  %164 = vmatprep.subr.mxu0 0.0
  %165 = vmatpush1.msra.mxu0 0.0
  %166 = vmatprep.subr.mxu0 0.0
  %167 = vmatpush1.msra.mxu0 0.0
  %168 = vmatprep.subr.mxu0 0.0
  %169 = vmatpush1.msra.mxu0 0.0
  %170 = vmatprep.subr.mxu0 0.0
  %171 = vmatpush1.msra.mxu0 0.0
  %172 = vmatprep.subr.mxu0 0.0
  %173 = vmatpush1.msra.mxu0 0.0
  %174 = vmatprep.subr.mxu0 0.0
  %175 = vmatpush1.msra.mxu0 0.0
  %176 = vmatprep.subr.mxu0 0.0
  %177 = vmatpush1.msra.mxu0 0.0
  %178 = vmatprep.subr.mxu0 0.0
  %179 = vmatpush1.msra.mxu0 0.0
  %180 = vmatprep.subr.mxu0 0.0
  %181 = vmatpush1.msra.mxu0 0.0
  %182 = vmatprep.subr.mxu0 0.0
  %183 = vmatpush1.msra.mxu0 0.0
  %184 = vmatprep.subr.mxu0 0.0
  %185 = vmatpush1.msra.mxu0 0.0
  %186 = vmatprep.mubr.f32.mxu0 0.0
  %187 = vmatmul.mubr.f32.gmra.mrb[0].mxu0 %v104
  %v188 = vpop.f32.mrb[0].mxu0
  %v189 = vadd.f32 0.0, %v188
  %v190 = vpop.f32.mrb[0].mxu0
  %v191 = vadd.f32 0.0, %v190
  %192 = vdwg.mxu0
  %193 = vmatprep.subr.mxu0 %v117
  %194 = vmatpush1.msra.mxu0 %v114
  %195 = vmatprep.subr.mxu0 0.0
  %196 = vmatpush1.msra.mxu0 0.0
  %197 = vmatprep.subr.mxu0 0.0
  %198 = vmatpush1.msra.mxu0 0.0
  %199 = vmatprep.subr.mxu0 0.0
  %200 = vmatpush1.msra.mxu0 0.0
  %201 = vmatprep.subr.mxu0 0.0
  %202 = vmatpush1.msra.mxu0 0.0
  %203 = vmatprep.subr.mxu0 0.0
  %204 = vmatpush1.msra.mxu0 0.0
  %205 = vmatprep.subr.mxu0 0.0
  %206 = vmatpush1.msra.mxu0 0.0
  %207 = vmatprep.subr.mxu0 0.0
  %208 = vmatpush1.msra.mxu0 0.0
  %209 = vmatprep.subr.mxu0 0.0
  %210 = vmatpush1.msra.mxu0 0.0
  %211 = vmatprep.subr.mxu0 0.0
  %212 = vmatpush1.msra.mxu0 0.0
  %213 = vmatprep.subr.mxu0 0.0
  %214 = vmatpush1.msra.mxu0 0.0
  %215 = vmatprep.subr.mxu0 0.0
  %216 = vmatpush1.msra.mxu0 0.0
  %217 = vmatprep.subr.mxu0 0.0
  %218 = vmatpush1.msra.mxu0 0.0
  %219 = vmatprep.subr.mxu0 0.0
  %220 = vmatpush1.msra.mxu0 0.0
  %221 = vmatprep.subr.mxu0 0.0
  %222 = vmatpush1.msra.mxu0 0.0
  %223 = vmatprep.subr.mxu0 0.0
  %224 = vmatpush1.msra.mxu0 0.0
  %225 = vmatprep.subr.mxu0 0.0
  %226 = vmatpush1.msra.mxu0 0.0
  %227 = vmatprep.subr.mxu0 0.0
  %228 = vmatpush1.msra.mxu0 0.0
  %229 = vmatprep.subr.mxu0 0.0
  %230 = vmatpush1.msra.mxu0 0.0
  %231 = vmatprep.subr.mxu0 0.0
  %232 = vmatpush1.msra.mxu0 0.0
  %233 = vmatprep.subr.mxu0 0.0
  %234 = vmatpush1.msra.mxu0 0.0
  %235 = vmatprep.subr.mxu0 0.0
  %236 = vmatpush1.msra.mxu0 0.0
  %237 = vmatprep.subr.mxu0 0.0
  %238 = vmatpush1.msra.mxu0 0.0
  %239 = vmatprep.subr.mxu0 0.0
  %240 = vmatpush1.msra.mxu0 0.0
  %241 = vmatprep.subr.mxu0 0.0
  %242 = vmatpush1.msra.mxu0 0.0
  %243 = vmatprep.subr.mxu0 0.0
  %244 = vmatpush1.msra.mxu0 0.0
  %245 = vmatprep.subr.mxu0 0.0
  %246 = vmatpush1.msra.mxu0 0.0
  %247 = vmatprep.subr.mxu0 0.0
  %248 = vmatpush1.msra.mxu0 0.0
  %249 = vmatprep.subr.mxu0 0.0
  %250 = vmatpush1.msra.mxu0 0.0
  %251 = vmatprep.subr.mxu0 0.0
  %252 = vmatpush1.msra.mxu0 0.0
  %253 = vmatprep.subr.mxu0 0.0
  %254 = vmatpush1.msra.mxu0 0.0
  %255 = vmatprep.subr.mxu0 0.0
  %256 = vmatpush1.msra.mxu0 0.0
  %257 = vmatprep.mubr.f32.mxu0 0.0
  %258 = vmatmul.mubr.f32.gmra.mrb[0].mxu0 %v104
  %v259 = vpop.f32.mrb[0].mxu0
  %v260 = vadd.f32 0.0, %v259
  %v261 = vpop.f32.mrb[0].mxu0
  %v262 = vadd.f32 0.0, %v261
  %263 = vdwg.mxu0
  %264 = vmatprep.subr.mxu0 0.0
  %265 = vmatpush1.msra.mxu0 %v120
  %266 = vmatprep.subr.mxu0 0.0
  %267 = vmatpush1.msra.mxu0 0.0
  %268 = vmatprep.subr.mxu0 0.0
  %269 = vmatpush1.msra.mxu0 0.0
  %270 = vmatprep.subr.mxu0 0.0
  %271 = vmatpush1.msra.mxu0 0.0
  %272 = vmatprep.subr.mxu0 0.0
  %273 = vmatpush1.msra.mxu0 0.0
  %274 = vmatprep.subr.mxu0 0.0
  %275 = vmatpush1.msra.mxu0 0.0
  %276 = vmatprep.subr.mxu0 0.0
  %277 = vmatpush1.msra.mxu0 0.0
  %278 = vmatprep.subr.mxu0 0.0
  %279 = vmatpush1.msra.mxu0 0.0
  %280 = vmatprep.subr.mxu0 0.0
  %281 = vmatpush1.msra.mxu0 0.0
  %282 = vmatprep.subr.mxu0 0.0
  %283 = vmatpush1.msra.mxu0 0.0
  %284 = vmatprep.subr.mxu0 0.0
  %285 = vmatpush1.msra.mxu0 0.0
  %286 = vmatprep.subr.mxu0 0.0
  %287 = vmatpush1.msra.mxu0 0.0
  %288 = vmatprep.subr.mxu0 0.0
  %289 = vmatpush1.msra.mxu0 0.0
  %290 = vmatprep.subr.mxu0 0.0
  %291 = vmatpush1.msra.mxu0 0.0
  %292 = vmatprep.subr.mxu0 0.0
  %293 = vmatpush1.msra.mxu0 0.0
  %294 = vmatprep.subr.mxu0 0.0
  %295 = vmatpush1.msra.mxu0 0.0
  %296 = vmatprep.subr.mxu0 0.0
  %297 = vmatpush1.msra.mxu0 0.0
  %298 = vmatprep.subr.mxu0 0.0
  %299 = vmatpush1.msra.mxu0 0.0
  %300 = vmatprep.subr.mxu0 0.0
  %301 = vmatpush1.msra.mxu0 0.0
  %302 = vmatprep.subr.mxu0 0.0
  %303 = vmatpush1.msra.mxu0 0.0
  %304 = vmatprep.subr.mxu0 0.0
  %305 = vmatpush1.msra.mxu0 0.0
  %306 = vmatprep.subr.mxu0 0.0
  %307 = vmatpush1.msra.mxu0 0.0
  %308 = vmatprep.subr.mxu0 0.0
  %309 = vmatpush1.msra.mxu0 0.0
  %310 = vmatprep.subr.mxu0 0.0
  %311 = vmatpush1.msra.mxu0 0.0
  %312 = vmatprep.subr.mxu0 0.0
  %313 = vmatpush1.msra.mxu0 0.0
  %314 = vmatprep.subr.mxu0 0.0
  %315 = vmatpush1.msra.mxu0 0.0
  %316 = vmatprep.subr.mxu0 0.0
  %317 = vmatpush1.msra.mxu0 0.0
  %318 = vmatprep.subr.mxu0 0.0
  %319 = vmatpush1.msra.mxu0 0.0
  %320 = vmatprep.subr.mxu0 0.0
  %321 = vmatpush1.msra.mxu0 0.0
  %322 = vmatprep.subr.mxu0 0.0
  %323 = vmatpush1.msra.mxu0 0.0
  %324 = vmatprep.subr.mxu0 0.0
  %325 = vmatpush1.msra.mxu0 0.0
  %326 = vmatprep.subr.mxu0 0.0
  %327 = vmatpush1.msra.mxu0 0.0
  %328 = vmatprep.mubr.f32.mxu0 0.0
  %329 = vmatmul.mubr.f32.gmra.mrb[0].mxu0 %v104
  %v330 = vpop.f32.mrb[0].mxu0
  %v331 = vadd.f32 0.0, %v330
  %v332 = vpop.f32.mrb[0].mxu0
  %333 = vdwg.mxu0
  %v335 = vsel %vm102, %v34, 0
  %v338 = vsel %vm106, %v83, 0
  %v341 = vsel %vm106, %v82, 0
  %v344 = vsel %vm106, %v81, 0
  %v347 = vsel %vm106, %v80, 0
  %v350 = vsel %vm106, %v79, 0
  %352 = vmatprep.subr.mxu0 %v341
  %353 = vmatpush1.msra.mxu0 %v338
  %354 = vmatprep.subr.mxu0 0.0
  %355 = vmatpush1.msra.mxu0 0.0
  %356 = vmatprep.subr.mxu0 0.0
  %357 = vmatpush1.msra.mxu0 0.0
  %358 = vmatprep.subr.mxu0 0.0
  %359 = vmatpush1.msra.mxu0 0.0
  %360 = vmatprep.subr.mxu0 0.0
  %361 = vmatpush1.msra.mxu0 0.0
  %362 = vmatprep.subr.mxu0 0.0
  %363 = vmatpush1.msra.mxu0 0.0
  %364 = vmatprep.subr.mxu0 0.0
  %365 = vmatpush1.msra.mxu0 0.0
  %366 = vmatprep.subr.mxu0 0.0
  %367 = vmatpush1.msra.mxu0 0.0
  %368 = vmatprep.subr.mxu0 0.0
  %369 = vmatpush1.msra.mxu0 0.0
  %370 = vmatprep.subr.mxu0 0.0
  %371 = vmatpush1.msra.mxu0 0.0
  %372 = vmatprep.subr.mxu0 0.0
  %373 = vmatpush1.msra.mxu0 0.0
  %374 = vmatprep.subr.mxu0 0.0
  %375 = vmatpush1.msra.mxu0 0.0
  %376 = vmatprep.subr.mxu0 0.0
  %377 = vmatpush1.msra.mxu0 0.0
  %378 = vmatprep.subr.mxu0 0.0
  %379 = vmatpush1.msra.mxu0 0.0
  %380 = vmatprep.subr.mxu0 0.0
  %381 = vmatpush1.msra.mxu0 0.0
  %382 = vmatprep.subr.mxu0 0.0
  %383 = vmatpush1.msra.mxu0 0.0
  %384 = vmatprep.subr.mxu0 0.0
  %385 = vmatpush1.msra.mxu0 0.0
  %386 = vmatprep.subr.mxu0 0.0
  %387 = vmatpush1.msra.mxu0 0.0
  %388 = vmatprep.subr.mxu0 0.0
  %389 = vmatpush1.msra.mxu0 0.0
  %390 = vmatprep.subr.mxu0 0.0
  %391 = vmatpush1.msra.mxu0 0.0
  %392 = vmatprep.subr.mxu0 0.0
  %393 = vmatpush1.msra.mxu0 0.0
  %394 = vmatprep.subr.mxu0 0.0
  %395 = vmatpush1.msra.mxu0 0.0
  %396 = vmatprep.subr.mxu0 0.0
  %397 = vmatpush1.msra.mxu0 0.0
  %398 = vmatprep.subr.mxu0 0.0
  %399 = vmatpush1.msra.mxu0 0.0
  %400 = vmatprep.subr.mxu0 0.0
  %401 = vmatpush1.msra.mxu0 0.0
  %402 = vmatprep.subr.mxu0 0.0
  %403 = vmatpush1.msra.mxu0 0.0
  %404 = vmatprep.subr.mxu0 0.0
  %405 = vmatpush1.msra.mxu0 0.0
  %406 = vmatprep.subr.mxu0 0.0
  %407 = vmatpush1.msra.mxu0 0.0
  %408 = vmatprep.subr.mxu0 0.0
  %409 = vmatpush1.msra.mxu0 0.0
  %410 = vmatprep.subr.mxu0 0.0
  %411 = vmatpush1.msra.mxu0 0.0
  %412 = vmatprep.subr.mxu0 0.0
  %413 = vmatpush1.msra.mxu0 0.0
  %414 = vmatprep.subr.mxu0 0.0
  %415 = vmatpush1.msra.mxu0 0.0
  %416 = vmatprep.mubr.f32.mxu0 0.0
  %417 = vmatmul.mubr.f32.gmra.mrb[0].mxu0 %v335
  %v418 = vpop.f32.mrb[0].mxu0
  %v419 = vadd.f32 %v189, %v418
  %v420 = vpop.f32.mrb[0].mxu0
  %v421 = vadd.f32 %v191, %v420
  %422 = vdwg.mxu0
  %423 = vmatprep.subr.mxu0 %v347
  %424 = vmatpush1.msra.mxu0 %v344
  %425 = vmatprep.subr.mxu0 0.0
  %426 = vmatpush1.msra.mxu0 0.0
  %427 = vmatprep.subr.mxu0 0.0
  %428 = vmatpush1.msra.mxu0 0.0
  %429 = vmatprep.subr.mxu0 0.0
  %430 = vmatpush1.msra.mxu0 0.0
  %431 = vmatprep.subr.mxu0 0.0
  %432 = vmatpush1.msra.mxu0 0.0
  %433 = vmatprep.subr.mxu0 0.0
  %434 = vmatpush1.msra.mxu0 0.0
  %435 = vmatprep.subr.mxu0 0.0
  %436 = vmatpush1.msra.mxu0 0.0
  %437 = vmatprep.subr.mxu0 0.0
  %438 = vmatpush1.msra.mxu0 0.0
  %439 = vmatprep.subr.mxu0 0.0
  %440 = vmatpush1.msra.mxu0 0.0
  %441 = vmatprep.subr.mxu0 0.0
  %442 = vmatpush1.msra.mxu0 0.0
  %443 = vmatprep.subr.mxu0 0.0
  %444 = vmatpush1.msra.mxu0 0.0
  %445 = vmatprep.subr.mxu0 0.0
  %446 = vmatpush1.msra.mxu0 0.0
  %447 = vmatprep.subr.mxu0 0.0
  %448 = vmatpush1.msra.mxu0 0.0
  %449 = vmatprep.subr.mxu0 0.0
  %450 = vmatpush1.msra.mxu0 0.0
  %451 = vmatprep.subr.mxu0 0.0
  %452 = vmatpush1.msra.mxu0 0.0
  %453 = vmatprep.subr.mxu0 0.0
  %454 = vmatpush1.msra.mxu0 0.0
  %455 = vmatprep.subr.mxu0 0.0
  %456 = vmatpush1.msra.mxu0 0.0
  %457 = vmatprep.subr.mxu0 0.0
  %458 = vmatpush1.msra.mxu0 0.0
  %459 = vmatprep.subr.mxu0 0.0
  %460 = vmatpush1.msra.mxu0 0.0
  %461 = vmatprep.subr.mxu0 0.0
  %462 = vmatpush1.msra.mxu0 0.0
  %463 = vmatprep.subr.mxu0 0.0
  %464 = vmatpush1.msra.mxu0 0.0
  %465 = vmatprep.subr.mxu0 0.0
  %466 = vmatpush1.msra.mxu0 0.0
  %467 = vmatprep.subr.mxu0 0.0
  %468 = vmatpush1.msra.mxu0 0.0
  %469 = vmatprep.subr.mxu0 0.0
  %470 = vmatpush1.msra.mxu0 0.0
  %471 = vmatprep.subr.mxu0 0.0
  %472 = vmatpush1.msra.mxu0 0.0
  %473 = vmatprep.subr.mxu0 0.0
  %474 = vmatpush1.msra.mxu0 0.0
  %475 = vmatprep.subr.mxu0 0.0
  %476 = vmatpush1.msra.mxu0 0.0
  %477 = vmatprep.subr.mxu0 0.0
  %478 = vmatpush1.msra.mxu0 0.0
  %479 = vmatprep.subr.mxu0 0.0
  %480 = vmatpush1.msra.mxu0 0.0
  %481 = vmatprep.subr.mxu0 0.0
  %482 = vmatpush1.msra.mxu0 0.0
  %483 = vmatprep.subr.mxu0 0.0
  %484 = vmatpush1.msra.mxu0 0.0
  %485 = vmatprep.subr.mxu0 0.0
  %486 = vmatpush1.msra.mxu0 0.0
  %487 = vmatprep.mubr.f32.mxu0 0.0
  %488 = vmatmul.mubr.f32.gmra.mrb[0].mxu0 %v335
  %v489 = vpop.f32.mrb[0].mxu0
  %v490 = vadd.f32 %v260, %v489
  %v491 = vpop.f32.mrb[0].mxu0
  %v492 = vadd.f32 %v262, %v491
  %493 = vdwg.mxu0
  %494 = vmatprep.subr.mxu0 0.0
  %495 = vmatpush1.msra.mxu0 %v350
  %496 = vmatprep.subr.mxu0 0.0
  %497 = vmatpush1.msra.mxu0 0.0
  %498 = vmatprep.subr.mxu0 0.0
  %499 = vmatpush1.msra.mxu0 0.0
  %500 = vmatprep.subr.mxu0 0.0
  %501 = vmatpush1.msra.mxu0 0.0
  %502 = vmatprep.subr.mxu0 0.0
  %503 = vmatpush1.msra.mxu0 0.0
  %504 = vmatprep.subr.mxu0 0.0
  %505 = vmatpush1.msra.mxu0 0.0
  %506 = vmatprep.subr.mxu0 0.0
  %507 = vmatpush1.msra.mxu0 0.0
  %508 = vmatprep.subr.mxu0 0.0
  %509 = vmatpush1.msra.mxu0 0.0
  %510 = vmatprep.subr.mxu0 0.0
  %511 = vmatpush1.msra.mxu0 0.0
  %512 = vmatprep.subr.mxu0 0.0
  %513 = vmatpush1.msra.mxu0 0.0
  %514 = vmatprep.subr.mxu0 0.0
  %515 = vmatpush1.msra.mxu0 0.0
  %516 = vmatprep.subr.mxu0 0.0
  %517 = vmatpush1.msra.mxu0 0.0
  %518 = vmatprep.subr.mxu0 0.0
  %519 = vmatpush1.msra.mxu0 0.0
  %520 = vmatprep.subr.mxu0 0.0
  %521 = vmatpush1.msra.mxu0 0.0
  %522 = vmatprep.subr.mxu0 0.0
  %523 = vmatpush1.msra.mxu0 0.0
  %524 = vmatprep.subr.mxu0 0.0
  %525 = vmatpush1.msra.mxu0 0.0
  %526 = vmatprep.subr.mxu0 0.0
  %527 = vmatpush1.msra.mxu0 0.0
  %528 = vmatprep.subr.mxu0 0.0
  %529 = vmatpush1.msra.mxu0 0.0
  %530 = vmatprep.subr.mxu0 0.0
  %531 = vmatpush1.msra.mxu0 0.0
  %532 = vmatprep.subr.mxu0 0.0
  %533 = vmatpush1.msra.mxu0 0.0
  %534 = vmatprep.subr.mxu0 0.0
  %535 = vmatpush1.msra.mxu0 0.0
  %536 = vmatprep.subr.mxu0 0.0
  %537 = vmatpush1.msra.mxu0 0.0
  %538 = vmatprep.subr.mxu0 0.0
  %539 = vmatpush1.msra.mxu0 0.0
  %540 = vmatprep.subr.mxu0 0.0
  %541 = vmatpush1.msra.mxu0 0.0
  %542 = vmatprep.subr.mxu0 0.0
  %543 = vmatpush1.msra.mxu0 0.0
  %544 = vmatprep.subr.mxu0 0.0
  %545 = vmatpush1.msra.mxu0 0.0
  %546 = vmatprep.subr.mxu0 0.0
  %547 = vmatpush1.msra.mxu0 0.0
  %548 = vmatprep.subr.mxu0 0.0
  %549 = vmatpush1.msra.mxu0 0.0
  %550 = vmatprep.subr.mxu0 0.0
  %551 = vmatpush1.msra.mxu0 0.0
  %552 = vmatprep.subr.mxu0 0.0
  %553 = vmatpush1.msra.mxu0 0.0
  %554 = vmatprep.subr.mxu0 0.0
  %555 = vmatpush1.msra.mxu0 0.0
  %556 = vmatprep.subr.mxu0 0.0
  %557 = vmatpush1.msra.mxu0 0.0
  %558 = vmatprep.mubr.f32.mxu0 0.0
  %559 = vmatmul.mubr.f32.gmra.mrb[0].mxu0 %v335
  %v560 = vpop.f32.mrb[0].mxu0
  %v561 = vadd.f32 %v331, %v560
  %v562 = vpop.f32.mrb[0].mxu0
  %563 = vdwg.mxu0
  %s564 = scalar_lea.vmem %s4, 16
  %v565 = vld [vmem:[%s564] sm:$0xff]
  %566 = vrot.lane.b32.xlu0 %v44, 12
  %v567 = vpop.permute.xlu0 %566
  %568 = vrot.lane.b32.xlu0 %v52, 12
  %v569 = vpop.permute.xlu0 %568
  %570 = vrot.lane.b32.xlu0 %v51, 12
  %v571 = vpop.permute.xlu0 %570
  %572 = vrot.lane.b32.xlu0 %v53, 12
  %v573 = vpop.permute.xlu0 %572
  %574 = vrot.lane.b32.xlu0 %v60, 12
  %v575 = vpop.permute.xlu0 %574
  %vm576 = vcmp.lt.s32.totalorder %v77, 12
  %v577 = vsel %vm576, %v573, %v575
  %v578 = vsel %vm576, %v571, %v573
  %v579 = vsel %vm576, %v569, %v571
  %v580 = vsel %vm576, %v567, %v569
  %v581 = vsel %vm576, %v575, %v567
  %v583 = vsel %vm102, %v565, 0
  %v586 = vsel %vm106, %v581, 0
  %v589 = vsel %vm106, %v580, 0
  %v592 = vsel %vm106, %v579, 0
  %v595 = vsel %vm106, %v578, 0
  %v598 = vsel %vm106, %v577, 0
  %600 = vmatprep.subr.mxu0 %v589
  %601 = vmatpush1.msra.mxu0 %v586
  %602 = vmatprep.subr.mxu0 0.0
  %603 = vmatpush1.msra.mxu0 0.0
  %604 = vmatprep.subr.mxu0 0.0
  %605 = vmatpush1.msra.mxu0 0.0
  %606 = vmatprep.subr.mxu0 0.0
  %607 = vmatpush1.msra.mxu0 0.0
  %608 = vmatprep.subr.mxu0 0.0
  %609 = vmatpush1.msra.mxu0 0.0
  %610 = vmatprep.subr.mxu0 0.0
  %611 = vmatpush1.msra.mxu0 0.0
  %612 = vmatprep.subr.mxu0 0.0
  %613 = vmatpush1.msra.mxu0 0.0
  %614 = vmatprep.subr.mxu0 0.0
  %615 = vmatpush1.msra.mxu0 0.0
  %616 = vmatprep.subr.mxu0 0.0
  %617 = vmatpush1.msra.mxu0 0.0
  %618 = vmatprep.subr.mxu0 0.0
  %619 = vmatpush1.msra.mxu0 0.0
  %620 = vmatprep.subr.mxu0 0.0
  %621 = vmatpush1.msra.mxu0 0.0
  %622 = vmatprep.subr.mxu0 0.0
  %623 = vmatpush1.msra.mxu0 0.0
  %624 = vmatprep.subr.mxu0 0.0
  %625 = vmatpush1.msra.mxu0 0.0
  %626 = vmatprep.subr.mxu0 0.0
  %627 = vmatpush1.msra.mxu0 0.0
  %628 = vmatprep.subr.mxu0 0.0
  %629 = vmatpush1.msra.mxu0 0.0
  %630 = vmatprep.subr.mxu0 0.0
  %631 = vmatpush1.msra.mxu0 0.0
  %632 = vmatprep.subr.mxu0 0.0
  %633 = vmatpush1.msra.mxu0 0.0
  %634 = vmatprep.subr.mxu0 0.0
  %635 = vmatpush1.msra.mxu0 0.0
  %636 = vmatprep.subr.mxu0 0.0
  %637 = vmatpush1.msra.mxu0 0.0
  %638 = vmatprep.subr.mxu0 0.0
  %639 = vmatpush1.msra.mxu0 0.0
  %640 = vmatprep.subr.mxu0 0.0
  %641 = vmatpush1.msra.mxu0 0.0
  %642 = vmatprep.subr.mxu0 0.0
  %643 = vmatpush1.msra.mxu0 0.0
  %644 = vmatprep.subr.mxu0 0.0
  %645 = vmatpush1.msra.mxu0 0.0
  %646 = vmatprep.subr.mxu0 0.0
  %647 = vmatpush1.msra.mxu0 0.0
  %648 = vmatprep.subr.mxu0 0.0
  %649 = vmatpush1.msra.mxu0 0.0
  %650 = vmatprep.subr.mxu0 0.0
  %651 = vmatpush1.msra.mxu0 0.0
  %652 = vmatprep.subr.mxu0 0.0
  %653 = vmatpush1.msra.mxu0 0.0
  %654 = vmatprep.subr.mxu0 0.0
  %655 = vmatpush1.msra.mxu0 0.0
  %656 = vmatprep.subr.mxu0 0.0
  %657 = vmatpush1.msra.mxu0 0.0
  %658 = vmatprep.subr.mxu0 0.0
  %659 = vmatpush1.msra.mxu0 0.0
  %660 = vmatprep.subr.mxu0 0.0
  %661 = vmatpush1.msra.mxu0 0.0
  %662 = vmatprep.subr.mxu0 0.0
  %663 = vmatpush1.msra.mxu0 0.0
  %664 = vmatprep.mubr.f32.mxu0 0.0
  %665 = vmatmul.mubr.f32.gmra.mrb[0].mxu0 %v583
  %v666 = vpop.f32.mrb[0].mxu0
  %v667 = vadd.f32 0.0, %v666
  %v668 = vpop.f32.mrb[0].mxu0
  %v669 = vadd.f32 0.0, %v668
  %670 = vdwg.mxu0
  %671 = vmatprep.subr.mxu0 %v595
  %672 = vmatpush1.msra.mxu0 %v592
  %673 = vmatprep.subr.mxu0 0.0
  %674 = vmatpush1.msra.mxu0 0.0
  %675 = vmatprep.subr.mxu0 0.0
  %676 = vmatpush1.msra.mxu0 0.0
  %677 = vmatprep.subr.mxu0 0.0
  %678 = vmatpush1.msra.mxu0 0.0
  %679 = vmatprep.subr.mxu0 0.0
  %680 = vmatpush1.msra.mxu0 0.0
  %681 = vmatprep.subr.mxu0 0.0
  %682 = vmatpush1.msra.mxu0 0.0
  %683 = vmatprep.subr.mxu0 0.0
  %684 = vmatpush1.msra.mxu0 0.0
  %685 = vmatprep.subr.mxu0 0.0
  %686 = vmatpush1.msra.mxu0 0.0
  %687 = vmatprep.subr.mxu0 0.0
  %688 = vmatpush1.msra.mxu0 0.0
  %689 = vmatprep.subr.mxu0 0.0
  %690 = vmatpush1.msra.mxu0 0.0
  %691 = vmatprep.subr.mxu0 0.0
  %692 = vmatpush1.msra.mxu0 0.0
  %693 = vmatprep.subr.mxu0 0.0
  %694 = vmatpush1.msra.mxu0 0.0
  %695 = vmatprep.subr.mxu0 0.0
  %696 = vmatpush1.msra.mxu0 0.0
  %697 = vmatprep.subr.mxu0 0.0
  %698 = vmatpush1.msra.mxu0 0.0
  %699 = vmatprep.subr.mxu0 0.0
  %700 = vmatpush1.msra.mxu0 0.0
  %701 = vmatprep.subr.mxu0 0.0
  %702 = vmatpush1.msra.mxu0 0.0
  %703 = vmatprep.subr.mxu0 0.0
  %704 = vmatpush1.msra.mxu0 0.0
  %705 = vmatprep.subr.mxu0 0.0
  %706 = vmatpush1.msra.mxu0 0.0
  %707 = vmatprep.subr.mxu0 0.0
  %708 = vmatpush1.msra.mxu0 0.0
  %709 = vmatprep.subr.mxu0 0.0
  %710 = vmatpush1.msra.mxu0 0.0
  %711 = vmatprep.subr.mxu0 0.0
  %712 = vmatpush1.msra.mxu0 0.0
  %713 = vmatprep.subr.mxu0 0.0
  %714 = vmatpush1.msra.mxu0 0.0
  %715 = vmatprep.subr.mxu0 0.0
  %716 = vmatpush1.msra.mxu0 0.0
  %717 = vmatprep.subr.mxu0 0.0
  %718 = vmatpush1.msra.mxu0 0.0
  %719 = vmatprep.subr.mxu0 0.0
  %720 = vmatpush1.msra.mxu0 0.0
  %721 = vmatprep.subr.mxu0 0.0
  %722 = vmatpush1.msra.mxu0 0.0
  %723 = vmatprep.subr.mxu0 0.0
  %724 = vmatpush1.msra.mxu0 0.0
  %725 = vmatprep.subr.mxu0 0.0
  %726 = vmatpush1.msra.mxu0 0.0
  %727 = vmatprep.subr.mxu0 0.0
  %728 = vmatpush1.msra.mxu0 0.0
  %729 = vmatprep.subr.mxu0 0.0
  %730 = vmatpush1.msra.mxu0 0.0
  %731 = vmatprep.subr.mxu0 0.0
  %732 = vmatpush1.msra.mxu0 0.0
  %733 = vmatprep.subr.mxu0 0.0
  %734 = vmatpush1.msra.mxu0 0.0
  %735 = vmatprep.mubr.f32.mxu0 0.0
  %736 = vmatmul.mubr.f32.gmra.mrb[0].mxu0 %v583
  %v737 = vpop.f32.mrb[0].mxu0
  %v738 = vadd.f32 0.0, %v737
  %v739 = vpop.f32.mrb[0].mxu0
  %v740 = vadd.f32 0.0, %v739
  %741 = vdwg.mxu0
  %742 = vmatprep.subr.mxu0 0.0
  %743 = vmatpush1.msra.mxu0 %v598
  %744 = vmatprep.subr.mxu0 0.0
  %745 = vmatpush1.msra.mxu0 0.0
  %746 = vmatprep.subr.mxu0 0.0
  %747 = vmatpush1.msra.mxu0 0.0
  %748 = vmatprep.subr.mxu0 0.0
  %749 = vmatpush1.msra.mxu0 0.0
  %750 = vmatprep.subr.mxu0 0.0
  %751 = vmatpush1.msra.mxu0 0.0
  %752 = vmatprep.subr.mxu0 0.0
  %753 = vmatpush1.msra.mxu0 0.0
  %754 = vmatprep.subr.mxu0 0.0
  %755 = vmatpush1.msra.mxu0 0.0
  %756 = vmatprep.subr.mxu0 0.0
  %757 = vmatpush1.msra.mxu0 0.0
  %758 = vmatprep.subr.mxu0 0.0
  %759 = vmatpush1.msra.mxu0 0.0
  %760 = vmatprep.subr.mxu0 0.0
  %761 = vmatpush1.msra.mxu0 0.0
  %762 = vmatprep.subr.mxu0 0.0
  %763 = vmatpush1.msra.mxu0 0.0
  %764 = vmatprep.subr.mxu0 0.0
  %765 = vmatpush1.msra.mxu0 0.0
  %766 = vmatprep.subr.mxu0 0.0
  %767 = vmatpush1.msra.mxu0 0.0
  %768 = vmatprep.subr.mxu0 0.0
  %769 = vmatpush1.msra.mxu0 0.0
  %770 = vmatprep.subr.mxu0 0.0
  %771 = vmatpush1.msra.mxu0 0.0
  %772 = vmatprep.subr.mxu0 0.0
  %773 = vmatpush1.msra.mxu0 0.0
  %774 = vmatprep.subr.mxu0 0.0
  %775 = vmatpush1.msra.mxu0 0.0
  %776 = vmatprep.subr.mxu0 0.0
  %777 = vmatpush1.msra.mxu0 0.0
  %778 = vmatprep.subr.mxu0 0.0
  %779 = vmatpush1.msra.mxu0 0.0
  %780 = vmatprep.subr.mxu0 0.0
  %781 = vmatpush1.msra.mxu0 0.0
  %782 = vmatprep.subr.mxu0 0.0
  %783 = vmatpush1.msra.mxu0 0.0
  %784 = vmatprep.subr.mxu0 0.0
  %785 = vmatpush1.msra.mxu0 0.0
  %786 = vmatprep.subr.mxu0 0.0
  %787 = vmatpush1.msra.mxu0 0.0
  %788 = vmatprep.subr.mxu0 0.0
  %789 = vmatpush1.msra.mxu0 0.0
  %790 = vmatprep.subr.mxu0 0.0
  %791 = vmatpush1.msra.mxu0 0.0
  %792 = vmatprep.subr.mxu0 0.0
  %793 = vmatpush1.msra.mxu0 0.0
  %794 = vmatprep.subr.mxu0 0.0
  %795 = vmatpush1.msra.mxu0 0.0
  %796 = vmatprep.subr.mxu0 0.0
  %797 = vmatpush1.msra.mxu0 0.0
  %798 = vmatprep.subr.mxu0 0.0
  %799 = vmatpush1.msra.mxu0 0.0
  %800 = vmatprep.subr.mxu0 0.0
  %801 = vmatpush1.msra.mxu0 0.0
  %802 = vmatprep.subr.mxu0 0.0
  %803 = vmatpush1.msra.mxu0 0.0
  %804 = vmatprep.subr.mxu0 0.0
  %805 = vmatpush1.msra.mxu0 0.0
  %806 = vmatprep.mubr.f32.mxu0 0.0
  %807 = vmatmul.mubr.f32.gmra.mrb[0].mxu0 %v583
  %v808 = vpop.f32.mrb[0].mxu0
  %v809 = vadd.f32 0.0, %v808
  %v810 = vpop.f32.mrb[0].mxu0
  %811 = vdwg.mxu0
  %v812 = vadd.f32 %v419, %v667
  %v813 = vadd.f32 %v421, %v669
  %v814 = vadd.f32 %v490, %v738
  %v815 = vadd.f32 %v492, %v740
  %v816 = vadd.f32 %v561, %v809
  %s817 = scalar_lea.vmem %s4, 24
  %v818 = vld [vmem:[%s817] sm:$0xff]
  %819 = vrot.lane.b32.xlu0 %v44, 1
  %v820 = vpop.permute.xlu0 %819
  %821 = vrot.lane.b32.xlu0 %v52, 1
  %v822 = vpop.permute.xlu0 %821
  %823 = vrot.lane.b32.xlu0 %v51, 1
  %v824 = vpop.permute.xlu0 %823
  %825 = vrot.lane.b32.xlu0 %v53, 1
  %v826 = vpop.permute.xlu0 %825
  %827 = vrot.lane.b32.xlu0 %v60, 1
  %v828 = vpop.permute.xlu0 %827
  %vm829 = vcmp.lt.s32.totalorder %v77, 1
  %v830 = vsel %vm829, %v826, %v828
  %v831 = vsel %vm829, %v824, %v826
  %v832 = vsel %vm829, %v822, %v824
  %v833 = vsel %vm829, %v820, %v822
  %v834 = vsel %vm829, %v828, %v820
  %v836 = vsel %vm102, %v818, 0
  %v839 = vsel %vm106, %v834, 0
  %v842 = vsel %vm106, %v833, 0
  %v845 = vsel %vm106, %v832, 0
  %v848 = vsel %vm106, %v831, 0
  %v851 = vsel %vm106, %v830, 0
  %853 = vmatprep.subr.mxu0 %v842
  %854 = vmatpush1.msra.mxu0 %v839
  %855 = vmatprep.subr.mxu0 0.0
  %856 = vmatpush1.msra.mxu0 0.0
  %857 = vmatprep.subr.mxu0 0.0
  %858 = vmatpush1.msra.mxu0 0.0
  %859 = vmatprep.subr.mxu0 0.0
  %860 = vmatpush1.msra.mxu0 0.0
  %861 = vmatprep.subr.mxu0 0.0
  %862 = vmatpush1.msra.mxu0 0.0
  %863 = vmatprep.subr.mxu0 0.0
  %864 = vmatpush1.msra.mxu0 0.0
  %865 = vmatprep.subr.mxu0 0.0
  %866 = vmatpush1.msra.mxu0 0.0
  %867 = vmatprep.subr.mxu0 0.0
  %868 = vmatpush1.msra.mxu0 0.0
  %869 = vmatprep.subr.mxu0 0.0
  %870 = vmatpush1.msra.mxu0 0.0
  %871 = vmatprep.subr.mxu0 0.0
  %872 = vmatpush1.msra.mxu0 0.0
  %873 = vmatprep.subr.mxu0 0.0
  %874 = vmatpush1.msra.mxu0 0.0
  %875 = vmatprep.subr.mxu0 0.0
  %876 = vmatpush1.msra.mxu0 0.0
  %877 = vmatprep.subr.mxu0 0.0
  %878 = vmatpush1.msra.mxu0 0.0
  %879 = vmatprep.subr.mxu0 0.0
  %880 = vmatpush1.msra.mxu0 0.0
  %881 = vmatprep.subr.mxu0 0.0
  %882 = vmatpush1.msra.mxu0 0.0
  %883 = vmatprep.subr.mxu0 0.0
  %884 = vmatpush1.msra.mxu0 0.0
  %885 = vmatprep.subr.mxu0 0.0
  %886 = vmatpush1.msra.mxu0 0.0
  %887 = vmatprep.subr.mxu0 0.0
  %888 = vmatpush1.msra.mxu0 0.0
  %889 = vmatprep.subr.mxu0 0.0
  %890 = vmatpush1.msra.mxu0 0.0
  %891 = vmatprep.subr.mxu0 0.0
  %892 = vmatpush1.msra.mxu0 0.0
  %893 = vmatprep.subr.mxu0 0.0
  %894 = vmatpush1.msra.mxu0 0.0
  %895 = vmatprep.subr.mxu0 0.0
  %896 = vmatpush1.msra.mxu0 0.0
  %897 = vmatprep.subr.mxu0 0.0
  %898 = vmatpush1.msra.mxu0 0.0
  %899 = vmatprep.subr.mxu0 0.0
  %900 = vmatpush1.msra.mxu0 0.0
  %901 = vmatprep.subr.mxu0 0.0
  %902 = vmatpush1.msra.mxu0 0.0
  %903 = vmatprep.subr.mxu0 0.0
  %904 = vmatpush1.msra.mxu0 0.0
  %905 = vmatprep.subr.mxu0 0.0
  %906 = vmatpush1.msra.mxu0 0.0
  %907 = vmatprep.subr.mxu0 0.0
  %908 = vmatpush1.msra.mxu0 0.0
  %909 = vmatprep.subr.mxu0 0.0
  %910 = vmatpush1.msra.mxu0 0.0
  %911 = vmatprep.subr.mxu0 0.0
  %912 = vmatpush1.msra.mxu0 0.0
  %913 = vmatprep.subr.mxu0 0.0
  %914 = vmatpush1.msra.mxu0 0.0
  %915 = vmatprep.subr.mxu0 0.0
  %916 = vmatpush1.msra.mxu0 0.0
  %917 = vmatprep.mubr.f32.mxu0 0.0
  %918 = vmatmul.mubr.f32.gmra.mrb[0].mxu0 %v836
  %v919 = vpop.f32.mrb[0].mxu0
  %v920 = vadd.f32 0.0, %v919
  %v921 = vpop.f32.mrb[0].mxu0
  %v922 = vadd.f32 0.0, %v921
  %923 = vdwg.mxu0
  %924 = vmatprep.subr.mxu0 %v848
  %925 = vmatpush1.msra.mxu0 %v845
  %926 = vmatprep.subr.mxu0 0.0
  %927 = vmatpush1.msra.mxu0 0.0
  %928 = vmatprep.subr.mxu0 0.0
  %929 = vmatpush1.msra.mxu0 0.0
  %930 = vmatprep.subr.mxu0 0.0
  %931 = vmatpush1.msra.mxu0 0.0
  %932 = vmatprep.subr.mxu0 0.0
  %933 = vmatpush1.msra.mxu0 0.0
  %934 = vmatprep.subr.mxu0 0.0
  %935 = vmatpush1.msra.mxu0 0.0
  %936 = vmatprep.subr.mxu0 0.0
  %937 = vmatpush1.msra.mxu0 0.0
  %938 = vmatprep.subr.mxu0 0.0
  %939 = vmatpush1.msra.mxu0 0.0
  %940 = vmatprep.subr.mxu0 0.0
  %941 = vmatpush1.msra.mxu0 0.0
  %942 = vmatprep.subr.mxu0 0.0
  %943 = vmatpush1.msra.mxu0 0.0
  %944 = vmatprep.subr.mxu0 0.0
  %945 = vmatpush1.msra.mxu0 0.0
  %946 = vmatprep.subr.mxu0 0.0
  %947 = vmatpush1.msra.mxu0 0.0
  %948 = vmatprep.subr.mxu0 0.0
  %949 = vmatpush1.msra.mxu0 0.0
  %950 = vmatprep.subr.mxu0 0.0
  %951 = vmatpush1.msra.mxu0 0.0
  %952 = vmatprep.subr.mxu0 0.0
  %953 = vmatpush1.msra.mxu0 0.0
  %954 = vmatprep.subr.mxu0 0.0
  %955 = vmatpush1.msra.mxu0 0.0
  %956 = vmatprep.subr.mxu0 0.0
  %957 = vmatpush1.msra.mxu0 0.0
  %958 = vmatprep.subr.mxu0 0.0
  %959 = vmatpush1.msra.mxu0 0.0
  %960 = vmatprep.subr.mxu0 0.0
  %961 = vmatpush1.msra.mxu0 0.0
  %962 = vmatprep.subr.mxu0 0.0
  %963 = vmatpush1.msra.mxu0 0.0
  %964 = vmatprep.subr.mxu0 0.0
  %965 = vmatpush1.msra.mxu0 0.0
  %966 = vmatprep.subr.mxu0 0.0
  %967 = vmatpush1.msra.mxu0 0.0
  %968 = vmatprep.subr.mxu0 0.0
  %969 = vmatpush1.msra.mxu0 0.0
  %970 = vmatprep.subr.mxu0 0.0
  %971 = vmatpush1.msra.mxu0 0.0
  %972 = vmatprep.subr.mxu0 0.0
  %973 = vmatpush1.msra.mxu0 0.0
  %974 = vmatprep.subr.mxu0 0.0
  %975 = vmatpush1.msra.mxu0 0.0
  %976 = vmatprep.subr.mxu0 0.0
  %977 = vmatpush1.msra.mxu0 0.0
  %978 = vmatprep.subr.mxu0 0.0
  %979 = vmatpush1.msra.mxu0 0.0
  %980 = vmatprep.subr.mxu0 0.0
  %981 = vmatpush1.msra.mxu0 0.0
  %982 = vmatprep.subr.mxu0 0.0
  %983 = vmatpush1.msra.mxu0 0.0
  %984 = vmatprep.subr.mxu0 0.0
  %985 = vmatpush1.msra.mxu0 0.0
  %986 = vmatprep.subr.mxu0 0.0
  %987 = vmatpush1.msra.mxu0 0.0
  %988 = vmatprep.mubr.f32.mxu0 0.0
  %989 = vmatmul.mubr.f32.gmra.mrb[0].mxu0 %v836
  %v990 = vpop.f32.mrb[0].mxu0
  %v991 = vadd.f32 0.0, %v990
  %v992 = vpop.f32.mrb[0].mxu0
  %v993 = vadd.f32 0.0, %v992
  %994 = vdwg.mxu0
  %995 = vmatprep.subr.mxu0 0.0
  %996 = vmatpush1.msra.mxu0 %v851
  %997 = vmatprep.subr.mxu0 0.0
  %998 = vmatpush1.msra.mxu0 0.0
  %999 = vmatprep.subr.mxu0 0.0
  %1000 = vmatpush1.msra.mxu0 0.0
  %1001 = vmatprep.subr.mxu0 0.0
  %1002 = vmatpush1.msra.mxu0 0.0
  %1003 = vmatprep.subr.mxu0 0.0
  %1004 = vmatpush1.msra.mxu0 0.0
  %1005 = vmatprep.subr.mxu0 0.0
  %1006 = vmatpush1.msra.mxu0 0.0
  %1007 = vmatprep.subr.mxu0 0.0
  %1008 = vmatpush1.msra.mxu0 0.0
  %1009 = vmatprep.subr.mxu0 0.0
  %1010 = vmatpush1.msra.mxu0 0.0
  %1011 = vmatprep.subr.mxu0 0.0
  %1012 = vmatpush1.msra.mxu0 0.0
  %1013 = vmatprep.subr.mxu0 0.0
  %1014 = vmatpush1.msra.mxu0 0.0
  %1015 = vmatprep.subr.mxu0 0.0
  %1016 = vmatpush1.msra.mxu0 0.0
  %1017 = vmatprep.subr.mxu0 0.0
  %1018 = vmatpush1.msra.mxu0 0.0
  %1019 = vmatprep.subr.mxu0 0.0
  %1020 = vmatpush1.msra.mxu0 0.0
  %1021 = vmatprep.subr.mxu0 0.0
  %1022 = vmatpush1.msra.mxu0 0.0
  %1023 = vmatprep.subr.mxu0 0.0
  %1024 = vmatpush1.msra.mxu0 0.0
  %1025 = vmatprep.subr.mxu0 0.0
  %1026 = vmatpush1.msra.mxu0 0.0
  %1027 = vmatprep.subr.mxu0 0.0
  %1028 = vmatpush1.msra.mxu0 0.0
  %1029 = vmatprep.subr.mxu0 0.0
  %1030 = vmatpush1.msra.mxu0 0.0
  %1031 = vmatprep.subr.mxu0 0.0
  %1032 = vmatpush1.msra.mxu0 0.0
  %1033 = vmatprep.subr.mxu0 0.0
  %1034 = vmatpush1.msra.mxu0 0.0
  %1035 = vmatprep.subr.mxu0 0.0
  %1036 = vmatpush1.msra.mxu0 0.0
  %1037 = vmatprep.subr.mxu0 0.0
  %1038 = vmatpush1.msra.mxu0 0.0
  %1039 = vmatprep.subr.mxu0 0.0
  %1040 = vmatpush1.msra.mxu0 0.0
  %1041 = vmatprep.subr.mxu0 0.0
  %1042 = vmatpush1.msra.mxu0 0.0
  %1043 = vmatprep.subr.mxu0 0.0
  %1044 = vmatpush1.msra.mxu0 0.0
  %1045 = vmatprep.subr.mxu0 0.0
  %1046 = vmatpush1.msra.mxu0 0.0
  %1047 = vmatprep.subr.mxu0 0.0
  %1048 = vmatpush1.msra.mxu0 0.0
  %1049 = vmatprep.subr.mxu0 0.0
  %1050 = vmatpush1.msra.mxu0 0.0
  %1051 = vmatprep.subr.mxu0 0.0
  %1052 = vmatpush1.msra.mxu0 0.0
  %1053 = vmatprep.subr.mxu0 0.0
  %1054 = vmatpush1.msra.mxu0 0.0
  %1055 = vmatprep.subr.mxu0 0.0
  %1056 = vmatpush1.msra.mxu0 0.0
  %1057 = vmatprep.subr.mxu0 0.0
  %1058 = vmatpush1.msra.mxu0 0.0
  %1059 = vmatprep.mubr.f32.mxu0 0.0
  %1060 = vmatmul.mubr.f32.gmra.mrb[0].mxu0 %v836
  %v1061 = vpop.f32.mrb[0].mxu0
  %v1062 = vadd.f32 0.0, %v1061
  %v1063 = vpop.f32.mrb[0].mxu0
  %1064 = vdwg.mxu0
  %v1065 = vadd.f32 %v812, %v920
  %v1066 = vadd.f32 %v813, %v922
  %v1067 = vadd.f32 %v814, %v991
  %v1068 = vadd.f32 %v815, %v993
  %v1069 = vadd.f32 %v816, %v1062
  %s1070 = scalar_lea.vmem %s4, 32
  %v1071 = vld [vmem:[%s1070] sm:$0xff]
  %v1073 = vsel %vm102, %v1071, 0
  %v1075 = vsel %vm106, %v44, 0
  %v1077 = vsel %vm106, %v52, 0
  %v1079 = vsel %vm106, %v51, 0
  %v1081 = vsel %vm106, %v53, 0
  %v1083 = vsel %vm106, %v60, 0
  %1085 = vmatprep.subr.mxu0 %v1077
  %1086 = vmatpush1.msra.mxu0 %v1075
  %1087 = vmatprep.subr.mxu0 0.0
  %1088 = vmatpush1.msra.mxu0 0.0
  %1089 = vmatprep.subr.mxu0 0.0
  %1090 = vmatpush1.msra.mxu0 0.0
  %1091 = vmatprep.subr.mxu0 0.0
  %1092 = vmatpush1.msra.mxu0 0.0
  %1093 = vmatprep.subr.mxu0 0.0
  %1094 = vmatpush1.msra.mxu0 0.0
  %1095 = vmatprep.subr.mxu0 0.0
  %1096 = vmatpush1.msra.mxu0 0.0
  %1097 = vmatprep.subr.mxu0 0.0
  %1098 = vmatpush1.msra.mxu0 0.0
  %1099 = vmatprep.subr.mxu0 0.0
  %1100 = vmatpush1.msra.mxu0 0.0
  %1101 = vmatprep.subr.mxu0 0.0
  %1102 = vmatpush1.msra.mxu0 0.0
  %1103 = vmatprep.subr.mxu0 0.0
  %1104 = vmatpush1.msra.mxu0 0.0
  %1105 = vmatprep.subr.mxu0 0.0
  %1106 = vmatpush1.msra.mxu0 0.0
  %1107 = vmatprep.subr.mxu0 0.0
  %1108 = vmatpush1.msra.mxu0 0.0
  %1109 = vmatprep.subr.mxu0 0.0
  %1110 = vmatpush1.msra.mxu0 0.0
  %1111 = vmatprep.subr.mxu0 0.0
  %1112 = vmatpush1.msra.mxu0 0.0
  %1113 = vmatprep.subr.mxu0 0.0
  %1114 = vmatpush1.msra.mxu0 0.0
  %1115 = vmatprep.subr.mxu0 0.0
  %1116 = vmatpush1.msra.mxu0 0.0
  %1117 = vmatprep.subr.mxu0 0.0
  %1118 = vmatpush1.msra.mxu0 0.0
  %1119 = vmatprep.subr.mxu0 0.0
  %1120 = vmatpush1.msra.mxu0 0.0
  %1121 = vmatprep.subr.mxu0 0.0
  %1122 = vmatpush1.msra.mxu0 0.0
  %1123 = vmatprep.subr.mxu0 0.0
  %1124 = vmatpush1.msra.mxu0 0.0
  %1125 = vmatprep.subr.mxu0 0.0
  %1126 = vmatpush1.msra.mxu0 0.0
  %1127 = vmatprep.subr.mxu0 0.0
  %1128 = vmatpush1.msra.mxu0 0.0
  %1129 = vmatprep.subr.mxu0 0.0
  %1130 = vmatpush1.msra.mxu0 0.0
  %1131 = vmatprep.subr.mxu0 0.0
  %1132 = vmatpush1.msra.mxu0 0.0
  %1133 = vmatprep.subr.mxu0 0.0
  %1134 = vmatpush1.msra.mxu0 0.0
  %1135 = vmatprep.subr.mxu0 0.0
  %1136 = vmatpush1.msra.mxu0 0.0
  %1137 = vmatprep.subr.mxu0 0.0
  %1138 = vmatpush1.msra.mxu0 0.0
  %1139 = vmatprep.subr.mxu0 0.0
  %1140 = vmatpush1.msra.mxu0 0.0
  %1141 = vmatprep.subr.mxu0 0.0
  %1142 = vmatpush1.msra.mxu0 0.0
  %1143 = vmatprep.subr.mxu0 0.0
  %1144 = vmatpush1.msra.mxu0 0.0
  %1145 = vmatprep.subr.mxu0 0.0
  %1146 = vmatpush1.msra.mxu0 0.0
  %1147 = vmatprep.subr.mxu0 0.0
  %1148 = vmatpush1.msra.mxu0 0.0
  %1149 = vmatprep.mubr.f32.mxu0 0.0
  %1150 = vmatmul.mubr.f32.gmra.mrb[0].mxu0 %v1073
  %v1151 = vpop.f32.mrb[0].mxu0
  %v1152 = vadd.f32 0.0, %v1151
  %v1153 = vpop.f32.mrb[0].mxu0
  %v1154 = vadd.f32 0.0, %v1153
  %1155 = vdwg.mxu0
  %1156 = vmatprep.subr.mxu0 %v1081
  %1157 = vmatpush1.msra.mxu0 %v1079
  %1158 = vmatprep.subr.mxu0 0.0
  %1159 = vmatpush1.msra.mxu0 0.0
  %1160 = vmatprep.subr.mxu0 0.0
  %1161 = vmatpush1.msra.mxu0 0.0
  %1162 = vmatprep.subr.mxu0 0.0
  %1163 = vmatpush1.msra.mxu0 0.0
  %1164 = vmatprep.subr.mxu0 0.0
  %1165 = vmatpush1.msra.mxu0 0.0
  %1166 = vmatprep.subr.mxu0 0.0
  %1167 = vmatpush1.msra.mxu0 0.0
  %1168 = vmatprep.subr.mxu0 0.0
  %1169 = vmatpush1.msra.mxu0 0.0
  %1170 = vmatprep.subr.mxu0 0.0
  %1171 = vmatpush1.msra.mxu0 0.0
  %1172 = vmatprep.subr.mxu0 0.0
  %1173 = vmatpush1.msra.mxu0 0.0
  %1174 = vmatprep.subr.mxu0 0.0
  %1175 = vmatpush1.msra.mxu0 0.0
  %1176 = vmatprep.subr.mxu0 0.0
  %1177 = vmatpush1.msra.mxu0 0.0
  %1178 = vmatprep.subr.mxu0 0.0
  %1179 = vmatpush1.msra.mxu0 0.0
  %1180 = vmatprep.subr.mxu0 0.0
  %1181 = vmatpush1.msra.mxu0 0.0
  %1182 = vmatprep.subr.mxu0 0.0
  %1183 = vmatpush1.msra.mxu0 0.0
  %1184 = vmatprep.subr.mxu0 0.0
  %1185 = vmatpush1.msra.mxu0 0.0
  %1186 = vmatprep.subr.mxu0 0.0
  %1187 = vmatpush1.msra.mxu0 0.0
  %1188 = vmatprep.subr.mxu0 0.0
  %1189 = vmatpush1.msra.mxu0 0.0
  %1190 = vmatprep.subr.mxu0 0.0
  %1191 = vmatpush1.msra.mxu0 0.0
  %1192 = vmatprep.subr.mxu0 0.0
  %1193 = vmatpush1.msra.mxu0 0.0
  %1194 = vmatprep.subr.mxu0 0.0
  %1195 = vmatpush1.msra.mxu0 0.0
  %1196 = vmatprep.subr.mxu0 0.0
  %1197 = vmatpush1.msra.mxu0 0.0
  %1198 = vmatprep.subr.mxu0 0.0
  %1199 = vmatpush1.msra.mxu0 0.0
  %1200 = vmatprep.subr.mxu0 0.0
  %1201 = vmatpush1.msra.mxu0 0.0
  %1202 = vmatprep.subr.mxu0 0.0
  %1203 = vmatpush1.msra.mxu0 0.0
  %1204 = vmatprep.subr.mxu0 0.0
  %1205 = vmatpush1.msra.mxu0 0.0
  %1206 = vmatprep.subr.mxu0 0.0
  %1207 = vmatpush1.msra.mxu0 0.0
  %1208 = vmatprep.subr.mxu0 0.0
  %1209 = vmatpush1.msra.mxu0 0.0
  %1210 = vmatprep.subr.mxu0 0.0
  %1211 = vmatpush1.msra.mxu0 0.0
  %1212 = vmatprep.subr.mxu0 0.0
  %1213 = vmatpush1.msra.mxu0 0.0
  %1214 = vmatprep.subr.mxu0 0.0
  %1215 = vmatpush1.msra.mxu0 0.0
  %1216 = vmatprep.subr.mxu0 0.0
  %1217 = vmatpush1.msra.mxu0 0.0
  %1218 = vmatprep.subr.mxu0 0.0
  %1219 = vmatpush1.msra.mxu0 0.0
  %1220 = vmatprep.mubr.f32.mxu0 0.0
  %1221 = vmatmul.mubr.f32.gmra.mrb[0].mxu0 %v1073
  %v1222 = vpop.f32.mrb[0].mxu0
  %v1223 = vadd.f32 0.0, %v1222
  %v1224 = vpop.f32.mrb[0].mxu0
  %v1225 = vadd.f32 0.0, %v1224
  %1226 = vdwg.mxu0
  %1227 = vmatprep.subr.mxu0 0.0
  %1228 = vmatpush1.msra.mxu0 %v1083
  %1229 = vmatprep.subr.mxu0 0.0
  %1230 = vmatpush1.msra.mxu0 0.0
  %1231 = vmatprep.subr.mxu0 0.0
  %1232 = vmatpush1.msra.mxu0 0.0
  %1233 = vmatprep.subr.mxu0 0.0
  %1234 = vmatpush1.msra.mxu0 0.0
  %1235 = vmatprep.subr.mxu0 0.0
  %1236 = vmatpush1.msra.mxu0 0.0
  %1237 = vmatprep.subr.mxu0 0.0
  %1238 = vmatpush1.msra.mxu0 0.0
  %1239 = vmatprep.subr.mxu0 0.0
  %1240 = vmatpush1.msra.mxu0 0.0
  %1241 = vmatprep.subr.mxu0 0.0
  %1242 = vmatpush1.msra.mxu0 0.0
  %1243 = vmatprep.subr.mxu0 0.0
  %1244 = vmatpush1.msra.mxu0 0.0
  %1245 = vmatprep.subr.mxu0 0.0
  %1246 = vmatpush1.msra.mxu0 0.0
  %1247 = vmatprep.subr.mxu0 0.0
  %1248 = vmatpush1.msra.mxu0 0.0
  %1249 = vmatprep.subr.mxu0 0.0
  %1250 = vmatpush1.msra.mxu0 0.0
  %1251 = vmatprep.subr.mxu0 0.0
  %1252 = vmatpush1.msra.mxu0 0.0
  %1253 = vmatprep.subr.mxu0 0.0
  %1254 = vmatpush1.msra.mxu0 0.0
  %1255 = vmatprep.subr.mxu0 0.0
  %1256 = vmatpush1.msra.mxu0 0.0
  %1257 = vmatprep.subr.mxu0 0.0
  %1258 = vmatpush1.msra.mxu0 0.0
  %1259 = vmatprep.subr.mxu0 0.0
  %1260 = vmatpush1.msra.mxu0 0.0
  %1261 = vmatprep.subr.mxu0 0.0
  %1262 = vmatpush1.msra.mxu0 0.0
  %1263 = vmatprep.subr.mxu0 0.0
  %1264 = vmatpush1.msra.mxu0 0.0
  %1265 = vmatprep.subr.mxu0 0.0
  %1266 = vmatpush1.msra.mxu0 0.0
  %1267 = vmatprep.subr.mxu0 0.0
  %1268 = vmatpush1.msra.mxu0 0.0
  %1269 = vmatprep.subr.mxu0 0.0
  %1270 = vmatpush1.msra.mxu0 0.0
  %1271 = vmatprep.subr.mxu0 0.0
  %1272 = vmatpush1.msra.mxu0 0.0
  %1273 = vmatprep.subr.mxu0 0.0
  %1274 = vmatpush1.msra.mxu0 0.0
  %1275 = vmatprep.subr.mxu0 0.0
  %1276 = vmatpush1.msra.mxu0 0.0
  %1277 = vmatprep.subr.mxu0 0.0
  %1278 = vmatpush1.msra.mxu0 0.0
  %1279 = vmatprep.subr.mxu0 0.0
  %1280 = vmatpush1.msra.mxu0 0.0
  %1281 = vmatprep.subr.mxu0 0.0
  %1282 = vmatpush1.msra.mxu0 0.0
  %1283 = vmatprep.subr.mxu0 0.0
  %1284 = vmatpush1.msra.mxu0 0.0
  %1285 = vmatprep.subr.mxu0 0.0
  %1286 = vmatpush1.msra.mxu0 0.0
  %1287 = vmatprep.subr.mxu0 0.0
  %1288 = vmatpush1.msra.mxu0 0.0
  %1289 = vmatprep.subr.mxu0 0.0
  %1290 = vmatpush1.msra.mxu0 0.0
  %1291 = vmatprep.mubr.f32.mxu0 0.0
  %1292 = vmatmul.mubr.f32.gmra.mrb[0].mxu0 %v1073
  %v1293 = vpop.f32.mrb[0].mxu0
  %v1294 = vadd.f32 0.0, %v1293
  %v1295 = vpop.f32.mrb[0].mxu0
  %1296 = vdwg.mxu0
  %v1297 = vadd.f32 %v1065, %v1152
  %v1298 = vadd.f32 %v1066, %v1154
  %v1299 = vadd.f32 %v1067, %v1223
  %v1300 = vadd.f32 %v1068, %v1225
  %v1301 = vadd.f32 %v1069, %v1294
  %s1302 = scalar_lea.vmem %s4, 40
  %v1303 = vld [vmem:[%s1302] sm:$0xff]
  %1304 = vrot.lane.b32.xlu0 %v44, 127
  %v1305 = vpop.permute.xlu0 %1304
  %1306 = vrot.lane.b32.xlu0 %v52, 127
  %v1307 = vpop.permute.xlu0 %1306
  %1308 = vrot.lane.b32.xlu0 %v51, 127
  %v1309 = vpop.permute.xlu0 %1308
  %1310 = vrot.lane.b32.xlu0 %v53, 127
  %v1311 = vpop.permute.xlu0 %1310
  %1312 = vrot.lane.b32.xlu0 %v60, 127
  %v1313 = vpop.permute.xlu0 %1312
  %vm1314 = vcmp.lt.s32.totalorder %v77, 127
  %v1315 = vsel %vm1314, %v1311, %v1313
  %v1316 = vsel %vm1314, %v1309, %v1311
  %v1317 = vsel %vm1314, %v1307, %v1309
  %v1318 = vsel %vm1314, %v1305, %v1307
  %v1319 = vsel %vm1314, %v1313, %v1305
  %v1321 = vsel %vm102, %v1303, 0
  %v1324 = vsel %vm106, %v1318, 0
  %v1327 = vsel %vm106, %v1317, 0
  %v1330 = vsel %vm106, %v1316, 0
  %v1333 = vsel %vm106, %v1315, 0
  %v1336 = vsel %vm106, %v1319, 0
  %1338 = vmatprep.subr.mxu0 %v1327
  %1339 = vmatpush1.msra.mxu0 %v1324
  %1340 = vmatprep.subr.mxu0 0.0
  %1341 = vmatpush1.msra.mxu0 0.0
  %1342 = vmatprep.subr.mxu0 0.0
  %1343 = vmatpush1.msra.mxu0 0.0
  %1344 = vmatprep.subr.mxu0 0.0
  %1345 = vmatpush1.msra.mxu0 0.0
  %1346 = vmatprep.subr.mxu0 0.0
  %1347 = vmatpush1.msra.mxu0 0.0
  %1348 = vmatprep.subr.mxu0 0.0
  %1349 = vmatpush1.msra.mxu0 0.0
  %1350 = vmatprep.subr.mxu0 0.0
  %1351 = vmatpush1.msra.mxu0 0.0
  %1352 = vmatprep.subr.mxu0 0.0
  %1353 = vmatpush1.msra.mxu0 0.0
  %1354 = vmatprep.subr.mxu0 0.0
  %1355 = vmatpush1.msra.mxu0 0.0
  %1356 = vmatprep.subr.mxu0 0.0
  %1357 = vmatpush1.msra.mxu0 0.0
  %1358 = vmatprep.subr.mxu0 0.0
  %1359 = vmatpush1.msra.mxu0 0.0
  %1360 = vmatprep.subr.mxu0 0.0
  %1361 = vmatpush1.msra.mxu0 0.0
  %1362 = vmatprep.subr.mxu0 0.0
  %1363 = vmatpush1.msra.mxu0 0.0
  %1364 = vmatprep.subr.mxu0 0.0
  %1365 = vmatpush1.msra.mxu0 0.0
  %1366 = vmatprep.subr.mxu0 0.0
  %1367 = vmatpush1.msra.mxu0 0.0
  %1368 = vmatprep.subr.mxu0 0.0
  %1369 = vmatpush1.msra.mxu0 0.0
  %1370 = vmatprep.subr.mxu0 0.0
  %1371 = vmatpush1.msra.mxu0 0.0
  %1372 = vmatprep.subr.mxu0 0.0
  %1373 = vmatpush1.msra.mxu0 0.0
  %1374 = vmatprep.subr.mxu0 0.0
  %1375 = vmatpush1.msra.mxu0 0.0
  %1376 = vmatprep.subr.mxu0 0.0
  %1377 = vmatpush1.msra.mxu0 0.0
  %1378 = vmatprep.subr.mxu0 0.0
  %1379 = vmatpush1.msra.mxu0 0.0
  %1380 = vmatprep.subr.mxu0 0.0
  %1381 = vmatpush1.msra.mxu0 0.0
  %1382 = vmatprep.subr.mxu0 0.0
  %1383 = vmatpush1.msra.mxu0 0.0
  %1384 = vmatprep.subr.mxu0 0.0
  %1385 = vmatpush1.msra.mxu0 0.0
  %1386 = vmatprep.subr.mxu0 0.0
  %1387 = vmatpush1.msra.mxu0 0.0
  %1388 = vmatprep.subr.mxu0 0.0
  %1389 = vmatpush1.msra.mxu0 0.0
  %1390 = vmatprep.subr.mxu0 0.0
  %1391 = vmatpush1.msra.mxu0 0.0
  %1392 = vmatprep.subr.mxu0 0.0
  %1393 = vmatpush1.msra.mxu0 0.0
  %1394 = vmatprep.subr.mxu0 0.0
  %1395 = vmatpush1.msra.mxu0 0.0
  %1396 = vmatprep.subr.mxu0 0.0
  %1397 = vmatpush1.msra.mxu0 0.0
  %1398 = vmatprep.subr.mxu0 0.0
  %1399 = vmatpush1.msra.mxu0 0.0
  %1400 = vmatprep.subr.mxu0 0.0
  %1401 = vmatpush1.msra.mxu0 0.0
  %1402 = vmatprep.mubr.f32.mxu0 0.0
  %1403 = vmatmul.mubr.f32.gmra.mrb[0].mxu0 %v1321
  %v1404 = vpop.f32.mrb[0].mxu0
  %v1405 = vadd.f32 0.0, %v1404
  %v1406 = vpop.f32.mrb[0].mxu0
  %v1407 = vadd.f32 0.0, %v1406
  %1408 = vdwg.mxu0
  %1409 = vmatprep.subr.mxu0 %v1333
  %1410 = vmatpush1.msra.mxu0 %v1330
  %1411 = vmatprep.subr.mxu0 0.0
  %1412 = vmatpush1.msra.mxu0 0.0
  %1413 = vmatprep.subr.mxu0 0.0
  %1414 = vmatpush1.msra.mxu0 0.0
  %1415 = vmatprep.subr.mxu0 0.0
  %1416 = vmatpush1.msra.mxu0 0.0
  %1417 = vmatprep.subr.mxu0 0.0
  %1418 = vmatpush1.msra.mxu0 0.0
  %1419 = vmatprep.subr.mxu0 0.0
  %1420 = vmatpush1.msra.mxu0 0.0
  %1421 = vmatprep.subr.mxu0 0.0
  %1422 = vmatpush1.msra.mxu0 0.0
  %1423 = vmatprep.subr.mxu0 0.0
  %1424 = vmatpush1.msra.mxu0 0.0
  %1425 = vmatprep.subr.mxu0 0.0
  %1426 = vmatpush1.msra.mxu0 0.0
  %1427 = vmatprep.subr.mxu0 0.0
  %1428 = vmatpush1.msra.mxu0 0.0
  %1429 = vmatprep.subr.mxu0 0.0
  %1430 = vmatpush1.msra.mxu0 0.0
  %1431 = vmatprep.subr.mxu0 0.0
  %1432 = vmatpush1.msra.mxu0 0.0
  %1433 = vmatprep.subr.mxu0 0.0
  %1434 = vmatpush1.msra.mxu0 0.0
  %1435 = vmatprep.subr.mxu0 0.0
  %1436 = vmatpush1.msra.mxu0 0.0
  %1437 = vmatprep.subr.mxu0 0.0
  %1438 = vmatpush1.msra.mxu0 0.0
  %1439 = vmatprep.subr.mxu0 0.0
  %1440 = vmatpush1.msra.mxu0 0.0
  %1441 = vmatprep.subr.mxu0 0.0
  %1442 = vmatpush1.msra.mxu0 0.0
  %1443 = vmatprep.subr.mxu0 0.0
  %1444 = vmatpush1.msra.mxu0 0.0
  %1445 = vmatprep.subr.mxu0 0.0
  %1446 = vmatpush1.msra.mxu0 0.0
  %1447 = vmatprep.subr.mxu0 0.0
  %1448 = vmatpush1.msra.mxu0 0.0
  %1449 = vmatprep.subr.mxu0 0.0
  %1450 = vmatpush1.msra.mxu0 0.0
  %1451 = vmatprep.subr.mxu0 0.0
  %1452 = vmatpush1.msra.mxu0 0.0
  %1453 = vmatprep.subr.mxu0 0.0
  %1454 = vmatpush1.msra.mxu0 0.0
  %1455 = vmatprep.subr.mxu0 0.0
  %1456 = vmatpush1.msra.mxu0 0.0
  %1457 = vmatprep.subr.mxu0 0.0
  %1458 = vmatpush1.msra.mxu0 0.0
  %1459 = vmatprep.subr.mxu0 0.0
  %1460 = vmatpush1.msra.mxu0 0.0
  %1461 = vmatprep.subr.mxu0 0.0
  %1462 = vmatpush1.msra.mxu0 0.0
  %1463 = vmatprep.subr.mxu0 0.0
  %1464 = vmatpush1.msra.mxu0 0.0
  %1465 = vmatprep.subr.mxu0 0.0
  %1466 = vmatpush1.msra.mxu0 0.0
  %1467 = vmatprep.subr.mxu0 0.0
  %1468 = vmatpush1.msra.mxu0 0.0
  %1469 = vmatprep.subr.mxu0 0.0
  %1470 = vmatpush1.msra.mxu0 0.0
  %1471 = vmatprep.subr.mxu0 0.0
  %1472 = vmatpush1.msra.mxu0 0.0
  %1473 = vmatprep.mubr.f32.mxu0 0.0
  %1474 = vmatmul.mubr.f32.gmra.mrb[0].mxu0 %v1321
  %v1475 = vpop.f32.mrb[0].mxu0
  %v1476 = vadd.f32 0.0, %v1475
  %v1477 = vpop.f32.mrb[0].mxu0
  %v1478 = vadd.f32 0.0, %v1477
  %1479 = vdwg.mxu0
  %1480 = vmatprep.subr.mxu0 0.0
  %1481 = vmatpush1.msra.mxu0 %v1336
  %1482 = vmatprep.subr.mxu0 0.0
  %1483 = vmatpush1.msra.mxu0 0.0
  %1484 = vmatprep.subr.mxu0 0.0
  %1485 = vmatpush1.msra.mxu0 0.0
  %1486 = vmatprep.subr.mxu0 0.0
  %1487 = vmatpush1.msra.mxu0 0.0
  %1488 = vmatprep.subr.mxu0 0.0
  %1489 = vmatpush1.msra.mxu0 0.0
  %1490 = vmatprep.subr.mxu0 0.0
  %1491 = vmatpush1.msra.mxu0 0.0
  %1492 = vmatprep.subr.mxu0 0.0
  %1493 = vmatpush1.msra.mxu0 0.0
  %1494 = vmatprep.subr.mxu0 0.0
  %1495 = vmatpush1.msra.mxu0 0.0
  %1496 = vmatprep.subr.mxu0 0.0
  %1497 = vmatpush1.msra.mxu0 0.0
  %1498 = vmatprep.subr.mxu0 0.0
  %1499 = vmatpush1.msra.mxu0 0.0
  %1500 = vmatprep.subr.mxu0 0.0
  %1501 = vmatpush1.msra.mxu0 0.0
  %1502 = vmatprep.subr.mxu0 0.0
  %1503 = vmatpush1.msra.mxu0 0.0
  %1504 = vmatprep.subr.mxu0 0.0
  %1505 = vmatpush1.msra.mxu0 0.0
  %1506 = vmatprep.subr.mxu0 0.0
  %1507 = vmatpush1.msra.mxu0 0.0
  %1508 = vmatprep.subr.mxu0 0.0
  %1509 = vmatpush1.msra.mxu0 0.0
  %1510 = vmatprep.subr.mxu0 0.0
  %1511 = vmatpush1.msra.mxu0 0.0
  %1512 = vmatprep.subr.mxu0 0.0
  %1513 = vmatpush1.msra.mxu0 0.0
  %1514 = vmatprep.subr.mxu0 0.0
  %1515 = vmatpush1.msra.mxu0 0.0
  %1516 = vmatprep.subr.mxu0 0.0
  %1517 = vmatpush1.msra.mxu0 0.0
  %1518 = vmatprep.subr.mxu0 0.0
  %1519 = vmatpush1.msra.mxu0 0.0
  %1520 = vmatprep.subr.mxu0 0.0
  %1521 = vmatpush1.msra.mxu0 0.0
  %1522 = vmatprep.subr.mxu0 0.0
  %1523 = vmatpush1.msra.mxu0 0.0
  %1524 = vmatprep.subr.mxu0 0.0
  %1525 = vmatpush1.msra.mxu0 0.0
  %1526 = vmatprep.subr.mxu0 0.0
  %1527 = vmatpush1.msra.mxu0 0.0
  %1528 = vmatprep.subr.mxu0 0.0
  %1529 = vmatpush1.msra.mxu0 0.0
  %1530 = vmatprep.subr.mxu0 0.0
  %1531 = vmatpush1.msra.mxu0 0.0
  %1532 = vmatprep.subr.mxu0 0.0
  %1533 = vmatpush1.msra.mxu0 0.0
  %1534 = vmatprep.subr.mxu0 0.0
  %1535 = vmatpush1.msra.mxu0 0.0
  %1536 = vmatprep.subr.mxu0 0.0
  %1537 = vmatpush1.msra.mxu0 0.0
  %1538 = vmatprep.subr.mxu0 0.0
  %1539 = vmatpush1.msra.mxu0 0.0
  %1540 = vmatprep.subr.mxu0 0.0
  %1541 = vmatpush1.msra.mxu0 0.0
  %1542 = vmatprep.subr.mxu0 0.0
  %1543 = vmatpush1.msra.mxu0 0.0
  %1544 = vmatprep.mubr.f32.mxu0 0.0
  %1545 = vmatmul.mubr.f32.gmra.mrb[0].mxu0 %v1321
  %v1546 = vpop.f32.mrb[0].mxu0
  %v1547 = vadd.f32 0.0, %v1546
  %v1548 = vpop.f32.mrb[0].mxu0
  %1549 = vdwg.mxu0
  %v1550 = vadd.f32 %v1297, %v1405
  %v1551 = vadd.f32 %v1298, %v1407
  %v1552 = vadd.f32 %v1299, %v1476
  %v1553 = vadd.f32 %v1300, %v1478
  %v1554 = vadd.f32 %v1301, %v1547
  %s1555 = scalar_lea.vmem %s4, 48
  %v1556 = vld [vmem:[%s1555] sm:$0xff]
  %1557 = vrot.lane.b32.xlu0 %v44, 116
  %v1558 = vpop.permute.xlu0 %1557
  %1559 = vrot.lane.b32.xlu0 %v52, 116
  %v1560 = vpop.permute.xlu0 %1559
  %1561 = vrot.lane.b32.xlu0 %v51, 116
  %v1562 = vpop.permute.xlu0 %1561
  %1563 = vrot.lane.b32.xlu0 %v53, 116
  %v1564 = vpop.permute.xlu0 %1563
  %1565 = vrot.lane.b32.xlu0 %v60, 116
  %v1566 = vpop.permute.xlu0 %1565
  %vm1567 = vcmp.lt.s32.totalorder %v77, 116
  %v1568 = vsel %vm1567, %v1564, %v1566
  %v1569 = vsel %vm1567, %v1562, %v1564
  %v1570 = vsel %vm1567, %v1560, %v1562
  %v1571 = vsel %vm1567, %v1558, %v1560
  %v1572 = vsel %vm1567, %v1566, %v1558
  %v1574 = vsel %vm102, %v1556, 0
  %v1577 = vsel %vm106, %v1571, 0
  %v1580 = vsel %vm106, %v1570, 0
  %v1583 = vsel %vm106, %v1569, 0
  %v1586 = vsel %vm106, %v1568, 0
  %v1589 = vsel %vm106, %v1572, 0
  %1591 = vmatprep.subr.mxu0 %v1580
  %1592 = vmatpush1.msra.mxu0 %v1577
  %1593 = vmatprep.subr.mxu0 0.0
  %1594 = vmatpush1.msra.mxu0 0.0
  %1595 = vmatprep.subr.mxu0 0.0
  %1596 = vmatpush1.msra.mxu0 0.0
  %1597 = vmatprep.subr.mxu0 0.0
  %1598 = vmatpush1.msra.mxu0 0.0
  %1599 = vmatprep.subr.mxu0 0.0
  %1600 = vmatpush1.msra.mxu0 0.0
  %1601 = vmatprep.subr.mxu0 0.0
  %1602 = vmatpush1.msra.mxu0 0.0
  %1603 = vmatprep.subr.mxu0 0.0
  %1604 = vmatpush1.msra.mxu0 0.0
  %1605 = vmatprep.subr.mxu0 0.0
  %1606 = vmatpush1.msra.mxu0 0.0
  %1607 = vmatprep.subr.mxu0 0.0
  %1608 = vmatpush1.msra.mxu0 0.0
  %1609 = vmatprep.subr.mxu0 0.0
  %1610 = vmatpush1.msra.mxu0 0.0
  %1611 = vmatprep.subr.mxu0 0.0
  %1612 = vmatpush1.msra.mxu0 0.0
  %1613 = vmatprep.subr.mxu0 0.0
  %1614 = vmatpush1.msra.mxu0 0.0
  %1615 = vmatprep.subr.mxu0 0.0
  %1616 = vmatpush1.msra.mxu0 0.0
  %1617 = vmatprep.subr.mxu0 0.0
  %1618 = vmatpush1.msra.mxu0 0.0
  %1619 = vmatprep.subr.mxu0 0.0
  %1620 = vmatpush1.msra.mxu0 0.0
  %1621 = vmatprep.subr.mxu0 0.0
  %1622 = vmatpush1.msra.mxu0 0.0
  %1623 = vmatprep.subr.mxu0 0.0
  %1624 = vmatpush1.msra.mxu0 0.0
  %1625 = vmatprep.subr.mxu0 0.0
  %1626 = vmatpush1.msra.mxu0 0.0
  %1627 = vmatprep.subr.mxu0 0.0
  %1628 = vmatpush1.msra.mxu0 0.0
  %1629 = vmatprep.subr.mxu0 0.0
  %1630 = vmatpush1.msra.mxu0 0.0
  %1631 = vmatprep.subr.mxu0 0.0
  %1632 = vmatpush1.msra.mxu0 0.0
  %1633 = vmatprep.subr.mxu0 0.0
  %1634 = vmatpush1.msra.mxu0 0.0
  %1635 = vmatprep.subr.mxu0 0.0
  %1636 = vmatpush1.msra.mxu0 0.0
  %1637 = vmatprep.subr.mxu0 0.0
  %1638 = vmatpush1.msra.mxu0 0.0
  %1639 = vmatprep.subr.mxu0 0.0
  %1640 = vmatpush1.msra.mxu0 0.0
  %1641 = vmatprep.subr.mxu0 0.0
  %1642 = vmatpush1.msra.mxu0 0.0
  %1643 = vmatprep.subr.mxu0 0.0
  %1644 = vmatpush1.msra.mxu0 0.0
  %1645 = vmatprep.subr.mxu0 0.0
  %1646 = vmatpush1.msra.mxu0 0.0
  %1647 = vmatprep.subr.mxu0 0.0
  %1648 = vmatpush1.msra.mxu0 0.0
  %1649 = vmatprep.subr.mxu0 0.0
  %1650 = vmatpush1.msra.mxu0 0.0
  %1651 = vmatprep.subr.mxu0 0.0
  %1652 = vmatpush1.msra.mxu0 0.0
  %1653 = vmatprep.subr.mxu0 0.0
  %1654 = vmatpush1.msra.mxu0 0.0
  %1655 = vmatprep.mubr.f32.mxu0 0.0
  %1656 = vmatmul.mubr.f32.gmra.mrb[0].mxu0 %v1574
  %v1657 = vpop.f32.mrb[0].mxu0
  %v1658 = vadd.f32 0.0, %v1657
  %v1659 = vpop.f32.mrb[0].mxu0
  %v1660 = vadd.f32 0.0, %v1659
  %1661 = vdwg.mxu0
  %1662 = vmatprep.subr.mxu0 %v1586
  %1663 = vmatpush1.msra.mxu0 %v1583
  %1664 = vmatprep.subr.mxu0 0.0
  %1665 = vmatpush1.msra.mxu0 0.0
  %1666 = vmatprep.subr.mxu0 0.0
  %1667 = vmatpush1.msra.mxu0 0.0
  %1668 = vmatprep.subr.mxu0 0.0
  %1669 = vmatpush1.msra.mxu0 0.0
  %1670 = vmatprep.subr.mxu0 0.0
  %1671 = vmatpush1.msra.mxu0 0.0
  %1672 = vmatprep.subr.mxu0 0.0
  %1673 = vmatpush1.msra.mxu0 0.0
  %1674 = vmatprep.subr.mxu0 0.0
  %1675 = vmatpush1.msra.mxu0 0.0
  %1676 = vmatprep.subr.mxu0 0.0
  %1677 = vmatpush1.msra.mxu0 0.0
  %1678 = vmatprep.subr.mxu0 0.0
  %1679 = vmatpush1.msra.mxu0 0.0
  %1680 = vmatprep.subr.mxu0 0.0
  %1681 = vmatpush1.msra.mxu0 0.0
  %1682 = vmatprep.subr.mxu0 0.0
  %1683 = vmatpush1.msra.mxu0 0.0
  %1684 = vmatprep.subr.mxu0 0.0
  %1685 = vmatpush1.msra.mxu0 0.0
  %1686 = vmatprep.subr.mxu0 0.0
  %1687 = vmatpush1.msra.mxu0 0.0
  %1688 = vmatprep.subr.mxu0 0.0
  %1689 = vmatpush1.msra.mxu0 0.0
  %1690 = vmatprep.subr.mxu0 0.0
  %1691 = vmatpush1.msra.mxu0 0.0
  %1692 = vmatprep.subr.mxu0 0.0
  %1693 = vmatpush1.msra.mxu0 0.0
  %1694 = vmatprep.subr.mxu0 0.0
  %1695 = vmatpush1.msra.mxu0 0.0
  %1696 = vmatprep.subr.mxu0 0.0
  %1697 = vmatpush1.msra.mxu0 0.0
  %1698 = vmatprep.subr.mxu0 0.0
  %1699 = vmatpush1.msra.mxu0 0.0
  %1700 = vmatprep.subr.mxu0 0.0
  %1701 = vmatpush1.msra.mxu0 0.0
  %1702 = vmatprep.subr.mxu0 0.0
  %1703 = vmatpush1.msra.mxu0 0.0
  %1704 = vmatprep.subr.mxu0 0.0
  %1705 = vmatpush1.msra.mxu0 0.0
  %1706 = vmatprep.subr.mxu0 0.0
  %1707 = vmatpush1.msra.mxu0 0.0
  %1708 = vmatprep.subr.mxu0 0.0
  %1709 = vmatpush1.msra.mxu0 0.0
  %1710 = vmatprep.subr.mxu0 0.0
  %1711 = vmatpush1.msra.mxu0 0.0
  %1712 = vmatprep.subr.mxu0 0.0
  %1713 = vmatpush1.msra.mxu0 0.0
  %1714 = vmatprep.subr.mxu0 0.0
  %1715 = vmatpush1.msra.mxu0 0.0
  %1716 = vmatprep.subr.mxu0 0.0
  %1717 = vmatpush1.msra.mxu0 0.0
  %1718 = vmatprep.subr.mxu0 0.0
  %1719 = vmatpush1.msra.mxu0 0.0
  %1720 = vmatprep.subr.mxu0 0.0
  %1721 = vmatpush1.msra.mxu0 0.0
  %1722 = vmatprep.subr.mxu0 0.0
  %1723 = vmatpush1.msra.mxu0 0.0
  %1724 = vmatprep.subr.mxu0 0.0
  %1725 = vmatpush1.msra.mxu0 0.0
  %1726 = vmatprep.mubr.f32.mxu0 0.0
  %1727 = vmatmul.mubr.f32.gmra.mrb[0].mxu0 %v1574
  %v1728 = vpop.f32.mrb[0].mxu0
  %v1729 = vadd.f32 0.0, %v1728
  %v1730 = vpop.f32.mrb[0].mxu0
  %v1731 = vadd.f32 0.0, %v1730
  %1732 = vdwg.mxu0
  %1733 = vmatprep.subr.mxu0 0.0
  %1734 = vmatpush1.msra.mxu0 %v1589
  %1735 = vmatprep.subr.mxu0 0.0
  %1736 = vmatpush1.msra.mxu0 0.0
  %1737 = vmatprep.subr.mxu0 0.0
  %1738 = vmatpush1.msra.mxu0 0.0
  %1739 = vmatprep.subr.mxu0 0.0
  %1740 = vmatpush1.msra.mxu0 0.0
  %1741 = vmatprep.subr.mxu0 0.0
  %1742 = vmatpush1.msra.mxu0 0.0
  %1743 = vmatprep.subr.mxu0 0.0
  %1744 = vmatpush1.msra.mxu0 0.0
  %1745 = vmatprep.subr.mxu0 0.0
  %1746 = vmatpush1.msra.mxu0 0.0
  %1747 = vmatprep.subr.mxu0 0.0
  %1748 = vmatpush1.msra.mxu0 0.0
  %1749 = vmatprep.subr.mxu0 0.0
  %1750 = vmatpush1.msra.mxu0 0.0
  %1751 = vmatprep.subr.mxu0 0.0
  %1752 = vmatpush1.msra.mxu0 0.0
  %1753 = vmatprep.subr.mxu0 0.0
  %1754 = vmatpush1.msra.mxu0 0.0
  %1755 = vmatprep.subr.mxu0 0.0
  %1756 = vmatpush1.msra.mxu0 0.0
  %1757 = vmatprep.subr.mxu0 0.0
  %1758 = vmatpush1.msra.mxu0 0.0
  %1759 = vmatprep.subr.mxu0 0.0
  %1760 = vmatpush1.msra.mxu0 0.0
  %1761 = vmatprep.subr.mxu0 0.0
  %1762 = vmatpush1.msra.mxu0 0.0
  %1763 = vmatprep.subr.mxu0 0.0
  %1764 = vmatpush1.msra.mxu0 0.0
  %1765 = vmatprep.subr.mxu0 0.0
  %1766 = vmatpush1.msra.mxu0 0.0
  %1767 = vmatprep.subr.mxu0 0.0
  %1768 = vmatpush1.msra.mxu0 0.0
  %1769 = vmatprep.subr.mxu0 0.0
  %1770 = vmatpush1.msra.mxu0 0.0
  %1771 = vmatprep.subr.mxu0 0.0
  %1772 = vmatpush1.msra.mxu0 0.0
  %1773 = vmatprep.subr.mxu0 0.0
  %1774 = vmatpush1.msra.mxu0 0.0
  %1775 = vmatprep.subr.mxu0 0.0
  %1776 = vmatpush1.msra.mxu0 0.0
  %1777 = vmatprep.subr.mxu0 0.0
  %1778 = vmatpush1.msra.mxu0 0.0
  %1779 = vmatprep.subr.mxu0 0.0
  %1780 = vmatpush1.msra.mxu0 0.0
  %1781 = vmatprep.subr.mxu0 0.0
  %1782 = vmatpush1.msra.mxu0 0.0
  %1783 = vmatprep.subr.mxu0 0.0
  %1784 = vmatpush1.msra.mxu0 0.0
  %1785 = vmatprep.subr.mxu0 0.0
  %1786 = vmatpush1.msra.mxu0 0.0
  %1787 = vmatprep.subr.mxu0 0.0
  %1788 = vmatpush1.msra.mxu0 0.0
  %1789 = vmatprep.subr.mxu0 0.0
  %1790 = vmatpush1.msra.mxu0 0.0
  %1791 = vmatprep.subr.mxu0 0.0
  %1792 = vmatpush1.msra.mxu0 0.0
  %1793 = vmatprep.subr.mxu0 0.0
  %1794 = vmatpush1.msra.mxu0 0.0
  %1795 = vmatprep.subr.mxu0 0.0
  %1796 = vmatpush1.msra.mxu0 0.0
  %1797 = vmatprep.mubr.f32.mxu0 0.0
  %1798 = vmatmul.mubr.f32.gmra.mrb[0].mxu0 %v1574
  %v1799 = vpop.f32.mrb[0].mxu0
  %v1800 = vadd.f32 0.0, %v1799
  %v1801 = vpop.f32.mrb[0].mxu0
  %1802 = vdwg.mxu0
  %v1803 = vadd.f32 %v1550, %v1658
  %v1804 = vadd.f32 %v1551, %v1660
  %v1805 = vadd.f32 %v1552, %v1729
  %v1806 = vadd.f32 %v1553, %v1731
  %v1807 = vadd.f32 %v1554, %v1800
  %s1808 = scalar_lea.vmem %s4, 56
  %v1809 = vld [vmem:[%s1808] sm:$0xff]
  %1810 = vrot.lane.b32.xlu0 %v44, 115
  %v1811 = vpop.permute.xlu0 %1810
  %1812 = vrot.lane.b32.xlu0 %v52, 115
  %v1813 = vpop.permute.xlu0 %1812
  %1814 = vrot.lane.b32.xlu0 %v51, 115
  %v1815 = vpop.permute.xlu0 %1814
  %1816 = vrot.lane.b32.xlu0 %v53, 115
  %v1817 = vpop.permute.xlu0 %1816
  %1818 = vrot.lane.b32.xlu0 %v60, 115
  %v1819 = vpop.permute.xlu0 %1818
  %vm1820 = vcmp.lt.s32.totalorder %v77, 115
  %v1821 = vsel %vm1820, %v1817, %v1819
  %v1822 = vsel %vm1820, %v1815, %v1817
  %v1823 = vsel %vm1820, %v1813, %v1815
  %v1824 = vsel %vm1820, %v1811, %v1813
  %v1825 = vsel %vm1820, %v1819, %v1811
  %v1827 = vsel %vm102, %v1809, 0
  %v1830 = vsel %vm106, %v1824, 0
  %v1833 = vsel %vm106, %v1823, 0
  %v1836 = vsel %vm106, %v1822, 0
  %v1839 = vsel %vm106, %v1821, 0
  %v1842 = vsel %vm106, %v1825, 0
  %1844 = vmatprep.subr.mxu0 %v1833
  %1845 = vmatpush1.msra.mxu0 %v1830
  %1846 = vmatprep.subr.mxu0 0.0
  %1847 = vmatpush1.msra.mxu0 0.0
  %1848 = vmatprep.subr.mxu0 0.0
  %1849 = vmatpush1.msra.mxu0 0.0
  %1850 = vmatprep.subr.mxu0 0.0
  %1851 = vmatpush1.msra.mxu0 0.0
  %1852 = vmatprep.subr.mxu0 0.0
  %1853 = vmatpush1.msra.mxu0 0.0
  %1854 = vmatprep.subr.mxu0 0.0
  %1855 = vmatpush1.msra.mxu0 0.0
  %1856 = vmatprep.subr.mxu0 0.0
  %1857 = vmatpush1.msra.mxu0 0.0
  %1858 = vmatprep.subr.mxu0 0.0
  %1859 = vmatpush1.msra.mxu0 0.0
  %1860 = vmatprep.subr.mxu0 0.0
  %1861 = vmatpush1.msra.mxu0 0.0
  %1862 = vmatprep.subr.mxu0 0.0
  %1863 = vmatpush1.msra.mxu0 0.0
  %1864 = vmatprep.subr.mxu0 0.0
  %1865 = vmatpush1.msra.mxu0 0.0
  %1866 = vmatprep.subr.mxu0 0.0
  %1867 = vmatpush1.msra.mxu0 0.0
  %1868 = vmatprep.subr.mxu0 0.0
  %1869 = vmatpush1.msra.mxu0 0.0
  %1870 = vmatprep.subr.mxu0 0.0
  %1871 = vmatpush1.msra.mxu0 0.0
  %1872 = vmatprep.subr.mxu0 0.0
  %1873 = vmatpush1.msra.mxu0 0.0
  %1874 = vmatprep.subr.mxu0 0.0
  %1875 = vmatpush1.msra.mxu0 0.0
  %1876 = vmatprep.subr.mxu0 0.0
  %1877 = vmatpush1.msra.mxu0 0.0
  %1878 = vmatprep.subr.mxu0 0.0
  %1879 = vmatpush1.msra.mxu0 0.0
  %1880 = vmatprep.subr.mxu0 0.0
  %1881 = vmatpush1.msra.mxu0 0.0
  %1882 = vmatprep.subr.mxu0 0.0
  %1883 = vmatpush1.msra.mxu0 0.0
  %1884 = vmatprep.subr.mxu0 0.0
  %1885 = vmatpush1.msra.mxu0 0.0
  %1886 = vmatprep.subr.mxu0 0.0
  %1887 = vmatpush1.msra.mxu0 0.0
  %1888 = vmatprep.subr.mxu0 0.0
  %1889 = vmatpush1.msra.mxu0 0.0
  %1890 = vmatprep.subr.mxu0 0.0
  %1891 = vmatpush1.msra.mxu0 0.0
  %1892 = vmatprep.subr.mxu0 0.0
  %1893 = vmatpush1.msra.mxu0 0.0
  %1894 = vmatprep.subr.mxu0 0.0
  %1895 = vmatpush1.msra.mxu0 0.0
  %1896 = vmatprep.subr.mxu0 0.0
  %1897 = vmatpush1.msra.mxu0 0.0
  %1898 = vmatprep.subr.mxu0 0.0
  %1899 = vmatpush1.msra.mxu0 0.0
  %1900 = vmatprep.subr.mxu0 0.0
  %1901 = vmatpush1.msra.mxu0 0.0
  %1902 = vmatprep.subr.mxu0 0.0
  %1903 = vmatpush1.msra.mxu0 0.0
  %1904 = vmatprep.subr.mxu0 0.0
  %1905 = vmatpush1.msra.mxu0 0.0
  %1906 = vmatprep.subr.mxu0 0.0
  %1907 = vmatpush1.msra.mxu0 0.0
  %1908 = vmatprep.mubr.f32.mxu0 0.0
  %1909 = vmatmul.mubr.f32.gmra.mrb[0].mxu0 %v1827
  %v1910 = vpop.f32.mrb[0].mxu0
  %v1911 = vadd.f32 0.0, %v1910
  %v1912 = vpop.f32.mrb[0].mxu0
  %v1913 = vadd.f32 0.0, %v1912
  %1914 = vdwg.mxu0
  %1915 = vmatprep.subr.mxu0 %v1839
  %1916 = vmatpush1.msra.mxu0 %v1836
  %1917 = vmatprep.subr.mxu0 0.0
  %1918 = vmatpush1.msra.mxu0 0.0
  %1919 = vmatprep.subr.mxu0 0.0
  %1920 = vmatpush1.msra.mxu0 0.0
  %1921 = vmatprep.subr.mxu0 0.0
  %1922 = vmatpush1.msra.mxu0 0.0
  %1923 = vmatprep.subr.mxu0 0.0
  %1924 = vmatpush1.msra.mxu0 0.0
  %1925 = vmatprep.subr.mxu0 0.0
  %1926 = vmatpush1.msra.mxu0 0.0
  %1927 = vmatprep.subr.mxu0 0.0
  %1928 = vmatpush1.msra.mxu0 0.0
  %1929 = vmatprep.subr.mxu0 0.0
  %1930 = vmatpush1.msra.mxu0 0.0
  %1931 = vmatprep.subr.mxu0 0.0
  %1932 = vmatpush1.msra.mxu0 0.0
  %1933 = vmatprep.subr.mxu0 0.0
  %1934 = vmatpush1.msra.mxu0 0.0
  %1935 = vmatprep.subr.mxu0 0.0
  %1936 = vmatpush1.msra.mxu0 0.0
  %1937 = vmatprep.subr.mxu0 0.0
  %1938 = vmatpush1.msra.mxu0 0.0
  %1939 = vmatprep.subr.mxu0 0.0
  %1940 = vmatpush1.msra.mxu0 0.0
  %1941 = vmatprep.subr.mxu0 0.0
  %1942 = vmatpush1.msra.mxu0 0.0
  %1943 = vmatprep.subr.mxu0 0.0
  %1944 = vmatpush1.msra.mxu0 0.0
  %1945 = vmatprep.subr.mxu0 0.0
  %1946 = vmatpush1.msra.mxu0 0.0
  %1947 = vmatprep.subr.mxu0 0.0
  %1948 = vmatpush1.msra.mxu0 0.0
  %1949 = vmatprep.subr.mxu0 0.0
  %1950 = vmatpush1.msra.mxu0 0.0
  %1951 = vmatprep.subr.mxu0 0.0
  %1952 = vmatpush1.msra.mxu0 0.0
  %1953 = vmatprep.subr.mxu0 0.0
  %1954 = vmatpush1.msra.mxu0 0.0
  %1955 = vmatprep.subr.mxu0 0.0
  %1956 = vmatpush1.msra.mxu0 0.0
  %1957 = vmatprep.subr.mxu0 0.0
  %1958 = vmatpush1.msra.mxu0 0.0
  %1959 = vmatprep.subr.mxu0 0.0
  %1960 = vmatpush1.msra.mxu0 0.0
  %1961 = vmatprep.subr.mxu0 0.0
  %1962 = vmatpush1.msra.mxu0 0.0
  %1963 = vmatprep.subr.mxu0 0.0
  %1964 = vmatpush1.msra.mxu0 0.0
  %1965 = vmatprep.subr.mxu0 0.0
  %1966 = vmatpush1.msra.mxu0 0.0
  %1967 = vmatprep.subr.mxu0 0.0
  %1968 = vmatpush1.msra.mxu0 0.0
  %1969 = vmatprep.subr.mxu0 0.0
  %1970 = vmatpush1.msra.mxu0 0.0
  %1971 = vmatprep.subr.mxu0 0.0
  %1972 = vmatpush1.msra.mxu0 0.0
  %1973 = vmatprep.subr.mxu0 0.0
  %1974 = vmatpush1.msra.mxu0 0.0
  %1975 = vmatprep.subr.mxu0 0.0
  %1976 = vmatpush1.msra.mxu0 0.0
  %1977 = vmatprep.subr.mxu0 0.0
  %1978 = vmatpush1.msra.mxu0 0.0
  %1979 = vmatprep.mubr.f32.mxu0 0.0
  %1980 = vmatmul.mubr.f32.gmra.mrb[0].mxu0 %v1827
  %v1981 = vpop.f32.mrb[0].mxu0
  %v1982 = vadd.f32 0.0, %v1981
  %v1983 = vpop.f32.mrb[0].mxu0
  %v1984 = vadd.f32 0.0, %v1983
  %1985 = vdwg.mxu0
  %1986 = vmatprep.subr.mxu0 0.0
  %1987 = vmatpush1.msra.mxu0 %v1842
  %1988 = vmatprep.subr.mxu0 0.0
  %1989 = vmatpush1.msra.mxu0 0.0
  %1990 = vmatprep.subr.mxu0 0.0
  %1991 = vmatpush1.msra.mxu0 0.0
  %1992 = vmatprep.subr.mxu0 0.0
  %1993 = vmatpush1.msra.mxu0 0.0
  %1994 = vmatprep.subr.mxu0 0.0
  %1995 = vmatpush1.msra.mxu0 0.0
  %1996 = vmatprep.subr.mxu0 0.0
  %1997 = vmatpush1.msra.mxu0 0.0
  %1998 = vmatprep.subr.mxu0 0.0
  %1999 = vmatpush1.msra.mxu0 0.0
  %2000 = vmatprep.subr.mxu0 0.0
  %2001 = vmatpush1.msra.mxu0 0.0
  %2002 = vmatprep.subr.mxu0 0.0
  %2003 = vmatpush1.msra.mxu0 0.0
  %2004 = vmatprep.subr.mxu0 0.0
  %2005 = vmatpush1.msra.mxu0 0.0
  %2006 = vmatprep.subr.mxu0 0.0
  %2007 = vmatpush1.msra.mxu0 0.0
  %2008 = vmatprep.subr.mxu0 0.0
  %2009 = vmatpush1.msra.mxu0 0.0
  %2010 = vmatprep.subr.mxu0 0.0
  %2011 = vmatpush1.msra.mxu0 0.0
  %2012 = vmatprep.subr.mxu0 0.0
  %2013 = vmatpush1.msra.mxu0 0.0
  %2014 = vmatprep.subr.mxu0 0.0
  %2015 = vmatpush1.msra.mxu0 0.0
  %2016 = vmatprep.subr.mxu0 0.0
  %2017 = vmatpush1.msra.mxu0 0.0
  %2018 = vmatprep.subr.mxu0 0.0
  %2019 = vmatpush1.msra.mxu0 0.0
  %2020 = vmatprep.subr.mxu0 0.0
  %2021 = vmatpush1.msra.mxu0 0.0
  %2022 = vmatprep.subr.mxu0 0.0
  %2023 = vmatpush1.msra.mxu0 0.0
  %2024 = vmatprep.subr.mxu0 0.0
  %2025 = vmatpush1.msra.mxu0 0.0
  %2026 = vmatprep.subr.mxu0 0.0
  %2027 = vmatpush1.msra.mxu0 0.0
  %2028 = vmatprep.subr.mxu0 0.0
  %2029 = vmatpush1.msra.mxu0 0.0
  %2030 = vmatprep.subr.mxu0 0.0
  %2031 = vmatpush1.msra.mxu0 0.0
  %2032 = vmatprep.subr.mxu0 0.0
  %2033 = vmatpush1.msra.mxu0 0.0
  %2034 = vmatprep.subr.mxu0 0.0
  %2035 = vmatpush1.msra.mxu0 0.0
  %2036 = vmatprep.subr.mxu0 0.0
  %2037 = vmatpush1.msra.mxu0 0.0
  %2038 = vmatprep.subr.mxu0 0.0
  %2039 = vmatpush1.msra.mxu0 0.0
  %2040 = vmatprep.subr.mxu0 0.0
  %2041 = vmatpush1.msra.mxu0 0.0
  %2042 = vmatprep.subr.mxu0 0.0
  %2043 = vmatpush1.msra.mxu0 0.0
  %2044 = vmatprep.subr.mxu0 0.0
  %2045 = vmatpush1.msra.mxu0 0.0
  %2046 = vmatprep.subr.mxu0 0.0
  %2047 = vmatpush1.msra.mxu0 0.0
  %2048 = vmatprep.subr.mxu0 0.0
  %2049 = vmatpush1.msra.mxu0 0.0
  %2050 = vmatprep.mubr.f32.mxu0 0.0
  %2051 = vmatmul.mubr.f32.gmra.mrb[0].mxu0 %v1827
  %v2052 = vpop.f32.mrb[0].mxu0
  %v2053 = vadd.f32 0.0, %v2052
  %v2054 = vpop.f32.mrb[0].mxu0
  %2055 = vdwg.mxu0
  %v2056 = vadd.f32 %v1803, %v1911
  %v2057 = vadd.f32 %v1804, %v1913
  %v2058 = vadd.f32 %v1805, %v1982
  %v2059 = vadd.f32 %v1806, %v1984
  %v2060 = vadd.f32 %v1807, %v2053
  %s2061 = scalar_lea.vmem %s4, 64
  %v2062 = vld [vmem:[%s2061] sm:$0xff]
  %2063 = vrot.lane.b32.xlu0 %v44, 114
  %v2064 = vpop.permute.xlu0 %2063
  %2065 = vrot.lane.b32.xlu0 %v52, 114
  %v2066 = vpop.permute.xlu0 %2065
  %2067 = vrot.lane.b32.xlu0 %v51, 114
  %v2068 = vpop.permute.xlu0 %2067
  %2069 = vrot.lane.b32.xlu0 %v53, 114
  %v2070 = vpop.permute.xlu0 %2069
  %2071 = vrot.lane.b32.xlu0 %v60, 114
  %v2072 = vpop.permute.xlu0 %2071
  %vm2073 = vcmp.lt.s32.totalorder %v77, 114
  %v2074 = vsel %vm2073, %v2070, %v2072
  %v2075 = vsel %vm2073, %v2068, %v2070
  %v2076 = vsel %vm2073, %v2066, %v2068
  %v2077 = vsel %vm2073, %v2064, %v2066
  %v2078 = vsel %vm2073, %v2072, %v2064
  %v2080 = vsel %vm102, %v2062, 0
  %v2083 = vsel %vm106, %v2077, 0
  %v2086 = vsel %vm106, %v2076, 0
  %v2089 = vsel %vm106, %v2075, 0
  %v2092 = vsel %vm106, %v2074, 0
  %v2095 = vsel %vm106, %v2078, 0
  %2097 = vmatprep.subr.mxu0 %v2086
  %2098 = vmatpush1.msra.mxu0 %v2083
  %2099 = vmatprep.subr.mxu0 0.0
  %2100 = vmatpush1.msra.mxu0 0.0
  %2101 = vmatprep.subr.mxu0 0.0
  %2102 = vmatpush1.msra.mxu0 0.0
  %2103 = vmatprep.subr.mxu0 0.0
  %2104 = vmatpush1.msra.mxu0 0.0
  %2105 = vmatprep.subr.mxu0 0.0
  %2106 = vmatpush1.msra.mxu0 0.0
  %2107 = vmatprep.subr.mxu0 0.0
  %2108 = vmatpush1.msra.mxu0 0.0
  %2109 = vmatprep.subr.mxu0 0.0
  %2110 = vmatpush1.msra.mxu0 0.0
  %2111 = vmatprep.subr.mxu0 0.0
  %2112 = vmatpush1.msra.mxu0 0.0
  %2113 = vmatprep.subr.mxu0 0.0
  %2114 = vmatpush1.msra.mxu0 0.0
  %2115 = vmatprep.subr.mxu0 0.0
  %2116 = vmatpush1.msra.mxu0 0.0
  %2117 = vmatprep.subr.mxu0 0.0
  %2118 = vmatpush1.msra.mxu0 0.0
  %2119 = vmatprep.subr.mxu0 0.0
  %2120 = vmatpush1.msra.mxu0 0.0
  %2121 = vmatprep.subr.mxu0 0.0
  %2122 = vmatpush1.msra.mxu0 0.0
  %2123 = vmatprep.subr.mxu0 0.0
  %2124 = vmatpush1.msra.mxu0 0.0
  %2125 = vmatprep.subr.mxu0 0.0
  %2126 = vmatpush1.msra.mxu0 0.0
  %2127 = vmatprep.subr.mxu0 0.0
  %2128 = vmatpush1.msra.mxu0 0.0
  %2129 = vmatprep.subr.mxu0 0.0
  %2130 = vmatpush1.msra.mxu0 0.0
  %2131 = vmatprep.subr.mxu0 0.0
  %2132 = vmatpush1.msra.mxu0 0.0
  %2133 = vmatprep.subr.mxu0 0.0
  %2134 = vmatpush1.msra.mxu0 0.0
  %2135 = vmatprep.subr.mxu0 0.0
  %2136 = vmatpush1.msra.mxu0 0.0
  %2137 = vmatprep.subr.mxu0 0.0
  %2138 = vmatpush1.msra.mxu0 0.0
  %2139 = vmatprep.subr.mxu0 0.0
  %2140 = vmatpush1.msra.mxu0 0.0
  %2141 = vmatprep.subr.mxu0 0.0
  %2142 = vmatpush1.msra.mxu0 0.0
  %2143 = vmatprep.subr.mxu0 0.0
  %2144 = vmatpush1.msra.mxu0 0.0
  %2145 = vmatprep.subr.mxu0 0.0
  %2146 = vmatpush1.msra.mxu0 0.0
  %2147 = vmatprep.subr.mxu0 0.0
  %2148 = vmatpush1.msra.mxu0 0.0
  %2149 = vmatprep.subr.mxu0 0.0
  %2150 = vmatpush1.msra.mxu0 0.0
  %2151 = vmatprep.subr.mxu0 0.0
  %2152 = vmatpush1.msra.mxu0 0.0
  %2153 = vmatprep.subr.mxu0 0.0
  %2154 = vmatpush1.msra.mxu0 0.0
  %2155 = vmatprep.subr.mxu0 0.0
  %2156 = vmatpush1.msra.mxu0 0.0
  %2157 = vmatprep.subr.mxu0 0.0
  %2158 = vmatpush1.msra.mxu0 0.0
  %2159 = vmatprep.subr.mxu0 0.0
  %2160 = vmatpush1.msra.mxu0 0.0
  %2161 = vmatprep.mubr.f32.mxu0 0.0
  %2162 = vmatmul.mubr.f32.gmra.mrb[0].mxu0 %v2080
  %v2163 = vpop.f32.mrb[0].mxu0
  %v2164 = vadd.f32 0.0, %v2163
  %v2165 = vpop.f32.mrb[0].mxu0
  %v2166 = vadd.f32 0.0, %v2165
  %2167 = vdwg.mxu0
  %2168 = vmatprep.subr.mxu0 %v2092
  %2169 = vmatpush1.msra.mxu0 %v2089
  %2170 = vmatprep.subr.mxu0 0.0
  %2171 = vmatpush1.msra.mxu0 0.0
  %2172 = vmatprep.subr.mxu0 0.0
  %2173 = vmatpush1.msra.mxu0 0.0
  %2174 = vmatprep.subr.mxu0 0.0
  %2175 = vmatpush1.msra.mxu0 0.0
  %2176 = vmatprep.subr.mxu0 0.0
  %2177 = vmatpush1.msra.mxu0 0.0
  %2178 = vmatprep.subr.mxu0 0.0
  %2179 = vmatpush1.msra.mxu0 0.0
  %2180 = vmatprep.subr.mxu0 0.0
  %2181 = vmatpush1.msra.mxu0 0.0
  %2182 = vmatprep.subr.mxu0 0.0
  %2183 = vmatpush1.msra.mxu0 0.0
  %2184 = vmatprep.subr.mxu0 0.0
  %2185 = vmatpush1.msra.mxu0 0.0
  %2186 = vmatprep.subr.mxu0 0.0
  %2187 = vmatpush1.msra.mxu0 0.0
  %2188 = vmatprep.subr.mxu0 0.0
  %2189 = vmatpush1.msra.mxu0 0.0
  %2190 = vmatprep.subr.mxu0 0.0
  %2191 = vmatpush1.msra.mxu0 0.0
  %2192 = vmatprep.subr.mxu0 0.0
  %2193 = vmatpush1.msra.mxu0 0.0
  %2194 = vmatprep.subr.mxu0 0.0
  %2195 = vmatpush1.msra.mxu0 0.0
  %2196 = vmatprep.subr.mxu0 0.0
  %2197 = vmatpush1.msra.mxu0 0.0
  %2198 = vmatprep.subr.mxu0 0.0
  %2199 = vmatpush1.msra.mxu0 0.0
  %2200 = vmatprep.subr.mxu0 0.0
  %2201 = vmatpush1.msra.mxu0 0.0
  %2202 = vmatprep.subr.mxu0 0.0
  %2203 = vmatpush1.msra.mxu0 0.0
  %2204 = vmatprep.subr.mxu0 0.0
  %2205 = vmatpush1.msra.mxu0 0.0
  %2206 = vmatprep.subr.mxu0 0.0
  %2207 = vmatpush1.msra.mxu0 0.0
  %2208 = vmatprep.subr.mxu0 0.0
  %2209 = vmatpush1.msra.mxu0 0.0
  %2210 = vmatprep.subr.mxu0 0.0
  %2211 = vmatpush1.msra.mxu0 0.0
  %2212 = vmatprep.subr.mxu0 0.0
  %2213 = vmatpush1.msra.mxu0 0.0
  %2214 = vmatprep.subr.mxu0 0.0
  %2215 = vmatpush1.msra.mxu0 0.0
  %2216 = vmatprep.subr.mxu0 0.0
  %2217 = vmatpush1.msra.mxu0 0.0
  %2218 = vmatprep.subr.mxu0 0.0
  %2219 = vmatpush1.msra.mxu0 0.0
  %2220 = vmatprep.subr.mxu0 0.0
  %2221 = vmatpush1.msra.mxu0 0.0
  %2222 = vmatprep.subr.mxu0 0.0
  %2223 = vmatpush1.msra.mxu0 0.0
  %2224 = vmatprep.subr.mxu0 0.0
  %2225 = vmatpush1.msra.mxu0 0.0
  %2226 = vmatprep.subr.mxu0 0.0
  %2227 = vmatpush1.msra.mxu0 0.0
  %2228 = vmatprep.subr.mxu0 0.0
  %2229 = vmatpush1.msra.mxu0 0.0
  %2230 = vmatprep.subr.mxu0 0.0
  %2231 = vmatpush1.msra.mxu0 0.0
  %2232 = vmatprep.mubr.f32.mxu0 0.0
  %2233 = vmatmul.mubr.f32.gmra.mrb[0].mxu0 %v2080
  %v2234 = vpop.f32.mrb[0].mxu0
  %v2235 = vadd.f32 0.0, %v2234
  %v2236 = vpop.f32.mrb[0].mxu0
  %v2237 = vadd.f32 0.0, %v2236
  %2238 = vdwg.mxu0
  %2239 = vmatprep.subr.mxu0 0.0
  %2240 = vmatpush1.msra.mxu0 %v2095
  %2241 = vmatprep.subr.mxu0 0.0
  %2242 = vmatpush1.msra.mxu0 0.0
  %2243 = vmatprep.subr.mxu0 0.0
  %2244 = vmatpush1.msra.mxu0 0.0
  %2245 = vmatprep.subr.mxu0 0.0
  %2246 = vmatpush1.msra.mxu0 0.0
  %2247 = vmatprep.subr.mxu0 0.0
  %2248 = vmatpush1.msra.mxu0 0.0
  %2249 = vmatprep.subr.mxu0 0.0
  %2250 = vmatpush1.msra.mxu0 0.0
  %2251 = vmatprep.subr.mxu0 0.0
  %2252 = vmatpush1.msra.mxu0 0.0
  %2253 = vmatprep.subr.mxu0 0.0
  %2254 = vmatpush1.msra.mxu0 0.0
  %2255 = vmatprep.subr.mxu0 0.0
  %2256 = vmatpush1.msra.mxu0 0.0
  %2257 = vmatprep.subr.mxu0 0.0
  %2258 = vmatpush1.msra.mxu0 0.0
  %2259 = vmatprep.subr.mxu0 0.0
  %2260 = vmatpush1.msra.mxu0 0.0
  %2261 = vmatprep.subr.mxu0 0.0
  %2262 = vmatpush1.msra.mxu0 0.0
  %2263 = vmatprep.subr.mxu0 0.0
  %2264 = vmatpush1.msra.mxu0 0.0
  %2265 = vmatprep.subr.mxu0 0.0
  %2266 = vmatpush1.msra.mxu0 0.0
  %2267 = vmatprep.subr.mxu0 0.0
  %2268 = vmatpush1.msra.mxu0 0.0
  %2269 = vmatprep.subr.mxu0 0.0
  %2270 = vmatpush1.msra.mxu0 0.0
  %2271 = vmatprep.subr.mxu0 0.0
  %2272 = vmatpush1.msra.mxu0 0.0
  %2273 = vmatprep.subr.mxu0 0.0
  %2274 = vmatpush1.msra.mxu0 0.0
  %2275 = vmatprep.subr.mxu0 0.0
  %2276 = vmatpush1.msra.mxu0 0.0
  %2277 = vmatprep.subr.mxu0 0.0
  %2278 = vmatpush1.msra.mxu0 0.0
  %2279 = vmatprep.subr.mxu0 0.0
  %2280 = vmatpush1.msra.mxu0 0.0
  %2281 = vmatprep.subr.mxu0 0.0
  %2282 = vmatpush1.msra.mxu0 0.0
  %2283 = vmatprep.subr.mxu0 0.0
  %2284 = vmatpush1.msra.mxu0 0.0
  %2285 = vmatprep.subr.mxu0 0.0
  %2286 = vmatpush1.msra.mxu0 0.0
  %2287 = vmatprep.subr.mxu0 0.0
  %2288 = vmatpush1.msra.mxu0 0.0
  %2289 = vmatprep.subr.mxu0 0.0
  %2290 = vmatpush1.msra.mxu0 0.0
  %2291 = vmatprep.subr.mxu0 0.0
  %2292 = vmatpush1.msra.mxu0 0.0
  %2293 = vmatprep.subr.mxu0 0.0
  %2294 = vmatpush1.msra.mxu0 0.0
  %2295 = vmatprep.subr.mxu0 0.0
  %2296 = vmatpush1.msra.mxu0 0.0
  %2297 = vmatprep.subr.mxu0 0.0
  %2298 = vmatpush1.msra.mxu0 0.0
  %2299 = vmatprep.subr.mxu0 0.0
  %2300 = vmatpush1.msra.mxu0 0.0
  %2301 = vmatprep.subr.mxu0 0.0
  %2302 = vmatpush1.msra.mxu0 0.0
  %2303 = vmatprep.mubr.f32.mxu0 0.0
  %2304 = vmatmul.mubr.f32.gmra.mrb[0].mxu0 %v2080
  %v2305 = vpop.f32.mrb[0].mxu0
  %v2306 = vadd.f32 0.0, %v2305
  %v2307 = vpop.f32.mrb[0].mxu0
  %2308 = vdwg.mxu0
  %v2309 = vadd.f32 %v2056, %v2164
  %v2310 = vadd.f32 %v2057, %v2166
  %v2311 = vadd.f32 %v2058, %v2235
  %v2312 = vadd.f32 %v2059, %v2237
  %v2313 = vadd.f32 %v2060, %v2306
  %v2314 = vld [vmem:[%s5] sm:$0xff]
  %2316 = vset.pattern.permute.xlu0 0
  %2317 = vperm.xlu0 %2316, %v2314
  %v2318 = vpop.permute.xlu0 %2317
  %v2320 = vadd.f32 %v2309, %v2318
  %v2321 = vadd.f32 %v2310, %v2318
  %v2322 = vadd.f32 %v2311, %v2318
  %v2323 = vadd.f32 %v2312, %v2318
  %v2324 = vadd.f32 %v2313, %v2318
  %vm2325 = vcmp.gt.f32.partialorder %v2320, 0.0
  %vm2326 = vcmp.gt.f32.partialorder %v2321, 0.0
  %vm2327 = vcmp.gt.f32.partialorder %v2322, 0.0
  %vm2328 = vcmp.gt.f32.partialorder %v2323, 0.0
  %vm2329 = vcmp.gt.f32.partialorder %v2324, 0.0
  %v2330 = vmul.f32 %v2320, 0.01
  %v2331 = vmul.f32 %v2321, 0.01
  %v2332 = vmul.f32 %v2322, 0.01
  %v2333 = vmul.f32 %v2323, 0.01
  %v2334 = vmul.f32 %v2324, 0.01
  %v2335 = vsel %vm2325, %v2320, %v2330
  %v2336 = vsel %vm2326, %v2321, %v2331
  %v2337 = vsel %vm2327, %v2322, %v2332
  %v2338 = vsel %vm2328, %v2323, %v2333
  %v2339 = vsel %vm2329, %v2324, %v2334
  %v2341 = vlaneseq
  %v2342 = vshrl.u32 %v2341, 7
  %v2343 = vsub.s32 0, %v2342
  %v2344 = vrot.slane %v31, %v2343
  %v2345 = vlaneseq
  %v2346 = vshrl.u32 %v2345, 7
  %v2347 = vsub.s32 1, %v2346
  %v2348 = vrot.slane %v31, %v2347
  %v2349 = vlaneseq
  %v2350 = vshrl.u32 %v2349, 7
  %v2351 = vsub.s32 2, %v2350
  %v2352 = vrot.slane %v31, %v2351
  %v2353 = vlaneseq
  %v2354 = vshrl.u32 %v2353, 7
  %v2355 = vsub.s32 3, %v2354
  %v2356 = vrot.slane %v31, %v2355
  %v2357 = vlaneseq
  %v2358 = vshrl.u32 %v2357, 7
  %v2359 = vsub.s32 4, %v2358
  %v2360 = vrot.slane %v31, %v2359
  %v2366 = vmul.f32 %v2335, %v2344
  %v2367 = vmul.f32 %v2336, %v2348
  %v2368 = vmul.f32 %v2337, %v2352
  %v2369 = vmul.f32 %v2338, %v2356
  %v2370 = vmul.f32 %v2339, %v2360
  %s2371 = scalar_lea.vmem %s4, 72
  %v2372 = vld [vmem:[%s2371] sm:$0xff]
  %2373 = vrot.lane.b32.xlu0 %v2366, 14
  %v2374 = vpop.permute.xlu0 %2373
  %2375 = vrot.lane.b32.xlu0 %v2367, 14
  %v2376 = vpop.permute.xlu0 %2375
  %2377 = vrot.lane.b32.xlu0 %v2368, 14
  %v2378 = vpop.permute.xlu0 %2377
  %2379 = vrot.lane.b32.xlu0 %v2369, 14
  %v2380 = vpop.permute.xlu0 %2379
  %2381 = vrot.lane.b32.xlu0 %v2370, 14
  %v2382 = vpop.permute.xlu0 %2381
  %v2383 = vsel %vm78, %v2380, %v2382
  %v2384 = vsel %vm78, %v2378, %v2380
  %v2385 = vsel %vm78, %v2376, %v2378
  %v2386 = vsel %vm78, %v2374, %v2376
  %v2387 = vsel %vm78, %v2382, %v2374
  %s2388 = scalar_lea.vmem %s4, 80
  %v2389 = vld [vmem:[%s2388] sm:$0xff]
  %2390 = vrot.lane.b32.xlu0 %v2366, 13
  %v2391 = vpop.permute.xlu0 %2390
  %2392 = vrot.lane.b32.xlu0 %v2367, 13
  %v2393 = vpop.permute.xlu0 %2392
  %2394 = vrot.lane.b32.xlu0 %v2368, 13
  %v2395 = vpop.permute.xlu0 %2394
  %2396 = vrot.lane.b32.xlu0 %v2369, 13
  %v2397 = vpop.permute.xlu0 %2396
  %2398 = vrot.lane.b32.xlu0 %v2370, 13
  %v2399 = vpop.permute.xlu0 %2398
  %v2400 = vsel %vm96, %v2397, %v2399
  %v2401 = vsel %vm96, %v2395, %v2397
  %v2402 = vsel %vm96, %v2393, %v2395
  %v2403 = vsel %vm96, %v2391, %v2393
  %v2404 = vsel %vm96, %v2399, %v2391
  %vm2405 = vcmask 64512
  %v2407 = vsel %vm2405, %v2389, 0
  %2409 = vmatprep.subr.mxu0 %v2403
  %2410 = vmatpush1.msra.mxu0 %v2404
  %2411 = vmatprep.subr.mxu0 0.0
  %2412 = vmatpush1.msra.mxu0 0.0
  %2413 = vmatprep.subr.mxu0 0.0
  %2414 = vmatpush1.msra.mxu0 0.0
  %2415 = vmatprep.subr.mxu0 0.0
  %2416 = vmatpush1.msra.mxu0 0.0
  %2417 = vmatprep.subr.mxu0 0.0
  %2418 = vmatpush1.msra.mxu0 0.0
  %2419 = vmatprep.subr.mxu0 0.0
  %2420 = vmatpush1.msra.mxu0 0.0
  %2421 = vmatprep.subr.mxu0 0.0
  %2422 = vmatpush1.msra.mxu0 0.0
  %2423 = vmatprep.subr.mxu0 0.0
  %2424 = vmatpush1.msra.mxu0 0.0
  %2425 = vmatprep.subr.mxu0 0.0
  %2426 = vmatpush1.msra.mxu0 0.0
  %2427 = vmatprep.subr.mxu0 0.0
  %2428 = vmatpush1.msra.mxu0 0.0
  %2429 = vmatprep.subr.mxu0 0.0
  %2430 = vmatpush1.msra.mxu0 0.0
  %2431 = vmatprep.subr.mxu0 0.0
  %2432 = vmatpush1.msra.mxu0 0.0
  %2433 = vmatprep.subr.mxu0 0.0
  %2434 = vmatpush1.msra.mxu0 0.0
  %2435 = vmatprep.subr.mxu0 0.0
  %2436 = vmatpush1.msra.mxu0 0.0
  %2437 = vmatprep.subr.mxu0 0.0
  %2438 = vmatpush1.msra.mxu0 0.0
  %2439 = vmatprep.subr.mxu0 0.0
  %2440 = vmatpush1.msra.mxu0 0.0
  %2441 = vmatprep.subr.mxu0 0.0
  %2442 = vmatpush1.msra.mxu0 0.0
  %2443 = vmatprep.subr.mxu0 0.0
  %2444 = vmatpush1.msra.mxu0 0.0
  %2445 = vmatprep.subr.mxu0 0.0
  %2446 = vmatpush1.msra.mxu0 0.0
  %2447 = vmatprep.subr.mxu0 0.0
  %2448 = vmatpush1.msra.mxu0 0.0
  %2449 = vmatprep.subr.mxu0 0.0
  %2450 = vmatpush1.msra.mxu0 0.0
  %2451 = vmatprep.subr.mxu0 0.0
  %2452 = vmatpush1.msra.mxu0 0.0
  %2453 = vmatprep.subr.mxu0 0.0
  %2454 = vmatpush1.msra.mxu0 0.0
  %2455 = vmatprep.subr.mxu0 0.0
  %2456 = vmatpush1.msra.mxu0 0.0
  %2457 = vmatprep.subr.mxu0 0.0
  %2458 = vmatpush1.msra.mxu0 0.0
  %2459 = vmatprep.subr.mxu0 0.0
  %2460 = vmatpush1.msra.mxu0 0.0
  %2461 = vmatprep.subr.mxu0 0.0
  %2462 = vmatpush1.msra.mxu0 0.0
  %2463 = vmatprep.subr.mxu0 0.0
  %2464 = vmatpush1.msra.mxu0 0.0
  %2465 = vmatprep.subr.mxu0 0.0
  %2466 = vmatpush1.msra.mxu0 0.0
  %2467 = vmatprep.subr.mxu0 0.0
  %2468 = vmatpush1.msra.mxu0 0.0
  %2469 = vmatprep.subr.mxu0 0.0
  %2470 = vmatpush1.msra.mxu0 0.0
  %2471 = vmatprep.subr.mxu0 0.0
  %2472 = vmatpush1.msra.mxu0 0.0
  %2473 = vmatprep.mubr.f32.mxu0 0.0
  %2474 = vmatmul.mubr.f32.gmra.mrb[0].mxu0 %v2407
  %v2475 = vpop.f32.mrb[0].mxu0
  %v2476 = vadd.f32 0.0, %v2475
  %v2477 = vpop.f32.mrb[0].mxu0
  %v2478 = vadd.f32 0.0, %v2477
  %2479 = vdwg.mxu0
  %2480 = vmatprep.subr.mxu0 %v2401
  %2481 = vmatpush1.msra.mxu0 %v2402
  %2482 = vmatprep.subr.mxu0 0.0
  %2483 = vmatpush1.msra.mxu0 0.0
  %2484 = vmatprep.subr.mxu0 0.0
  %2485 = vmatpush1.msra.mxu0 0.0
  %2486 = vmatprep.subr.mxu0 0.0
  %2487 = vmatpush1.msra.mxu0 0.0
  %2488 = vmatprep.subr.mxu0 0.0
  %2489 = vmatpush1.msra.mxu0 0.0
  %2490 = vmatprep.subr.mxu0 0.0
  %2491 = vmatpush1.msra.mxu0 0.0
  %2492 = vmatprep.subr.mxu0 0.0
  %2493 = vmatpush1.msra.mxu0 0.0
  %2494 = vmatprep.subr.mxu0 0.0
  %2495 = vmatpush1.msra.mxu0 0.0
  %2496 = vmatprep.subr.mxu0 0.0
  %2497 = vmatpush1.msra.mxu0 0.0
  %2498 = vmatprep.subr.mxu0 0.0
  %2499 = vmatpush1.msra.mxu0 0.0
  %2500 = vmatprep.subr.mxu0 0.0
  %2501 = vmatpush1.msra.mxu0 0.0
  %2502 = vmatprep.subr.mxu0 0.0
  %2503 = vmatpush1.msra.mxu0 0.0
  %2504 = vmatprep.subr.mxu0 0.0
  %2505 = vmatpush1.msra.mxu0 0.0
  %2506 = vmatprep.subr.mxu0 0.0
  %2507 = vmatpush1.msra.mxu0 0.0
  %2508 = vmatprep.subr.mxu0 0.0
  %2509 = vmatpush1.msra.mxu0 0.0
  %2510 = vmatprep.subr.mxu0 0.0
  %2511 = vmatpush1.msra.mxu0 0.0
  %2512 = vmatprep.subr.mxu0 0.0
  %2513 = vmatpush1.msra.mxu0 0.0
  %2514 = vmatprep.subr.mxu0 0.0
  %2515 = vmatpush1.msra.mxu0 0.0
  %2516 = vmatprep.subr.mxu0 0.0
  %2517 = vmatpush1.msra.mxu0 0.0
  %2518 = vmatprep.subr.mxu0 0.0
  %2519 = vmatpush1.msra.mxu0 0.0
  %2520 = vmatprep.subr.mxu0 0.0
  %2521 = vmatpush1.msra.mxu0 0.0
  %2522 = vmatprep.subr.mxu0 0.0
  %2523 = vmatpush1.msra.mxu0 0.0
  %2524 = vmatprep.subr.mxu0 0.0
  %2525 = vmatpush1.msra.mxu0 0.0
  %2526 = vmatprep.subr.mxu0 0.0
  %2527 = vmatpush1.msra.mxu0 0.0
  %2528 = vmatprep.subr.mxu0 0.0
  %2529 = vmatpush1.msra.mxu0 0.0
  %2530 = vmatprep.subr.mxu0 0.0
  %2531 = vmatpush1.msra.mxu0 0.0
  %2532 = vmatprep.subr.mxu0 0.0
  %2533 = vmatpush1.msra.mxu0 0.0
  %2534 = vmatprep.subr.mxu0 0.0
  %2535 = vmatpush1.msra.mxu0 0.0
  %2536 = vmatprep.subr.mxu0 0.0
  %2537 = vmatpush1.msra.mxu0 0.0
  %2538 = vmatprep.subr.mxu0 0.0
  %2539 = vmatpush1.msra.mxu0 0.0
  %2540 = vmatprep.subr.mxu0 0.0
  %2541 = vmatpush1.msra.mxu0 0.0
  %2542 = vmatprep.subr.mxu0 0.0
  %2543 = vmatpush1.msra.mxu0 0.0
  %2544 = vmatprep.mubr.f32.mxu0 0.0
  %2545 = vmatmul.mubr.f32.gmra.mrb[0].mxu0 %v2407
  %v2546 = vpop.f32.mrb[0].mxu0
  %v2547 = vadd.f32 0.0, %v2546
  %v2548 = vpop.f32.mrb[0].mxu0
  %v2549 = vadd.f32 0.0, %v2548
  %2550 = vdwg.mxu0
  %2551 = vmatprep.subr.mxu0 0.0
  %2552 = vmatpush1.msra.mxu0 %v2400
  %2553 = vmatprep.subr.mxu0 0.0
  %2554 = vmatpush1.msra.mxu0 0.0
  %2555 = vmatprep.subr.mxu0 0.0
  %2556 = vmatpush1.msra.mxu0 0.0
  %2557 = vmatprep.subr.mxu0 0.0
  %2558 = vmatpush1.msra.mxu0 0.0
  %2559 = vmatprep.subr.mxu0 0.0
  %2560 = vmatpush1.msra.mxu0 0.0
  %2561 = vmatprep.subr.mxu0 0.0
  %2562 = vmatpush1.msra.mxu0 0.0
  %2563 = vmatprep.subr.mxu0 0.0
  %2564 = vmatpush1.msra.mxu0 0.0
  %2565 = vmatprep.subr.mxu0 0.0
  %2566 = vmatpush1.msra.mxu0 0.0
  %2567 = vmatprep.subr.mxu0 0.0
  %2568 = vmatpush1.msra.mxu0 0.0
  %2569 = vmatprep.subr.mxu0 0.0
  %2570 = vmatpush1.msra.mxu0 0.0
  %2571 = vmatprep.subr.mxu0 0.0
  %2572 = vmatpush1.msra.mxu0 0.0
  %2573 = vmatprep.subr.mxu0 0.0
  %2574 = vmatpush1.msra.mxu0 0.0
  %2575 = vmatprep.subr.mxu0 0.0
  %2576 = vmatpush1.msra.mxu0 0.0
  %2577 = vmatprep.subr.mxu0 0.0
  %2578 = vmatpush1.msra.mxu0 0.0
  %2579 = vmatprep.subr.mxu0 0.0
  %2580 = vmatpush1.msra.mxu0 0.0
  %2581 = vmatprep.subr.mxu0 0.0
  %2582 = vmatpush1.msra.mxu0 0.0
  %2583 = vmatprep.subr.mxu0 0.0
  %2584 = vmatpush1.msra.mxu0 0.0
  %2585 = vmatprep.subr.mxu0 0.0
  %2586 = vmatpush1.msra.mxu0 0.0
  %2587 = vmatprep.subr.mxu0 0.0
  %2588 = vmatpush1.msra.mxu0 0.0
  %2589 = vmatprep.subr.mxu0 0.0
  %2590 = vmatpush1.msra.mxu0 0.0
  %2591 = vmatprep.subr.mxu0 0.0
  %2592 = vmatpush1.msra.mxu0 0.0
  %2593 = vmatprep.subr.mxu0 0.0
  %2594 = vmatpush1.msra.mxu0 0.0
  %2595 = vmatprep.subr.mxu0 0.0
  %2596 = vmatpush1.msra.mxu0 0.0
  %2597 = vmatprep.subr.mxu0 0.0
  %2598 = vmatpush1.msra.mxu0 0.0
  %2599 = vmatprep.subr.mxu0 0.0
  %2600 = vmatpush1.msra.mxu0 0.0
  %2601 = vmatprep.subr.mxu0 0.0
  %2602 = vmatpush1.msra.mxu0 0.0
  %2603 = vmatprep.subr.mxu0 0.0
  %2604 = vmatpush1.msra.mxu0 0.0
  %2605 = vmatprep.subr.mxu0 0.0
  %2606 = vmatpush1.msra.mxu0 0.0
  %2607 = vmatprep.subr.mxu0 0.0
  %2608 = vmatpush1.msra.mxu0 0.0
  %2609 = vmatprep.subr.mxu0 0.0
  %2610 = vmatpush1.msra.mxu0 0.0
  %2611 = vmatprep.subr.mxu0 0.0
  %2612 = vmatpush1.msra.mxu0 0.0
  %2613 = vmatprep.subr.mxu0 0.0
  %2614 = vmatpush1.msra.mxu0 0.0
  %2615 = vmatprep.mubr.f32.mxu0 0.0
  %2616 = vmatmul.mubr.f32.gmra.mrb[0].mxu0 %v2407
  %v2617 = vpop.f32.mrb[0].mxu0
  %v2618 = vadd.f32 0.0, %v2617
  %v2619 = vpop.f32.mrb[0].mxu0
  %2620 = vdwg.mxu0
  %v2622 = vsel %vm2405, %v2372, 0
  %2624 = vmatprep.subr.mxu0 %v2386
  %2625 = vmatpush1.msra.mxu0 %v2387
  %2626 = vmatprep.subr.mxu0 0.0
  %2627 = vmatpush1.msra.mxu0 0.0
  %2628 = vmatprep.subr.mxu0 0.0
  %2629 = vmatpush1.msra.mxu0 0.0
  %2630 = vmatprep.subr.mxu0 0.0
  %2631 = vmatpush1.msra.mxu0 0.0
  %2632 = vmatprep.subr.mxu0 0.0
  %2633 = vmatpush1.msra.mxu0 0.0
  %2634 = vmatprep.subr.mxu0 0.0
  %2635 = vmatpush1.msra.mxu0 0.0
  %2636 = vmatprep.subr.mxu0 0.0
  %2637 = vmatpush1.msra.mxu0 0.0
  %2638 = vmatprep.subr.mxu0 0.0
  %2639 = vmatpush1.msra.mxu0 0.0
  %2640 = vmatprep.subr.mxu0 0.0
  %2641 = vmatpush1.msra.mxu0 0.0
  %2642 = vmatprep.subr.mxu0 0.0
  %2643 = vmatpush1.msra.mxu0 0.0
  %2644 = vmatprep.subr.mxu0 0.0
  %2645 = vmatpush1.msra.mxu0 0.0
  %2646 = vmatprep.subr.mxu0 0.0
  %2647 = vmatpush1.msra.mxu0 0.0
  %2648 = vmatprep.subr.mxu0 0.0
  %2649 = vmatpush1.msra.mxu0 0.0
  %2650 = vmatprep.subr.mxu0 0.0
  %2651 = vmatpush1.msra.mxu0 0.0
  %2652 = vmatprep.subr.mxu0 0.0
  %2653 = vmatpush1.msra.mxu0 0.0
  %2654 = vmatprep.subr.mxu0 0.0
  %2655 = vmatpush1.msra.mxu0 0.0
  %2656 = vmatprep.subr.mxu0 0.0
  %2657 = vmatpush1.msra.mxu0 0.0
  %2658 = vmatprep.subr.mxu0 0.0
  %2659 = vmatpush1.msra.mxu0 0.0
  %2660 = vmatprep.subr.mxu0 0.0
  %2661 = vmatpush1.msra.mxu0 0.0
  %2662 = vmatprep.subr.mxu0 0.0
  %2663 = vmatpush1.msra.mxu0 0.0
  %2664 = vmatprep.subr.mxu0 0.0
  %2665 = vmatpush1.msra.mxu0 0.0
  %2666 = vmatprep.subr.mxu0 0.0
  %2667 = vmatpush1.msra.mxu0 0.0
  %2668 = vmatprep.subr.mxu0 0.0
  %2669 = vmatpush1.msra.mxu0 0.0
  %2670 = vmatprep.subr.mxu0 0.0
  %2671 = vmatpush1.msra.mxu0 0.0
  %2672 = vmatprep.subr.mxu0 0.0
  %2673 = vmatpush1.msra.mxu0 0.0
  %2674 = vmatprep.subr.mxu0 0.0
  %2675 = vmatpush1.msra.mxu0 0.0
  %2676 = vmatprep.subr.mxu0 0.0
  %2677 = vmatpush1.msra.mxu0 0.0
  %2678 = vmatprep.subr.mxu0 0.0
  %2679 = vmatpush1.msra.mxu0 0.0
  %2680 = vmatprep.subr.mxu0 0.0
  %2681 = vmatpush1.msra.mxu0 0.0
  %2682 = vmatprep.subr.mxu0 0.0
  %2683 = vmatpush1.msra.mxu0 0.0
  %2684 = vmatprep.subr.mxu0 0.0
  %2685 = vmatpush1.msra.mxu0 0.0
  %2686 = vmatprep.subr.mxu0 0.0
  %2687 = vmatpush1.msra.mxu0 0.0
  %2688 = vmatprep.mubr.f32.mxu0 0.0
  %2689 = vmatmul.mubr.f32.gmra.mrb[0].mxu0 %v2622
  %v2690 = vpop.f32.mrb[0].mxu0
  %v2691 = vadd.f32 %v2476, %v2690
  %v2692 = vpop.f32.mrb[0].mxu0
  %v2693 = vadd.f32 %v2478, %v2692
  %2694 = vdwg.mxu0
  %2695 = vmatprep.subr.mxu0 %v2384
  %2696 = vmatpush1.msra.mxu0 %v2385
  %2697 = vmatprep.subr.mxu0 0.0
  %2698 = vmatpush1.msra.mxu0 0.0
  %2699 = vmatprep.subr.mxu0 0.0
  %2700 = vmatpush1.msra.mxu0 0.0
  %2701 = vmatprep.subr.mxu0 0.0
  %2702 = vmatpush1.msra.mxu0 0.0
  %2703 = vmatprep.subr.mxu0 0.0
  %2704 = vmatpush1.msra.mxu0 0.0
  %2705 = vmatprep.subr.mxu0 0.0
  %2706 = vmatpush1.msra.mxu0 0.0
  %2707 = vmatprep.subr.mxu0 0.0
  %2708 = vmatpush1.msra.mxu0 0.0
  %2709 = vmatprep.subr.mxu0 0.0
  %2710 = vmatpush1.msra.mxu0 0.0
  %2711 = vmatprep.subr.mxu0 0.0
  %2712 = vmatpush1.msra.mxu0 0.0
  %2713 = vmatprep.subr.mxu0 0.0
  %2714 = vmatpush1.msra.mxu0 0.0
  %2715 = vmatprep.subr.mxu0 0.0
  %2716 = vmatpush1.msra.mxu0 0.0
  %2717 = vmatprep.subr.mxu0 0.0
  %2718 = vmatpush1.msra.mxu0 0.0
  %2719 = vmatprep.subr.mxu0 0.0
  %2720 = vmatpush1.msra.mxu0 0.0
  %2721 = vmatprep.subr.mxu0 0.0
  %2722 = vmatpush1.msra.mxu0 0.0
  %2723 = vmatprep.subr.mxu0 0.0
  %2724 = vmatpush1.msra.mxu0 0.0
  %2725 = vmatprep.subr.mxu0 0.0
  %2726 = vmatpush1.msra.mxu0 0.0
  %2727 = vmatprep.subr.mxu0 0.0
  %2728 = vmatpush1.msra.mxu0 0.0
  %2729 = vmatprep.subr.mxu0 0.0
  %2730 = vmatpush1.msra.mxu0 0.0
  %2731 = vmatprep.subr.mxu0 0.0
  %2732 = vmatpush1.msra.mxu0 0.0
  %2733 = vmatprep.subr.mxu0 0.0
  %2734 = vmatpush1.msra.mxu0 0.0
  %2735 = vmatprep.subr.mxu0 0.0
  %2736 = vmatpush1.msra.mxu0 0.0
  %2737 = vmatprep.subr.mxu0 0.0
  %2738 = vmatpush1.msra.mxu0 0.0
  %2739 = vmatprep.subr.mxu0 0.0
  %2740 = vmatpush1.msra.mxu0 0.0
  %2741 = vmatprep.subr.mxu0 0.0
  %2742 = vmatpush1.msra.mxu0 0.0
  %2743 = vmatprep.subr.mxu0 0.0
  %2744 = vmatpush1.msra.mxu0 0.0
  %2745 = vmatprep.subr.mxu0 0.0
  %2746 = vmatpush1.msra.mxu0 0.0
  %2747 = vmatprep.subr.mxu0 0.0
  %2748 = vmatpush1.msra.mxu0 0.0
  %2749 = vmatprep.subr.mxu0 0.0
  %2750 = vmatpush1.msra.mxu0 0.0
  %2751 = vmatprep.subr.mxu0 0.0
  %2752 = vmatpush1.msra.mxu0 0.0
  %2753 = vmatprep.subr.mxu0 0.0
  %2754 = vmatpush1.msra.mxu0 0.0
  %2755 = vmatprep.subr.mxu0 0.0
  %2756 = vmatpush1.msra.mxu0 0.0
  %2757 = vmatprep.subr.mxu0 0.0
  %2758 = vmatpush1.msra.mxu0 0.0
  %2759 = vmatprep.mubr.f32.mxu0 0.0
  %2760 = vmatmul.mubr.f32.gmra.mrb[0].mxu0 %v2622
  %v2761 = vpop.f32.mrb[0].mxu0
  %v2762 = vadd.f32 %v2547, %v2761
  %v2763 = vpop.f32.mrb[0].mxu0
  %v2764 = vadd.f32 %v2549, %v2763
  %2765 = vdwg.mxu0
  %2766 = vmatprep.subr.mxu0 0.0
  %2767 = vmatpush1.msra.mxu0 %v2383
  %2768 = vmatprep.subr.mxu0 0.0
  %2769 = vmatpush1.msra.mxu0 0.0
  %2770 = vmatprep.subr.mxu0 0.0
  %2771 = vmatpush1.msra.mxu0 0.0
  %2772 = vmatprep.subr.mxu0 0.0
  %2773 = vmatpush1.msra.mxu0 0.0
  %2774 = vmatprep.subr.mxu0 0.0
  %2775 = vmatpush1.msra.mxu0 0.0
  %2776 = vmatprep.subr.mxu0 0.0
  %2777 = vmatpush1.msra.mxu0 0.0
  %2778 = vmatprep.subr.mxu0 0.0
  %2779 = vmatpush1.msra.mxu0 0.0
  %2780 = vmatprep.subr.mxu0 0.0
  %2781 = vmatpush1.msra.mxu0 0.0
  %2782 = vmatprep.subr.mxu0 0.0
  %2783 = vmatpush1.msra.mxu0 0.0
  %2784 = vmatprep.subr.mxu0 0.0
  %2785 = vmatpush1.msra.mxu0 0.0
  %2786 = vmatprep.subr.mxu0 0.0
  %2787 = vmatpush1.msra.mxu0 0.0
  %2788 = vmatprep.subr.mxu0 0.0
  %2789 = vmatpush1.msra.mxu0 0.0
  %2790 = vmatprep.subr.mxu0 0.0
  %2791 = vmatpush1.msra.mxu0 0.0
  %2792 = vmatprep.subr.mxu0 0.0
  %2793 = vmatpush1.msra.mxu0 0.0
  %2794 = vmatprep.subr.mxu0 0.0
  %2795 = vmatpush1.msra.mxu0 0.0
  %2796 = vmatprep.subr.mxu0 0.0
  %2797 = vmatpush1.msra.mxu0 0.0
  %2798 = vmatprep.subr.mxu0 0.0
  %2799 = vmatpush1.msra.mxu0 0.0
  %2800 = vmatprep.subr.mxu0 0.0
  %2801 = vmatpush1.msra.mxu0 0.0
  %2802 = vmatprep.subr.mxu0 0.0
  %2803 = vmatpush1.msra.mxu0 0.0
  %2804 = vmatprep.subr.mxu0 0.0
  %2805 = vmatpush1.msra.mxu0 0.0
  %2806 = vmatprep.subr.mxu0 0.0
  %2807 = vmatpush1.msra.mxu0 0.0
  %2808 = vmatprep.subr.mxu0 0.0
  %2809 = vmatpush1.msra.mxu0 0.0
  %2810 = vmatprep.subr.mxu0 0.0
  %2811 = vmatpush1.msra.mxu0 0.0
  %2812 = vmatprep.subr.mxu0 0.0
  %2813 = vmatpush1.msra.mxu0 0.0
  %2814 = vmatprep.subr.mxu0 0.0
  %2815 = vmatpush1.msra.mxu0 0.0
  %2816 = vmatprep.subr.mxu0 0.0
  %2817 = vmatpush1.msra.mxu0 0.0
  %2818 = vmatprep.subr.mxu0 0.0
  %2819 = vmatpush1.msra.mxu0 0.0
  %2820 = vmatprep.subr.mxu0 0.0
  %2821 = vmatpush1.msra.mxu0 0.0
  %2822 = vmatprep.subr.mxu0 0.0
  %2823 = vmatpush1.msra.mxu0 0.0
  %2824 = vmatprep.subr.mxu0 0.0
  %2825 = vmatpush1.msra.mxu0 0.0
  %2826 = vmatprep.subr.mxu0 0.0
  %2827 = vmatpush1.msra.mxu0 0.0
  %2828 = vmatprep.subr.mxu0 0.0
  %2829 = vmatpush1.msra.mxu0 0.0
  %2830 = vmatprep.mubr.f32.mxu0 0.0
  %2831 = vmatmul.mubr.f32.gmra.mrb[0].mxu0 %v2622
  %v2832 = vpop.f32.mrb[0].mxu0
  %v2833 = vadd.f32 %v2618, %v2832
  %v2834 = vpop.f32.mrb[0].mxu0
  %2835 = vdwg.mxu0
  %s2836 = scalar_lea.vmem %s4, 88
  %v2837 = vld [vmem:[%s2836] sm:$0xff]
  %2838 = vrot.lane.b32.xlu0 %v2366, 12
  %v2839 = vpop.permute.xlu0 %2838
  %2840 = vrot.lane.b32.xlu0 %v2367, 12
  %v2841 = vpop.permute.xlu0 %2840
  %2842 = vrot.lane.b32.xlu0 %v2368, 12
  %v2843 = vpop.permute.xlu0 %2842
  %2844 = vrot.lane.b32.xlu0 %v2369, 12
  %v2845 = vpop.permute.xlu0 %2844
  %2846 = vrot.lane.b32.xlu0 %v2370, 12
  %v2847 = vpop.permute.xlu0 %2846
  %v2848 = vsel %vm576, %v2845, %v2847
  %v2849 = vsel %vm576, %v2843, %v2845
  %v2850 = vsel %vm576, %v2841, %v2843
  %v2851 = vsel %vm576, %v2839, %v2841
  %v2852 = vsel %vm576, %v2847, %v2839
  %v2854 = vsel %vm2405, %v2837, 0
  %2856 = vmatprep.subr.mxu0 %v2851
  %2857 = vmatpush1.msra.mxu0 %v2852
  %2858 = vmatprep.subr.mxu0 0.0
  %2859 = vmatpush1.msra.mxu0 0.0
  %2860 = vmatprep.subr.mxu0 0.0
  %2861 = vmatpush1.msra.mxu0 0.0
  %2862 = vmatprep.subr.mxu0 0.0
  %2863 = vmatpush1.msra.mxu0 0.0
  %2864 = vmatprep.subr.mxu0 0.0
  %2865 = vmatpush1.msra.mxu0 0.0
  %2866 = vmatprep.subr.mxu0 0.0
  %2867 = vmatpush1.msra.mxu0 0.0
  %2868 = vmatprep.subr.mxu0 0.0
  %2869 = vmatpush1.msra.mxu0 0.0
  %2870 = vmatprep.subr.mxu0 0.0
  %2871 = vmatpush1.msra.mxu0 0.0
  %2872 = vmatprep.subr.mxu0 0.0
  %2873 = vmatpush1.msra.mxu0 0.0
  %2874 = vmatprep.subr.mxu0 0.0
  %2875 = vmatpush1.msra.mxu0 0.0
  %2876 = vmatprep.subr.mxu0 0.0
  %2877 = vmatpush1.msra.mxu0 0.0
  %2878 = vmatprep.subr.mxu0 0.0
  %2879 = vmatpush1.msra.mxu0 0.0
  %2880 = vmatprep.subr.mxu0 0.0
  %2881 = vmatpush1.msra.mxu0 0.0
  %2882 = vmatprep.subr.mxu0 0.0
  %2883 = vmatpush1.msra.mxu0 0.0
  %2884 = vmatprep.subr.mxu0 0.0
  %2885 = vmatpush1.msra.mxu0 0.0
  %2886 = vmatprep.subr.mxu0 0.0
  %2887 = vmatpush1.msra.mxu0 0.0
  %2888 = vmatprep.subr.mxu0 0.0
  %2889 = vmatpush1.msra.mxu0 0.0
  %2890 = vmatprep.subr.mxu0 0.0
  %2891 = vmatpush1.msra.mxu0 0.0
  %2892 = vmatprep.subr.mxu0 0.0
  %2893 = vmatpush1.msra.mxu0 0.0
  %2894 = vmatprep.subr.mxu0 0.0
  %2895 = vmatpush1.msra.mxu0 0.0
  %2896 = vmatprep.subr.mxu0 0.0
  %2897 = vmatpush1.msra.mxu0 0.0
  %2898 = vmatprep.subr.mxu0 0.0
  %2899 = vmatpush1.msra.mxu0 0.0
  %2900 = vmatprep.subr.mxu0 0.0
  %2901 = vmatpush1.msra.mxu0 0.0
  %2902 = vmatprep.subr.mxu0 0.0
  %2903 = vmatpush1.msra.mxu0 0.0
  %2904 = vmatprep.subr.mxu0 0.0
  %2905 = vmatpush1.msra.mxu0 0.0
  %2906 = vmatprep.subr.mxu0 0.0
  %2907 = vmatpush1.msra.mxu0 0.0
  %2908 = vmatprep.subr.mxu0 0.0
  %2909 = vmatpush1.msra.mxu0 0.0
  %2910 = vmatprep.subr.mxu0 0.0
  %2911 = vmatpush1.msra.mxu0 0.0
  %2912 = vmatprep.subr.mxu0 0.0
  %2913 = vmatpush1.msra.mxu0 0.0
  %2914 = vmatprep.subr.mxu0 0.0
  %2915 = vmatpush1.msra.mxu0 0.0
  %2916 = vmatprep.subr.mxu0 0.0
  %2917 = vmatpush1.msra.mxu0 0.0
  %2918 = vmatprep.subr.mxu0 0.0
  %2919 = vmatpush1.msra.mxu0 0.0
  %2920 = vmatprep.mubr.f32.mxu0 0.0
  %2921 = vmatmul.mubr.f32.gmra.mrb[0].mxu0 %v2854
  %v2922 = vpop.f32.mrb[0].mxu0
  %v2923 = vadd.f32 0.0, %v2922
  %v2924 = vpop.f32.mrb[0].mxu0
  %v2925 = vadd.f32 0.0, %v2924
  %2926 = vdwg.mxu0
  %2927 = vmatprep.subr.mxu0 %v2849
  %2928 = vmatpush1.msra.mxu0 %v2850
  %2929 = vmatprep.subr.mxu0 0.0
  %2930 = vmatpush1.msra.mxu0 0.0
  %2931 = vmatprep.subr.mxu0 0.0
  %2932 = vmatpush1.msra.mxu0 0.0
  %2933 = vmatprep.subr.mxu0 0.0
  %2934 = vmatpush1.msra.mxu0 0.0
  %2935 = vmatprep.subr.mxu0 0.0
  %2936 = vmatpush1.msra.mxu0 0.0
  %2937 = vmatprep.subr.mxu0 0.0
  %2938 = vmatpush1.msra.mxu0 0.0
  %2939 = vmatprep.subr.mxu0 0.0
  %2940 = vmatpush1.msra.mxu0 0.0
  %2941 = vmatprep.subr.mxu0 0.0
  %2942 = vmatpush1.msra.mxu0 0.0
  %2943 = vmatprep.subr.mxu0 0.0
  %2944 = vmatpush1.msra.mxu0 0.0
  %2945 = vmatprep.subr.mxu0 0.0
  %2946 = vmatpush1.msra.mxu0 0.0
  %2947 = vmatprep.subr.mxu0 0.0
  %2948 = vmatpush1.msra.mxu0 0.0
  %2949 = vmatprep.subr.mxu0 0.0
  %2950 = vmatpush1.msra.mxu0 0.0
  %2951 = vmatprep.subr.mxu0 0.0
  %2952 = vmatpush1.msra.mxu0 0.0
  %2953 = vmatprep.subr.mxu0 0.0
  %2954 = vmatpush1.msra.mxu0 0.0
  %2955 = vmatprep.subr.mxu0 0.0
  %2956 = vmatpush1.msra.mxu0 0.0
  %2957 = vmatprep.subr.mxu0 0.0
  %2958 = vmatpush1.msra.mxu0 0.0
  %2959 = vmatprep.subr.mxu0 0.0
  %2960 = vmatpush1.msra.mxu0 0.0
  %2961 = vmatprep.subr.mxu0 0.0
  %2962 = vmatpush1.msra.mxu0 0.0
  %2963 = vmatprep.subr.mxu0 0.0
  %2964 = vmatpush1.msra.mxu0 0.0
  %2965 = vmatprep.subr.mxu0 0.0
  %2966 = vmatpush1.msra.mxu0 0.0
  %2967 = vmatprep.subr.mxu0 0.0
  %2968 = vmatpush1.msra.mxu0 0.0
  %2969 = vmatprep.subr.mxu0 0.0
  %2970 = vmatpush1.msra.mxu0 0.0
  %2971 = vmatprep.subr.mxu0 0.0
  %2972 = vmatpush1.msra.mxu0 0.0
  %2973 = vmatprep.subr.mxu0 0.0
  %2974 = vmatpush1.msra.mxu0 0.0
  %2975 = vmatprep.subr.mxu0 0.0
  %2976 = vmatpush1.msra.mxu0 0.0
  %2977 = vmatprep.subr.mxu0 0.0
  %2978 = vmatpush1.msra.mxu0 0.0
  %2979 = vmatprep.subr.mxu0 0.0
  %2980 = vmatpush1.msra.mxu0 0.0
  %2981 = vmatprep.subr.mxu0 0.0
  %2982 = vmatpush1.msra.mxu0 0.0
  %2983 = vmatprep.subr.mxu0 0.0
  %2984 = vmatpush1.msra.mxu0 0.0
  %2985 = vmatprep.subr.mxu0 0.0
  %2986 = vmatpush1.msra.mxu0 0.0
  %2987 = vmatprep.subr.mxu0 0.0
  %2988 = vmatpush1.msra.mxu0 0.0
  %2989 = vmatprep.subr.mxu0 0.0
  %2990 = vmatpush1.msra.mxu0 0.0
  %2991 = vmatprep.mubr.f32.mxu0 0.0
  %2992 = vmatmul.mubr.f32.gmra.mrb[0].mxu0 %v2854
  %v2993 = vpop.f32.mrb[0].mxu0
  %v2994 = vadd.f32 0.0, %v2993
  %v2995 = vpop.f32.mrb[0].mxu0
  %v2996 = vadd.f32 0.0, %v2995
  %2997 = vdwg.mxu0
  %2998 = vmatprep.subr.mxu0 0.0
  %2999 = vmatpush1.msra.mxu0 %v2848
  %3000 = vmatprep.subr.mxu0 0.0
  %3001 = vmatpush1.msra.mxu0 0.0
  %3002 = vmatprep.subr.mxu0 0.0
  %3003 = vmatpush1.msra.mxu0 0.0
  %3004 = vmatprep.subr.mxu0 0.0
  %3005 = vmatpush1.msra.mxu0 0.0
  %3006 = vmatprep.subr.mxu0 0.0
  %3007 = vmatpush1.msra.mxu0 0.0
  %3008 = vmatprep.subr.mxu0 0.0
  %3009 = vmatpush1.msra.mxu0 0.0
  %3010 = vmatprep.subr.mxu0 0.0
  %3011 = vmatpush1.msra.mxu0 0.0
  %3012 = vmatprep.subr.mxu0 0.0
  %3013 = vmatpush1.msra.mxu0 0.0
  %3014 = vmatprep.subr.mxu0 0.0
  %3015 = vmatpush1.msra.mxu0 0.0
  %3016 = vmatprep.subr.mxu0 0.0
  %3017 = vmatpush1.msra.mxu0 0.0
  %3018 = vmatprep.subr.mxu0 0.0
  %3019 = vmatpush1.msra.mxu0 0.0
  %3020 = vmatprep.subr.mxu0 0.0
  %3021 = vmatpush1.msra.mxu0 0.0
  %3022 = vmatprep.subr.mxu0 0.0
  %3023 = vmatpush1.msra.mxu0 0.0
  %3024 = vmatprep.subr.mxu0 0.0
  %3025 = vmatpush1.msra.mxu0 0.0
  %3026 = vmatprep.subr.mxu0 0.0
  %3027 = vmatpush1.msra.mxu0 0.0
  %3028 = vmatprep.subr.mxu0 0.0
  %3029 = vmatpush1.msra.mxu0 0.0
  %3030 = vmatprep.subr.mxu0 0.0
  %3031 = vmatpush1.msra.mxu0 0.0
  %3032 = vmatprep.subr.mxu0 0.0
  %3033 = vmatpush1.msra.mxu0 0.0
  %3034 = vmatprep.subr.mxu0 0.0
  %3035 = vmatpush1.msra.mxu0 0.0
  %3036 = vmatprep.subr.mxu0 0.0
  %3037 = vmatpush1.msra.mxu0 0.0
  %3038 = vmatprep.subr.mxu0 0.0
  %3039 = vmatpush1.msra.mxu0 0.0
  %3040 = vmatprep.subr.mxu0 0.0
  %3041 = vmatpush1.msra.mxu0 0.0
  %3042 = vmatprep.subr.mxu0 0.0
  %3043 = vmatpush1.msra.mxu0 0.0
  %3044 = vmatprep.subr.mxu0 0.0
  %3045 = vmatpush1.msra.mxu0 0.0
  %3046 = vmatprep.subr.mxu0 0.0
  %3047 = vmatpush1.msra.mxu0 0.0
  %3048 = vmatprep.subr.mxu0 0.0
  %3049 = vmatpush1.msra.mxu0 0.0
  %3050 = vmatprep.subr.mxu0 0.0
  %3051 = vmatpush1.msra.mxu0 0.0
  %3052 = vmatprep.subr.mxu0 0.0
  %3053 = vmatpush1.msra.mxu0 0.0
  %3054 = vmatprep.subr.mxu0 0.0
  %3055 = vmatpush1.msra.mxu0 0.0
  %3056 = vmatprep.subr.mxu0 0.0
  %3057 = vmatpush1.msra.mxu0 0.0
  %3058 = vmatprep.subr.mxu0 0.0
  %3059 = vmatpush1.msra.mxu0 0.0
  %3060 = vmatprep.subr.mxu0 0.0
  %3061 = vmatpush1.msra.mxu0 0.0
  %3062 = vmatprep.mubr.f32.mxu0 0.0
  %3063 = vmatmul.mubr.f32.gmra.mrb[0].mxu0 %v2854
  %v3064 = vpop.f32.mrb[0].mxu0
  %v3065 = vadd.f32 0.0, %v3064
  %v3066 = vpop.f32.mrb[0].mxu0
  %3067 = vdwg.mxu0
  %v3068 = vadd.f32 %v2691, %v2923
  %v3069 = vadd.f32 %v2693, %v2925
  %v3070 = vadd.f32 %v2762, %v2994
  %v3071 = vadd.f32 %v2764, %v2996
  %v3072 = vadd.f32 %v2833, %v3065
  %s3073 = scalar_lea.vmem %s4, 96
  %v3074 = vld [vmem:[%s3073] sm:$0xff]
  %3075 = vrot.lane.b32.xlu0 %v2366, 1
  %v3076 = vpop.permute.xlu0 %3075
  %3077 = vrot.lane.b32.xlu0 %v2367, 1
  %v3078 = vpop.permute.xlu0 %3077
  %3079 = vrot.lane.b32.xlu0 %v2368, 1
  %v3080 = vpop.permute.xlu0 %3079
  %3081 = vrot.lane.b32.xlu0 %v2369, 1
  %v3082 = vpop.permute.xlu0 %3081
  %3083 = vrot.lane.b32.xlu0 %v2370, 1
  %v3084 = vpop.permute.xlu0 %3083
  %v3085 = vsel %vm829, %v3082, %v3084
  %v3086 = vsel %vm829, %v3080, %v3082
  %v3087 = vsel %vm829, %v3078, %v3080
  %v3088 = vsel %vm829, %v3076, %v3078
  %v3089 = vsel %vm829, %v3084, %v3076
  %v3091 = vsel %vm2405, %v3074, 0
  %3093 = vmatprep.subr.mxu0 %v3088
  %3094 = vmatpush1.msra.mxu0 %v3089
  %3095 = vmatprep.subr.mxu0 0.0
  %3096 = vmatpush1.msra.mxu0 0.0
  %3097 = vmatprep.subr.mxu0 0.0
  %3098 = vmatpush1.msra.mxu0 0.0
  %3099 = vmatprep.subr.mxu0 0.0
  %3100 = vmatpush1.msra.mxu0 0.0
  %3101 = vmatprep.subr.mxu0 0.0
  %3102 = vmatpush1.msra.mxu0 0.0
  %3103 = vmatprep.subr.mxu0 0.0
  %3104 = vmatpush1.msra.mxu0 0.0
  %3105 = vmatprep.subr.mxu0 0.0
  %3106 = vmatpush1.msra.mxu0 0.0
  %3107 = vmatprep.subr.mxu0 0.0
  %3108 = vmatpush1.msra.mxu0 0.0
  %3109 = vmatprep.subr.mxu0 0.0
  %3110 = vmatpush1.msra.mxu0 0.0
  %3111 = vmatprep.subr.mxu0 0.0
  %3112 = vmatpush1.msra.mxu0 0.0
  %3113 = vmatprep.subr.mxu0 0.0
  %3114 = vmatpush1.msra.mxu0 0.0
  %3115 = vmatprep.subr.mxu0 0.0
  %3116 = vmatpush1.msra.mxu0 0.0
  %3117 = vmatprep.subr.mxu0 0.0
  %3118 = vmatpush1.msra.mxu0 0.0
  %3119 = vmatprep.subr.mxu0 0.0
  %3120 = vmatpush1.msra.mxu0 0.0
  %3121 = vmatprep.subr.mxu0 0.0
  %3122 = vmatpush1.msra.mxu0 0.0
  %3123 = vmatprep.subr.mxu0 0.0
  %3124 = vmatpush1.msra.mxu0 0.0
  %3125 = vmatprep.subr.mxu0 0.0
  %3126 = vmatpush1.msra.mxu0 0.0
  %3127 = vmatprep.subr.mxu0 0.0
  %3128 = vmatpush1.msra.mxu0 0.0
  %3129 = vmatprep.subr.mxu0 0.0
  %3130 = vmatpush1.msra.mxu0 0.0
  %3131 = vmatprep.subr.mxu0 0.0
  %3132 = vmatpush1.msra.mxu0 0.0
  %3133 = vmatprep.subr.mxu0 0.0
  %3134 = vmatpush1.msra.mxu0 0.0
  %3135 = vmatprep.subr.mxu0 0.0
  %3136 = vmatpush1.msra.mxu0 0.0
  %3137 = vmatprep.subr.mxu0 0.0
  %3138 = vmatpush1.msra.mxu0 0.0
  %3139 = vmatprep.subr.mxu0 0.0
  %3140 = vmatpush1.msra.mxu0 0.0
  %3141 = vmatprep.subr.mxu0 0.0
  %3142 = vmatpush1.msra.mxu0 0.0
  %3143 = vmatprep.subr.mxu0 0.0
  %3144 = vmatpush1.msra.mxu0 0.0
  %3145 = vmatprep.subr.mxu0 0.0
  %3146 = vmatpush1.msra.mxu0 0.0
  %3147 = vmatprep.subr.mxu0 0.0
  %3148 = vmatpush1.msra.mxu0 0.0
  %3149 = vmatprep.subr.mxu0 0.0
  %3150 = vmatpush1.msra.mxu0 0.0
  %3151 = vmatprep.subr.mxu0 0.0
  %3152 = vmatpush1.msra.mxu0 0.0
  %3153 = vmatprep.subr.mxu0 0.0
  %3154 = vmatpush1.msra.mxu0 0.0
  %3155 = vmatprep.subr.mxu0 0.0
  %3156 = vmatpush1.msra.mxu0 0.0
  %3157 = vmatprep.mubr.f32.mxu0 0.0
  %3158 = vmatmul.mubr.f32.gmra.mrb[0].mxu0 %v3091
  %v3159 = vpop.f32.mrb[0].mxu0
  %v3160 = vadd.f32 0.0, %v3159
  %v3161 = vpop.f32.mrb[0].mxu0
  %v3162 = vadd.f32 0.0, %v3161
  %3163 = vdwg.mxu0
  %3164 = vmatprep.subr.mxu0 %v3086
  %3165 = vmatpush1.msra.mxu0 %v3087
  %3166 = vmatprep.subr.mxu0 0.0
  %3167 = vmatpush1.msra.mxu0 0.0
  %3168 = vmatprep.subr.mxu0 0.0
  %3169 = vmatpush1.msra.mxu0 0.0
  %3170 = vmatprep.subr.mxu0 0.0
  %3171 = vmatpush1.msra.mxu0 0.0
  %3172 = vmatprep.subr.mxu0 0.0
  %3173 = vmatpush1.msra.mxu0 0.0
  %3174 = vmatprep.subr.mxu0 0.0
  %3175 = vmatpush1.msra.mxu0 0.0
  %3176 = vmatprep.subr.mxu0 0.0
  %3177 = vmatpush1.msra.mxu0 0.0
  %3178 = vmatprep.subr.mxu0 0.0
  %3179 = vmatpush1.msra.mxu0 0.0
  %3180 = vmatprep.subr.mxu0 0.0
  %3181 = vmatpush1.msra.mxu0 0.0
  %3182 = vmatprep.subr.mxu0 0.0
  %3183 = vmatpush1.msra.mxu0 0.0
  %3184 = vmatprep.subr.mxu0 0.0
  %3185 = vmatpush1.msra.mxu0 0.0
  %3186 = vmatprep.subr.mxu0 0.0
  %3187 = vmatpush1.msra.mxu0 0.0
  %3188 = vmatprep.subr.mxu0 0.0
  %3189 = vmatpush1.msra.mxu0 0.0
  %3190 = vmatprep.subr.mxu0 0.0
  %3191 = vmatpush1.msra.mxu0 0.0
  %3192 = vmatprep.subr.mxu0 0.0
  %3193 = vmatpush1.msra.mxu0 0.0
  %3194 = vmatprep.subr.mxu0 0.0
  %3195 = vmatpush1.msra.mxu0 0.0
  %3196 = vmatprep.subr.mxu0 0.0
  %3197 = vmatpush1.msra.mxu0 0.0
  %3198 = vmatprep.subr.mxu0 0.0
  %3199 = vmatpush1.msra.mxu0 0.0
  %3200 = vmatprep.subr.mxu0 0.0
  %3201 = vmatpush1.msra.mxu0 0.0
  %3202 = vmatprep.subr.mxu0 0.0
  %3203 = vmatpush1.msra.mxu0 0.0
  %3204 = vmatprep.subr.mxu0 0.0
  %3205 = vmatpush1.msra.mxu0 0.0
  %3206 = vmatprep.subr.mxu0 0.0
  %3207 = vmatpush1.msra.mxu0 0.0
  %3208 = vmatprep.subr.mxu0 0.0
  %3209 = vmatpush1.msra.mxu0 0.0
  %3210 = vmatprep.subr.mxu0 0.0
  %3211 = vmatpush1.msra.mxu0 0.0
  %3212 = vmatprep.subr.mxu0 0.0
  %3213 = vmatpush1.msra.mxu0 0.0
  %3214 = vmatprep.subr.mxu0 0.0
  %3215 = vmatpush1.msra.mxu0 0.0
  %3216 = vmatprep.subr.mxu0 0.0
  %3217 = vmatpush1.msra.mxu0 0.0
  %3218 = vmatprep.subr.mxu0 0.0
  %3219 = vmatpush1.msra.mxu0 0.0
  %3220 = vmatprep.subr.mxu0 0.0
  %3221 = vmatpush1.msra.mxu0 0.0
  %3222 = vmatprep.subr.mxu0 0.0
  %3223 = vmatpush1.msra.mxu0 0.0
  %3224 = vmatprep.subr.mxu0 0.0
  %3225 = vmatpush1.msra.mxu0 0.0
  %3226 = vmatprep.subr.mxu0 0.0
  %3227 = vmatpush1.msra.mxu0 0.0
  %3228 = vmatprep.mubr.f32.mxu0 0.0
  %3229 = vmatmul.mubr.f32.gmra.mrb[0].mxu0 %v3091
  %v3230 = vpop.f32.mrb[0].mxu0
  %v3231 = vadd.f32 0.0, %v3230
  %v3232 = vpop.f32.mrb[0].mxu0
  %v3233 = vadd.f32 0.0, %v3232
  %3234 = vdwg.mxu0
  %3235 = vmatprep.subr.mxu0 0.0
  %3236 = vmatpush1.msra.mxu0 %v3085
  %3237 = vmatprep.subr.mxu0 0.0
  %3238 = vmatpush1.msra.mxu0 0.0
  %3239 = vmatprep.subr.mxu0 0.0
  %3240 = vmatpush1.msra.mxu0 0.0
  %3241 = vmatprep.subr.mxu0 0.0
  %3242 = vmatpush1.msra.mxu0 0.0
  %3243 = vmatprep.subr.mxu0 0.0
  %3244 = vmatpush1.msra.mxu0 0.0
  %3245 = vmatprep.subr.mxu0 0.0
  %3246 = vmatpush1.msra.mxu0 0.0
  %3247 = vmatprep.subr.mxu0 0.0
  %3248 = vmatpush1.msra.mxu0 0.0
  %3249 = vmatprep.subr.mxu0 0.0
  %3250 = vmatpush1.msra.mxu0 0.0
  %3251 = vmatprep.subr.mxu0 0.0
  %3252 = vmatpush1.msra.mxu0 0.0
  %3253 = vmatprep.subr.mxu0 0.0
  %3254 = vmatpush1.msra.mxu0 0.0
  %3255 = vmatprep.subr.mxu0 0.0
  %3256 = vmatpush1.msra.mxu0 0.0
  %3257 = vmatprep.subr.mxu0 0.0
  %3258 = vmatpush1.msra.mxu0 0.0
  %3259 = vmatprep.subr.mxu0 0.0
  %3260 = vmatpush1.msra.mxu0 0.0
  %3261 = vmatprep.subr.mxu0 0.0
  %3262 = vmatpush1.msra.mxu0 0.0
  %3263 = vmatprep.subr.mxu0 0.0
  %3264 = vmatpush1.msra.mxu0 0.0
  %3265 = vmatprep.subr.mxu0 0.0
  %3266 = vmatpush1.msra.mxu0 0.0
  %3267 = vmatprep.subr.mxu0 0.0
  %3268 = vmatpush1.msra.mxu0 0.0
  %3269 = vmatprep.subr.mxu0 0.0
  %3270 = vmatpush1.msra.mxu0 0.0
  %3271 = vmatprep.subr.mxu0 0.0
  %3272 = vmatpush1.msra.mxu0 0.0
  %3273 = vmatprep.subr.mxu0 0.0
  %3274 = vmatpush1.msra.mxu0 0.0
  %3275 = vmatprep.subr.mxu0 0.0
  %3276 = vmatpush1.msra.mxu0 0.0
  %3277 = vmatprep.subr.mxu0 0.0
  %3278 = vmatpush1.msra.mxu0 0.0
  %3279 = vmatprep.subr.mxu0 0.0
  %3280 = vmatpush1.msra.mxu0 0.0
  %3281 = vmatprep.subr.mxu0 0.0
  %3282 = vmatpush1.msra.mxu0 0.0
  %3283 = vmatprep.subr.mxu0 0.0
  %3284 = vmatpush1.msra.mxu0 0.0
  %3285 = vmatprep.subr.mxu0 0.0
  %3286 = vmatpush1.msra.mxu0 0.0
  %3287 = vmatprep.subr.mxu0 0.0
  %3288 = vmatpush1.msra.mxu0 0.0
  %3289 = vmatprep.subr.mxu0 0.0
  %3290 = vmatpush1.msra.mxu0 0.0
  %3291 = vmatprep.subr.mxu0 0.0
  %3292 = vmatpush1.msra.mxu0 0.0
  %3293 = vmatprep.subr.mxu0 0.0
  %3294 = vmatpush1.msra.mxu0 0.0
  %3295 = vmatprep.subr.mxu0 0.0
  %3296 = vmatpush1.msra.mxu0 0.0
  %3297 = vmatprep.subr.mxu0 0.0
  %3298 = vmatpush1.msra.mxu0 0.0
  %3299 = vmatprep.mubr.f32.mxu0 0.0
  %3300 = vmatmul.mubr.f32.gmra.mrb[0].mxu0 %v3091
  %v3301 = vpop.f32.mrb[0].mxu0
  %v3302 = vadd.f32 0.0, %v3301
  %v3303 = vpop.f32.mrb[0].mxu0
  %3304 = vdwg.mxu0
  %v3305 = vadd.f32 %v3068, %v3160
  %v3306 = vadd.f32 %v3069, %v3162
  %v3307 = vadd.f32 %v3070, %v3231
  %v3308 = vadd.f32 %v3071, %v3233
  %v3309 = vadd.f32 %v3072, %v3302
  %s3310 = scalar_lea.vmem %s4, 104
  %v3311 = vld [vmem:[%s3310] sm:$0xff]
  %v3313 = vsel %vm2405, %v3311, 0
  %3315 = vmatprep.subr.mxu0 %v2367
  %3316 = vmatpush1.msra.mxu0 %v2366
  %3317 = vmatprep.subr.mxu0 0.0
  %3318 = vmatpush1.msra.mxu0 0.0
  %3319 = vmatprep.subr.mxu0 0.0
  %3320 = vmatpush1.msra.mxu0 0.0
  %3321 = vmatprep.subr.mxu0 0.0
  %3322 = vmatpush1.msra.mxu0 0.0
  %3323 = vmatprep.subr.mxu0 0.0
  %3324 = vmatpush1.msra.mxu0 0.0
  %3325 = vmatprep.subr.mxu0 0.0
  %3326 = vmatpush1.msra.mxu0 0.0
  %3327 = vmatprep.subr.mxu0 0.0
  %3328 = vmatpush1.msra.mxu0 0.0
  %3329 = vmatprep.subr.mxu0 0.0
  %3330 = vmatpush1.msra.mxu0 0.0
  %3331 = vmatprep.subr.mxu0 0.0
  %3332 = vmatpush1.msra.mxu0 0.0
  %3333 = vmatprep.subr.mxu0 0.0
  %3334 = vmatpush1.msra.mxu0 0.0
  %3335 = vmatprep.subr.mxu0 0.0
  %3336 = vmatpush1.msra.mxu0 0.0
  %3337 = vmatprep.subr.mxu0 0.0
  %3338 = vmatpush1.msra.mxu0 0.0
  %3339 = vmatprep.subr.mxu0 0.0
  %3340 = vmatpush1.msra.mxu0 0.0
  %3341 = vmatprep.subr.mxu0 0.0
  %3342 = vmatpush1.msra.mxu0 0.0
  %3343 = vmatprep.subr.mxu0 0.0
  %3344 = vmatpush1.msra.mxu0 0.0
  %3345 = vmatprep.subr.mxu0 0.0
  %3346 = vmatpush1.msra.mxu0 0.0
  %3347 = vmatprep.subr.mxu0 0.0
  %3348 = vmatpush1.msra.mxu0 0.0
  %3349 = vmatprep.subr.mxu0 0.0
  %3350 = vmatpush1.msra.mxu0 0.0
  %3351 = vmatprep.subr.mxu0 0.0
  %3352 = vmatpush1.msra.mxu0 0.0
  %3353 = vmatprep.subr.mxu0 0.0
  %3354 = vmatpush1.msra.mxu0 0.0
  %3355 = vmatprep.subr.mxu0 0.0
  %3356 = vmatpush1.msra.mxu0 0.0
  %3357 = vmatprep.subr.mxu0 0.0
  %3358 = vmatpush1.msra.mxu0 0.0
  %3359 = vmatprep.subr.mxu0 0.0
  %3360 = vmatpush1.msra.mxu0 0.0
  %3361 = vmatprep.subr.mxu0 0.0
  %3362 = vmatpush1.msra.mxu0 0.0
  %3363 = vmatprep.subr.mxu0 0.0
  %3364 = vmatpush1.msra.mxu0 0.0
  %3365 = vmatprep.subr.mxu0 0.0
  %3366 = vmatpush1.msra.mxu0 0.0
  %3367 = vmatprep.subr.mxu0 0.0
  %3368 = vmatpush1.msra.mxu0 0.0
  %3369 = vmatprep.subr.mxu0 0.0
  %3370 = vmatpush1.msra.mxu0 0.0
  %3371 = vmatprep.subr.mxu0 0.0
  %3372 = vmatpush1.msra.mxu0 0.0
  %3373 = vmatprep.subr.mxu0 0.0
  %3374 = vmatpush1.msra.mxu0 0.0
  %3375 = vmatprep.subr.mxu0 0.0
  %3376 = vmatpush1.msra.mxu0 0.0
  %3377 = vmatprep.subr.mxu0 0.0
  %3378 = vmatpush1.msra.mxu0 0.0
  %3379 = vmatprep.mubr.f32.mxu0 0.0
  %3380 = vmatmul.mubr.f32.gmra.mrb[0].mxu0 %v3313
  %v3381 = vpop.f32.mrb[0].mxu0
  %v3382 = vadd.f32 0.0, %v3381
  %v3383 = vpop.f32.mrb[0].mxu0
  %v3384 = vadd.f32 0.0, %v3383
  %3385 = vdwg.mxu0
  %3386 = vmatprep.subr.mxu0 %v2369
  %3387 = vmatpush1.msra.mxu0 %v2368
  %3388 = vmatprep.subr.mxu0 0.0
  %3389 = vmatpush1.msra.mxu0 0.0
  %3390 = vmatprep.subr.mxu0 0.0
  %3391 = vmatpush1.msra.mxu0 0.0
  %3392 = vmatprep.subr.mxu0 0.0
  %3393 = vmatpush1.msra.mxu0 0.0
  %3394 = vmatprep.subr.mxu0 0.0
  %3395 = vmatpush1.msra.mxu0 0.0
  %3396 = vmatprep.subr.mxu0 0.0
  %3397 = vmatpush1.msra.mxu0 0.0
  %3398 = vmatprep.subr.mxu0 0.0
  %3399 = vmatpush1.msra.mxu0 0.0
  %3400 = vmatprep.subr.mxu0 0.0
  %3401 = vmatpush1.msra.mxu0 0.0
  %3402 = vmatprep.subr.mxu0 0.0
  %3403 = vmatpush1.msra.mxu0 0.0
  %3404 = vmatprep.subr.mxu0 0.0
  %3405 = vmatpush1.msra.mxu0 0.0
  %3406 = vmatprep.subr.mxu0 0.0
  %3407 = vmatpush1.msra.mxu0 0.0
  %3408 = vmatprep.subr.mxu0 0.0
  %3409 = vmatpush1.msra.mxu0 0.0
  %3410 = vmatprep.subr.mxu0 0.0
  %3411 = vmatpush1.msra.mxu0 0.0
  %3412 = vmatprep.subr.mxu0 0.0
  %3413 = vmatpush1.msra.mxu0 0.0
  %3414 = vmatprep.subr.mxu0 0.0
  %3415 = vmatpush1.msra.mxu0 0.0
  %3416 = vmatprep.subr.mxu0 0.0
  %3417 = vmatpush1.msra.mxu0 0.0
  %3418 = vmatprep.subr.mxu0 0.0
  %3419 = vmatpush1.msra.mxu0 0.0
  %3420 = vmatprep.subr.mxu0 0.0
  %3421 = vmatpush1.msra.mxu0 0.0
  %3422 = vmatprep.subr.mxu0 0.0
  %3423 = vmatpush1.msra.mxu0 0.0
  %3424 = vmatprep.subr.mxu0 0.0
  %3425 = vmatpush1.msra.mxu0 0.0
  %3426 = vmatprep.subr.mxu0 0.0
  %3427 = vmatpush1.msra.mxu0 0.0
  %3428 = vmatprep.subr.mxu0 0.0
  %3429 = vmatpush1.msra.mxu0 0.0
  %3430 = vmatprep.subr.mxu0 0.0
  %3431 = vmatpush1.msra.mxu0 0.0
  %3432 = vmatprep.subr.mxu0 0.0
  %3433 = vmatpush1.msra.mxu0 0.0
  %3434 = vmatprep.subr.mxu0 0.0
  %3435 = vmatpush1.msra.mxu0 0.0
  %3436 = vmatprep.subr.mxu0 0.0
  %3437 = vmatpush1.msra.mxu0 0.0
  %3438 = vmatprep.subr.mxu0 0.0
  %3439 = vmatpush1.msra.mxu0 0.0
  %3440 = vmatprep.subr.mxu0 0.0
  %3441 = vmatpush1.msra.mxu0 0.0
  %3442 = vmatprep.subr.mxu0 0.0
  %3443 = vmatpush1.msra.mxu0 0.0
  %3444 = vmatprep.subr.mxu0 0.0
  %3445 = vmatpush1.msra.mxu0 0.0
  %3446 = vmatprep.subr.mxu0 0.0
  %3447 = vmatpush1.msra.mxu0 0.0
  %3448 = vmatprep.subr.mxu0 0.0
  %3449 = vmatpush1.msra.mxu0 0.0
  %3450 = vmatprep.mubr.f32.mxu0 0.0
  %3451 = vmatmul.mubr.f32.gmra.mrb[0].mxu0 %v3313
  %v3452 = vpop.f32.mrb[0].mxu0
  %v3453 = vadd.f32 0.0, %v3452
  %v3454 = vpop.f32.mrb[0].mxu0
  %v3455 = vadd.f32 0.0, %v3454
  %3456 = vdwg.mxu0
  %3457 = vmatprep.subr.mxu0 0.0
  %3458 = vmatpush1.msra.mxu0 %v2370
  %3459 = vmatprep.subr.mxu0 0.0
  %3460 = vmatpush1.msra.mxu0 0.0
  %3461 = vmatprep.subr.mxu0 0.0
  %3462 = vmatpush1.msra.mxu0 0.0
  %3463 = vmatprep.subr.mxu0 0.0
  %3464 = vmatpush1.msra.mxu0 0.0
  %3465 = vmatprep.subr.mxu0 0.0
  %3466 = vmatpush1.msra.mxu0 0.0
  %3467 = vmatprep.subr.mxu0 0.0
  %3468 = vmatpush1.msra.mxu0 0.0
  %3469 = vmatprep.subr.mxu0 0.0
  %3470 = vmatpush1.msra.mxu0 0.0
  %3471 = vmatprep.subr.mxu0 0.0
  %3472 = vmatpush1.msra.mxu0 0.0
  %3473 = vmatprep.subr.mxu0 0.0
  %3474 = vmatpush1.msra.mxu0 0.0
  %3475 = vmatprep.subr.mxu0 0.0
  %3476 = vmatpush1.msra.mxu0 0.0
  %3477 = vmatprep.subr.mxu0 0.0
  %3478 = vmatpush1.msra.mxu0 0.0
  %3479 = vmatprep.subr.mxu0 0.0
  %3480 = vmatpush1.msra.mxu0 0.0
  %3481 = vmatprep.subr.mxu0 0.0
  %3482 = vmatpush1.msra.mxu0 0.0
  %3483 = vmatprep.subr.mxu0 0.0
  %3484 = vmatpush1.msra.mxu0 0.0
  %3485 = vmatprep.subr.mxu0 0.0
  %3486 = vmatpush1.msra.mxu0 0.0
  %3487 = vmatprep.subr.mxu0 0.0
  %3488 = vmatpush1.msra.mxu0 0.0
  %3489 = vmatprep.subr.mxu0 0.0
  %3490 = vmatpush1.msra.mxu0 0.0
  %3491 = vmatprep.subr.mxu0 0.0
  %3492 = vmatpush1.msra.mxu0 0.0
  %3493 = vmatprep.subr.mxu0 0.0
  %3494 = vmatpush1.msra.mxu0 0.0
  %3495 = vmatprep.subr.mxu0 0.0
  %3496 = vmatpush1.msra.mxu0 0.0
  %3497 = vmatprep.subr.mxu0 0.0
  %3498 = vmatpush1.msra.mxu0 0.0
  %3499 = vmatprep.subr.mxu0 0.0
  %3500 = vmatpush1.msra.mxu0 0.0
  %3501 = vmatprep.subr.mxu0 0.0
  %3502 = vmatpush1.msra.mxu0 0.0
  %3503 = vmatprep.subr.mxu0 0.0
  %3504 = vmatpush1.msra.mxu0 0.0
  %3505 = vmatprep.subr.mxu0 0.0
  %3506 = vmatpush1.msra.mxu0 0.0
  %3507 = vmatprep.subr.mxu0 0.0
  %3508 = vmatpush1.msra.mxu0 0.0
  %3509 = vmatprep.subr.mxu0 0.0
  %3510 = vmatpush1.msra.mxu0 0.0
  %3511 = vmatprep.subr.mxu0 0.0
  %3512 = vmatpush1.msra.mxu0 0.0
  %3513 = vmatprep.subr.mxu0 0.0
  %3514 = vmatpush1.msra.mxu0 0.0
  %3515 = vmatprep.subr.mxu0 0.0
  %3516 = vmatpush1.msra.mxu0 0.0
  %3517 = vmatprep.subr.mxu0 0.0
  %3518 = vmatpush1.msra.mxu0 0.0
  %3519 = vmatprep.subr.mxu0 0.0
  %3520 = vmatpush1.msra.mxu0 0.0
  %3521 = vmatprep.mubr.f32.mxu0 0.0
  %3522 = vmatmul.mubr.f32.gmra.mrb[0].mxu0 %v3313
  %v3523 = vpop.f32.mrb[0].mxu0
  %v3524 = vadd.f32 0.0, %v3523
  %v3525 = vpop.f32.mrb[0].mxu0
  %3526 = vdwg.mxu0
  %v3527 = vadd.f32 %v3305, %v3382
  %v3528 = vadd.f32 %v3306, %v3384
  %v3529 = vadd.f32 %v3307, %v3453
  %v3530 = vadd.f32 %v3308, %v3455
  %v3531 = vadd.f32 %v3309, %v3524
  %s3532 = scalar_lea.vmem %s4, 112
  %v3533 = vld [vmem:[%s3532] sm:$0xff]
  %3534 = vrot.lane.b32.xlu0 %v2366, 127
  %v3535 = vpop.permute.xlu0 %3534
  %3536 = vrot.lane.b32.xlu0 %v2367, 127
  %v3537 = vpop.permute.xlu0 %3536
  %3538 = vrot.lane.b32.xlu0 %v2368, 127
  %v3539 = vpop.permute.xlu0 %3538
  %3540 = vrot.lane.b32.xlu0 %v2369, 127
  %v3541 = vpop.permute.xlu0 %3540
  %3542 = vrot.lane.b32.xlu0 %v2370, 127
  %v3543 = vpop.permute.xlu0 %3542
  %v3544 = vsel %vm1314, %v3541, %v3543
  %v3545 = vsel %vm1314, %v3539, %v3541
  %v3546 = vsel %vm1314, %v3537, %v3539
  %v3547 = vsel %vm1314, %v3535, %v3537
  %v3548 = vsel %vm1314, %v3543, %v3535
  %v3550 = vsel %vm2405, %v3533, 0
  %3552 = vmatprep.subr.mxu0 %v3546
  %3553 = vmatpush1.msra.mxu0 %v3547
  %3554 = vmatprep.subr.mxu0 0.0
  %3555 = vmatpush1.msra.mxu0 0.0
  %3556 = vmatprep.subr.mxu0 0.0
  %3557 = vmatpush1.msra.mxu0 0.0
  %3558 = vmatprep.subr.mxu0 0.0
  %3559 = vmatpush1.msra.mxu0 0.0
  %3560 = vmatprep.subr.mxu0 0.0
  %3561 = vmatpush1.msra.mxu0 0.0
  %3562 = vmatprep.subr.mxu0 0.0
  %3563 = vmatpush1.msra.mxu0 0.0
  %3564 = vmatprep.subr.mxu0 0.0
  %3565 = vmatpush1.msra.mxu0 0.0
  %3566 = vmatprep.subr.mxu0 0.0
  %3567 = vmatpush1.msra.mxu0 0.0
  %3568 = vmatprep.subr.mxu0 0.0
  %3569 = vmatpush1.msra.mxu0 0.0
  %3570 = vmatprep.subr.mxu0 0.0
  %3571 = vmatpush1.msra.mxu0 0.0
  %3572 = vmatprep.subr.mxu0 0.0
  %3573 = vmatpush1.msra.mxu0 0.0
  %3574 = vmatprep.subr.mxu0 0.0
  %3575 = vmatpush1.msra.mxu0 0.0
  %3576 = vmatprep.subr.mxu0 0.0
  %3577 = vmatpush1.msra.mxu0 0.0
  %3578 = vmatprep.subr.mxu0 0.0
  %3579 = vmatpush1.msra.mxu0 0.0
  %3580 = vmatprep.subr.mxu0 0.0
  %3581 = vmatpush1.msra.mxu0 0.0
  %3582 = vmatprep.subr.mxu0 0.0
  %3583 = vmatpush1.msra.mxu0 0.0
  %3584 = vmatprep.subr.mxu0 0.0
  %3585 = vmatpush1.msra.mxu0 0.0
  %3586 = vmatprep.subr.mxu0 0.0
  %3587 = vmatpush1.msra.mxu0 0.0
  %3588 = vmatprep.subr.mxu0 0.0
  %3589 = vmatpush1.msra.mxu0 0.0
  %3590 = vmatprep.subr.mxu0 0.0
  %3591 = vmatpush1.msra.mxu0 0.0
  %3592 = vmatprep.subr.mxu0 0.0
  %3593 = vmatpush1.msra.mxu0 0.0
  %3594 = vmatprep.subr.mxu0 0.0
  %3595 = vmatpush1.msra.mxu0 0.0
  %3596 = vmatprep.subr.mxu0 0.0
  %3597 = vmatpush1.msra.mxu0 0.0
  %3598 = vmatprep.subr.mxu0 0.0
  %3599 = vmatpush1.msra.mxu0 0.0
  %3600 = vmatprep.subr.mxu0 0.0
  %3601 = vmatpush1.msra.mxu0 0.0
  %3602 = vmatprep.subr.mxu0 0.0
  %3603 = vmatpush1.msra.mxu0 0.0
  %3604 = vmatprep.subr.mxu0 0.0
  %3605 = vmatpush1.msra.mxu0 0.0
  %3606 = vmatprep.subr.mxu0 0.0
  %3607 = vmatpush1.msra.mxu0 0.0
  %3608 = vmatprep.subr.mxu0 0.0
  %3609 = vmatpush1.msra.mxu0 0.0
  %3610 = vmatprep.subr.mxu0 0.0
  %3611 = vmatpush1.msra.mxu0 0.0
  %3612 = vmatprep.subr.mxu0 0.0
  %3613 = vmatpush1.msra.mxu0 0.0
  %3614 = vmatprep.subr.mxu0 0.0
  %3615 = vmatpush1.msra.mxu0 0.0
  %3616 = vmatprep.mubr.f32.mxu0 0.0
  %3617 = vmatmul.mubr.f32.gmra.mrb[0].mxu0 %v3550
  %v3618 = vpop.f32.mrb[0].mxu0
  %v3619 = vadd.f32 0.0, %v3618
  %v3620 = vpop.f32.mrb[0].mxu0
  %v3621 = vadd.f32 0.0, %v3620
  %3622 = vdwg.mxu0
  %3623 = vmatprep.subr.mxu0 %v3544
  %3624 = vmatpush1.msra.mxu0 %v3545
  %3625 = vmatprep.subr.mxu0 0.0
  %3626 = vmatpush1.msra.mxu0 0.0
  %3627 = vmatprep.subr.mxu0 0.0
  %3628 = vmatpush1.msra.mxu0 0.0
  %3629 = vmatprep.subr.mxu0 0.0
  %3630 = vmatpush1.msra.mxu0 0.0
  %3631 = vmatprep.subr.mxu0 0.0
  %3632 = vmatpush1.msra.mxu0 0.0
  %3633 = vmatprep.subr.mxu0 0.0
  %3634 = vmatpush1.msra.mxu0 0.0
  %3635 = vmatprep.subr.mxu0 0.0
  %3636 = vmatpush1.msra.mxu0 0.0
  %3637 = vmatprep.subr.mxu0 0.0
  %3638 = vmatpush1.msra.mxu0 0.0
  %3639 = vmatprep.subr.mxu0 0.0
  %3640 = vmatpush1.msra.mxu0 0.0
  %3641 = vmatprep.subr.mxu0 0.0
  %3642 = vmatpush1.msra.mxu0 0.0
  %3643 = vmatprep.subr.mxu0 0.0
  %3644 = vmatpush1.msra.mxu0 0.0
  %3645 = vmatprep.subr.mxu0 0.0
  %3646 = vmatpush1.msra.mxu0 0.0
  %3647 = vmatprep.subr.mxu0 0.0
  %3648 = vmatpush1.msra.mxu0 0.0
  %3649 = vmatprep.subr.mxu0 0.0
  %3650 = vmatpush1.msra.mxu0 0.0
  %3651 = vmatprep.subr.mxu0 0.0
  %3652 = vmatpush1.msra.mxu0 0.0
  %3653 = vmatprep.subr.mxu0 0.0
  %3654 = vmatpush1.msra.mxu0 0.0
  %3655 = vmatprep.subr.mxu0 0.0
  %3656 = vmatpush1.msra.mxu0 0.0
  %3657 = vmatprep.subr.mxu0 0.0
  %3658 = vmatpush1.msra.mxu0 0.0
  %3659 = vmatprep.subr.mxu0 0.0
  %3660 = vmatpush1.msra.mxu0 0.0
  %3661 = vmatprep.subr.mxu0 0.0
  %3662 = vmatpush1.msra.mxu0 0.0
  %3663 = vmatprep.subr.mxu0 0.0
  %3664 = vmatpush1.msra.mxu0 0.0
  %3665 = vmatprep.subr.mxu0 0.0
  %3666 = vmatpush1.msra.mxu0 0.0
  %3667 = vmatprep.subr.mxu0 0.0
  %3668 = vmatpush1.msra.mxu0 0.0
  %3669 = vmatprep.subr.mxu0 0.0
  %3670 = vmatpush1.msra.mxu0 0.0
  %3671 = vmatprep.subr.mxu0 0.0
  %3672 = vmatpush1.msra.mxu0 0.0
  %3673 = vmatprep.subr.mxu0 0.0
  %3674 = vmatpush1.msra.mxu0 0.0
  %3675 = vmatprep.subr.mxu0 0.0
  %3676 = vmatpush1.msra.mxu0 0.0
  %3677 = vmatprep.subr.mxu0 0.0
  %3678 = vmatpush1.msra.mxu0 0.0
  %3679 = vmatprep.subr.mxu0 0.0
  %3680 = vmatpush1.msra.mxu0 0.0
  %3681 = vmatprep.subr.mxu0 0.0
  %3682 = vmatpush1.msra.mxu0 0.0
  %3683 = vmatprep.subr.mxu0 0.0
  %3684 = vmatpush1.msra.mxu0 0.0
  %3685 = vmatprep.subr.mxu0 0.0
  %3686 = vmatpush1.msra.mxu0 0.0
  %3687 = vmatprep.mubr.f32.mxu0 0.0
  %3688 = vmatmul.mubr.f32.gmra.mrb[0].mxu0 %v3550
  %v3689 = vpop.f32.mrb[0].mxu0
  %v3690 = vadd.f32 0.0, %v3689
  %v3691 = vpop.f32.mrb[0].mxu0
  %v3692 = vadd.f32 0.0, %v3691
  %3693 = vdwg.mxu0
  %3694 = vmatprep.subr.mxu0 0.0
  %3695 = vmatpush1.msra.mxu0 %v3548
  %3696 = vmatprep.subr.mxu0 0.0
  %3697 = vmatpush1.msra.mxu0 0.0
  %3698 = vmatprep.subr.mxu0 0.0
  %3699 = vmatpush1.msra.mxu0 0.0
  %3700 = vmatprep.subr.mxu0 0.0
  %3701 = vmatpush1.msra.mxu0 0.0
  %3702 = vmatprep.subr.mxu0 0.0
  %3703 = vmatpush1.msra.mxu0 0.0
  %3704 = vmatprep.subr.mxu0 0.0
  %3705 = vmatpush1.msra.mxu0 0.0
  %3706 = vmatprep.subr.mxu0 0.0
  %3707 = vmatpush1.msra.mxu0 0.0
  %3708 = vmatprep.subr.mxu0 0.0
  %3709 = vmatpush1.msra.mxu0 0.0
  %3710 = vmatprep.subr.mxu0 0.0
  %3711 = vmatpush1.msra.mxu0 0.0
  %3712 = vmatprep.subr.mxu0 0.0
  %3713 = vmatpush1.msra.mxu0 0.0
  %3714 = vmatprep.subr.mxu0 0.0
  %3715 = vmatpush1.msra.mxu0 0.0
  %3716 = vmatprep.subr.mxu0 0.0
  %3717 = vmatpush1.msra.mxu0 0.0
  %3718 = vmatprep.subr.mxu0 0.0
  %3719 = vmatpush1.msra.mxu0 0.0
  %3720 = vmatprep.subr.mxu0 0.0
  %3721 = vmatpush1.msra.mxu0 0.0
  %3722 = vmatprep.subr.mxu0 0.0
  %3723 = vmatpush1.msra.mxu0 0.0
  %3724 = vmatprep.subr.mxu0 0.0
  %3725 = vmatpush1.msra.mxu0 0.0
  %3726 = vmatprep.subr.mxu0 0.0
  %3727 = vmatpush1.msra.mxu0 0.0
  %3728 = vmatprep.subr.mxu0 0.0
  %3729 = vmatpush1.msra.mxu0 0.0
  %3730 = vmatprep.subr.mxu0 0.0
  %3731 = vmatpush1.msra.mxu0 0.0
  %3732 = vmatprep.subr.mxu0 0.0
  %3733 = vmatpush1.msra.mxu0 0.0
  %3734 = vmatprep.subr.mxu0 0.0
  %3735 = vmatpush1.msra.mxu0 0.0
  %3736 = vmatprep.subr.mxu0 0.0
  %3737 = vmatpush1.msra.mxu0 0.0
  %3738 = vmatprep.subr.mxu0 0.0
  %3739 = vmatpush1.msra.mxu0 0.0
  %3740 = vmatprep.subr.mxu0 0.0
  %3741 = vmatpush1.msra.mxu0 0.0
  %3742 = vmatprep.subr.mxu0 0.0
  %3743 = vmatpush1.msra.mxu0 0.0
  %3744 = vmatprep.subr.mxu0 0.0
  %3745 = vmatpush1.msra.mxu0 0.0
  %3746 = vmatprep.subr.mxu0 0.0
  %3747 = vmatpush1.msra.mxu0 0.0
  %3748 = vmatprep.subr.mxu0 0.0
  %3749 = vmatpush1.msra.mxu0 0.0
  %3750 = vmatprep.subr.mxu0 0.0
  %3751 = vmatpush1.msra.mxu0 0.0
  %3752 = vmatprep.subr.mxu0 0.0
  %3753 = vmatpush1.msra.mxu0 0.0
  %3754 = vmatprep.subr.mxu0 0.0
  %3755 = vmatpush1.msra.mxu0 0.0
  %3756 = vmatprep.subr.mxu0 0.0
  %3757 = vmatpush1.msra.mxu0 0.0
  %3758 = vmatprep.mubr.f32.mxu0 0.0
  %3759 = vmatmul.mubr.f32.gmra.mrb[0].mxu0 %v3550
  %v3760 = vpop.f32.mrb[0].mxu0
  %v3761 = vadd.f32 0.0, %v3760
  %v3762 = vpop.f32.mrb[0].mxu0
  %3763 = vdwg.mxu0
  %v3764 = vadd.f32 %v3527, %v3619
  %v3765 = vadd.f32 %v3528, %v3621
  %v3766 = vadd.f32 %v3529, %v3690
  %v3767 = vadd.f32 %v3530, %v3692
  %v3768 = vadd.f32 %v3531, %v3761
  %s3769 = scalar_lea.vmem %s4, 120
  %v3770 = vld [vmem:[%s3769] sm:$0xff]
  %3771 = vrot.lane.b32.xlu0 %v2366, 116
  %v3772 = vpop.permute.xlu0 %3771
  %3773 = vrot.lane.b32.xlu0 %v2367, 116
  %v3774 = vpop.permute.xlu0 %3773
  %3775 = vrot.lane.b32.xlu0 %v2368, 116
  %v3776 = vpop.permute.xlu0 %3775
  %3777 = vrot.lane.b32.xlu0 %v2369, 116
  %v3778 = vpop.permute.xlu0 %3777
  %3779 = vrot.lane.b32.xlu0 %v2370, 116
  %v3780 = vpop.permute.xlu0 %3779
  %v3781 = vsel %vm1567, %v3778, %v3780
  %v3782 = vsel %vm1567, %v3776, %v3778
  %v3783 = vsel %vm1567, %v3774, %v3776
  %v3784 = vsel %vm1567, %v3772, %v3774
  %v3785 = vsel %vm1567, %v3780, %v3772
  %v3787 = vsel %vm2405, %v3770, 0
  %3789 = vmatprep.subr.mxu0 %v3783
  %3790 = vmatpush1.msra.mxu0 %v3784
  %3791 = vmatprep.subr.mxu0 0.0
  %3792 = vmatpush1.msra.mxu0 0.0
  %3793 = vmatprep.subr.mxu0 0.0
  %3794 = vmatpush1.msra.mxu0 0.0
  %3795 = vmatprep.subr.mxu0 0.0
  %3796 = vmatpush1.msra.mxu0 0.0
  %3797 = vmatprep.subr.mxu0 0.0
  %3798 = vmatpush1.msra.mxu0 0.0
  %3799 = vmatprep.subr.mxu0 0.0
  %3800 = vmatpush1.msra.mxu0 0.0
  %3801 = vmatprep.subr.mxu0 0.0
  %3802 = vmatpush1.msra.mxu0 0.0
  %3803 = vmatprep.subr.mxu0 0.0
  %3804 = vmatpush1.msra.mxu0 0.0
  %3805 = vmatprep.subr.mxu0 0.0
  %3806 = vmatpush1.msra.mxu0 0.0
  %3807 = vmatprep.subr.mxu0 0.0
  %3808 = vmatpush1.msra.mxu0 0.0
  %3809 = vmatprep.subr.mxu0 0.0
  %3810 = vmatpush1.msra.mxu0 0.0
  %3811 = vmatprep.subr.mxu0 0.0
  %3812 = vmatpush1.msra.mxu0 0.0
  %3813 = vmatprep.subr.mxu0 0.0
  %3814 = vmatpush1.msra.mxu0 0.0
  %3815 = vmatprep.subr.mxu0 0.0
  %3816 = vmatpush1.msra.mxu0 0.0
  %3817 = vmatprep.subr.mxu0 0.0
  %3818 = vmatpush1.msra.mxu0 0.0
  %3819 = vmatprep.subr.mxu0 0.0
  %3820 = vmatpush1.msra.mxu0 0.0
  %3821 = vmatprep.subr.mxu0 0.0
  %3822 = vmatpush1.msra.mxu0 0.0
  %3823 = vmatprep.subr.mxu0 0.0
  %3824 = vmatpush1.msra.mxu0 0.0
  %3825 = vmatprep.subr.mxu0 0.0
  %3826 = vmatpush1.msra.mxu0 0.0
  %3827 = vmatprep.subr.mxu0 0.0
  %3828 = vmatpush1.msra.mxu0 0.0
  %3829 = vmatprep.subr.mxu0 0.0
  %3830 = vmatpush1.msra.mxu0 0.0
  %3831 = vmatprep.subr.mxu0 0.0
  %3832 = vmatpush1.msra.mxu0 0.0
  %3833 = vmatprep.subr.mxu0 0.0
  %3834 = vmatpush1.msra.mxu0 0.0
  %3835 = vmatprep.subr.mxu0 0.0
  %3836 = vmatpush1.msra.mxu0 0.0
  %3837 = vmatprep.subr.mxu0 0.0
  %3838 = vmatpush1.msra.mxu0 0.0
  %3839 = vmatprep.subr.mxu0 0.0
  %3840 = vmatpush1.msra.mxu0 0.0
  %3841 = vmatprep.subr.mxu0 0.0
  %3842 = vmatpush1.msra.mxu0 0.0
  %3843 = vmatprep.subr.mxu0 0.0
  %3844 = vmatpush1.msra.mxu0 0.0
  %3845 = vmatprep.subr.mxu0 0.0
  %3846 = vmatpush1.msra.mxu0 0.0
  %3847 = vmatprep.subr.mxu0 0.0
  %3848 = vmatpush1.msra.mxu0 0.0
  %3849 = vmatprep.subr.mxu0 0.0
  %3850 = vmatpush1.msra.mxu0 0.0
  %3851 = vmatprep.subr.mxu0 0.0
  %3852 = vmatpush1.msra.mxu0 0.0
  %3853 = vmatprep.mubr.f32.mxu0 0.0
  %3854 = vmatmul.mubr.f32.gmra.mrb[0].mxu0 %v3787
  %v3855 = vpop.f32.mrb[0].mxu0
  %v3856 = vadd.f32 0.0, %v3855
  %v3857 = vpop.f32.mrb[0].mxu0
  %v3858 = vadd.f32 0.0, %v3857
  %3859 = vdwg.mxu0
  %3860 = vmatprep.subr.mxu0 %v3781
  %3861 = vmatpush1.msra.mxu0 %v3782
  %3862 = vmatprep.subr.mxu0 0.0
  %3863 = vmatpush1.msra.mxu0 0.0
  %3864 = vmatprep.subr.mxu0 0.0
  %3865 = vmatpush1.msra.mxu0 0.0
  %3866 = vmatprep.subr.mxu0 0.0
  %3867 = vmatpush1.msra.mxu0 0.0
  %3868 = vmatprep.subr.mxu0 0.0
  %3869 = vmatpush1.msra.mxu0 0.0
  %3870 = vmatprep.subr.mxu0 0.0
  %3871 = vmatpush1.msra.mxu0 0.0
  %3872 = vmatprep.subr.mxu0 0.0
  %3873 = vmatpush1.msra.mxu0 0.0
  %3874 = vmatprep.subr.mxu0 0.0
  %3875 = vmatpush1.msra.mxu0 0.0
  %3876 = vmatprep.subr.mxu0 0.0
  %3877 = vmatpush1.msra.mxu0 0.0
  %3878 = vmatprep.subr.mxu0 0.0
  %3879 = vmatpush1.msra.mxu0 0.0
  %3880 = vmatprep.subr.mxu0 0.0
  %3881 = vmatpush1.msra.mxu0 0.0
  %3882 = vmatprep.subr.mxu0 0.0
  %3883 = vmatpush1.msra.mxu0 0.0
  %3884 = vmatprep.subr.mxu0 0.0
  %3885 = vmatpush1.msra.mxu0 0.0
  %3886 = vmatprep.subr.mxu0 0.0
  %3887 = vmatpush1.msra.mxu0 0.0
  %3888 = vmatprep.subr.mxu0 0.0
  %3889 = vmatpush1.msra.mxu0 0.0
  %3890 = vmatprep.subr.mxu0 0.0
  %3891 = vmatpush1.msra.mxu0 0.0
  %3892 = vmatprep.subr.mxu0 0.0
  %3893 = vmatpush1.msra.mxu0 0.0
  %3894 = vmatprep.subr.mxu0 0.0
  %3895 = vmatpush1.msra.mxu0 0.0
  %3896 = vmatprep.subr.mxu0 0.0
  %3897 = vmatpush1.msra.mxu0 0.0
  %3898 = vmatprep.subr.mxu0 0.0
  %3899 = vmatpush1.msra.mxu0 0.0
  %3900 = vmatprep.subr.mxu0 0.0
  %3901 = vmatpush1.msra.mxu0 0.0
  %3902 = vmatprep.subr.mxu0 0.0
  %3903 = vmatpush1.msra.mxu0 0.0
  %3904 = vmatprep.subr.mxu0 0.0
  %3905 = vmatpush1.msra.mxu0 0.0
  %3906 = vmatprep.subr.mxu0 0.0
  %3907 = vmatpush1.msra.mxu0 0.0
  %3908 = vmatprep.subr.mxu0 0.0
  %3909 = vmatpush1.msra.mxu0 0.0
  %3910 = vmatprep.subr.mxu0 0.0
  %3911 = vmatpush1.msra.mxu0 0.0
  %3912 = vmatprep.subr.mxu0 0.0
  %3913 = vmatpush1.msra.mxu0 0.0
  %3914 = vmatprep.subr.mxu0 0.0
  %3915 = vmatpush1.msra.mxu0 0.0
  %3916 = vmatprep.subr.mxu0 0.0
  %3917 = vmatpush1.msra.mxu0 0.0
  %3918 = vmatprep.subr.mxu0 0.0
  %3919 = vmatpush1.msra.mxu0 0.0
  %3920 = vmatprep.subr.mxu0 0.0
  %3921 = vmatpush1.msra.mxu0 0.0
  %3922 = vmatprep.subr.mxu0 0.0
  %3923 = vmatpush1.msra.mxu0 0.0
  %3924 = vmatprep.mubr.f32.mxu0 0.0
  %3925 = vmatmul.mubr.f32.gmra.mrb[0].mxu0 %v3787
  %v3926 = vpop.f32.mrb[0].mxu0
  %v3927 = vadd.f32 0.0, %v3926
  %v3928 = vpop.f32.mrb[0].mxu0
  %v3929 = vadd.f32 0.0, %v3928
  %3930 = vdwg.mxu0
  %3931 = vmatprep.subr.mxu0 0.0
  %3932 = vmatpush1.msra.mxu0 %v3785
  %3933 = vmatprep.subr.mxu0 0.0
  %3934 = vmatpush1.msra.mxu0 0.0
  %3935 = vmatprep.subr.mxu0 0.0
  %3936 = vmatpush1.msra.mxu0 0.0
  %3937 = vmatprep.subr.mxu0 0.0
  %3938 = vmatpush1.msra.mxu0 0.0
  %3939 = vmatprep.subr.mxu0 0.0
  %3940 = vmatpush1.msra.mxu0 0.0
  %3941 = vmatprep.subr.mxu0 0.0
  %3942 = vmatpush1.msra.mxu0 0.0
  %3943 = vmatprep.subr.mxu0 0.0
  %3944 = vmatpush1.msra.mxu0 0.0
  %3945 = vmatprep.subr.mxu0 0.0
  %3946 = vmatpush1.msra.mxu0 0.0
  %3947 = vmatprep.subr.mxu0 0.0
  %3948 = vmatpush1.msra.mxu0 0.0
  %3949 = vmatprep.subr.mxu0 0.0
  %3950 = vmatpush1.msra.mxu0 0.0
  %3951 = vmatprep.subr.mxu0 0.0
  %3952 = vmatpush1.msra.mxu0 0.0
  %3953 = vmatprep.subr.mxu0 0.0
  %3954 = vmatpush1.msra.mxu0 0.0
  %3955 = vmatprep.subr.mxu0 0.0
  %3956 = vmatpush1.msra.mxu0 0.0
  %3957 = vmatprep.subr.mxu0 0.0
  %3958 = vmatpush1.msra.mxu0 0.0
  %3959 = vmatprep.subr.mxu0 0.0
  %3960 = vmatpush1.msra.mxu0 0.0
  %3961 = vmatprep.subr.mxu0 0.0
  %3962 = vmatpush1.msra.mxu0 0.0
  %3963 = vmatprep.subr.mxu0 0.0
  %3964 = vmatpush1.msra.mxu0 0.0
  %3965 = vmatprep.subr.mxu0 0.0
  %3966 = vmatpush1.msra.mxu0 0.0
  %3967 = vmatprep.subr.mxu0 0.0
  %3968 = vmatpush1.msra.mxu0 0.0
  %3969 = vmatprep.subr.mxu0 0.0
  %3970 = vmatpush1.msra.mxu0 0.0
  %3971 = vmatprep.subr.mxu0 0.0
  %3972 = vmatpush1.msra.mxu0 0.0
  %3973 = vmatprep.subr.mxu0 0.0
  %3974 = vmatpush1.msra.mxu0 0.0
  %3975 = vmatprep.subr.mxu0 0.0
  %3976 = vmatpush1.msra.mxu0 0.0
  %3977 = vmatprep.subr.mxu0 0.0
  %3978 = vmatpush1.msra.mxu0 0.0
  %3979 = vmatprep.subr.mxu0 0.0
  %3980 = vmatpush1.msra.mxu0 0.0
  %3981 = vmatprep.subr.mxu0 0.0
  %3982 = vmatpush1.msra.mxu0 0.0
  %3983 = vmatprep.subr.mxu0 0.0
  %3984 = vmatpush1.msra.mxu0 0.0
  %3985 = vmatprep.subr.mxu0 0.0
  %3986 = vmatpush1.msra.mxu0 0.0
  %3987 = vmatprep.subr.mxu0 0.0
  %3988 = vmatpush1.msra.mxu0 0.0
  %3989 = vmatprep.subr.mxu0 0.0
  %3990 = vmatpush1.msra.mxu0 0.0
  %3991 = vmatprep.subr.mxu0 0.0
  %3992 = vmatpush1.msra.mxu0 0.0
  %3993 = vmatprep.subr.mxu0 0.0
  %3994 = vmatpush1.msra.mxu0 0.0
  %3995 = vmatprep.mubr.f32.mxu0 0.0
  %3996 = vmatmul.mubr.f32.gmra.mrb[0].mxu0 %v3787
  %v3997 = vpop.f32.mrb[0].mxu0
  %v3998 = vadd.f32 0.0, %v3997
  %v3999 = vpop.f32.mrb[0].mxu0
  %4000 = vdwg.mxu0
  %v4001 = vadd.f32 %v3764, %v3856
  %v4002 = vadd.f32 %v3765, %v3858
  %v4003 = vadd.f32 %v3766, %v3927
  %v4004 = vadd.f32 %v3767, %v3929
  %v4005 = vadd.f32 %v3768, %v3998
  %s4006 = scalar_lea.vmem %s4, 128
  %v4007 = vld [vmem:[%s4006] sm:$0xff]
  %4008 = vrot.lane.b32.xlu0 %v2366, 115
  %v4009 = vpop.permute.xlu0 %4008
  %4010 = vrot.lane.b32.xlu0 %v2367, 115
  %v4011 = vpop.permute.xlu0 %4010
  %4012 = vrot.lane.b32.xlu0 %v2368, 115
  %v4013 = vpop.permute.xlu0 %4012
  %4014 = vrot.lane.b32.xlu0 %v2369, 115
  %v4015 = vpop.permute.xlu0 %4014
  %4016 = vrot.lane.b32.xlu0 %v2370, 115
  %v4017 = vpop.permute.xlu0 %4016
  %v4018 = vsel %vm1820, %v4015, %v4017
  %v4019 = vsel %vm1820, %v4013, %v4015
  %v4020 = vsel %vm1820, %v4011, %v4013
  %v4021 = vsel %vm1820, %v4009, %v4011
  %v4022 = vsel %vm1820, %v4017, %v4009
  %v4024 = vsel %vm2405, %v4007, 0
  %4026 = vmatprep.subr.mxu0 %v4020
  %4027 = vmatpush1.msra.mxu0 %v4021
  %4028 = vmatprep.subr.mxu0 0.0
  %4029 = vmatpush1.msra.mxu0 0.0
  %4030 = vmatprep.subr.mxu0 0.0
  %4031 = vmatpush1.msra.mxu0 0.0
  %4032 = vmatprep.subr.mxu0 0.0
  %4033 = vmatpush1.msra.mxu0 0.0
  %4034 = vmatprep.subr.mxu0 0.0
  %4035 = vmatpush1.msra.mxu0 0.0
  %4036 = vmatprep.subr.mxu0 0.0
  %4037 = vmatpush1.msra.mxu0 0.0
  %4038 = vmatprep.subr.mxu0 0.0
  %4039 = vmatpush1.msra.mxu0 0.0
  %4040 = vmatprep.subr.mxu0 0.0
  %4041 = vmatpush1.msra.mxu0 0.0
  %4042 = vmatprep.subr.mxu0 0.0
  %4043 = vmatpush1.msra.mxu0 0.0
  %4044 = vmatprep.subr.mxu0 0.0
  %4045 = vmatpush1.msra.mxu0 0.0
  %4046 = vmatprep.subr.mxu0 0.0
  %4047 = vmatpush1.msra.mxu0 0.0
  %4048 = vmatprep.subr.mxu0 0.0
  %4049 = vmatpush1.msra.mxu0 0.0
  %4050 = vmatprep.subr.mxu0 0.0
  %4051 = vmatpush1.msra.mxu0 0.0
  %4052 = vmatprep.subr.mxu0 0.0
  %4053 = vmatpush1.msra.mxu0 0.0
  %4054 = vmatprep.subr.mxu0 0.0
  %4055 = vmatpush1.msra.mxu0 0.0
  %4056 = vmatprep.subr.mxu0 0.0
  %4057 = vmatpush1.msra.mxu0 0.0
  %4058 = vmatprep.subr.mxu0 0.0
  %4059 = vmatpush1.msra.mxu0 0.0
  %4060 = vmatprep.subr.mxu0 0.0
  %4061 = vmatpush1.msra.mxu0 0.0
  %4062 = vmatprep.subr.mxu0 0.0
  %4063 = vmatpush1.msra.mxu0 0.0
  %4064 = vmatprep.subr.mxu0 0.0
  %4065 = vmatpush1.msra.mxu0 0.0
  %4066 = vmatprep.subr.mxu0 0.0
  %4067 = vmatpush1.msra.mxu0 0.0
  %4068 = vmatprep.subr.mxu0 0.0
  %4069 = vmatpush1.msra.mxu0 0.0
  %4070 = vmatprep.subr.mxu0 0.0
  %4071 = vmatpush1.msra.mxu0 0.0
  %4072 = vmatprep.subr.mxu0 0.0
  %4073 = vmatpush1.msra.mxu0 0.0
  %4074 = vmatprep.subr.mxu0 0.0
  %4075 = vmatpush1.msra.mxu0 0.0
  %4076 = vmatprep.subr.mxu0 0.0
  %4077 = vmatpush1.msra.mxu0 0.0
  %4078 = vmatprep.subr.mxu0 0.0
  %4079 = vmatpush1.msra.mxu0 0.0
  %4080 = vmatprep.subr.mxu0 0.0
  %4081 = vmatpush1.msra.mxu0 0.0
  %4082 = vmatprep.subr.mxu0 0.0
  %4083 = vmatpush1.msra.mxu0 0.0
  %4084 = vmatprep.subr.mxu0 0.0
  %4085 = vmatpush1.msra.mxu0 0.0
  %4086 = vmatprep.subr.mxu0 0.0
  %4087 = vmatpush1.msra.mxu0 0.0
  %4088 = vmatprep.subr.mxu0 0.0
  %4089 = vmatpush1.msra.mxu0 0.0
  %4090 = vmatprep.mubr.f32.mxu0 0.0
  %4091 = vmatmul.mubr.f32.gmra.mrb[0].mxu0 %v4024
  %v4092 = vpop.f32.mrb[0].mxu0
  %v4093 = vadd.f32 0.0, %v4092
  %v4094 = vpop.f32.mrb[0].mxu0
  %v4095 = vadd.f32 0.0, %v4094
  %4096 = vdwg.mxu0
  %4097 = vmatprep.subr.mxu0 %v4018
  %4098 = vmatpush1.msra.mxu0 %v4019
  %4099 = vmatprep.subr.mxu0 0.0
  %4100 = vmatpush1.msra.mxu0 0.0
  %4101 = vmatprep.subr.mxu0 0.0
  %4102 = vmatpush1.msra.mxu0 0.0
  %4103 = vmatprep.subr.mxu0 0.0
  %4104 = vmatpush1.msra.mxu0 0.0
  %4105 = vmatprep.subr.mxu0 0.0
  %4106 = vmatpush1.msra.mxu0 0.0
  %4107 = vmatprep.subr.mxu0 0.0
  %4108 = vmatpush1.msra.mxu0 0.0
  %4109 = vmatprep.subr.mxu0 0.0
  %4110 = vmatpush1.msra.mxu0 0.0
  %4111 = vmatprep.subr.mxu0 0.0
  %4112 = vmatpush1.msra.mxu0 0.0
  %4113 = vmatprep.subr.mxu0 0.0
  %4114 = vmatpush1.msra.mxu0 0.0
  %4115 = vmatprep.subr.mxu0 0.0
  %4116 = vmatpush1.msra.mxu0 0.0
  %4117 = vmatprep.subr.mxu0 0.0
  %4118 = vmatpush1.msra.mxu0 0.0
  %4119 = vmatprep.subr.mxu0 0.0
  %4120 = vmatpush1.msra.mxu0 0.0
  %4121 = vmatprep.subr.mxu0 0.0
  %4122 = vmatpush1.msra.mxu0 0.0
  %4123 = vmatprep.subr.mxu0 0.0
  %4124 = vmatpush1.msra.mxu0 0.0
  %4125 = vmatprep.subr.mxu0 0.0
  %4126 = vmatpush1.msra.mxu0 0.0
  %4127 = vmatprep.subr.mxu0 0.0
  %4128 = vmatpush1.msra.mxu0 0.0
  %4129 = vmatprep.subr.mxu0 0.0
  %4130 = vmatpush1.msra.mxu0 0.0
  %4131 = vmatprep.subr.mxu0 0.0
  %4132 = vmatpush1.msra.mxu0 0.0
  %4133 = vmatprep.subr.mxu0 0.0
  %4134 = vmatpush1.msra.mxu0 0.0
  %4135 = vmatprep.subr.mxu0 0.0
  %4136 = vmatpush1.msra.mxu0 0.0
  %4137 = vmatprep.subr.mxu0 0.0
  %4138 = vmatpush1.msra.mxu0 0.0
  %4139 = vmatprep.subr.mxu0 0.0
  %4140 = vmatpush1.msra.mxu0 0.0
  %4141 = vmatprep.subr.mxu0 0.0
  %4142 = vmatpush1.msra.mxu0 0.0
  %4143 = vmatprep.subr.mxu0 0.0
  %4144 = vmatpush1.msra.mxu0 0.0
  %4145 = vmatprep.subr.mxu0 0.0
  %4146 = vmatpush1.msra.mxu0 0.0
  %4147 = vmatprep.subr.mxu0 0.0
  %4148 = vmatpush1.msra.mxu0 0.0
  %4149 = vmatprep.subr.mxu0 0.0
  %4150 = vmatpush1.msra.mxu0 0.0
  %4151 = vmatprep.subr.mxu0 0.0
  %4152 = vmatpush1.msra.mxu0 0.0
  %4153 = vmatprep.subr.mxu0 0.0
  %4154 = vmatpush1.msra.mxu0 0.0
  %4155 = vmatprep.subr.mxu0 0.0
  %4156 = vmatpush1.msra.mxu0 0.0
  %4157 = vmatprep.subr.mxu0 0.0
  %4158 = vmatpush1.msra.mxu0 0.0
  %4159 = vmatprep.subr.mxu0 0.0
  %4160 = vmatpush1.msra.mxu0 0.0
  %4161 = vmatprep.mubr.f32.mxu0 0.0
  %4162 = vmatmul.mubr.f32.gmra.mrb[0].mxu0 %v4024
  %v4163 = vpop.f32.mrb[0].mxu0
  %v4164 = vadd.f32 0.0, %v4163
  %v4165 = vpop.f32.mrb[0].mxu0
  %v4166 = vadd.f32 0.0, %v4165
  %4167 = vdwg.mxu0
  %4168 = vmatprep.subr.mxu0 0.0
  %4169 = vmatpush1.msra.mxu0 %v4022
  %4170 = vmatprep.subr.mxu0 0.0
  %4171 = vmatpush1.msra.mxu0 0.0
  %4172 = vmatprep.subr.mxu0 0.0
  %4173 = vmatpush1.msra.mxu0 0.0
  %4174 = vmatprep.subr.mxu0 0.0
  %4175 = vmatpush1.msra.mxu0 0.0
  %4176 = vmatprep.subr.mxu0 0.0
  %4177 = vmatpush1.msra.mxu0 0.0
  %4178 = vmatprep.subr.mxu0 0.0
  %4179 = vmatpush1.msra.mxu0 0.0
  %4180 = vmatprep.subr.mxu0 0.0
  %4181 = vmatpush1.msra.mxu0 0.0
  %4182 = vmatprep.subr.mxu0 0.0
  %4183 = vmatpush1.msra.mxu0 0.0
  %4184 = vmatprep.subr.mxu0 0.0
  %4185 = vmatpush1.msra.mxu0 0.0
  %4186 = vmatprep.subr.mxu0 0.0
  %4187 = vmatpush1.msra.mxu0 0.0
  %4188 = vmatprep.subr.mxu0 0.0
  %4189 = vmatpush1.msra.mxu0 0.0
  %4190 = vmatprep.subr.mxu0 0.0
  %4191 = vmatpush1.msra.mxu0 0.0
  %4192 = vmatprep.subr.mxu0 0.0
  %4193 = vmatpush1.msra.mxu0 0.0
  %4194 = vmatprep.subr.mxu0 0.0
  %4195 = vmatpush1.msra.mxu0 0.0
  %4196 = vmatprep.subr.mxu0 0.0
  %4197 = vmatpush1.msra.mxu0 0.0
  %4198 = vmatprep.subr.mxu0 0.0
  %4199 = vmatpush1.msra.mxu0 0.0
  %4200 = vmatprep.subr.mxu0 0.0
  %4201 = vmatpush1.msra.mxu0 0.0
  %4202 = vmatprep.subr.mxu0 0.0
  %4203 = vmatpush1.msra.mxu0 0.0
  %4204 = vmatprep.subr.mxu0 0.0
  %4205 = vmatpush1.msra.mxu0 0.0
  %4206 = vmatprep.subr.mxu0 0.0
  %4207 = vmatpush1.msra.mxu0 0.0
  %4208 = vmatprep.subr.mxu0 0.0
  %4209 = vmatpush1.msra.mxu0 0.0
  %4210 = vmatprep.subr.mxu0 0.0
  %4211 = vmatpush1.msra.mxu0 0.0
  %4212 = vmatprep.subr.mxu0 0.0
  %4213 = vmatpush1.msra.mxu0 0.0
  %4214 = vmatprep.subr.mxu0 0.0
  %4215 = vmatpush1.msra.mxu0 0.0
  %4216 = vmatprep.subr.mxu0 0.0
  %4217 = vmatpush1.msra.mxu0 0.0
  %4218 = vmatprep.subr.mxu0 0.0
  %4219 = vmatpush1.msra.mxu0 0.0
  %4220 = vmatprep.subr.mxu0 0.0
  %4221 = vmatpush1.msra.mxu0 0.0
  %4222 = vmatprep.subr.mxu0 0.0
  %4223 = vmatpush1.msra.mxu0 0.0
  %4224 = vmatprep.subr.mxu0 0.0
  %4225 = vmatpush1.msra.mxu0 0.0
  %4226 = vmatprep.subr.mxu0 0.0
  %4227 = vmatpush1.msra.mxu0 0.0
  %4228 = vmatprep.subr.mxu0 0.0
  %4229 = vmatpush1.msra.mxu0 0.0
  %4230 = vmatprep.subr.mxu0 0.0
  %4231 = vmatpush1.msra.mxu0 0.0
  %4232 = vmatprep.mubr.f32.mxu0 0.0
  %4233 = vmatmul.mubr.f32.gmra.mrb[0].mxu0 %v4024
  %v4234 = vpop.f32.mrb[0].mxu0
  %v4235 = vadd.f32 0.0, %v4234
  %v4236 = vpop.f32.mrb[0].mxu0
  %4237 = vdwg.mxu0
  %v4238 = vadd.f32 %v4001, %v4093
  %v4239 = vadd.f32 %v4002, %v4095
  %v4240 = vadd.f32 %v4003, %v4164
  %v4241 = vadd.f32 %v4004, %v4166
  %v4242 = vadd.f32 %v4005, %v4235
  %s4243 = scalar_lea.vmem %s4, 136
  %v4244 = vld [vmem:[%s4243] sm:$0xff]
  %4245 = vrot.lane.b32.xlu0 %v2366, 114
  %v4246 = vpop.permute.xlu0 %4245
  %4247 = vrot.lane.b32.xlu0 %v2367, 114
  %v4248 = vpop.permute.xlu0 %4247
  %4249 = vrot.lane.b32.xlu0 %v2368, 114
  %v4250 = vpop.permute.xlu0 %4249
  %4251 = vrot.lane.b32.xlu0 %v2369, 114
  %v4252 = vpop.permute.xlu0 %4251
  %4253 = vrot.lane.b32.xlu0 %v2370, 114
  %v4254 = vpop.permute.xlu0 %4253
  %v4255 = vsel %vm2073, %v4252, %v4254
  %v4256 = vsel %vm2073, %v4250, %v4252
  %v4257 = vsel %vm2073, %v4248, %v4250
  %v4258 = vsel %vm2073, %v4246, %v4248
  %v4259 = vsel %vm2073, %v4254, %v4246
  %v4261 = vsel %vm2405, %v4244, 0
  %4263 = vmatprep.subr.mxu0 %v4257
  %4264 = vmatpush1.msra.mxu0 %v4258
  %4265 = vmatprep.subr.mxu0 0.0
  %4266 = vmatpush1.msra.mxu0 0.0
  %4267 = vmatprep.subr.mxu0 0.0
  %4268 = vmatpush1.msra.mxu0 0.0
  %4269 = vmatprep.subr.mxu0 0.0
  %4270 = vmatpush1.msra.mxu0 0.0
  %4271 = vmatprep.subr.mxu0 0.0
  %4272 = vmatpush1.msra.mxu0 0.0
  %4273 = vmatprep.subr.mxu0 0.0
  %4274 = vmatpush1.msra.mxu0 0.0
  %4275 = vmatprep.subr.mxu0 0.0
  %4276 = vmatpush1.msra.mxu0 0.0
  %4277 = vmatprep.subr.mxu0 0.0
  %4278 = vmatpush1.msra.mxu0 0.0
  %4279 = vmatprep.subr.mxu0 0.0
  %4280 = vmatpush1.msra.mxu0 0.0
  %4281 = vmatprep.subr.mxu0 0.0
  %4282 = vmatpush1.msra.mxu0 0.0
  %4283 = vmatprep.subr.mxu0 0.0
  %4284 = vmatpush1.msra.mxu0 0.0
  %4285 = vmatprep.subr.mxu0 0.0
  %4286 = vmatpush1.msra.mxu0 0.0
  %4287 = vmatprep.subr.mxu0 0.0
  %4288 = vmatpush1.msra.mxu0 0.0
  %4289 = vmatprep.subr.mxu0 0.0
  %4290 = vmatpush1.msra.mxu0 0.0
  %4291 = vmatprep.subr.mxu0 0.0
  %4292 = vmatpush1.msra.mxu0 0.0
  %4293 = vmatprep.subr.mxu0 0.0
  %4294 = vmatpush1.msra.mxu0 0.0
  %4295 = vmatprep.subr.mxu0 0.0
  %4296 = vmatpush1.msra.mxu0 0.0
  %4297 = vmatprep.subr.mxu0 0.0
  %4298 = vmatpush1.msra.mxu0 0.0
  %4299 = vmatprep.subr.mxu0 0.0
  %4300 = vmatpush1.msra.mxu0 0.0
  %4301 = vmatprep.subr.mxu0 0.0
  %4302 = vmatpush1.msra.mxu0 0.0
  %4303 = vmatprep.subr.mxu0 0.0
  %4304 = vmatpush1.msra.mxu0 0.0
  %4305 = vmatprep.subr.mxu0 0.0
  %4306 = vmatpush1.msra.mxu0 0.0
  %4307 = vmatprep.subr.mxu0 0.0
  %4308 = vmatpush1.msra.mxu0 0.0
  %4309 = vmatprep.subr.mxu0 0.0
  %4310 = vmatpush1.msra.mxu0 0.0
  %4311 = vmatprep.subr.mxu0 0.0
  %4312 = vmatpush1.msra.mxu0 0.0
  %4313 = vmatprep.subr.mxu0 0.0
  %4314 = vmatpush1.msra.mxu0 0.0
  %4315 = vmatprep.subr.mxu0 0.0
  %4316 = vmatpush1.msra.mxu0 0.0
  %4317 = vmatprep.subr.mxu0 0.0
  %4318 = vmatpush1.msra.mxu0 0.0
  %4319 = vmatprep.subr.mxu0 0.0
  %4320 = vmatpush1.msra.mxu0 0.0
  %4321 = vmatprep.subr.mxu0 0.0
  %4322 = vmatpush1.msra.mxu0 0.0
  %4323 = vmatprep.subr.mxu0 0.0
  %4324 = vmatpush1.msra.mxu0 0.0
  %4325 = vmatprep.subr.mxu0 0.0
  %4326 = vmatpush1.msra.mxu0 0.0
  %4327 = vmatprep.mubr.f32.mxu0 0.0
  %4328 = vmatmul.mubr.f32.gmra.mrb[0].mxu0 %v4261
  %v4329 = vpop.f32.mrb[0].mxu0
  %v4330 = vadd.f32 0.0, %v4329
  %v4331 = vpop.f32.mrb[0].mxu0
  %v4332 = vadd.f32 0.0, %v4331
  %4333 = vdwg.mxu0
  %4334 = vmatprep.subr.mxu0 %v4255
  %4335 = vmatpush1.msra.mxu0 %v4256
  %4336 = vmatprep.subr.mxu0 0.0
  %4337 = vmatpush1.msra.mxu0 0.0
  %4338 = vmatprep.subr.mxu0 0.0
  %4339 = vmatpush1.msra.mxu0 0.0
  %4340 = vmatprep.subr.mxu0 0.0
  %4341 = vmatpush1.msra.mxu0 0.0
  %4342 = vmatprep.subr.mxu0 0.0
  %4343 = vmatpush1.msra.mxu0 0.0
  %4344 = vmatprep.subr.mxu0 0.0
  %4345 = vmatpush1.msra.mxu0 0.0
  %4346 = vmatprep.subr.mxu0 0.0
  %4347 = vmatpush1.msra.mxu0 0.0
  %4348 = vmatprep.subr.mxu0 0.0
  %4349 = vmatpush1.msra.mxu0 0.0
  %4350 = vmatprep.subr.mxu0 0.0
  %4351 = vmatpush1.msra.mxu0 0.0
  %4352 = vmatprep.subr.mxu0 0.0
  %4353 = vmatpush1.msra.mxu0 0.0
  %4354 = vmatprep.subr.mxu0 0.0
  %4355 = vmatpush1.msra.mxu0 0.0
  %4356 = vmatprep.subr.mxu0 0.0
  %4357 = vmatpush1.msra.mxu0 0.0
  %4358 = vmatprep.subr.mxu0 0.0
  %4359 = vmatpush1.msra.mxu0 0.0
  %4360 = vmatprep.subr.mxu0 0.0
  %4361 = vmatpush1.msra.mxu0 0.0
  %4362 = vmatprep.subr.mxu0 0.0
  %4363 = vmatpush1.msra.mxu0 0.0
  %4364 = vmatprep.subr.mxu0 0.0
  %4365 = vmatpush1.msra.mxu0 0.0
  %4366 = vmatprep.subr.mxu0 0.0
  %4367 = vmatpush1.msra.mxu0 0.0
  %4368 = vmatprep.subr.mxu0 0.0
  %4369 = vmatpush1.msra.mxu0 0.0
  %4370 = vmatprep.subr.mxu0 0.0
  %4371 = vmatpush1.msra.mxu0 0.0
  %4372 = vmatprep.subr.mxu0 0.0
  %4373 = vmatpush1.msra.mxu0 0.0
  %4374 = vmatprep.subr.mxu0 0.0
  %4375 = vmatpush1.msra.mxu0 0.0
  %4376 = vmatprep.subr.mxu0 0.0
  %4377 = vmatpush1.msra.mxu0 0.0
  %4378 = vmatprep.subr.mxu0 0.0
  %4379 = vmatpush1.msra.mxu0 0.0
  %4380 = vmatprep.subr.mxu0 0.0
  %4381 = vmatpush1.msra.mxu0 0.0
  %4382 = vmatprep.subr.mxu0 0.0
  %4383 = vmatpush1.msra.mxu0 0.0
  %4384 = vmatprep.subr.mxu0 0.0
  %4385 = vmatpush1.msra.mxu0 0.0
  %4386 = vmatprep.subr.mxu0 0.0
  %4387 = vmatpush1.msra.mxu0 0.0
  %4388 = vmatprep.subr.mxu0 0.0
  %4389 = vmatpush1.msra.mxu0 0.0
  %4390 = vmatprep.subr.mxu0 0.0
  %4391 = vmatpush1.msra.mxu0 0.0
  %4392 = vmatprep.subr.mxu0 0.0
  %4393 = vmatpush1.msra.mxu0 0.0
  %4394 = vmatprep.subr.mxu0 0.0
  %4395 = vmatpush1.msra.mxu0 0.0
  %4396 = vmatprep.subr.mxu0 0.0
  %4397 = vmatpush1.msra.mxu0 0.0
  %4398 = vmatprep.mubr.f32.mxu0 0.0
  %4399 = vmatmul.mubr.f32.gmra.mrb[0].mxu0 %v4261
  %v4400 = vpop.f32.mrb[0].mxu0
  %v4401 = vadd.f32 0.0, %v4400
  %v4402 = vpop.f32.mrb[0].mxu0
  %v4403 = vadd.f32 0.0, %v4402
  %4404 = vdwg.mxu0
  %4405 = vmatprep.subr.mxu0 0.0
  %4406 = vmatpush1.msra.mxu0 %v4259
  %4407 = vmatprep.subr.mxu0 0.0
  %4408 = vmatpush1.msra.mxu0 0.0
  %4409 = vmatprep.subr.mxu0 0.0
  %4410 = vmatpush1.msra.mxu0 0.0
  %4411 = vmatprep.subr.mxu0 0.0
  %4412 = vmatpush1.msra.mxu0 0.0
  %4413 = vmatprep.subr.mxu0 0.0
  %4414 = vmatpush1.msra.mxu0 0.0
  %4415 = vmatprep.subr.mxu0 0.0
  %4416 = vmatpush1.msra.mxu0 0.0
  %4417 = vmatprep.subr.mxu0 0.0
  %4418 = vmatpush1.msra.mxu0 0.0
  %4419 = vmatprep.subr.mxu0 0.0
  %4420 = vmatpush1.msra.mxu0 0.0
  %4421 = vmatprep.subr.mxu0 0.0
  %4422 = vmatpush1.msra.mxu0 0.0
  %4423 = vmatprep.subr.mxu0 0.0
  %4424 = vmatpush1.msra.mxu0 0.0
  %4425 = vmatprep.subr.mxu0 0.0
  %4426 = vmatpush1.msra.mxu0 0.0
  %4427 = vmatprep.subr.mxu0 0.0
  %4428 = vmatpush1.msra.mxu0 0.0
  %4429 = vmatprep.subr.mxu0 0.0
  %4430 = vmatpush1.msra.mxu0 0.0
  %4431 = vmatprep.subr.mxu0 0.0
  %4432 = vmatpush1.msra.mxu0 0.0
  %4433 = vmatprep.subr.mxu0 0.0
  %4434 = vmatpush1.msra.mxu0 0.0
  %4435 = vmatprep.subr.mxu0 0.0
  %4436 = vmatpush1.msra.mxu0 0.0
  %4437 = vmatprep.subr.mxu0 0.0
  %4438 = vmatpush1.msra.mxu0 0.0
  %4439 = vmatprep.subr.mxu0 0.0
  %4440 = vmatpush1.msra.mxu0 0.0
  %4441 = vmatprep.subr.mxu0 0.0
  %4442 = vmatpush1.msra.mxu0 0.0
  %4443 = vmatprep.subr.mxu0 0.0
  %4444 = vmatpush1.msra.mxu0 0.0
  %4445 = vmatprep.subr.mxu0 0.0
  %4446 = vmatpush1.msra.mxu0 0.0
  %4447 = vmatprep.subr.mxu0 0.0
  %4448 = vmatpush1.msra.mxu0 0.0
  %4449 = vmatprep.subr.mxu0 0.0
  %4450 = vmatpush1.msra.mxu0 0.0
  %4451 = vmatprep.subr.mxu0 0.0
  %4452 = vmatpush1.msra.mxu0 0.0
  %4453 = vmatprep.subr.mxu0 0.0
  %4454 = vmatpush1.msra.mxu0 0.0
  %4455 = vmatprep.subr.mxu0 0.0
  %4456 = vmatpush1.msra.mxu0 0.0
  %4457 = vmatprep.subr.mxu0 0.0
  %4458 = vmatpush1.msra.mxu0 0.0
  %4459 = vmatprep.subr.mxu0 0.0
  %4460 = vmatpush1.msra.mxu0 0.0
  %4461 = vmatprep.subr.mxu0 0.0
  %4462 = vmatpush1.msra.mxu0 0.0
  %4463 = vmatprep.subr.mxu0 0.0
  %4464 = vmatpush1.msra.mxu0 0.0
  %4465 = vmatprep.subr.mxu0 0.0
  %4466 = vmatpush1.msra.mxu0 0.0
  %4467 = vmatprep.subr.mxu0 0.0
  %4468 = vmatpush1.msra.mxu0 0.0
  %4469 = vmatprep.mubr.f32.mxu0 0.0
  %4470 = vmatmul.mubr.f32.gmra.mrb[0].mxu0 %v4261
  %v4471 = vpop.f32.mrb[0].mxu0
  %v4472 = vadd.f32 0.0, %v4471
  %v4473 = vpop.f32.mrb[0].mxu0
  %4474 = vdwg.mxu0
  %v4475 = vadd.f32 %v4238, %v4330
  %v4476 = vadd.f32 %v4239, %v4332
  %v4477 = vadd.f32 %v4240, %v4401
  %v4478 = vadd.f32 %v4241, %v4403
  %v4479 = vadd.f32 %v4242, %v4472
  %s4480 = scalar_lea.vmem %s5, 8
  %v4481 = vld [vmem:[%s4480] sm:$0xff]
  %4483 = vset.pattern.permute.xlu0 0
  %4484 = vperm.xlu0 %4483, %v4481
  %v4485 = vpop.permute.xlu0 %4484
  %v4487 = vadd.f32 %v4475, %v4485
  %v4488 = vadd.f32 %v4476, %v4485
  %v4489 = vadd.f32 %v4477, %v4485
  %v4490 = vadd.f32 %v4478, %v4485
  %v4491 = vadd.f32 %v4479, %v4485
  %vm4492 = vcmp.gt.f32.partialorder %v4487, 0.0
  %vm4493 = vcmp.gt.f32.partialorder %v4488, 0.0
  %vm4494 = vcmp.gt.f32.partialorder %v4489, 0.0
  %vm4495 = vcmp.gt.f32.partialorder %v4490, 0.0
  %vm4496 = vcmp.gt.f32.partialorder %v4491, 0.0
  %v4497 = vmul.f32 %v4487, 0.01
  %v4498 = vmul.f32 %v4488, 0.01
  %v4499 = vmul.f32 %v4489, 0.01
  %v4500 = vmul.f32 %v4490, 0.01
  %v4501 = vmul.f32 %v4491, 0.01
  %v4502 = vsel %vm4492, %v4487, %v4497
  %v4503 = vsel %vm4493, %v4488, %v4498
  %v4504 = vsel %vm4494, %v4489, %v4499
  %v4505 = vsel %vm4495, %v4490, %v4500
  %v4506 = vsel %vm4496, %v4491, %v4501
  %v4507 = vmul.f32 %v4502, %v2344
  %v4508 = vmul.f32 %v4503, %v2348
  %v4509 = vmul.f32 %v4504, %v2352
  %v4510 = vmul.f32 %v4505, %v2356
  %v4511 = vmul.f32 %v4506, %v2360
  %v4512 = vld [vmem:[%s1] sm:$0x1]
  %v4513 = vld [vmem:[%s2] sm:$0xff]
  %v4514 = vld [vmem:[%s2 + $0x8] sm:$0xff]
  %v4515 = vld [vmem:[%s2 + $0x10] sm:$0x3]
  %vm4516 = vcmask 146432
  %v4518 = vsel %vm4516, %v4512, 0
  %v4521 = vsel %vm106, %v4515, 0
  %4523 = vmatprep.subr.mxu0 0.0
  %4524 = vmatpush1.msra.mxu0 %v4513
  %4525 = vmatprep.subr.mxu0 0.0
  %4526 = vmatpush1.msra.mxu0 %v4514
  %4527 = vmatprep.subr.mxu0 0.0
  %4528 = vmatpush1.msra.mxu0 %v4521
  %4529 = vmatprep.subr.mxu0 0.0
  %4530 = vmatpush1.msra.mxu0 0.0
  %4531 = vmatprep.subr.mxu0 0.0
  %4532 = vmatpush1.msra.mxu0 0.0
  %4533 = vmatprep.subr.mxu0 0.0
  %4534 = vmatpush1.msra.mxu0 0.0
  %4535 = vmatprep.subr.mxu0 0.0
  %4536 = vmatpush1.msra.mxu0 0.0
  %4537 = vmatprep.subr.mxu0 0.0
  %4538 = vmatpush1.msra.mxu0 0.0
  %4539 = vmatprep.subr.mxu0 0.0
  %4540 = vmatpush1.msra.mxu0 0.0
  %4541 = vmatprep.subr.mxu0 0.0
  %4542 = vmatpush1.msra.mxu0 0.0
  %4543 = vmatprep.subr.mxu0 0.0
  %4544 = vmatpush1.msra.mxu0 0.0
  %4545 = vmatprep.subr.mxu0 0.0
  %4546 = vmatpush1.msra.mxu0 0.0
  %4547 = vmatprep.subr.mxu0 0.0
  %4548 = vmatpush1.msra.mxu0 0.0
  %4549 = vmatprep.subr.mxu0 0.0
  %4550 = vmatpush1.msra.mxu0 0.0
  %4551 = vmatprep.subr.mxu0 0.0
  %4552 = vmatpush1.msra.mxu0 0.0
  %4553 = vmatprep.subr.mxu0 0.0
  %4554 = vmatpush1.msra.mxu0 0.0
  %4555 = vmatprep.subr.mxu0 0.0
  %4556 = vmatpush1.msra.mxu0 0.0
  %4557 = vmatprep.subr.mxu0 0.0
  %4558 = vmatpush1.msra.mxu0 0.0
  %4559 = vmatprep.subr.mxu0 0.0
  %4560 = vmatpush1.msra.mxu0 0.0
  %4561 = vmatprep.subr.mxu0 0.0
  %4562 = vmatpush1.msra.mxu0 0.0
  %4563 = vmatprep.subr.mxu0 0.0
  %4564 = vmatpush1.msra.mxu0 0.0
  %4565 = vmatprep.subr.mxu0 0.0
  %4566 = vmatpush1.msra.mxu0 0.0
  %4567 = vmatprep.subr.mxu0 0.0
  %4568 = vmatpush1.msra.mxu0 0.0
  %4569 = vmatprep.subr.mxu0 0.0
  %4570 = vmatpush1.msra.mxu0 0.0
  %4571 = vmatprep.subr.mxu0 0.0
  %4572 = vmatpush1.msra.mxu0 0.0
  %4573 = vmatprep.subr.mxu0 0.0
  %4574 = vmatpush1.msra.mxu0 0.0
  %4575 = vmatprep.subr.mxu0 0.0
  %4576 = vmatpush1.msra.mxu0 0.0
  %4577 = vmatprep.subr.mxu0 0.0
  %4578 = vmatpush1.msra.mxu0 0.0
  %4579 = vmatprep.subr.mxu0 0.0
  %4580 = vmatpush1.msra.mxu0 0.0
  %4581 = vmatprep.subr.mxu0 0.0
  %4582 = vmatpush1.msra.mxu0 0.0
  %4583 = vmatprep.subr.mxu0 0.0
  %4584 = vmatpush1.msra.mxu0 0.0
  %4585 = vmatprep.subr.mxu0 0.0
  %4586 = vmatpush1.msra.mxu0 0.0
  %4587 = vmatprep.mubr.f32.mxu0 0.0
  %4588 = vmatmul.mubr.f32.gmra.mrb[0].mxu0 %v4518
  %v4589 = vpop.f32.mrb[0].mxu0
  %v4590 = vadd.f32 0.0, %v4589
  %v4591 = vpop.f32.mrb[0].mxu0
  %4592 = vdwg.mxu0
  %vm4593 = vcmp.gt.f32.partialorder %v4590, 0.0
  %v4594 = vmul.f32 %v4590, 0.01
  %v4595 = vsel %vm4593, %v4590, %v4594
  %v4597 = vsel %vm2405, %v4595, 0
  %4599 = vmatprep.subr.mxu0 %v24
  %4600 = vmatpush1.msra.mxu0 %v23
  %4601 = vmatprep.subr.mxu0 0.0
  %4602 = vmatpush1.msra.mxu0 0.0
  %4603 = vmatprep.subr.mxu0 0.0
  %4604 = vmatpush1.msra.mxu0 0.0
  %4605 = vmatprep.subr.mxu0 0.0
  %4606 = vmatpush1.msra.mxu0 0.0
  %4607 = vmatprep.subr.mxu0 0.0
  %4608 = vmatpush1.msra.mxu0 0.0
  %4609 = vmatprep.subr.mxu0 0.0
  %4610 = vmatpush1.msra.mxu0 0.0
  %4611 = vmatprep.subr.mxu0 0.0
  %4612 = vmatpush1.msra.mxu0 0.0
  %4613 = vmatprep.subr.mxu0 0.0
  %4614 = vmatpush1.msra.mxu0 0.0
  %4615 = vmatprep.subr.mxu0 0.0
  %4616 = vmatpush1.msra.mxu0 0.0
  %4617 = vmatprep.subr.mxu0 0.0
  %4618 = vmatpush1.msra.mxu0 0.0
  %4619 = vmatprep.subr.mxu0 0.0
  %4620 = vmatpush1.msra.mxu0 0.0
  %4621 = vmatprep.subr.mxu0 0.0
  %4622 = vmatpush1.msra.mxu0 0.0
  %4623 = vmatprep.subr.mxu0 0.0
  %4624 = vmatpush1.msra.mxu0 0.0
  %4625 = vmatprep.subr.mxu0 0.0
  %4626 = vmatpush1.msra.mxu0 0.0
  %4627 = vmatprep.subr.mxu0 0.0
  %4628 = vmatpush1.msra.mxu0 0.0
  %4629 = vmatprep.subr.mxu0 0.0
  %4630 = vmatpush1.msra.mxu0 0.0
  %4631 = vmatprep.subr.mxu0 0.0
  %4632 = vmatpush1.msra.mxu0 0.0
  %4633 = vmatprep.subr.mxu0 0.0
  %4634 = vmatpush1.msra.mxu0 0.0
  %4635 = vmatprep.subr.mxu0 0.0
  %4636 = vmatpush1.msra.mxu0 0.0
  %4637 = vmatprep.subr.mxu0 0.0
  %4638 = vmatpush1.msra.mxu0 0.0
  %4639 = vmatprep.subr.mxu0 0.0
  %4640 = vmatpush1.msra.mxu0 0.0
  %4641 = vmatprep.subr.mxu0 0.0
  %4642 = vmatpush1.msra.mxu0 0.0
  %4643 = vmatprep.subr.mxu0 0.0
  %4644 = vmatpush1.msra.mxu0 0.0
  %4645 = vmatprep.subr.mxu0 0.0
  %4646 = vmatpush1.msra.mxu0 0.0
  %4647 = vmatprep.subr.mxu0 0.0
  %4648 = vmatpush1.msra.mxu0 0.0
  %4649 = vmatprep.subr.mxu0 0.0
  %4650 = vmatpush1.msra.mxu0 0.0
  %4651 = vmatprep.subr.mxu0 0.0
  %4652 = vmatpush1.msra.mxu0 0.0
  %4653 = vmatprep.subr.mxu0 0.0
  %4654 = vmatpush1.msra.mxu0 0.0
  %4655 = vmatprep.subr.mxu0 0.0
  %4656 = vmatpush1.msra.mxu0 0.0
  %4657 = vmatprep.subr.mxu0 0.0
  %4658 = vmatpush1.msra.mxu0 0.0
  %4659 = vmatprep.subr.mxu0 0.0
  %4660 = vmatpush1.msra.mxu0 0.0
  %4661 = vmatprep.subr.mxu0 0.0
  %4662 = vmatpush1.msra.mxu0 0.0
  %4663 = vmatprep.mubr.f32.mxu0 0.0
  %4664 = vmatmul.mubr.f32.gmra.mrb[0].mxu0 %v4597
  %v4665 = vpop.f32.mrb[0].mxu0
  %v4666 = vadd.f32 0.0, %v4665
  %v4667 = vpop.f32.mrb[0].mxu0
  %v4668 = vadd.f32 0.0, %v4667
  %4669 = vdwg.mxu0
  %4670 = vmatprep.subr.mxu0 %v26
  %4671 = vmatpush1.msra.mxu0 %v25
  %4672 = vmatprep.subr.mxu0 0.0
  %4673 = vmatpush1.msra.mxu0 0.0
  %4674 = vmatprep.subr.mxu0 0.0
  %4675 = vmatpush1.msra.mxu0 0.0
  %4676 = vmatprep.subr.mxu0 0.0
  %4677 = vmatpush1.msra.mxu0 0.0
  %4678 = vmatprep.subr.mxu0 0.0
  %4679 = vmatpush1.msra.mxu0 0.0
  %4680 = vmatprep.subr.mxu0 0.0
  %4681 = vmatpush1.msra.mxu0 0.0
  %4682 = vmatprep.subr.mxu0 0.0
  %4683 = vmatpush1.msra.mxu0 0.0
  %4684 = vmatprep.subr.mxu0 0.0
  %4685 = vmatpush1.msra.mxu0 0.0
  %4686 = vmatprep.subr.mxu0 0.0
  %4687 = vmatpush1.msra.mxu0 0.0
  %4688 = vmatprep.subr.mxu0 0.0
  %4689 = vmatpush1.msra.mxu0 0.0
  %4690 = vmatprep.subr.mxu0 0.0
  %4691 = vmatpush1.msra.mxu0 0.0
  %4692 = vmatprep.subr.mxu0 0.0
  %4693 = vmatpush1.msra.mxu0 0.0
  %4694 = vmatprep.subr.mxu0 0.0
  %4695 = vmatpush1.msra.mxu0 0.0
  %4696 = vmatprep.subr.mxu0 0.0
  %4697 = vmatpush1.msra.mxu0 0.0
  %4698 = vmatprep.subr.mxu0 0.0
  %4699 = vmatpush1.msra.mxu0 0.0
  %4700 = vmatprep.subr.mxu0 0.0
  %4701 = vmatpush1.msra.mxu0 0.0
  %4702 = vmatprep.subr.mxu0 0.0
  %4703 = vmatpush1.msra.mxu0 0.0
  %4704 = vmatprep.subr.mxu0 0.0
  %4705 = vmatpush1.msra.mxu0 0.0
  %4706 = vmatprep.subr.mxu0 0.0
  %4707 = vmatpush1.msra.mxu0 0.0
  %4708 = vmatprep.subr.mxu0 0.0
  %4709 = vmatpush1.msra.mxu0 0.0
  %4710 = vmatprep.subr.mxu0 0.0
  %4711 = vmatpush1.msra.mxu0 0.0
  %4712 = vmatprep.subr.mxu0 0.0
  %4713 = vmatpush1.msra.mxu0 0.0
  %4714 = vmatprep.subr.mxu0 0.0
  %4715 = vmatpush1.msra.mxu0 0.0
  %4716 = vmatprep.subr.mxu0 0.0
  %4717 = vmatpush1.msra.mxu0 0.0
  %4718 = vmatprep.subr.mxu0 0.0
  %4719 = vmatpush1.msra.mxu0 0.0
  %4720 = vmatprep.subr.mxu0 0.0
  %4721 = vmatpush1.msra.mxu0 0.0
  %4722 = vmatprep.subr.mxu0 0.0
  %4723 = vmatpush1.msra.mxu0 0.0
  %4724 = vmatprep.subr.mxu0 0.0
  %4725 = vmatpush1.msra.mxu0 0.0
  %4726 = vmatprep.subr.mxu0 0.0
  %4727 = vmatpush1.msra.mxu0 0.0
  %4728 = vmatprep.subr.mxu0 0.0
  %4729 = vmatpush1.msra.mxu0 0.0
  %4730 = vmatprep.subr.mxu0 0.0
  %4731 = vmatpush1.msra.mxu0 0.0
  %4732 = vmatprep.subr.mxu0 0.0
  %4733 = vmatpush1.msra.mxu0 0.0
  %4734 = vmatprep.mubr.f32.mxu0 0.0
  %4735 = vmatmul.mubr.f32.gmra.mrb[0].mxu0 %v4597
  %v4736 = vpop.f32.mrb[0].mxu0
  %v4737 = vadd.f32 0.0, %v4736
  %v4738 = vpop.f32.mrb[0].mxu0
  %v4739 = vadd.f32 0.0, %v4738
  %4740 = vdwg.mxu0
  %4741 = vmatprep.subr.mxu0 0.0
  %4742 = vmatpush1.msra.mxu0 %v27
  %4743 = vmatprep.subr.mxu0 0.0
  %4744 = vmatpush1.msra.mxu0 0.0
  %4745 = vmatprep.subr.mxu0 0.0
  %4746 = vmatpush1.msra.mxu0 0.0
  %4747 = vmatprep.subr.mxu0 0.0
  %4748 = vmatpush1.msra.mxu0 0.0
  %4749 = vmatprep.subr.mxu0 0.0
  %4750 = vmatpush1.msra.mxu0 0.0
  %4751 = vmatprep.subr.mxu0 0.0
  %4752 = vmatpush1.msra.mxu0 0.0
  %4753 = vmatprep.subr.mxu0 0.0
  %4754 = vmatpush1.msra.mxu0 0.0
  %4755 = vmatprep.subr.mxu0 0.0
  %4756 = vmatpush1.msra.mxu0 0.0
  %4757 = vmatprep.subr.mxu0 0.0
  %4758 = vmatpush1.msra.mxu0 0.0
  %4759 = vmatprep.subr.mxu0 0.0
  %4760 = vmatpush1.msra.mxu0 0.0
  %4761 = vmatprep.subr.mxu0 0.0
  %4762 = vmatpush1.msra.mxu0 0.0
  %4763 = vmatprep.subr.mxu0 0.0
  %4764 = vmatpush1.msra.mxu0 0.0
  %4765 = vmatprep.subr.mxu0 0.0
  %4766 = vmatpush1.msra.mxu0 0.0
  %4767 = vmatprep.subr.mxu0 0.0
  %4768 = vmatpush1.msra.mxu0 0.0
  %4769 = vmatprep.subr.mxu0 0.0
  %4770 = vmatpush1.msra.mxu0 0.0
  %4771 = vmatprep.subr.mxu0 0.0
  %4772 = vmatpush1.msra.mxu0 0.0
  %4773 = vmatprep.subr.mxu0 0.0
  %4774 = vmatpush1.msra.mxu0 0.0
  %4775 = vmatprep.subr.mxu0 0.0
  %4776 = vmatpush1.msra.mxu0 0.0
  %4777 = vmatprep.subr.mxu0 0.0
  %4778 = vmatpush1.msra.mxu0 0.0
  %4779 = vmatprep.subr.mxu0 0.0
  %4780 = vmatpush1.msra.mxu0 0.0
  %4781 = vmatprep.subr.mxu0 0.0
  %4782 = vmatpush1.msra.mxu0 0.0
  %4783 = vmatprep.subr.mxu0 0.0
  %4784 = vmatpush1.msra.mxu0 0.0
  %4785 = vmatprep.subr.mxu0 0.0
  %4786 = vmatpush1.msra.mxu0 0.0
  %4787 = vmatprep.subr.mxu0 0.0
  %4788 = vmatpush1.msra.mxu0 0.0
  %4789 = vmatprep.subr.mxu0 0.0
  %4790 = vmatpush1.msra.mxu0 0.0
  %4791 = vmatprep.subr.mxu0 0.0
  %4792 = vmatpush1.msra.mxu0 0.0
  %4793 = vmatprep.subr.mxu0 0.0
  %4794 = vmatpush1.msra.mxu0 0.0
  %4795 = vmatprep.subr.mxu0 0.0
  %4796 = vmatpush1.msra.mxu0 0.0
  %4797 = vmatprep.subr.mxu0 0.0
  %4798 = vmatpush1.msra.mxu0 0.0
  %4799 = vmatprep.subr.mxu0 0.0
  %4800 = vmatpush1.msra.mxu0 0.0
  %4801 = vmatprep.subr.mxu0 0.0
  %4802 = vmatpush1.msra.mxu0 0.0
  %4803 = vmatprep.subr.mxu0 0.0
  %4804 = vmatpush1.msra.mxu0 0.0
  %4805 = vmatprep.mubr.f32.mxu0 0.0
  %4806 = vmatmul.mubr.f32.gmra.mrb[0].mxu0 %v4597
  %v4807 = vpop.f32.mrb[0].mxu0
  %v4808 = vadd.f32 0.0, %v4807
  %v4809 = vpop.f32.mrb[0].mxu0
  %4810 = vdwg.mxu0
  %s4811 = scalar_lea.vmem %s4, 144
  %v4812 = vld [vmem:[%s4811] sm:$0xff]
  %4813 = vrot.lane.b32.xlu0 %v4507, 14
  %v4814 = vpop.permute.xlu0 %4813
  %4815 = vrot.lane.b32.xlu0 %v4508, 14
  %v4816 = vpop.permute.xlu0 %4815
  %4817 = vrot.lane.b32.xlu0 %v4509, 14
  %v4818 = vpop.permute.xlu0 %4817
  %4819 = vrot.lane.b32.xlu0 %v4510, 14
  %v4820 = vpop.permute.xlu0 %4819
  %4821 = vrot.lane.b32.xlu0 %v4511, 14
  %v4822 = vpop.permute.xlu0 %4821
  %v4823 = vsel %vm78, %v4820, %v4822
  %v4824 = vsel %vm78, %v4818, %v4820
  %v4825 = vsel %vm78, %v4816, %v4818
  %v4826 = vsel %vm78, %v4814, %v4816
  %v4827 = vsel %vm78, %v4822, %v4814
  %4829 = vrot.lane.b32.xlu0 %v4812, 120
  %v4830 = vpop.permute.xlu0 %4829
  %v4831 = vsel %vm102, %v4830, 0
  %4833 = vmatprep.subr.mxu0 %v341
  %4834 = vmatpush1.msra.mxu0 %v338
  %4835 = vmatprep.subr.mxu0 0.0
  %4836 = vmatpush1.msra.mxu0 0.0
  %4837 = vmatprep.subr.mxu0 0.0
  %4838 = vmatpush1.msra.mxu0 0.0
  %4839 = vmatprep.subr.mxu0 0.0
  %4840 = vmatpush1.msra.mxu0 0.0
  %4841 = vmatprep.subr.mxu0 0.0
  %4842 = vmatpush1.msra.mxu0 0.0
  %4843 = vmatprep.subr.mxu0 0.0
  %4844 = vmatpush1.msra.mxu0 0.0
  %4845 = vmatprep.subr.mxu0 0.0
  %4846 = vmatpush1.msra.mxu0 0.0
  %4847 = vmatprep.subr.mxu0 0.0
  %4848 = vmatpush1.msra.mxu0 0.0
  %4849 = vmatprep.subr.mxu0 0.0
  %4850 = vmatpush1.msra.mxu0 0.0
  %4851 = vmatprep.subr.mxu0 0.0
  %4852 = vmatpush1.msra.mxu0 0.0
  %4853 = vmatprep.subr.mxu0 0.0
  %4854 = vmatpush1.msra.mxu0 0.0
  %4855 = vmatprep.subr.mxu0 0.0
  %4856 = vmatpush1.msra.mxu0 0.0
  %4857 = vmatprep.subr.mxu0 0.0
  %4858 = vmatpush1.msra.mxu0 0.0
  %4859 = vmatprep.subr.mxu0 0.0
  %4860 = vmatpush1.msra.mxu0 0.0
  %4861 = vmatprep.subr.mxu0 0.0
  %4862 = vmatpush1.msra.mxu0 0.0
  %4863 = vmatprep.subr.mxu0 0.0
  %4864 = vmatpush1.msra.mxu0 0.0
  %4865 = vmatprep.subr.mxu0 0.0
  %4866 = vmatpush1.msra.mxu0 0.0
  %4867 = vmatprep.subr.mxu0 0.0
  %4868 = vmatpush1.msra.mxu0 0.0
  %4869 = vmatprep.subr.mxu0 0.0
  %4870 = vmatpush1.msra.mxu0 0.0
  %4871 = vmatprep.subr.mxu0 0.0
  %4872 = vmatpush1.msra.mxu0 0.0
  %4873 = vmatprep.subr.mxu0 0.0
  %4874 = vmatpush1.msra.mxu0 0.0
  %4875 = vmatprep.subr.mxu0 0.0
  %4876 = vmatpush1.msra.mxu0 0.0
  %4877 = vmatprep.subr.mxu0 0.0
  %4878 = vmatpush1.msra.mxu0 0.0
  %4879 = vmatprep.subr.mxu0 0.0
  %4880 = vmatpush1.msra.mxu0 0.0
  %4881 = vmatprep.subr.mxu0 0.0
  %4882 = vmatpush1.msra.mxu0 0.0
  %4883 = vmatprep.subr.mxu0 0.0
  %4884 = vmatpush1.msra.mxu0 0.0
  %4885 = vmatprep.subr.mxu0 0.0
  %4886 = vmatpush1.msra.mxu0 0.0
  %4887 = vmatprep.subr.mxu0 0.0
  %4888 = vmatpush1.msra.mxu0 0.0
  %4889 = vmatprep.subr.mxu0 0.0
  %4890 = vmatpush1.msra.mxu0 0.0
  %4891 = vmatprep.subr.mxu0 0.0
  %4892 = vmatpush1.msra.mxu0 0.0
  %4893 = vmatprep.subr.mxu0 0.0
  %4894 = vmatpush1.msra.mxu0 0.0
  %4895 = vmatprep.subr.mxu0 0.0
  %4896 = vmatpush1.msra.mxu0 0.0
  %4897 = vmatprep.mubr.f32.mxu0 0.0
  %4898 = vmatmul.mubr.f32.gmra.mrb[0].mxu0 %v4831
  %v4899 = vpop.f32.mrb[0].mxu0
  %v4900 = vadd.f32 0.0, %v4899
  %v4901 = vpop.f32.mrb[0].mxu0
  %v4902 = vadd.f32 0.0, %v4901
  %4903 = vdwg.mxu0
  %4904 = vmatprep.subr.mxu0 %v347
  %4905 = vmatpush1.msra.mxu0 %v344
  %4906 = vmatprep.subr.mxu0 0.0
  %4907 = vmatpush1.msra.mxu0 0.0
  %4908 = vmatprep.subr.mxu0 0.0
  %4909 = vmatpush1.msra.mxu0 0.0
  %4910 = vmatprep.subr.mxu0 0.0
  %4911 = vmatpush1.msra.mxu0 0.0
  %4912 = vmatprep.subr.mxu0 0.0
  %4913 = vmatpush1.msra.mxu0 0.0
  %4914 = vmatprep.subr.mxu0 0.0
  %4915 = vmatpush1.msra.mxu0 0.0
  %4916 = vmatprep.subr.mxu0 0.0
  %4917 = vmatpush1.msra.mxu0 0.0
  %4918 = vmatprep.subr.mxu0 0.0
  %4919 = vmatpush1.msra.mxu0 0.0
  %4920 = vmatprep.subr.mxu0 0.0
  %4921 = vmatpush1.msra.mxu0 0.0
  %4922 = vmatprep.subr.mxu0 0.0
  %4923 = vmatpush1.msra.mxu0 0.0
  %4924 = vmatprep.subr.mxu0 0.0
  %4925 = vmatpush1.msra.mxu0 0.0
  %4926 = vmatprep.subr.mxu0 0.0
  %4927 = vmatpush1.msra.mxu0 0.0
  %4928 = vmatprep.subr.mxu0 0.0
  %4929 = vmatpush1.msra.mxu0 0.0
  %4930 = vmatprep.subr.mxu0 0.0
  %4931 = vmatpush1.msra.mxu0 0.0
  %4932 = vmatprep.subr.mxu0 0.0
  %4933 = vmatpush1.msra.mxu0 0.0
  %4934 = vmatprep.subr.mxu0 0.0
  %4935 = vmatpush1.msra.mxu0 0.0
  %4936 = vmatprep.subr.mxu0 0.0
  %4937 = vmatpush1.msra.mxu0 0.0
  %4938 = vmatprep.subr.mxu0 0.0
  %4939 = vmatpush1.msra.mxu0 0.0
  %4940 = vmatprep.subr.mxu0 0.0
  %4941 = vmatpush1.msra.mxu0 0.0
  %4942 = vmatprep.subr.mxu0 0.0
  %4943 = vmatpush1.msra.mxu0 0.0
  %4944 = vmatprep.subr.mxu0 0.0
  %4945 = vmatpush1.msra.mxu0 0.0
  %4946 = vmatprep.subr.mxu0 0.0
  %4947 = vmatpush1.msra.mxu0 0.0
  %4948 = vmatprep.subr.mxu0 0.0
  %4949 = vmatpush1.msra.mxu0 0.0
  %4950 = vmatprep.subr.mxu0 0.0
  %4951 = vmatpush1.msra.mxu0 0.0
  %4952 = vmatprep.subr.mxu0 0.0
  %4953 = vmatpush1.msra.mxu0 0.0
  %4954 = vmatprep.subr.mxu0 0.0
  %4955 = vmatpush1.msra.mxu0 0.0
  %4956 = vmatprep.subr.mxu0 0.0
  %4957 = vmatpush1.msra.mxu0 0.0
  %4958 = vmatprep.subr.mxu0 0.0
  %4959 = vmatpush1.msra.mxu0 0.0
  %4960 = vmatprep.subr.mxu0 0.0
  %4961 = vmatpush1.msra.mxu0 0.0
  %4962 = vmatprep.subr.mxu0 0.0
  %4963 = vmatpush1.msra.mxu0 0.0
  %4964 = vmatprep.subr.mxu0 0.0
  %4965 = vmatpush1.msra.mxu0 0.0
  %4966 = vmatprep.subr.mxu0 0.0
  %4967 = vmatpush1.msra.mxu0 0.0
  %4968 = vmatprep.mubr.f32.mxu0 0.0
  %4969 = vmatmul.mubr.f32.gmra.mrb[0].mxu0 %v4831
  %v4970 = vpop.f32.mrb[0].mxu0
  %v4971 = vadd.f32 0.0, %v4970
  %v4972 = vpop.f32.mrb[0].mxu0
  %v4973 = vadd.f32 0.0, %v4972
  %4974 = vdwg.mxu0
  %4975 = vmatprep.subr.mxu0 0.0
  %4976 = vmatpush1.msra.mxu0 %v350
  %4977 = vmatprep.subr.mxu0 0.0
  %4978 = vmatpush1.msra.mxu0 0.0
  %4979 = vmatprep.subr.mxu0 0.0
  %4980 = vmatpush1.msra.mxu0 0.0
  %4981 = vmatprep.subr.mxu0 0.0
  %4982 = vmatpush1.msra.mxu0 0.0
  %4983 = vmatprep.subr.mxu0 0.0
  %4984 = vmatpush1.msra.mxu0 0.0
  %4985 = vmatprep.subr.mxu0 0.0
  %4986 = vmatpush1.msra.mxu0 0.0
  %4987 = vmatprep.subr.mxu0 0.0
  %4988 = vmatpush1.msra.mxu0 0.0
  %4989 = vmatprep.subr.mxu0 0.0
  %4990 = vmatpush1.msra.mxu0 0.0
  %4991 = vmatprep.subr.mxu0 0.0
  %4992 = vmatpush1.msra.mxu0 0.0
  %4993 = vmatprep.subr.mxu0 0.0
  %4994 = vmatpush1.msra.mxu0 0.0
  %4995 = vmatprep.subr.mxu0 0.0
  %4996 = vmatpush1.msra.mxu0 0.0
  %4997 = vmatprep.subr.mxu0 0.0
  %4998 = vmatpush1.msra.mxu0 0.0
  %4999 = vmatprep.subr.mxu0 0.0
  %5000 = vmatpush1.msra.mxu0 0.0
  %5001 = vmatprep.subr.mxu0 0.0
  %5002 = vmatpush1.msra.mxu0 0.0
  %5003 = vmatprep.subr.mxu0 0.0
  %5004 = vmatpush1.msra.mxu0 0.0
  %5005 = vmatprep.subr.mxu0 0.0
  %5006 = vmatpush1.msra.mxu0 0.0
  %5007 = vmatprep.subr.mxu0 0.0
  %5008 = vmatpush1.msra.mxu0 0.0
  %5009 = vmatprep.subr.mxu0 0.0
  %5010 = vmatpush1.msra.mxu0 0.0
  %5011 = vmatprep.subr.mxu0 0.0
  %5012 = vmatpush1.msra.mxu0 0.0
  %5013 = vmatprep.subr.mxu0 0.0
  %5014 = vmatpush1.msra.mxu0 0.0
  %5015 = vmatprep.subr.mxu0 0.0
  %5016 = vmatpush1.msra.mxu0 0.0
  %5017 = vmatprep.subr.mxu0 0.0
  %5018 = vmatpush1.msra.mxu0 0.0
  %5019 = vmatprep.subr.mxu0 0.0
  %5020 = vmatpush1.msra.mxu0 0.0
  %5021 = vmatprep.subr.mxu0 0.0
  %5022 = vmatpush1.msra.mxu0 0.0
  %5023 = vmatprep.subr.mxu0 0.0
  %5024 = vmatpush1.msra.mxu0 0.0
  %5025 = vmatprep.subr.mxu0 0.0
  %5026 = vmatpush1.msra.mxu0 0.0
  %5027 = vmatprep.subr.mxu0 0.0
  %5028 = vmatpush1.msra.mxu0 0.0
  %5029 = vmatprep.subr.mxu0 0.0
  %5030 = vmatpush1.msra.mxu0 0.0
  %5031 = vmatprep.subr.mxu0 0.0
  %5032 = vmatpush1.msra.mxu0 0.0
  %5033 = vmatprep.subr.mxu0 0.0
  %5034 = vmatpush1.msra.mxu0 0.0
  %5035 = vmatprep.subr.mxu0 0.0
  %5036 = vmatpush1.msra.mxu0 0.0
  %5037 = vmatprep.subr.mxu0 0.0
  %5038 = vmatpush1.msra.mxu0 0.0
  %5039 = vmatprep.mubr.f32.mxu0 0.0
  %5040 = vmatmul.mubr.f32.gmra.mrb[0].mxu0 %v4831
  %v5041 = vpop.f32.mrb[0].mxu0
  %v5042 = vadd.f32 0.0, %v5041
  %v5043 = vpop.f32.mrb[0].mxu0
  %5044 = vdwg.mxu0
  %v5045 = vsel %vm2405, %v4812, 0
  %5047 = vmatprep.subr.mxu0 %v4826
  %5048 = vmatpush1.msra.mxu0 %v4827
  %5049 = vmatprep.subr.mxu0 0.0
  %5050 = vmatpush1.msra.mxu0 0.0
  %5051 = vmatprep.subr.mxu0 0.0
  %5052 = vmatpush1.msra.mxu0 0.0
  %5053 = vmatprep.subr.mxu0 0.0
  %5054 = vmatpush1.msra.mxu0 0.0
  %5055 = vmatprep.subr.mxu0 0.0
  %5056 = vmatpush1.msra.mxu0 0.0
  %5057 = vmatprep.subr.mxu0 0.0
  %5058 = vmatpush1.msra.mxu0 0.0
  %5059 = vmatprep.subr.mxu0 0.0
  %5060 = vmatpush1.msra.mxu0 0.0
  %5061 = vmatprep.subr.mxu0 0.0
  %5062 = vmatpush1.msra.mxu0 0.0
  %5063 = vmatprep.subr.mxu0 0.0
  %5064 = vmatpush1.msra.mxu0 0.0
  %5065 = vmatprep.subr.mxu0 0.0
  %5066 = vmatpush1.msra.mxu0 0.0
  %5067 = vmatprep.subr.mxu0 0.0
  %5068 = vmatpush1.msra.mxu0 0.0
  %5069 = vmatprep.subr.mxu0 0.0
  %5070 = vmatpush1.msra.mxu0 0.0
  %5071 = vmatprep.subr.mxu0 0.0
  %5072 = vmatpush1.msra.mxu0 0.0
  %5073 = vmatprep.subr.mxu0 0.0
  %5074 = vmatpush1.msra.mxu0 0.0
  %5075 = vmatprep.subr.mxu0 0.0
  %5076 = vmatpush1.msra.mxu0 0.0
  %5077 = vmatprep.subr.mxu0 0.0
  %5078 = vmatpush1.msra.mxu0 0.0
  %5079 = vmatprep.subr.mxu0 0.0
  %5080 = vmatpush1.msra.mxu0 0.0
  %5081 = vmatprep.subr.mxu0 0.0
  %5082 = vmatpush1.msra.mxu0 0.0
  %5083 = vmatprep.subr.mxu0 0.0
  %5084 = vmatpush1.msra.mxu0 0.0
  %5085 = vmatprep.subr.mxu0 0.0
  %5086 = vmatpush1.msra.mxu0 0.0
  %5087 = vmatprep.subr.mxu0 0.0
  %5088 = vmatpush1.msra.mxu0 0.0
  %5089 = vmatprep.subr.mxu0 0.0
  %5090 = vmatpush1.msra.mxu0 0.0
  %5091 = vmatprep.subr.mxu0 0.0
  %5092 = vmatpush1.msra.mxu0 0.0
  %5093 = vmatprep.subr.mxu0 0.0
  %5094 = vmatpush1.msra.mxu0 0.0
  %5095 = vmatprep.subr.mxu0 0.0
  %5096 = vmatpush1.msra.mxu0 0.0
  %5097 = vmatprep.subr.mxu0 0.0
  %5098 = vmatpush1.msra.mxu0 0.0
  %5099 = vmatprep.subr.mxu0 0.0
  %5100 = vmatpush1.msra.mxu0 0.0
  %5101 = vmatprep.subr.mxu0 0.0
  %5102 = vmatpush1.msra.mxu0 0.0
  %5103 = vmatprep.subr.mxu0 0.0
  %5104 = vmatpush1.msra.mxu0 0.0
  %5105 = vmatprep.subr.mxu0 0.0
  %5106 = vmatpush1.msra.mxu0 0.0
  %5107 = vmatprep.subr.mxu0 0.0
  %5108 = vmatpush1.msra.mxu0 0.0
  %5109 = vmatprep.subr.mxu0 0.0
  %5110 = vmatpush1.msra.mxu0 0.0
  %5111 = vmatprep.mubr.f32.mxu0 0.0
  %5112 = vmatmul.mubr.f32.gmra.mrb[0].mxu0 %v5045
  %v5113 = vpop.f32.mrb[0].mxu0
  %v5114 = vadd.f32 %v4900, %v5113
  %v5115 = vpop.f32.mrb[0].mxu0
  %v5116 = vadd.f32 %v4902, %v5115
  %5117 = vdwg.mxu0
  %5118 = vmatprep.subr.mxu0 %v4824
  %5119 = vmatpush1.msra.mxu0 %v4825
  %5120 = vmatprep.subr.mxu0 0.0
  %5121 = vmatpush1.msra.mxu0 0.0
  %5122 = vmatprep.subr.mxu0 0.0
  %5123 = vmatpush1.msra.mxu0 0.0
  %5124 = vmatprep.subr.mxu0 0.0
  %5125 = vmatpush1.msra.mxu0 0.0
  %5126 = vmatprep.subr.mxu0 0.0
  %5127 = vmatpush1.msra.mxu0 0.0
  %5128 = vmatprep.subr.mxu0 0.0
  %5129 = vmatpush1.msra.mxu0 0.0
  %5130 = vmatprep.subr.mxu0 0.0
  %5131 = vmatpush1.msra.mxu0 0.0
  %5132 = vmatprep.subr.mxu0 0.0
  %5133 = vmatpush1.msra.mxu0 0.0
  %5134 = vmatprep.subr.mxu0 0.0
  %5135 = vmatpush1.msra.mxu0 0.0
  %5136 = vmatprep.subr.mxu0 0.0
  %5137 = vmatpush1.msra.mxu0 0.0
  %5138 = vmatprep.subr.mxu0 0.0
  %5139 = vmatpush1.msra.mxu0 0.0
  %5140 = vmatprep.subr.mxu0 0.0
  %5141 = vmatpush1.msra.mxu0 0.0
  %5142 = vmatprep.subr.mxu0 0.0
  %5143 = vmatpush1.msra.mxu0 0.0
  %5144 = vmatprep.subr.mxu0 0.0
  %5145 = vmatpush1.msra.mxu0 0.0
  %5146 = vmatprep.subr.mxu0 0.0
  %5147 = vmatpush1.msra.mxu0 0.0
  %5148 = vmatprep.subr.mxu0 0.0
  %5149 = vmatpush1.msra.mxu0 0.0
  %5150 = vmatprep.subr.mxu0 0.0
  %5151 = vmatpush1.msra.mxu0 0.0
  %5152 = vmatprep.subr.mxu0 0.0
  %5153 = vmatpush1.msra.mxu0 0.0
  %5154 = vmatprep.subr.mxu0 0.0
  %5155 = vmatpush1.msra.mxu0 0.0
  %5156 = vmatprep.subr.mxu0 0.0
  %5157 = vmatpush1.msra.mxu0 0.0
  %5158 = vmatprep.subr.mxu0 0.0
  %5159 = vmatpush1.msra.mxu0 0.0
  %5160 = vmatprep.subr.mxu0 0.0
  %5161 = vmatpush1.msra.mxu0 0.0
  %5162 = vmatprep.subr.mxu0 0.0
  %5163 = vmatpush1.msra.mxu0 0.0
  %5164 = vmatprep.subr.mxu0 0.0
  %5165 = vmatpush1.msra.mxu0 0.0
  %5166 = vmatprep.subr.mxu0 0.0
  %5167 = vmatpush1.msra.mxu0 0.0
  %5168 = vmatprep.subr.mxu0 0.0
  %5169 = vmatpush1.msra.mxu0 0.0
  %5170 = vmatprep.subr.mxu0 0.0
  %5171 = vmatpush1.msra.mxu0 0.0
  %5172 = vmatprep.subr.mxu0 0.0
  %5173 = vmatpush1.msra.mxu0 0.0
  %5174 = vmatprep.subr.mxu0 0.0
  %5175 = vmatpush1.msra.mxu0 0.0
  %5176 = vmatprep.subr.mxu0 0.0
  %5177 = vmatpush1.msra.mxu0 0.0
  %5178 = vmatprep.subr.mxu0 0.0
  %5179 = vmatpush1.msra.mxu0 0.0
  %5180 = vmatprep.subr.mxu0 0.0
  %5181 = vmatpush1.msra.mxu0 0.0
  %5182 = vmatprep.mubr.f32.mxu0 0.0
  %5183 = vmatmul.mubr.f32.gmra.mrb[0].mxu0 %v5045
  %v5184 = vpop.f32.mrb[0].mxu0
  %v5185 = vadd.f32 %v4971, %v5184
  %v5186 = vpop.f32.mrb[0].mxu0
  %v5187 = vadd.f32 %v4973, %v5186
  %5188 = vdwg.mxu0
  %5189 = vmatprep.subr.mxu0 0.0
  %5190 = vmatpush1.msra.mxu0 %v4823
  %5191 = vmatprep.subr.mxu0 0.0
  %5192 = vmatpush1.msra.mxu0 0.0
  %5193 = vmatprep.subr.mxu0 0.0
  %5194 = vmatpush1.msra.mxu0 0.0
  %5195 = vmatprep.subr.mxu0 0.0
  %5196 = vmatpush1.msra.mxu0 0.0
  %5197 = vmatprep.subr.mxu0 0.0
  %5198 = vmatpush1.msra.mxu0 0.0
  %5199 = vmatprep.subr.mxu0 0.0
  %5200 = vmatpush1.msra.mxu0 0.0
  %5201 = vmatprep.subr.mxu0 0.0
  %5202 = vmatpush1.msra.mxu0 0.0
  %5203 = vmatprep.subr.mxu0 0.0
  %5204 = vmatpush1.msra.mxu0 0.0
  %5205 = vmatprep.subr.mxu0 0.0
  %5206 = vmatpush1.msra.mxu0 0.0
  %5207 = vmatprep.subr.mxu0 0.0
  %5208 = vmatpush1.msra.mxu0 0.0
  %5209 = vmatprep.subr.mxu0 0.0
  %5210 = vmatpush1.msra.mxu0 0.0
  %5211 = vmatprep.subr.mxu0 0.0
  %5212 = vmatpush1.msra.mxu0 0.0
  %5213 = vmatprep.subr.mxu0 0.0
  %5214 = vmatpush1.msra.mxu0 0.0
  %5215 = vmatprep.subr.mxu0 0.0
  %5216 = vmatpush1.msra.mxu0 0.0
  %5217 = vmatprep.subr.mxu0 0.0
  %5218 = vmatpush1.msra.mxu0 0.0
  %5219 = vmatprep.subr.mxu0 0.0
  %5220 = vmatpush1.msra.mxu0 0.0
  %5221 = vmatprep.subr.mxu0 0.0
  %5222 = vmatpush1.msra.mxu0 0.0
  %5223 = vmatprep.subr.mxu0 0.0
  %5224 = vmatpush1.msra.mxu0 0.0
  %5225 = vmatprep.subr.mxu0 0.0
  %5226 = vmatpush1.msra.mxu0 0.0
  %5227 = vmatprep.subr.mxu0 0.0
  %5228 = vmatpush1.msra.mxu0 0.0
  %5229 = vmatprep.subr.mxu0 0.0
  %5230 = vmatpush1.msra.mxu0 0.0
  %5231 = vmatprep.subr.mxu0 0.0
  %5232 = vmatpush1.msra.mxu0 0.0
  %5233 = vmatprep.subr.mxu0 0.0
  %5234 = vmatpush1.msra.mxu0 0.0
  %5235 = vmatprep.subr.mxu0 0.0
  %5236 = vmatpush1.msra.mxu0 0.0
  %5237 = vmatprep.subr.mxu0 0.0
  %5238 = vmatpush1.msra.mxu0 0.0
  %5239 = vmatprep.subr.mxu0 0.0
  %5240 = vmatpush1.msra.mxu0 0.0
  %5241 = vmatprep.subr.mxu0 0.0
  %5242 = vmatpush1.msra.mxu0 0.0
  %5243 = vmatprep.subr.mxu0 0.0
  %5244 = vmatpush1.msra.mxu0 0.0
  %5245 = vmatprep.subr.mxu0 0.0
  %5246 = vmatpush1.msra.mxu0 0.0
  %5247 = vmatprep.subr.mxu0 0.0
  %5248 = vmatpush1.msra.mxu0 0.0
  %5249 = vmatprep.subr.mxu0 0.0
  %5250 = vmatpush1.msra.mxu0 0.0
  %5251 = vmatprep.subr.mxu0 0.0
  %5252 = vmatpush1.msra.mxu0 0.0
  %5253 = vmatprep.mubr.f32.mxu0 0.0
  %5254 = vmatmul.mubr.f32.gmra.mrb[0].mxu0 %v5045
  %v5255 = vpop.f32.mrb[0].mxu0
  %v5256 = vadd.f32 %v5042, %v5255
  %v5257 = vpop.f32.mrb[0].mxu0
  %5258 = vdwg.mxu0
  %5259 = vrot.lane.b32.xlu0 %v4666, 14
  %v5260 = vpop.permute.xlu0 %5259
  %5261 = vrot.lane.b32.xlu0 %v4668, 14
  %v5262 = vpop.permute.xlu0 %5261
  %5263 = vrot.lane.b32.xlu0 %v4737, 14
  %v5264 = vpop.permute.xlu0 %5263
  %5265 = vrot.lane.b32.xlu0 %v4739, 14
  %v5266 = vpop.permute.xlu0 %5265
  %5267 = vrot.lane.b32.xlu0 %v4808, 14
  %v5268 = vpop.permute.xlu0 %5267
  %v5269 = vsel %vm78, %v5266, %v5268
  %v5270 = vsel %vm78, %v5264, %v5266
  %v5271 = vsel %vm78, %v5262, %v5264
  %v5272 = vsel %vm78, %v5260, %v5262
  %v5273 = vsel %vm78, %v5268, %v5260
  %5274 = vset.pattern.permute.xlu0 10
  %5275 = vperm.xlu0 %5274, %v4812
  %v5276 = vpop.permute.xlu0 %5275
  %v5278 = vlaneseq
  %v5279 = vshrl.u32 %v5278, 7
  %v5280 = vsub.s32 0, %v5279
  %v5281 = vrot.slane %v5273, %v5280
  %v5282 = vlaneseq
  %v5283 = vshrl.u32 %v5282, 7
  %v5284 = vsub.s32 0, %v5283
  %v5285 = vrot.slane %v5272, %v5284
  %v5286 = vlaneseq
  %v5287 = vshrl.u32 %v5286, 7
  %v5288 = vsub.s32 0, %v5287
  %v5289 = vrot.slane %v5271, %v5288
  %v5290 = vlaneseq
  %v5291 = vshrl.u32 %v5290, 7
  %v5292 = vsub.s32 0, %v5291
  %v5293 = vrot.slane %v5270, %v5292
  %v5294 = vlaneseq
  %v5295 = vshrl.u32 %v5294, 7
  %v5296 = vsub.s32 0, %v5295
  %v5297 = vrot.slane %v5269, %v5296
  %v5298 = vmul.f32 %v5276, %v5281
  %v5299 = vmul.f32 %v5276, %v5285
  %v5300 = vmul.f32 %v5276, %v5289
  %v5301 = vmul.f32 %v5276, %v5293
  %v5302 = vmul.f32 %v5276, %v5297
  %v5303 = vadd.f32 %v5114, %v5298
  %v5304 = vadd.f32 %v5116, %v5299
  %v5305 = vadd.f32 %v5185, %v5300
  %v5306 = vadd.f32 %v5187, %v5301
  %v5307 = vadd.f32 %v5256, %v5302
  %s5308 = scalar_lea.vmem %s4, 152
  %v5309 = vld [vmem:[%s5308] sm:$0xff]
  %5310 = vrot.lane.b32.xlu0 %v4507, 13
  %v5311 = vpop.permute.xlu0 %5310
  %5312 = vrot.lane.b32.xlu0 %v4508, 13
  %v5313 = vpop.permute.xlu0 %5312
  %5314 = vrot.lane.b32.xlu0 %v4509, 13
  %v5315 = vpop.permute.xlu0 %5314
  %5316 = vrot.lane.b32.xlu0 %v4510, 13
  %v5317 = vpop.permute.xlu0 %5316
  %5318 = vrot.lane.b32.xlu0 %v4511, 13
  %v5319 = vpop.permute.xlu0 %5318
  %v5320 = vsel %vm96, %v5317, %v5319
  %v5321 = vsel %vm96, %v5315, %v5317
  %v5322 = vsel %vm96, %v5313, %v5315
  %v5323 = vsel %vm96, %v5311, %v5313
  %v5324 = vsel %vm96, %v5319, %v5311
  %v5326 = vsel %vm2405, %v5309, 0
  %5328 = vmatprep.subr.mxu0 %v5323
  %5329 = vmatpush1.msra.mxu0 %v5324
  %5330 = vmatprep.subr.mxu0 0.0
  %5331 = vmatpush1.msra.mxu0 0.0
  %5332 = vmatprep.subr.mxu0 0.0
  %5333 = vmatpush1.msra.mxu0 0.0
  %5334 = vmatprep.subr.mxu0 0.0
  %5335 = vmatpush1.msra.mxu0 0.0
  %5336 = vmatprep.subr.mxu0 0.0
  %5337 = vmatpush1.msra.mxu0 0.0
  %5338 = vmatprep.subr.mxu0 0.0
  %5339 = vmatpush1.msra.mxu0 0.0
  %5340 = vmatprep.subr.mxu0 0.0
  %5341 = vmatpush1.msra.mxu0 0.0
  %5342 = vmatprep.subr.mxu0 0.0
  %5343 = vmatpush1.msra.mxu0 0.0
  %5344 = vmatprep.subr.mxu0 0.0
  %5345 = vmatpush1.msra.mxu0 0.0
  %5346 = vmatprep.subr.mxu0 0.0
  %5347 = vmatpush1.msra.mxu0 0.0
  %5348 = vmatprep.subr.mxu0 0.0
  %5349 = vmatpush1.msra.mxu0 0.0
  %5350 = vmatprep.subr.mxu0 0.0
  %5351 = vmatpush1.msra.mxu0 0.0
  %5352 = vmatprep.subr.mxu0 0.0
  %5353 = vmatpush1.msra.mxu0 0.0
  %5354 = vmatprep.subr.mxu0 0.0
  %5355 = vmatpush1.msra.mxu0 0.0
  %5356 = vmatprep.subr.mxu0 0.0
  %5357 = vmatpush1.msra.mxu0 0.0
  %5358 = vmatprep.subr.mxu0 0.0
  %5359 = vmatpush1.msra.mxu0 0.0
  %5360 = vmatprep.subr.mxu0 0.0
  %5361 = vmatpush1.msra.mxu0 0.0
  %5362 = vmatprep.subr.mxu0 0.0
  %5363 = vmatpush1.msra.mxu0 0.0
  %5364 = vmatprep.subr.mxu0 0.0
  %5365 = vmatpush1.msra.mxu0 0.0
  %5366 = vmatprep.subr.mxu0 0.0
  %5367 = vmatpush1.msra.mxu0 0.0
  %5368 = vmatprep.subr.mxu0 0.0
  %5369 = vmatpush1.msra.mxu0 0.0
  %5370 = vmatprep.subr.mxu0 0.0
  %5371 = vmatpush1.msra.mxu0 0.0
  %5372 = vmatprep.subr.mxu0 0.0
  %5373 = vmatpush1.msra.mxu0 0.0
  %5374 = vmatprep.subr.mxu0 0.0
  %5375 = vmatpush1.msra.mxu0 0.0
  %5376 = vmatprep.subr.mxu0 0.0
  %5377 = vmatpush1.msra.mxu0 0.0
  %5378 = vmatprep.subr.mxu0 0.0
  %5379 = vmatpush1.msra.mxu0 0.0
  %5380 = vmatprep.subr.mxu0 0.0
  %5381 = vmatpush1.msra.mxu0 0.0
  %5382 = vmatprep.subr.mxu0 0.0
  %5383 = vmatpush1.msra.mxu0 0.0
  %5384 = vmatprep.subr.mxu0 0.0
  %5385 = vmatpush1.msra.mxu0 0.0
  %5386 = vmatprep.subr.mxu0 0.0
  %5387 = vmatpush1.msra.mxu0 0.0
  %5388 = vmatprep.subr.mxu0 0.0
  %5389 = vmatpush1.msra.mxu0 0.0
  %5390 = vmatprep.subr.mxu0 0.0
  %5391 = vmatpush1.msra.mxu0 0.0
  %5392 = vmatprep.mubr.f32.mxu0 0.0
  %5393 = vmatmul.mubr.f32.gmra.mrb[0].mxu0 %v5326
  %v5394 = vpop.f32.mrb[0].mxu0
  %v5395 = vadd.f32 0.0, %v5394
  %v5396 = vpop.f32.mrb[0].mxu0
  %v5397 = vadd.f32 0.0, %v5396
  %5398 = vdwg.mxu0
  %5399 = vmatprep.subr.mxu0 %v5321
  %5400 = vmatpush1.msra.mxu0 %v5322
  %5401 = vmatprep.subr.mxu0 0.0
  %5402 = vmatpush1.msra.mxu0 0.0
  %5403 = vmatprep.subr.mxu0 0.0
  %5404 = vmatpush1.msra.mxu0 0.0
  %5405 = vmatprep.subr.mxu0 0.0
  %5406 = vmatpush1.msra.mxu0 0.0
  %5407 = vmatprep.subr.mxu0 0.0
  %5408 = vmatpush1.msra.mxu0 0.0
  %5409 = vmatprep.subr.mxu0 0.0
  %5410 = vmatpush1.msra.mxu0 0.0
  %5411 = vmatprep.subr.mxu0 0.0
  %5412 = vmatpush1.msra.mxu0 0.0
  %5413 = vmatprep.subr.mxu0 0.0
  %5414 = vmatpush1.msra.mxu0 0.0
  %5415 = vmatprep.subr.mxu0 0.0
  %5416 = vmatpush1.msra.mxu0 0.0
  %5417 = vmatprep.subr.mxu0 0.0
  %5418 = vmatpush1.msra.mxu0 0.0
  %5419 = vmatprep.subr.mxu0 0.0
  %5420 = vmatpush1.msra.mxu0 0.0
  %5421 = vmatprep.subr.mxu0 0.0
  %5422 = vmatpush1.msra.mxu0 0.0
  %5423 = vmatprep.subr.mxu0 0.0
  %5424 = vmatpush1.msra.mxu0 0.0
  %5425 = vmatprep.subr.mxu0 0.0
  %5426 = vmatpush1.msra.mxu0 0.0
  %5427 = vmatprep.subr.mxu0 0.0
  %5428 = vmatpush1.msra.mxu0 0.0
  %5429 = vmatprep.subr.mxu0 0.0
  %5430 = vmatpush1.msra.mxu0 0.0
  %5431 = vmatprep.subr.mxu0 0.0
  %5432 = vmatpush1.msra.mxu0 0.0
  %5433 = vmatprep.subr.mxu0 0.0
  %5434 = vmatpush1.msra.mxu0 0.0
  %5435 = vmatprep.subr.mxu0 0.0
  %5436 = vmatpush1.msra.mxu0 0.0
  %5437 = vmatprep.subr.mxu0 0.0
  %5438 = vmatpush1.msra.mxu0 0.0
  %5439 = vmatprep.subr.mxu0 0.0
  %5440 = vmatpush1.msra.mxu0 0.0
  %5441 = vmatprep.subr.mxu0 0.0
  %5442 = vmatpush1.msra.mxu0 0.0
  %5443 = vmatprep.subr.mxu0 0.0
  %5444 = vmatpush1.msra.mxu0 0.0
  %5445 = vmatprep.subr.mxu0 0.0
  %5446 = vmatpush1.msra.mxu0 0.0
  %5447 = vmatprep.subr.mxu0 0.0
  %5448 = vmatpush1.msra.mxu0 0.0
  %5449 = vmatprep.subr.mxu0 0.0
  %5450 = vmatpush1.msra.mxu0 0.0
  %5451 = vmatprep.subr.mxu0 0.0
  %5452 = vmatpush1.msra.mxu0 0.0
  %5453 = vmatprep.subr.mxu0 0.0
  %5454 = vmatpush1.msra.mxu0 0.0
  %5455 = vmatprep.subr.mxu0 0.0
  %5456 = vmatpush1.msra.mxu0 0.0
  %5457 = vmatprep.subr.mxu0 0.0
  %5458 = vmatpush1.msra.mxu0 0.0
  %5459 = vmatprep.subr.mxu0 0.0
  %5460 = vmatpush1.msra.mxu0 0.0
  %5461 = vmatprep.subr.mxu0 0.0
  %5462 = vmatpush1.msra.mxu0 0.0
  %5463 = vmatprep.mubr.f32.mxu0 0.0
  %5464 = vmatmul.mubr.f32.gmra.mrb[0].mxu0 %v5326
  %v5465 = vpop.f32.mrb[0].mxu0
  %v5466 = vadd.f32 0.0, %v5465
  %v5467 = vpop.f32.mrb[0].mxu0
  %v5468 = vadd.f32 0.0, %v5467
  %5469 = vdwg.mxu0
  %5470 = vmatprep.subr.mxu0 0.0
  %5471 = vmatpush1.msra.mxu0 %v5320
  %5472 = vmatprep.subr.mxu0 0.0
  %5473 = vmatpush1.msra.mxu0 0.0
  %5474 = vmatprep.subr.mxu0 0.0
  %5475 = vmatpush1.msra.mxu0 0.0
  %5476 = vmatprep.subr.mxu0 0.0
  %5477 = vmatpush1.msra.mxu0 0.0
  %5478 = vmatprep.subr.mxu0 0.0
  %5479 = vmatpush1.msra.mxu0 0.0
  %5480 = vmatprep.subr.mxu0 0.0
  %5481 = vmatpush1.msra.mxu0 0.0
  %5482 = vmatprep.subr.mxu0 0.0
  %5483 = vmatpush1.msra.mxu0 0.0
  %5484 = vmatprep.subr.mxu0 0.0
  %5485 = vmatpush1.msra.mxu0 0.0
  %5486 = vmatprep.subr.mxu0 0.0
  %5487 = vmatpush1.msra.mxu0 0.0
  %5488 = vmatprep.subr.mxu0 0.0
  %5489 = vmatpush1.msra.mxu0 0.0
  %5490 = vmatprep.subr.mxu0 0.0
  %5491 = vmatpush1.msra.mxu0 0.0
  %5492 = vmatprep.subr.mxu0 0.0
  %5493 = vmatpush1.msra.mxu0 0.0
  %5494 = vmatprep.subr.mxu0 0.0
  %5495 = vmatpush1.msra.mxu0 0.0
  %5496 = vmatprep.subr.mxu0 0.0
  %5497 = vmatpush1.msra.mxu0 0.0
  %5498 = vmatprep.subr.mxu0 0.0
  %5499 = vmatpush1.msra.mxu0 0.0
  %5500 = vmatprep.subr.mxu0 0.0
  %5501 = vmatpush1.msra.mxu0 0.0
  %5502 = vmatprep.subr.mxu0 0.0
  %5503 = vmatpush1.msra.mxu0 0.0
  %5504 = vmatprep.subr.mxu0 0.0
  %5505 = vmatpush1.msra.mxu0 0.0
  %5506 = vmatprep.subr.mxu0 0.0
  %5507 = vmatpush1.msra.mxu0 0.0
  %5508 = vmatprep.subr.mxu0 0.0
  %5509 = vmatpush1.msra.mxu0 0.0
  %5510 = vmatprep.subr.mxu0 0.0
  %5511 = vmatpush1.msra.mxu0 0.0
  %5512 = vmatprep.subr.mxu0 0.0
  %5513 = vmatpush1.msra.mxu0 0.0
  %5514 = vmatprep.subr.mxu0 0.0
  %5515 = vmatpush1.msra.mxu0 0.0
  %5516 = vmatprep.subr.mxu0 0.0
  %5517 = vmatpush1.msra.mxu0 0.0
  %5518 = vmatprep.subr.mxu0 0.0
  %5519 = vmatpush1.msra.mxu0 0.0
  %5520 = vmatprep.subr.mxu0 0.0
  %5521 = vmatpush1.msra.mxu0 0.0
  %5522 = vmatprep.subr.mxu0 0.0
  %5523 = vmatpush1.msra.mxu0 0.0
  %5524 = vmatprep.subr.mxu0 0.0
  %5525 = vmatpush1.msra.mxu0 0.0
  %5526 = vmatprep.subr.mxu0 0.0
  %5527 = vmatpush1.msra.mxu0 0.0
  %5528 = vmatprep.subr.mxu0 0.0
  %5529 = vmatpush1.msra.mxu0 0.0
  %5530 = vmatprep.subr.mxu0 0.0
  %5531 = vmatpush1.msra.mxu0 0.0
  %5532 = vmatprep.subr.mxu0 0.0
  %5533 = vmatpush1.msra.mxu0 0.0
  %5534 = vmatprep.mubr.f32.mxu0 0.0
  %5535 = vmatmul.mubr.f32.gmra.mrb[0].mxu0 %v5326
  %v5536 = vpop.f32.mrb[0].mxu0
  %v5537 = vadd.f32 0.0, %v5536
  %v5538 = vpop.f32.mrb[0].mxu0
  %5539 = vdwg.mxu0
  %v5540 = vadd.f32 %v5303, %v5395
  %v5541 = vadd.f32 %v5304, %v5397
  %v5542 = vadd.f32 %v5305, %v5466
  %v5543 = vadd.f32 %v5306, %v5468
  %v5544 = vadd.f32 %v5307, %v5537
  %5545 = vrot.lane.b32.xlu0 %v5309, 120
  %v5546 = vpop.permute.xlu0 %5545
  %v5547 = vsel %vm102, %v5546, 0
  %5549 = vmatprep.subr.mxu0 %v111
  %5550 = vmatpush1.msra.mxu0 %v108
  %5551 = vmatprep.subr.mxu0 0.0
  %5552 = vmatpush1.msra.mxu0 0.0
  %5553 = vmatprep.subr.mxu0 0.0
  %5554 = vmatpush1.msra.mxu0 0.0
  %5555 = vmatprep.subr.mxu0 0.0
  %5556 = vmatpush1.msra.mxu0 0.0
  %5557 = vmatprep.subr.mxu0 0.0
  %5558 = vmatpush1.msra.mxu0 0.0
  %5559 = vmatprep.subr.mxu0 0.0
  %5560 = vmatpush1.msra.mxu0 0.0
  %5561 = vmatprep.subr.mxu0 0.0
  %5562 = vmatpush1.msra.mxu0 0.0
  %5563 = vmatprep.subr.mxu0 0.0
  %5564 = vmatpush1.msra.mxu0 0.0
  %5565 = vmatprep.subr.mxu0 0.0
  %5566 = vmatpush1.msra.mxu0 0.0
  %5567 = vmatprep.subr.mxu0 0.0
  %5568 = vmatpush1.msra.mxu0 0.0
  %5569 = vmatprep.subr.mxu0 0.0
  %5570 = vmatpush1.msra.mxu0 0.0
  %5571 = vmatprep.subr.mxu0 0.0
  %5572 = vmatpush1.msra.mxu0 0.0
  %5573 = vmatprep.subr.mxu0 0.0
  %5574 = vmatpush1.msra.mxu0 0.0
  %5575 = vmatprep.subr.mxu0 0.0
  %5576 = vmatpush1.msra.mxu0 0.0
  %5577 = vmatprep.subr.mxu0 0.0
  %5578 = vmatpush1.msra.mxu0 0.0
  %5579 = vmatprep.subr.mxu0 0.0
  %5580 = vmatpush1.msra.mxu0 0.0
  %5581 = vmatprep.subr.mxu0 0.0
  %5582 = vmatpush1.msra.mxu0 0.0
  %5583 = vmatprep.subr.mxu0 0.0
  %5584 = vmatpush1.msra.mxu0 0.0
  %5585 = vmatprep.subr.mxu0 0.0
  %5586 = vmatpush1.msra.mxu0 0.0
  %5587 = vmatprep.subr.mxu0 0.0
  %5588 = vmatpush1.msra.mxu0 0.0
  %5589 = vmatprep.subr.mxu0 0.0
  %5590 = vmatpush1.msra.mxu0 0.0
  %5591 = vmatprep.subr.mxu0 0.0
  %5592 = vmatpush1.msra.mxu0 0.0
  %5593 = vmatprep.subr.mxu0 0.0
  %5594 = vmatpush1.msra.mxu0 0.0
  %5595 = vmatprep.subr.mxu0 0.0
  %5596 = vmatpush1.msra.mxu0 0.0
  %5597 = vmatprep.subr.mxu0 0.0
  %5598 = vmatpush1.msra.mxu0 0.0
  %5599 = vmatprep.subr.mxu0 0.0
  %5600 = vmatpush1.msra.mxu0 0.0
  %5601 = vmatprep.subr.mxu0 0.0
  %5602 = vmatpush1.msra.mxu0 0.0
  %5603 = vmatprep.subr.mxu0 0.0
  %5604 = vmatpush1.msra.mxu0 0.0
  %5605 = vmatprep.subr.mxu0 0.0
  %5606 = vmatpush1.msra.mxu0 0.0
  %5607 = vmatprep.subr.mxu0 0.0
  %5608 = vmatpush1.msra.mxu0 0.0
  %5609 = vmatprep.subr.mxu0 0.0
  %5610 = vmatpush1.msra.mxu0 0.0
  %5611 = vmatprep.subr.mxu0 0.0
  %5612 = vmatpush1.msra.mxu0 0.0
  %5613 = vmatprep.mubr.f32.mxu0 0.0
  %5614 = vmatmul.mubr.f32.gmra.mrb[0].mxu0 %v5547
  %v5615 = vpop.f32.mrb[0].mxu0
  %v5616 = vadd.f32 0.0, %v5615
  %v5617 = vpop.f32.mrb[0].mxu0
  %v5618 = vadd.f32 0.0, %v5617
  %5619 = vdwg.mxu0
  %5620 = vmatprep.subr.mxu0 %v117
  %5621 = vmatpush1.msra.mxu0 %v114
  %5622 = vmatprep.subr.mxu0 0.0
  %5623 = vmatpush1.msra.mxu0 0.0
  %5624 = vmatprep.subr.mxu0 0.0
  %5625 = vmatpush1.msra.mxu0 0.0
  %5626 = vmatprep.subr.mxu0 0.0
  %5627 = vmatpush1.msra.mxu0 0.0
  %5628 = vmatprep.subr.mxu0 0.0
  %5629 = vmatpush1.msra.mxu0 0.0
  %5630 = vmatprep.subr.mxu0 0.0
  %5631 = vmatpush1.msra.mxu0 0.0
  %5632 = vmatprep.subr.mxu0 0.0
  %5633 = vmatpush1.msra.mxu0 0.0
  %5634 = vmatprep.subr.mxu0 0.0
  %5635 = vmatpush1.msra.mxu0 0.0
  %5636 = vmatprep.subr.mxu0 0.0
  %5637 = vmatpush1.msra.mxu0 0.0
  %5638 = vmatprep.subr.mxu0 0.0
  %5639 = vmatpush1.msra.mxu0 0.0
  %5640 = vmatprep.subr.mxu0 0.0
  %5641 = vmatpush1.msra.mxu0 0.0
  %5642 = vmatprep.subr.mxu0 0.0
  %5643 = vmatpush1.msra.mxu0 0.0
  %5644 = vmatprep.subr.mxu0 0.0
  %5645 = vmatpush1.msra.mxu0 0.0
  %5646 = vmatprep.subr.mxu0 0.0
  %5647 = vmatpush1.msra.mxu0 0.0
  %5648 = vmatprep.subr.mxu0 0.0
  %5649 = vmatpush1.msra.mxu0 0.0
  %5650 = vmatprep.subr.mxu0 0.0
  %5651 = vmatpush1.msra.mxu0 0.0
  %5652 = vmatprep.subr.mxu0 0.0
  %5653 = vmatpush1.msra.mxu0 0.0
  %5654 = vmatprep.subr.mxu0 0.0
  %5655 = vmatpush1.msra.mxu0 0.0
  %5656 = vmatprep.subr.mxu0 0.0
  %5657 = vmatpush1.msra.mxu0 0.0
  %5658 = vmatprep.subr.mxu0 0.0
  %5659 = vmatpush1.msra.mxu0 0.0
  %5660 = vmatprep.subr.mxu0 0.0
  %5661 = vmatpush1.msra.mxu0 0.0
  %5662 = vmatprep.subr.mxu0 0.0
  %5663 = vmatpush1.msra.mxu0 0.0
  %5664 = vmatprep.subr.mxu0 0.0
  %5665 = vmatpush1.msra.mxu0 0.0
  %5666 = vmatprep.subr.mxu0 0.0
  %5667 = vmatpush1.msra.mxu0 0.0
  %5668 = vmatprep.subr.mxu0 0.0
  %5669 = vmatpush1.msra.mxu0 0.0
  %5670 = vmatprep.subr.mxu0 0.0
  %5671 = vmatpush1.msra.mxu0 0.0
  %5672 = vmatprep.subr.mxu0 0.0
  %5673 = vmatpush1.msra.mxu0 0.0
  %5674 = vmatprep.subr.mxu0 0.0
  %5675 = vmatpush1.msra.mxu0 0.0
  %5676 = vmatprep.subr.mxu0 0.0
  %5677 = vmatpush1.msra.mxu0 0.0
  %5678 = vmatprep.subr.mxu0 0.0
  %5679 = vmatpush1.msra.mxu0 0.0
  %5680 = vmatprep.subr.mxu0 0.0
  %5681 = vmatpush1.msra.mxu0 0.0
  %5682 = vmatprep.subr.mxu0 0.0
  %5683 = vmatpush1.msra.mxu0 0.0
  %5684 = vmatprep.mubr.f32.mxu0 0.0
  %5685 = vmatmul.mubr.f32.gmra.mrb[0].mxu0 %v5547
  %v5686 = vpop.f32.mrb[0].mxu0
  %v5687 = vadd.f32 0.0, %v5686
  %v5688 = vpop.f32.mrb[0].mxu0
  %v5689 = vadd.f32 0.0, %v5688
  %5690 = vdwg.mxu0
  %5691 = vmatprep.subr.mxu0 0.0
  %5692 = vmatpush1.msra.mxu0 %v120
  %5693 = vmatprep.subr.mxu0 0.0
  %5694 = vmatpush1.msra.mxu0 0.0
  %5695 = vmatprep.subr.mxu0 0.0
  %5696 = vmatpush1.msra.mxu0 0.0
  %5697 = vmatprep.subr.mxu0 0.0
  %5698 = vmatpush1.msra.mxu0 0.0
  %5699 = vmatprep.subr.mxu0 0.0
  %5700 = vmatpush1.msra.mxu0 0.0
  %5701 = vmatprep.subr.mxu0 0.0
  %5702 = vmatpush1.msra.mxu0 0.0
  %5703 = vmatprep.subr.mxu0 0.0
  %5704 = vmatpush1.msra.mxu0 0.0
  %5705 = vmatprep.subr.mxu0 0.0
  %5706 = vmatpush1.msra.mxu0 0.0
  %5707 = vmatprep.subr.mxu0 0.0
  %5708 = vmatpush1.msra.mxu0 0.0
  %5709 = vmatprep.subr.mxu0 0.0
  %5710 = vmatpush1.msra.mxu0 0.0
  %5711 = vmatprep.subr.mxu0 0.0
  %5712 = vmatpush1.msra.mxu0 0.0
  %5713 = vmatprep.subr.mxu0 0.0
  %5714 = vmatpush1.msra.mxu0 0.0
  %5715 = vmatprep.subr.mxu0 0.0
  %5716 = vmatpush1.msra.mxu0 0.0
  %5717 = vmatprep.subr.mxu0 0.0
  %5718 = vmatpush1.msra.mxu0 0.0
  %5719 = vmatprep.subr.mxu0 0.0
  %5720 = vmatpush1.msra.mxu0 0.0
  %5721 = vmatprep.subr.mxu0 0.0
  %5722 = vmatpush1.msra.mxu0 0.0
  %5723 = vmatprep.subr.mxu0 0.0
  %5724 = vmatpush1.msra.mxu0 0.0
  %5725 = vmatprep.subr.mxu0 0.0
  %5726 = vmatpush1.msra.mxu0 0.0
  %5727 = vmatprep.subr.mxu0 0.0
  %5728 = vmatpush1.msra.mxu0 0.0
  %5729 = vmatprep.subr.mxu0 0.0
  %5730 = vmatpush1.msra.mxu0 0.0
  %5731 = vmatprep.subr.mxu0 0.0
  %5732 = vmatpush1.msra.mxu0 0.0
  %5733 = vmatprep.subr.mxu0 0.0
  %5734 = vmatpush1.msra.mxu0 0.0
  %5735 = vmatprep.subr.mxu0 0.0
  %5736 = vmatpush1.msra.mxu0 0.0
  %5737 = vmatprep.subr.mxu0 0.0
  %5738 = vmatpush1.msra.mxu0 0.0
  %5739 = vmatprep.subr.mxu0 0.0
  %5740 = vmatpush1.msra.mxu0 0.0
  %5741 = vmatprep.subr.mxu0 0.0
  %5742 = vmatpush1.msra.mxu0 0.0
  %5743 = vmatprep.subr.mxu0 0.0
  %5744 = vmatpush1.msra.mxu0 0.0
  %5745 = vmatprep.subr.mxu0 0.0
  %5746 = vmatpush1.msra.mxu0 0.0
  %5747 = vmatprep.subr.mxu0 0.0
  %5748 = vmatpush1.msra.mxu0 0.0
  %5749 = vmatprep.subr.mxu0 0.0
  %5750 = vmatpush1.msra.mxu0 0.0
  %5751 = vmatprep.subr.mxu0 0.0
  %5752 = vmatpush1.msra.mxu0 0.0
  %5753 = vmatprep.subr.mxu0 0.0
  %5754 = vmatpush1.msra.mxu0 0.0
  %5755 = vmatprep.mubr.f32.mxu0 0.0
  %5756 = vmatmul.mubr.f32.gmra.mrb[0].mxu0 %v5547
  %v5757 = vpop.f32.mrb[0].mxu0
  %v5758 = vadd.f32 0.0, %v5757
  %v5759 = vpop.f32.mrb[0].mxu0
  %5760 = vdwg.mxu0
  %v5761 = vadd.f32 %v5540, %v5616
  %v5762 = vadd.f32 %v5541, %v5618
  %v5763 = vadd.f32 %v5542, %v5687
  %v5764 = vadd.f32 %v5543, %v5689
  %v5765 = vadd.f32 %v5544, %v5758
  %5766 = vrot.lane.b32.xlu0 %v4666, 13
  %v5767 = vpop.permute.xlu0 %5766
  %5768 = vrot.lane.b32.xlu0 %v4668, 13
  %v5769 = vpop.permute.xlu0 %5768
  %5770 = vrot.lane.b32.xlu0 %v4737, 13
  %v5771 = vpop.permute.xlu0 %5770
  %5772 = vrot.lane.b32.xlu0 %v4739, 13
  %v5773 = vpop.permute.xlu0 %5772
  %5774 = vrot.lane.b32.xlu0 %v4808, 13
  %v5775 = vpop.permute.xlu0 %5774
  %v5776 = vsel %vm96, %v5773, %v5775
  %v5777 = vsel %vm96, %v5771, %v5773
  %v5778 = vsel %vm96, %v5769, %v5771
  %v5779 = vsel %vm96, %v5767, %v5769
  %v5780 = vsel %vm96, %v5775, %v5767
  %5781 = vset.pattern.permute.xlu0 10
  %5782 = vperm.xlu0 %5781, %v5309
  %v5783 = vpop.permute.xlu0 %5782
  %v5785 = vlaneseq
  %v5786 = vshrl.u32 %v5785, 7
  %v5787 = vsub.s32 0, %v5786
  %v5788 = vrot.slane %v5780, %v5787
  %v5789 = vlaneseq
  %v5790 = vshrl.u32 %v5789, 7
  %v5791 = vsub.s32 0, %v5790
  %v5792 = vrot.slane %v5779, %v5791
  %v5793 = vlaneseq
  %v5794 = vshrl.u32 %v5793, 7
  %v5795 = vsub.s32 0, %v5794
  %v5796 = vrot.slane %v5778, %v5795
  %v5797 = vlaneseq
  %v5798 = vshrl.u32 %v5797, 7
  %v5799 = vsub.s32 0, %v5798
  %v5800 = vrot.slane %v5777, %v5799
  %v5801 = vlaneseq
  %v5802 = vshrl.u32 %v5801, 7
  %v5803 = vsub.s32 0, %v5802
  %v5804 = vrot.slane %v5776, %v5803
  %v5805 = vmul.f32 %v5783, %v5788
  %v5806 = vmul.f32 %v5783, %v5792
  %v5807 = vmul.f32 %v5783, %v5796
  %v5808 = vmul.f32 %v5783, %v5800
  %v5809 = vmul.f32 %v5783, %v5804
  %v5810 = vadd.f32 %v5761, %v5805
  %v5811 = vadd.f32 %v5762, %v5806
  %v5812 = vadd.f32 %v5763, %v5807
  %v5813 = vadd.f32 %v5764, %v5808
  %v5814 = vadd.f32 %v5765, %v5809
  %s5815 = scalar_lea.vmem %s4, 160
  %v5816 = vld [vmem:[%s5815] sm:$0xff]
  %5817 = vrot.lane.b32.xlu0 %v4507, 12
  %v5818 = vpop.permute.xlu0 %5817
  %5819 = vrot.lane.b32.xlu0 %v4508, 12
  %v5820 = vpop.permute.xlu0 %5819
  %5821 = vrot.lane.b32.xlu0 %v4509, 12
  %v5822 = vpop.permute.xlu0 %5821
  %5823 = vrot.lane.b32.xlu0 %v4510, 12
  %v5824 = vpop.permute.xlu0 %5823
  %5825 = vrot.lane.b32.xlu0 %v4511, 12
  %v5826 = vpop.permute.xlu0 %5825
  %v5827 = vsel %vm576, %v5824, %v5826
  %v5828 = vsel %vm576, %v5822, %v5824
  %v5829 = vsel %vm576, %v5820, %v5822
  %v5830 = vsel %vm576, %v5818, %v5820
  %v5831 = vsel %vm576, %v5826, %v5818
  %v5833 = vsel %vm2405, %v5816, 0
  %5835 = vmatprep.subr.mxu0 %v5830
  %5836 = vmatpush1.msra.mxu0 %v5831
  %5837 = vmatprep.subr.mxu0 0.0
  %5838 = vmatpush1.msra.mxu0 0.0
  %5839 = vmatprep.subr.mxu0 0.0
  %5840 = vmatpush1.msra.mxu0 0.0
  %5841 = vmatprep.subr.mxu0 0.0
  %5842 = vmatpush1.msra.mxu0 0.0
  %5843 = vmatprep.subr.mxu0 0.0
  %5844 = vmatpush1.msra.mxu0 0.0
  %5845 = vmatprep.subr.mxu0 0.0
  %5846 = vmatpush1.msra.mxu0 0.0
  %5847 = vmatprep.subr.mxu0 0.0
  %5848 = vmatpush1.msra.mxu0 0.0
  %5849 = vmatprep.subr.mxu0 0.0
  %5850 = vmatpush1.msra.mxu0 0.0
  %5851 = vmatprep.subr.mxu0 0.0
  %5852 = vmatpush1.msra.mxu0 0.0
  %5853 = vmatprep.subr.mxu0 0.0
  %5854 = vmatpush1.msra.mxu0 0.0
  %5855 = vmatprep.subr.mxu0 0.0
  %5856 = vmatpush1.msra.mxu0 0.0
  %5857 = vmatprep.subr.mxu0 0.0
  %5858 = vmatpush1.msra.mxu0 0.0
  %5859 = vmatprep.subr.mxu0 0.0
  %5860 = vmatpush1.msra.mxu0 0.0
  %5861 = vmatprep.subr.mxu0 0.0
  %5862 = vmatpush1.msra.mxu0 0.0
  %5863 = vmatprep.subr.mxu0 0.0
  %5864 = vmatpush1.msra.mxu0 0.0
  %5865 = vmatprep.subr.mxu0 0.0
  %5866 = vmatpush1.msra.mxu0 0.0
  %5867 = vmatprep.subr.mxu0 0.0
  %5868 = vmatpush1.msra.mxu0 0.0
  %5869 = vmatprep.subr.mxu0 0.0
  %5870 = vmatpush1.msra.mxu0 0.0
  %5871 = vmatprep.subr.mxu0 0.0
  %5872 = vmatpush1.msra.mxu0 0.0
  %5873 = vmatprep.subr.mxu0 0.0
  %5874 = vmatpush1.msra.mxu0 0.0
  %5875 = vmatprep.subr.mxu0 0.0
  %5876 = vmatpush1.msra.mxu0 0.0
  %5877 = vmatprep.subr.mxu0 0.0
  %5878 = vmatpush1.msra.mxu0 0.0
  %5879 = vmatprep.subr.mxu0 0.0
  %5880 = vmatpush1.msra.mxu0 0.0
  %5881 = vmatprep.subr.mxu0 0.0
  %5882 = vmatpush1.msra.mxu0 0.0
  %5883 = vmatprep.subr.mxu0 0.0
  %5884 = vmatpush1.msra.mxu0 0.0
  %5885 = vmatprep.subr.mxu0 0.0
  %5886 = vmatpush1.msra.mxu0 0.0
  %5887 = vmatprep.subr.mxu0 0.0
  %5888 = vmatpush1.msra.mxu0 0.0
  %5889 = vmatprep.subr.mxu0 0.0
  %5890 = vmatpush1.msra.mxu0 0.0
  %5891 = vmatprep.subr.mxu0 0.0
  %5892 = vmatpush1.msra.mxu0 0.0
  %5893 = vmatprep.subr.mxu0 0.0
  %5894 = vmatpush1.msra.mxu0 0.0
  %5895 = vmatprep.subr.mxu0 0.0
  %5896 = vmatpush1.msra.mxu0 0.0
  %5897 = vmatprep.subr.mxu0 0.0
  %5898 = vmatpush1.msra.mxu0 0.0
  %5899 = vmatprep.mubr.f32.mxu0 0.0
  %5900 = vmatmul.mubr.f32.gmra.mrb[0].mxu0 %v5833
  %v5901 = vpop.f32.mrb[0].mxu0
  %v5902 = vadd.f32 0.0, %v5901
  %v5903 = vpop.f32.mrb[0].mxu0
  %v5904 = vadd.f32 0.0, %v5903
  %5905 = vdwg.mxu0
  %5906 = vmatprep.subr.mxu0 %v5828
  %5907 = vmatpush1.msra.mxu0 %v5829
  %5908 = vmatprep.subr.mxu0 0.0
  %5909 = vmatpush1.msra.mxu0 0.0
  %5910 = vmatprep.subr.mxu0 0.0
  %5911 = vmatpush1.msra.mxu0 0.0
  %5912 = vmatprep.subr.mxu0 0.0
  %5913 = vmatpush1.msra.mxu0 0.0
  %5914 = vmatprep.subr.mxu0 0.0
  %5915 = vmatpush1.msra.mxu0 0.0
  %5916 = vmatprep.subr.mxu0 0.0
  %5917 = vmatpush1.msra.mxu0 0.0
  %5918 = vmatprep.subr.mxu0 0.0
  %5919 = vmatpush1.msra.mxu0 0.0
  %5920 = vmatprep.subr.mxu0 0.0
  %5921 = vmatpush1.msra.mxu0 0.0
  %5922 = vmatprep.subr.mxu0 0.0
  %5923 = vmatpush1.msra.mxu0 0.0
  %5924 = vmatprep.subr.mxu0 0.0
  %5925 = vmatpush1.msra.mxu0 0.0
  %5926 = vmatprep.subr.mxu0 0.0
  %5927 = vmatpush1.msra.mxu0 0.0
  %5928 = vmatprep.subr.mxu0 0.0
  %5929 = vmatpush1.msra.mxu0 0.0
  %5930 = vmatprep.subr.mxu0 0.0
  %5931 = vmatpush1.msra.mxu0 0.0
  %5932 = vmatprep.subr.mxu0 0.0
  %5933 = vmatpush1.msra.mxu0 0.0
  %5934 = vmatprep.subr.mxu0 0.0
  %5935 = vmatpush1.msra.mxu0 0.0
  %5936 = vmatprep.subr.mxu0 0.0
  %5937 = vmatpush1.msra.mxu0 0.0
  %5938 = vmatprep.subr.mxu0 0.0
  %5939 = vmatpush1.msra.mxu0 0.0
  %5940 = vmatprep.subr.mxu0 0.0
  %5941 = vmatpush1.msra.mxu0 0.0
  %5942 = vmatprep.subr.mxu0 0.0
  %5943 = vmatpush1.msra.mxu0 0.0
  %5944 = vmatprep.subr.mxu0 0.0
  %5945 = vmatpush1.msra.mxu0 0.0
  %5946 = vmatprep.subr.mxu0 0.0
  %5947 = vmatpush1.msra.mxu0 0.0
  %5948 = vmatprep.subr.mxu0 0.0
  %5949 = vmatpush1.msra.mxu0 0.0
  %5950 = vmatprep.subr.mxu0 0.0
  %5951 = vmatpush1.msra.mxu0 0.0
  %5952 = vmatprep.subr.mxu0 0.0
  %5953 = vmatpush1.msra.mxu0 0.0
  %5954 = vmatprep.subr.mxu0 0.0
  %5955 = vmatpush1.msra.mxu0 0.0
  %5956 = vmatprep.subr.mxu0 0.0
  %5957 = vmatpush1.msra.mxu0 0.0
  %5958 = vmatprep.subr.mxu0 0.0
  %5959 = vmatpush1.msra.mxu0 0.0
  %5960 = vmatprep.subr.mxu0 0.0
  %5961 = vmatpush1.msra.mxu0 0.0
  %5962 = vmatprep.subr.mxu0 0.0
  %5963 = vmatpush1.msra.mxu0 0.0
  %5964 = vmatprep.subr.mxu0 0.0
  %5965 = vmatpush1.msra.mxu0 0.0
  %5966 = vmatprep.subr.mxu0 0.0
  %5967 = vmatpush1.msra.mxu0 0.0
  %5968 = vmatprep.subr.mxu0 0.0
  %5969 = vmatpush1.msra.mxu0 0.0
  %5970 = vmatprep.mubr.f32.mxu0 0.0
  %5971 = vmatmul.mubr.f32.gmra.mrb[0].mxu0 %v5833
  %v5972 = vpop.f32.mrb[0].mxu0
  %v5973 = vadd.f32 0.0, %v5972
  %v5974 = vpop.f32.mrb[0].mxu0
  %v5975 = vadd.f32 0.0, %v5974
  %5976 = vdwg.mxu0
  %5977 = vmatprep.subr.mxu0 0.0
  %5978 = vmatpush1.msra.mxu0 %v5827
  %5979 = vmatprep.subr.mxu0 0.0
  %5980 = vmatpush1.msra.mxu0 0.0
  %5981 = vmatprep.subr.mxu0 0.0
  %5982 = vmatpush1.msra.mxu0 0.0
  %5983 = vmatprep.subr.mxu0 0.0
  %5984 = vmatpush1.msra.mxu0 0.0
  %5985 = vmatprep.subr.mxu0 0.0
  %5986 = vmatpush1.msra.mxu0 0.0
  %5987 = vmatprep.subr.mxu0 0.0
  %5988 = vmatpush1.msra.mxu0 0.0
  %5989 = vmatprep.subr.mxu0 0.0
  %5990 = vmatpush1.msra.mxu0 0.0
  %5991 = vmatprep.subr.mxu0 0.0
  %5992 = vmatpush1.msra.mxu0 0.0
  %5993 = vmatprep.subr.mxu0 0.0
  %5994 = vmatpush1.msra.mxu0 0.0
  %5995 = vmatprep.subr.mxu0 0.0
  %5996 = vmatpush1.msra.mxu0 0.0
  %5997 = vmatprep.subr.mxu0 0.0
  %5998 = vmatpush1.msra.mxu0 0.0
  %5999 = vmatprep.subr.mxu0 0.0
  %6000 = vmatpush1.msra.mxu0 0.0
  %6001 = vmatprep.subr.mxu0 0.0
  %6002 = vmatpush1.msra.mxu0 0.0
  %6003 = vmatprep.subr.mxu0 0.0
  %6004 = vmatpush1.msra.mxu0 0.0
  %6005 = vmatprep.subr.mxu0 0.0
  %6006 = vmatpush1.msra.mxu0 0.0
  %6007 = vmatprep.subr.mxu0 0.0
  %6008 = vmatpush1.msra.mxu0 0.0
  %6009 = vmatprep.subr.mxu0 0.0
  %6010 = vmatpush1.msra.mxu0 0.0
  %6011 = vmatprep.subr.mxu0 0.0
  %6012 = vmatpush1.msra.mxu0 0.0
  %6013 = vmatprep.subr.mxu0 0.0
  %6014 = vmatpush1.msra.mxu0 0.0
  %6015 = vmatprep.subr.mxu0 0.0
  %6016 = vmatpush1.msra.mxu0 0.0
  %6017 = vmatprep.subr.mxu0 0.0
  %6018 = vmatpush1.msra.mxu0 0.0
  %6019 = vmatprep.subr.mxu0 0.0
  %6020 = vmatpush1.msra.mxu0 0.0
  %6021 = vmatprep.subr.mxu0 0.0
  %6022 = vmatpush1.msra.mxu0 0.0
  %6023 = vmatprep.subr.mxu0 0.0
  %6024 = vmatpush1.msra.mxu0 0.0
  %6025 = vmatprep.subr.mxu0 0.0
  %6026 = vmatpush1.msra.mxu0 0.0
  %6027 = vmatprep.subr.mxu0 0.0
  %6028 = vmatpush1.msra.mxu0 0.0
  %6029 = vmatprep.subr.mxu0 0.0
  %6030 = vmatpush1.msra.mxu0 0.0
  %6031 = vmatprep.subr.mxu0 0.0
  %6032 = vmatpush1.msra.mxu0 0.0
  %6033 = vmatprep.subr.mxu0 0.0
  %6034 = vmatpush1.msra.mxu0 0.0
  %6035 = vmatprep.subr.mxu0 0.0
  %6036 = vmatpush1.msra.mxu0 0.0
  %6037 = vmatprep.subr.mxu0 0.0
  %6038 = vmatpush1.msra.mxu0 0.0
  %6039 = vmatprep.subr.mxu0 0.0
  %6040 = vmatpush1.msra.mxu0 0.0
  %6041 = vmatprep.mubr.f32.mxu0 0.0
  %6042 = vmatmul.mubr.f32.gmra.mrb[0].mxu0 %v5833
  %v6043 = vpop.f32.mrb[0].mxu0
  %v6044 = vadd.f32 0.0, %v6043
  %v6045 = vpop.f32.mrb[0].mxu0
  %6046 = vdwg.mxu0
  %v6047 = vadd.f32 %v5810, %v5902
  %v6048 = vadd.f32 %v5811, %v5904
  %v6049 = vadd.f32 %v5812, %v5973
  %v6050 = vadd.f32 %v5813, %v5975
  %v6051 = vadd.f32 %v5814, %v6044
  %6052 = vrot.lane.b32.xlu0 %v5816, 120
  %v6053 = vpop.permute.xlu0 %6052
  %v6054 = vsel %vm102, %v6053, 0
  %6056 = vmatprep.subr.mxu0 %v589
  %6057 = vmatpush1.msra.mxu0 %v586
  %6058 = vmatprep.subr.mxu0 0.0
  %6059 = vmatpush1.msra.mxu0 0.0
  %6060 = vmatprep.subr.mxu0 0.0
  %6061 = vmatpush1.msra.mxu0 0.0
  %6062 = vmatprep.subr.mxu0 0.0
  %6063 = vmatpush1.msra.mxu0 0.0
  %6064 = vmatprep.subr.mxu0 0.0
  %6065 = vmatpush1.msra.mxu0 0.0
  %6066 = vmatprep.subr.mxu0 0.0
  %6067 = vmatpush1.msra.mxu0 0.0
  %6068 = vmatprep.subr.mxu0 0.0
  %6069 = vmatpush1.msra.mxu0 0.0
  %6070 = vmatprep.subr.mxu0 0.0
  %6071 = vmatpush1.msra.mxu0 0.0
  %6072 = vmatprep.subr.mxu0 0.0
  %6073 = vmatpush1.msra.mxu0 0.0
  %6074 = vmatprep.subr.mxu0 0.0
  %6075 = vmatpush1.msra.mxu0 0.0
  %6076 = vmatprep.subr.mxu0 0.0
  %6077 = vmatpush1.msra.mxu0 0.0
  %6078 = vmatprep.subr.mxu0 0.0
  %6079 = vmatpush1.msra.mxu0 0.0
  %6080 = vmatprep.subr.mxu0 0.0
  %6081 = vmatpush1.msra.mxu0 0.0
  %6082 = vmatprep.subr.mxu0 0.0
  %6083 = vmatpush1.msra.mxu0 0.0
  %6084 = vmatprep.subr.mxu0 0.0
  %6085 = vmatpush1.msra.mxu0 0.0
  %6086 = vmatprep.subr.mxu0 0.0
  %6087 = vmatpush1.msra.mxu0 0.0
  %6088 = vmatprep.subr.mxu0 0.0
  %6089 = vmatpush1.msra.mxu0 0.0
  %6090 = vmatprep.subr.mxu0 0.0
  %6091 = vmatpush1.msra.mxu0 0.0
  %6092 = vmatprep.subr.mxu0 0.0
  %6093 = vmatpush1.msra.mxu0 0.0
  %6094 = vmatprep.subr.mxu0 0.0
  %6095 = vmatpush1.msra.mxu0 0.0
  %6096 = vmatprep.subr.mxu0 0.0
  %6097 = vmatpush1.msra.mxu0 0.0
  %6098 = vmatprep.subr.mxu0 0.0
  %6099 = vmatpush1.msra.mxu0 0.0
  %6100 = vmatprep.subr.mxu0 0.0
  %6101 = vmatpush1.msra.mxu0 0.0
  %6102 = vmatprep.subr.mxu0 0.0
  %6103 = vmatpush1.msra.mxu0 0.0
  %6104 = vmatprep.subr.mxu0 0.0
  %6105 = vmatpush1.msra.mxu0 0.0
  %6106 = vmatprep.subr.mxu0 0.0
  %6107 = vmatpush1.msra.mxu0 0.0
  %6108 = vmatprep.subr.mxu0 0.0
  %6109 = vmatpush1.msra.mxu0 0.0
  %6110 = vmatprep.subr.mxu0 0.0
  %6111 = vmatpush1.msra.mxu0 0.0
  %6112 = vmatprep.subr.mxu0 0.0
  %6113 = vmatpush1.msra.mxu0 0.0
  %6114 = vmatprep.subr.mxu0 0.0
  %6115 = vmatpush1.msra.mxu0 0.0
  %6116 = vmatprep.subr.mxu0 0.0
  %6117 = vmatpush1.msra.mxu0 0.0
  %6118 = vmatprep.subr.mxu0 0.0
  %6119 = vmatpush1.msra.mxu0 0.0
  %6120 = vmatprep.mubr.f32.mxu0 0.0
  %6121 = vmatmul.mubr.f32.gmra.mrb[0].mxu0 %v6054
  %v6122 = vpop.f32.mrb[0].mxu0
  %v6123 = vadd.f32 0.0, %v6122
  %v6124 = vpop.f32.mrb[0].mxu0
  %v6125 = vadd.f32 0.0, %v6124
  %6126 = vdwg.mxu0
  %6127 = vmatprep.subr.mxu0 %v595
  %6128 = vmatpush1.msra.mxu0 %v592
  %6129 = vmatprep.subr.mxu0 0.0
  %6130 = vmatpush1.msra.mxu0 0.0
  %6131 = vmatprep.subr.mxu0 0.0
  %6132 = vmatpush1.msra.mxu0 0.0
  %6133 = vmatprep.subr.mxu0 0.0
  %6134 = vmatpush1.msra.mxu0 0.0
  %6135 = vmatprep.subr.mxu0 0.0
  %6136 = vmatpush1.msra.mxu0 0.0
  %6137 = vmatprep.subr.mxu0 0.0
  %6138 = vmatpush1.msra.mxu0 0.0
  %6139 = vmatprep.subr.mxu0 0.0
  %6140 = vmatpush1.msra.mxu0 0.0
  %6141 = vmatprep.subr.mxu0 0.0
  %6142 = vmatpush1.msra.mxu0 0.0
  %6143 = vmatprep.subr.mxu0 0.0
  %6144 = vmatpush1.msra.mxu0 0.0
  %6145 = vmatprep.subr.mxu0 0.0
  %6146 = vmatpush1.msra.mxu0 0.0
  %6147 = vmatprep.subr.mxu0 0.0
  %6148 = vmatpush1.msra.mxu0 0.0
  %6149 = vmatprep.subr.mxu0 0.0
  %6150 = vmatpush1.msra.mxu0 0.0
  %6151 = vmatprep.subr.mxu0 0.0
  %6152 = vmatpush1.msra.mxu0 0.0
  %6153 = vmatprep.subr.mxu0 0.0
  %6154 = vmatpush1.msra.mxu0 0.0
  %6155 = vmatprep.subr.mxu0 0.0
  %6156 = vmatpush1.msra.mxu0 0.0
  %6157 = vmatprep.subr.mxu0 0.0
  %6158 = vmatpush1.msra.mxu0 0.0
  %6159 = vmatprep.subr.mxu0 0.0
  %6160 = vmatpush1.msra.mxu0 0.0
  %6161 = vmatprep.subr.mxu0 0.0
  %6162 = vmatpush1.msra.mxu0 0.0
  %6163 = vmatprep.subr.mxu0 0.0
  %6164 = vmatpush1.msra.mxu0 0.0
  %6165 = vmatprep.subr.mxu0 0.0
  %6166 = vmatpush1.msra.mxu0 0.0
  %6167 = vmatprep.subr.mxu0 0.0
  %6168 = vmatpush1.msra.mxu0 0.0
  %6169 = vmatprep.subr.mxu0 0.0
  %6170 = vmatpush1.msra.mxu0 0.0
  %6171 = vmatprep.subr.mxu0 0.0
  %6172 = vmatpush1.msra.mxu0 0.0
  %6173 = vmatprep.subr.mxu0 0.0
  %6174 = vmatpush1.msra.mxu0 0.0
  %6175 = vmatprep.subr.mxu0 0.0
  %6176 = vmatpush1.msra.mxu0 0.0
  %6177 = vmatprep.subr.mxu0 0.0
  %6178 = vmatpush1.msra.mxu0 0.0
  %6179 = vmatprep.subr.mxu0 0.0
  %6180 = vmatpush1.msra.mxu0 0.0
  %6181 = vmatprep.subr.mxu0 0.0
  %6182 = vmatpush1.msra.mxu0 0.0
  %6183 = vmatprep.subr.mxu0 0.0
  %6184 = vmatpush1.msra.mxu0 0.0
  %6185 = vmatprep.subr.mxu0 0.0
  %6186 = vmatpush1.msra.mxu0 0.0
  %6187 = vmatprep.subr.mxu0 0.0
  %6188 = vmatpush1.msra.mxu0 0.0
  %6189 = vmatprep.subr.mxu0 0.0
  %6190 = vmatpush1.msra.mxu0 0.0
  %6191 = vmatprep.mubr.f32.mxu0 0.0
  %6192 = vmatmul.mubr.f32.gmra.mrb[0].mxu0 %v6054
  %v6193 = vpop.f32.mrb[0].mxu0
  %v6194 = vadd.f32 0.0, %v6193
  %v6195 = vpop.f32.mrb[0].mxu0
  %v6196 = vadd.f32 0.0, %v6195
  %6197 = vdwg.mxu0
  %6198 = vmatprep.subr.mxu0 0.0
  %6199 = vmatpush1.msra.mxu0 %v598
  %6200 = vmatprep.subr.mxu0 0.0
  %6201 = vmatpush1.msra.mxu0 0.0
  %6202 = vmatprep.subr.mxu0 0.0
  %6203 = vmatpush1.msra.mxu0 0.0
  %6204 = vmatprep.subr.mxu0 0.0
  %6205 = vmatpush1.msra.mxu0 0.0
  %6206 = vmatprep.subr.mxu0 0.0
  %6207 = vmatpush1.msra.mxu0 0.0
  %6208 = vmatprep.subr.mxu0 0.0
  %6209 = vmatpush1.msra.mxu0 0.0
  %6210 = vmatprep.subr.mxu0 0.0
  %6211 = vmatpush1.msra.mxu0 0.0
  %6212 = vmatprep.subr.mxu0 0.0
  %6213 = vmatpush1.msra.mxu0 0.0
  %6214 = vmatprep.subr.mxu0 0.0
  %6215 = vmatpush1.msra.mxu0 0.0
  %6216 = vmatprep.subr.mxu0 0.0
  %6217 = vmatpush1.msra.mxu0 0.0
  %6218 = vmatprep.subr.mxu0 0.0
  %6219 = vmatpush1.msra.mxu0 0.0
  %6220 = vmatprep.subr.mxu0 0.0
  %6221 = vmatpush1.msra.mxu0 0.0
  %6222 = vmatprep.subr.mxu0 0.0
  %6223 = vmatpush1.msra.mxu0 0.0
  %6224 = vmatprep.subr.mxu0 0.0
  %6225 = vmatpush1.msra.mxu0 0.0
  %6226 = vmatprep.subr.mxu0 0.0
  %6227 = vmatpush1.msra.mxu0 0.0
  %6228 = vmatprep.subr.mxu0 0.0
  %6229 = vmatpush1.msra.mxu0 0.0
  %6230 = vmatprep.subr.mxu0 0.0
  %6231 = vmatpush1.msra.mxu0 0.0
  %6232 = vmatprep.subr.mxu0 0.0
  %6233 = vmatpush1.msra.mxu0 0.0
  %6234 = vmatprep.subr.mxu0 0.0
  %6235 = vmatpush1.msra.mxu0 0.0
  %6236 = vmatprep.subr.mxu0 0.0
  %6237 = vmatpush1.msra.mxu0 0.0
  %6238 = vmatprep.subr.mxu0 0.0
  %6239 = vmatpush1.msra.mxu0 0.0
  %6240 = vmatprep.subr.mxu0 0.0
  %6241 = vmatpush1.msra.mxu0 0.0
  %6242 = vmatprep.subr.mxu0 0.0
  %6243 = vmatpush1.msra.mxu0 0.0
  %6244 = vmatprep.subr.mxu0 0.0
  %6245 = vmatpush1.msra.mxu0 0.0
  %6246 = vmatprep.subr.mxu0 0.0
  %6247 = vmatpush1.msra.mxu0 0.0
  %6248 = vmatprep.subr.mxu0 0.0
  %6249 = vmatpush1.msra.mxu0 0.0
  %6250 = vmatprep.subr.mxu0 0.0
  %6251 = vmatpush1.msra.mxu0 0.0
  %6252 = vmatprep.subr.mxu0 0.0
  %6253 = vmatpush1.msra.mxu0 0.0
  %6254 = vmatprep.subr.mxu0 0.0
  %6255 = vmatpush1.msra.mxu0 0.0
  %6256 = vmatprep.subr.mxu0 0.0
  %6257 = vmatpush1.msra.mxu0 0.0
  %6258 = vmatprep.subr.mxu0 0.0
  %6259 = vmatpush1.msra.mxu0 0.0
  %6260 = vmatprep.subr.mxu0 0.0
  %6261 = vmatpush1.msra.mxu0 0.0
  %6262 = vmatprep.mubr.f32.mxu0 0.0
  %6263 = vmatmul.mubr.f32.gmra.mrb[0].mxu0 %v6054
  %v6264 = vpop.f32.mrb[0].mxu0
  %v6265 = vadd.f32 0.0, %v6264
  %v6266 = vpop.f32.mrb[0].mxu0
  %6267 = vdwg.mxu0
  %v6268 = vadd.f32 %v6047, %v6123
  %v6269 = vadd.f32 %v6048, %v6125
  %v6270 = vadd.f32 %v6049, %v6194
  %v6271 = vadd.f32 %v6050, %v6196
  %v6272 = vadd.f32 %v6051, %v6265
  %6273 = vrot.lane.b32.xlu0 %v4666, 12
  %v6274 = vpop.permute.xlu0 %6273
  %6275 = vrot.lane.b32.xlu0 %v4668, 12
  %v6276 = vpop.permute.xlu0 %6275
  %6277 = vrot.lane.b32.xlu0 %v4737, 12
  %v6278 = vpop.permute.xlu0 %6277
  %6279 = vrot.lane.b32.xlu0 %v4739, 12
  %v6280 = vpop.permute.xlu0 %6279
  %6281 = vrot.lane.b32.xlu0 %v4808, 12
  %v6282 = vpop.permute.xlu0 %6281
  %v6283 = vsel %vm576, %v6280, %v6282
  %v6284 = vsel %vm576, %v6278, %v6280
  %v6285 = vsel %vm576, %v6276, %v6278
  %v6286 = vsel %vm576, %v6274, %v6276
  %v6287 = vsel %vm576, %v6282, %v6274
  %6288 = vset.pattern.permute.xlu0 10
  %6289 = vperm.xlu0 %6288, %v5816
  %v6290 = vpop.permute.xlu0 %6289
  %v6292 = vlaneseq
  %v6293 = vshrl.u32 %v6292, 7
  %v6294 = vsub.s32 0, %v6293
  %v6295 = vrot.slane %v6287, %v6294
  %v6296 = vlaneseq
  %v6297 = vshrl.u32 %v6296, 7
  %v6298 = vsub.s32 0, %v6297
  %v6299 = vrot.slane %v6286, %v6298
  %v6300 = vlaneseq
  %v6301 = vshrl.u32 %v6300, 7
  %v6302 = vsub.s32 0, %v6301
  %v6303 = vrot.slane %v6285, %v6302
  %v6304 = vlaneseq
  %v6305 = vshrl.u32 %v6304, 7
  %v6306 = vsub.s32 0, %v6305
  %v6307 = vrot.slane %v6284, %v6306
  %v6308 = vlaneseq
  %v6309 = vshrl.u32 %v6308, 7
  %v6310 = vsub.s32 0, %v6309
  %v6311 = vrot.slane %v6283, %v6310
  %v6312 = vmul.f32 %v6290, %v6295
  %v6313 = vmul.f32 %v6290, %v6299
  %v6314 = vmul.f32 %v6290, %v6303
  %v6315 = vmul.f32 %v6290, %v6307
  %v6316 = vmul.f32 %v6290, %v6311
  %v6317 = vadd.f32 %v6268, %v6312
  %v6318 = vadd.f32 %v6269, %v6313
  %v6319 = vadd.f32 %v6270, %v6314
  %v6320 = vadd.f32 %v6271, %v6315
  %v6321 = vadd.f32 %v6272, %v6316
  %s6322 = scalar_lea.vmem %s4, 168
  %v6323 = vld [vmem:[%s6322] sm:$0xff]
  %6324 = vrot.lane.b32.xlu0 %v4507, 1
  %v6325 = vpop.permute.xlu0 %6324
  %6326 = vrot.lane.b32.xlu0 %v4508, 1
  %v6327 = vpop.permute.xlu0 %6326
  %6328 = vrot.lane.b32.xlu0 %v4509, 1
  %v6329 = vpop.permute.xlu0 %6328
  %6330 = vrot.lane.b32.xlu0 %v4510, 1
  %v6331 = vpop.permute.xlu0 %6330
  %6332 = vrot.lane.b32.xlu0 %v4511, 1
  %v6333 = vpop.permute.xlu0 %6332
  %v6334 = vsel %vm829, %v6331, %v6333
  %v6335 = vsel %vm829, %v6329, %v6331
  %v6336 = vsel %vm829, %v6327, %v6329
  %v6337 = vsel %vm829, %v6325, %v6327
  %v6338 = vsel %vm829, %v6333, %v6325
  %v6340 = vsel %vm2405, %v6323, 0
  %6342 = vmatprep.subr.mxu0 %v6337
  %6343 = vmatpush1.msra.mxu0 %v6338
  %6344 = vmatprep.subr.mxu0 0.0
  %6345 = vmatpush1.msra.mxu0 0.0
  %6346 = vmatprep.subr.mxu0 0.0
  %6347 = vmatpush1.msra.mxu0 0.0
  %6348 = vmatprep.subr.mxu0 0.0
  %6349 = vmatpush1.msra.mxu0 0.0
  %6350 = vmatprep.subr.mxu0 0.0
  %6351 = vmatpush1.msra.mxu0 0.0
  %6352 = vmatprep.subr.mxu0 0.0
  %6353 = vmatpush1.msra.mxu0 0.0
  %6354 = vmatprep.subr.mxu0 0.0
  %6355 = vmatpush1.msra.mxu0 0.0
  %6356 = vmatprep.subr.mxu0 0.0
  %6357 = vmatpush1.msra.mxu0 0.0
  %6358 = vmatprep.subr.mxu0 0.0
  %6359 = vmatpush1.msra.mxu0 0.0
  %6360 = vmatprep.subr.mxu0 0.0
  %6361 = vmatpush1.msra.mxu0 0.0
  %6362 = vmatprep.subr.mxu0 0.0
  %6363 = vmatpush1.msra.mxu0 0.0
  %6364 = vmatprep.subr.mxu0 0.0
  %6365 = vmatpush1.msra.mxu0 0.0
  %6366 = vmatprep.subr.mxu0 0.0
  %6367 = vmatpush1.msra.mxu0 0.0
  %6368 = vmatprep.subr.mxu0 0.0
  %6369 = vmatpush1.msra.mxu0 0.0
  %6370 = vmatprep.subr.mxu0 0.0
  %6371 = vmatpush1.msra.mxu0 0.0
  %6372 = vmatprep.subr.mxu0 0.0
  %6373 = vmatpush1.msra.mxu0 0.0
  %6374 = vmatprep.subr.mxu0 0.0
  %6375 = vmatpush1.msra.mxu0 0.0
  %6376 = vmatprep.subr.mxu0 0.0
  %6377 = vmatpush1.msra.mxu0 0.0
  %6378 = vmatprep.subr.mxu0 0.0
  %6379 = vmatpush1.msra.mxu0 0.0
  %6380 = vmatprep.subr.mxu0 0.0
  %6381 = vmatpush1.msra.mxu0 0.0
  %6382 = vmatprep.subr.mxu0 0.0
  %6383 = vmatpush1.msra.mxu0 0.0
  %6384 = vmatprep.subr.mxu0 0.0
  %6385 = vmatpush1.msra.mxu0 0.0
  %6386 = vmatprep.subr.mxu0 0.0
  %6387 = vmatpush1.msra.mxu0 0.0
  %6388 = vmatprep.subr.mxu0 0.0
  %6389 = vmatpush1.msra.mxu0 0.0
  %6390 = vmatprep.subr.mxu0 0.0
  %6391 = vmatpush1.msra.mxu0 0.0
  %6392 = vmatprep.subr.mxu0 0.0
  %6393 = vmatpush1.msra.mxu0 0.0
  %6394 = vmatprep.subr.mxu0 0.0
  %6395 = vmatpush1.msra.mxu0 0.0
  %6396 = vmatprep.subr.mxu0 0.0
  %6397 = vmatpush1.msra.mxu0 0.0
  %6398 = vmatprep.subr.mxu0 0.0
  %6399 = vmatpush1.msra.mxu0 0.0
  %6400 = vmatprep.subr.mxu0 0.0
  %6401 = vmatpush1.msra.mxu0 0.0
  %6402 = vmatprep.subr.mxu0 0.0
  %6403 = vmatpush1.msra.mxu0 0.0
  %6404 = vmatprep.subr.mxu0 0.0
  %6405 = vmatpush1.msra.mxu0 0.0
  %6406 = vmatprep.mubr.f32.mxu0 0.0
  %6407 = vmatmul.mubr.f32.gmra.mrb[0].mxu0 %v6340
  %v6408 = vpop.f32.mrb[0].mxu0
  %v6409 = vadd.f32 0.0, %v6408
  %v6410 = vpop.f32.mrb[0].mxu0
  %v6411 = vadd.f32 0.0, %v6410
  %6412 = vdwg.mxu0
  %6413 = vmatprep.subr.mxu0 %v6335
  %6414 = vmatpush1.msra.mxu0 %v6336
  %6415 = vmatprep.subr.mxu0 0.0
  %6416 = vmatpush1.msra.mxu0 0.0
  %6417 = vmatprep.subr.mxu0 0.0
  %6418 = vmatpush1.msra.mxu0 0.0
  %6419 = vmatprep.subr.mxu0 0.0
  %6420 = vmatpush1.msra.mxu0 0.0
  %6421 = vmatprep.subr.mxu0 0.0
  %6422 = vmatpush1.msra.mxu0 0.0
  %6423 = vmatprep.subr.mxu0 0.0
  %6424 = vmatpush1.msra.mxu0 0.0
  %6425 = vmatprep.subr.mxu0 0.0
  %6426 = vmatpush1.msra.mxu0 0.0
  %6427 = vmatprep.subr.mxu0 0.0
  %6428 = vmatpush1.msra.mxu0 0.0
  %6429 = vmatprep.subr.mxu0 0.0
  %6430 = vmatpush1.msra.mxu0 0.0
  %6431 = vmatprep.subr.mxu0 0.0
  %6432 = vmatpush1.msra.mxu0 0.0
  %6433 = vmatprep.subr.mxu0 0.0
  %6434 = vmatpush1.msra.mxu0 0.0
  %6435 = vmatprep.subr.mxu0 0.0
  %6436 = vmatpush1.msra.mxu0 0.0
  %6437 = vmatprep.subr.mxu0 0.0
  %6438 = vmatpush1.msra.mxu0 0.0
  %6439 = vmatprep.subr.mxu0 0.0
  %6440 = vmatpush1.msra.mxu0 0.0
  %6441 = vmatprep.subr.mxu0 0.0
  %6442 = vmatpush1.msra.mxu0 0.0
  %6443 = vmatprep.subr.mxu0 0.0
  %6444 = vmatpush1.msra.mxu0 0.0
  %6445 = vmatprep.subr.mxu0 0.0
  %6446 = vmatpush1.msra.mxu0 0.0
  %6447 = vmatprep.subr.mxu0 0.0
  %6448 = vmatpush1.msra.mxu0 0.0
  %6449 = vmatprep.subr.mxu0 0.0
  %6450 = vmatpush1.msra.mxu0 0.0
  %6451 = vmatprep.subr.mxu0 0.0
  %6452 = vmatpush1.msra.mxu0 0.0
  %6453 = vmatprep.subr.mxu0 0.0
  %6454 = vmatpush1.msra.mxu0 0.0
  %6455 = vmatprep.subr.mxu0 0.0
  %6456 = vmatpush1.msra.mxu0 0.0
  %6457 = vmatprep.subr.mxu0 0.0
  %6458 = vmatpush1.msra.mxu0 0.0
  %6459 = vmatprep.subr.mxu0 0.0
  %6460 = vmatpush1.msra.mxu0 0.0
  %6461 = vmatprep.subr.mxu0 0.0
  %6462 = vmatpush1.msra.mxu0 0.0
  %6463 = vmatprep.subr.mxu0 0.0
  %6464 = vmatpush1.msra.mxu0 0.0
  %6465 = vmatprep.subr.mxu0 0.0
  %6466 = vmatpush1.msra.mxu0 0.0
  %6467 = vmatprep.subr.mxu0 0.0
  %6468 = vmatpush1.msra.mxu0 0.0
  %6469 = vmatprep.subr.mxu0 0.0
  %6470 = vmatpush1.msra.mxu0 0.0
  %6471 = vmatprep.subr.mxu0 0.0
  %6472 = vmatpush1.msra.mxu0 0.0
  %6473 = vmatprep.subr.mxu0 0.0
  %6474 = vmatpush1.msra.mxu0 0.0
  %6475 = vmatprep.subr.mxu0 0.0
  %6476 = vmatpush1.msra.mxu0 0.0
  %6477 = vmatprep.mubr.f32.mxu0 0.0
  %6478 = vmatmul.mubr.f32.gmra.mrb[0].mxu0 %v6340
  %v6479 = vpop.f32.mrb[0].mxu0
  %v6480 = vadd.f32 0.0, %v6479
  %v6481 = vpop.f32.mrb[0].mxu0
  %v6482 = vadd.f32 0.0, %v6481
  %6483 = vdwg.mxu0
  %6484 = vmatprep.subr.mxu0 0.0
  %6485 = vmatpush1.msra.mxu0 %v6334
  %6486 = vmatprep.subr.mxu0 0.0
  %6487 = vmatpush1.msra.mxu0 0.0
  %6488 = vmatprep.subr.mxu0 0.0
  %6489 = vmatpush1.msra.mxu0 0.0
  %6490 = vmatprep.subr.mxu0 0.0
  %6491 = vmatpush1.msra.mxu0 0.0
  %6492 = vmatprep.subr.mxu0 0.0
  %6493 = vmatpush1.msra.mxu0 0.0
  %6494 = vmatprep.subr.mxu0 0.0
  %6495 = vmatpush1.msra.mxu0 0.0
  %6496 = vmatprep.subr.mxu0 0.0
  %6497 = vmatpush1.msra.mxu0 0.0
  %6498 = vmatprep.subr.mxu0 0.0
  %6499 = vmatpush1.msra.mxu0 0.0
  %6500 = vmatprep.subr.mxu0 0.0
  %6501 = vmatpush1.msra.mxu0 0.0
  %6502 = vmatprep.subr.mxu0 0.0
  %6503 = vmatpush1.msra.mxu0 0.0
  %6504 = vmatprep.subr.mxu0 0.0
  %6505 = vmatpush1.msra.mxu0 0.0
  %6506 = vmatprep.subr.mxu0 0.0
  %6507 = vmatpush1.msra.mxu0 0.0
  %6508 = vmatprep.subr.mxu0 0.0
  %6509 = vmatpush1.msra.mxu0 0.0
  %6510 = vmatprep.subr.mxu0 0.0
  %6511 = vmatpush1.msra.mxu0 0.0
  %6512 = vmatprep.subr.mxu0 0.0
  %6513 = vmatpush1.msra.mxu0 0.0
  %6514 = vmatprep.subr.mxu0 0.0
  %6515 = vmatpush1.msra.mxu0 0.0
  %6516 = vmatprep.subr.mxu0 0.0
  %6517 = vmatpush1.msra.mxu0 0.0
  %6518 = vmatprep.subr.mxu0 0.0
  %6519 = vmatpush1.msra.mxu0 0.0
  %6520 = vmatprep.subr.mxu0 0.0
  %6521 = vmatpush1.msra.mxu0 0.0
  %6522 = vmatprep.subr.mxu0 0.0
  %6523 = vmatpush1.msra.mxu0 0.0
  %6524 = vmatprep.subr.mxu0 0.0
  %6525 = vmatpush1.msra.mxu0 0.0
  %6526 = vmatprep.subr.mxu0 0.0
  %6527 = vmatpush1.msra.mxu0 0.0
  %6528 = vmatprep.subr.mxu0 0.0
  %6529 = vmatpush1.msra.mxu0 0.0
  %6530 = vmatprep.subr.mxu0 0.0
  %6531 = vmatpush1.msra.mxu0 0.0
  %6532 = vmatprep.subr.mxu0 0.0
  %6533 = vmatpush1.msra.mxu0 0.0
  %6534 = vmatprep.subr.mxu0 0.0
  %6535 = vmatpush1.msra.mxu0 0.0
  %6536 = vmatprep.subr.mxu0 0.0
  %6537 = vmatpush1.msra.mxu0 0.0
  %6538 = vmatprep.subr.mxu0 0.0
  %6539 = vmatpush1.msra.mxu0 0.0
  %6540 = vmatprep.subr.mxu0 0.0
  %6541 = vmatpush1.msra.mxu0 0.0
  %6542 = vmatprep.subr.mxu0 0.0
  %6543 = vmatpush1.msra.mxu0 0.0
  %6544 = vmatprep.subr.mxu0 0.0
  %6545 = vmatpush1.msra.mxu0 0.0
  %6546 = vmatprep.subr.mxu0 0.0
  %6547 = vmatpush1.msra.mxu0 0.0
  %6548 = vmatprep.mubr.f32.mxu0 0.0
  %6549 = vmatmul.mubr.f32.gmra.mrb[0].mxu0 %v6340
  %v6550 = vpop.f32.mrb[0].mxu0
  %v6551 = vadd.f32 0.0, %v6550
  %v6552 = vpop.f32.mrb[0].mxu0
  %6553 = vdwg.mxu0
  %v6554 = vadd.f32 %v6317, %v6409
  %v6555 = vadd.f32 %v6318, %v6411
  %v6556 = vadd.f32 %v6319, %v6480
  %v6557 = vadd.f32 %v6320, %v6482
  %v6558 = vadd.f32 %v6321, %v6551
  %6559 = vrot.lane.b32.xlu0 %v6323, 120
  %v6560 = vpop.permute.xlu0 %6559
  %v6561 = vsel %vm102, %v6560, 0
  %6563 = vmatprep.subr.mxu0 %v842
  %6564 = vmatpush1.msra.mxu0 %v839
  %6565 = vmatprep.subr.mxu0 0.0
  %6566 = vmatpush1.msra.mxu0 0.0
  %6567 = vmatprep.subr.mxu0 0.0
  %6568 = vmatpush1.msra.mxu0 0.0
  %6569 = vmatprep.subr.mxu0 0.0
  %6570 = vmatpush1.msra.mxu0 0.0
  %6571 = vmatprep.subr.mxu0 0.0
  %6572 = vmatpush1.msra.mxu0 0.0
  %6573 = vmatprep.subr.mxu0 0.0
  %6574 = vmatpush1.msra.mxu0 0.0
  %6575 = vmatprep.subr.mxu0 0.0
  %6576 = vmatpush1.msra.mxu0 0.0
  %6577 = vmatprep.subr.mxu0 0.0
  %6578 = vmatpush1.msra.mxu0 0.0
  %6579 = vmatprep.subr.mxu0 0.0
  %6580 = vmatpush1.msra.mxu0 0.0
  %6581 = vmatprep.subr.mxu0 0.0
  %6582 = vmatpush1.msra.mxu0 0.0
  %6583 = vmatprep.subr.mxu0 0.0
  %6584 = vmatpush1.msra.mxu0 0.0
  %6585 = vmatprep.subr.mxu0 0.0
  %6586 = vmatpush1.msra.mxu0 0.0
  %6587 = vmatprep.subr.mxu0 0.0
  %6588 = vmatpush1.msra.mxu0 0.0
  %6589 = vmatprep.subr.mxu0 0.0
  %6590 = vmatpush1.msra.mxu0 0.0
  %6591 = vmatprep.subr.mxu0 0.0
  %6592 = vmatpush1.msra.mxu0 0.0
  %6593 = vmatprep.subr.mxu0 0.0
  %6594 = vmatpush1.msra.mxu0 0.0
  %6595 = vmatprep.subr.mxu0 0.0
  %6596 = vmatpush1.msra.mxu0 0.0
  %6597 = vmatprep.subr.mxu0 0.0
  %6598 = vmatpush1.msra.mxu0 0.0
  %6599 = vmatprep.subr.mxu0 0.0
  %6600 = vmatpush1.msra.mxu0 0.0
  %6601 = vmatprep.subr.mxu0 0.0
  %6602 = vmatpush1.msra.mxu0 0.0
  %6603 = vmatprep.subr.mxu0 0.0
  %6604 = vmatpush1.msra.mxu0 0.0
  %6605 = vmatprep.subr.mxu0 0.0
  %6606 = vmatpush1.msra.mxu0 0.0
  %6607 = vmatprep.subr.mxu0 0.0
  %6608 = vmatpush1.msra.mxu0 0.0
  %6609 = vmatprep.subr.mxu0 0.0
  %6610 = vmatpush1.msra.mxu0 0.0
  %6611 = vmatprep.subr.mxu0 0.0
  %6612 = vmatpush1.msra.mxu0 0.0
  %6613 = vmatprep.subr.mxu0 0.0
  %6614 = vmatpush1.msra.mxu0 0.0
  %6615 = vmatprep.subr.mxu0 0.0
  %6616 = vmatpush1.msra.mxu0 0.0
  %6617 = vmatprep.subr.mxu0 0.0
  %6618 = vmatpush1.msra.mxu0 0.0
  %6619 = vmatprep.subr.mxu0 0.0
  %6620 = vmatpush1.msra.mxu0 0.0
  %6621 = vmatprep.subr.mxu0 0.0
  %6622 = vmatpush1.msra.mxu0 0.0
  %6623 = vmatprep.subr.mxu0 0.0
  %6624 = vmatpush1.msra.mxu0 0.0
  %6625 = vmatprep.subr.mxu0 0.0
  %6626 = vmatpush1.msra.mxu0 0.0
  %6627 = vmatprep.mubr.f32.mxu0 0.0
  %6628 = vmatmul.mubr.f32.gmra.mrb[0].mxu0 %v6561
  %v6629 = vpop.f32.mrb[0].mxu0
  %v6630 = vadd.f32 0.0, %v6629
  %v6631 = vpop.f32.mrb[0].mxu0
  %v6632 = vadd.f32 0.0, %v6631
  %6633 = vdwg.mxu0
  %6634 = vmatprep.subr.mxu0 %v848
  %6635 = vmatpush1.msra.mxu0 %v845
  %6636 = vmatprep.subr.mxu0 0.0
  %6637 = vmatpush1.msra.mxu0 0.0
  %6638 = vmatprep.subr.mxu0 0.0
  %6639 = vmatpush1.msra.mxu0 0.0
  %6640 = vmatprep.subr.mxu0 0.0
  %6641 = vmatpush1.msra.mxu0 0.0
  %6642 = vmatprep.subr.mxu0 0.0
  %6643 = vmatpush1.msra.mxu0 0.0
  %6644 = vmatprep.subr.mxu0 0.0
  %6645 = vmatpush1.msra.mxu0 0.0
  %6646 = vmatprep.subr.mxu0 0.0
  %6647 = vmatpush1.msra.mxu0 0.0
  %6648 = vmatprep.subr.mxu0 0.0
  %6649 = vmatpush1.msra.mxu0 0.0
  %6650 = vmatprep.subr.mxu0 0.0
  %6651 = vmatpush1.msra.mxu0 0.0
  %6652 = vmatprep.subr.mxu0 0.0
  %6653 = vmatpush1.msra.mxu0 0.0
  %6654 = vmatprep.subr.mxu0 0.0
  %6655 = vmatpush1.msra.mxu0 0.0
  %6656 = vmatprep.subr.mxu0 0.0
  %6657 = vmatpush1.msra.mxu0 0.0
  %6658 = vmatprep.subr.mxu0 0.0
  %6659 = vmatpush1.msra.mxu0 0.0
  %6660 = vmatprep.subr.mxu0 0.0
  %6661 = vmatpush1.msra.mxu0 0.0
  %6662 = vmatprep.subr.mxu0 0.0
  %6663 = vmatpush1.msra.mxu0 0.0
  %6664 = vmatprep.subr.mxu0 0.0
  %6665 = vmatpush1.msra.mxu0 0.0
  %6666 = vmatprep.subr.mxu0 0.0
  %6667 = vmatpush1.msra.mxu0 0.0
  %6668 = vmatprep.subr.mxu0 0.0
  %6669 = vmatpush1.msra.mxu0 0.0
  %6670 = vmatprep.subr.mxu0 0.0
  %6671 = vmatpush1.msra.mxu0 0.0
  %6672 = vmatprep.subr.mxu0 0.0
  %6673 = vmatpush1.msra.mxu0 0.0
  %6674 = vmatprep.subr.mxu0 0.0
  %6675 = vmatpush1.msra.mxu0 0.0
  %6676 = vmatprep.subr.mxu0 0.0
  %6677 = vmatpush1.msra.mxu0 0.0
  %6678 = vmatprep.subr.mxu0 0.0
  %6679 = vmatpush1.msra.mxu0 0.0
  %6680 = vmatprep.subr.mxu0 0.0
  %6681 = vmatpush1.msra.mxu0 0.0
  %6682 = vmatprep.subr.mxu0 0.0
  %6683 = vmatpush1.msra.mxu0 0.0
  %6684 = vmatprep.subr.mxu0 0.0
  %6685 = vmatpush1.msra.mxu0 0.0
  %6686 = vmatprep.subr.mxu0 0.0
  %6687 = vmatpush1.msra.mxu0 0.0
  %6688 = vmatprep.subr.mxu0 0.0
  %6689 = vmatpush1.msra.mxu0 0.0
  %6690 = vmatprep.subr.mxu0 0.0
  %6691 = vmatpush1.msra.mxu0 0.0
  %6692 = vmatprep.subr.mxu0 0.0
  %6693 = vmatpush1.msra.mxu0 0.0
  %6694 = vmatprep.subr.mxu0 0.0
  %6695 = vmatpush1.msra.mxu0 0.0
  %6696 = vmatprep.subr.mxu0 0.0
  %6697 = vmatpush1.msra.mxu0 0.0
  %6698 = vmatprep.mubr.f32.mxu0 0.0
  %6699 = vmatmul.mubr.f32.gmra.mrb[0].mxu0 %v6561
  %v6700 = vpop.f32.mrb[0].mxu0
  %v6701 = vadd.f32 0.0, %v6700
  %v6702 = vpop.f32.mrb[0].mxu0
  %v6703 = vadd.f32 0.0, %v6702
  %6704 = vdwg.mxu0
  %6705 = vmatprep.subr.mxu0 0.0
  %6706 = vmatpush1.msra.mxu0 %v851
  %6707 = vmatprep.subr.mxu0 0.0
  %6708 = vmatpush1.msra.mxu0 0.0
  %6709 = vmatprep.subr.mxu0 0.0
  %6710 = vmatpush1.msra.mxu0 0.0
  %6711 = vmatprep.subr.mxu0 0.0
  %6712 = vmatpush1.msra.mxu0 0.0
  %6713 = vmatprep.subr.mxu0 0.0
  %6714 = vmatpush1.msra.mxu0 0.0
  %6715 = vmatprep.subr.mxu0 0.0
  %6716 = vmatpush1.msra.mxu0 0.0
  %6717 = vmatprep.subr.mxu0 0.0
  %6718 = vmatpush1.msra.mxu0 0.0
  %6719 = vmatprep.subr.mxu0 0.0
  %6720 = vmatpush1.msra.mxu0 0.0
  %6721 = vmatprep.subr.mxu0 0.0
  %6722 = vmatpush1.msra.mxu0 0.0
  %6723 = vmatprep.subr.mxu0 0.0
  %6724 = vmatpush1.msra.mxu0 0.0
  %6725 = vmatprep.subr.mxu0 0.0
  %6726 = vmatpush1.msra.mxu0 0.0
  %6727 = vmatprep.subr.mxu0 0.0
  %6728 = vmatpush1.msra.mxu0 0.0
  %6729 = vmatprep.subr.mxu0 0.0
  %6730 = vmatpush1.msra.mxu0 0.0
  %6731 = vmatprep.subr.mxu0 0.0
  %6732 = vmatpush1.msra.mxu0 0.0
  %6733 = vmatprep.subr.mxu0 0.0
  %6734 = vmatpush1.msra.mxu0 0.0
  %6735 = vmatprep.subr.mxu0 0.0
  %6736 = vmatpush1.msra.mxu0 0.0
  %6737 = vmatprep.subr.mxu0 0.0
  %6738 = vmatpush1.msra.mxu0 0.0
  %6739 = vmatprep.subr.mxu0 0.0
  %6740 = vmatpush1.msra.mxu0 0.0
  %6741 = vmatprep.subr.mxu0 0.0
  %6742 = vmatpush1.msra.mxu0 0.0
  %6743 = vmatprep.subr.mxu0 0.0
  %6744 = vmatpush1.msra.mxu0 0.0
  %6745 = vmatprep.subr.mxu0 0.0
  %6746 = vmatpush1.msra.mxu0 0.0
  %6747 = vmatprep.subr.mxu0 0.0
  %6748 = vmatpush1.msra.mxu0 0.0
  %6749 = vmatprep.subr.mxu0 0.0
  %6750 = vmatpush1.msra.mxu0 0.0
  %6751 = vmatprep.subr.mxu0 0.0
  %6752 = vmatpush1.msra.mxu0 0.0
  %6753 = vmatprep.subr.mxu0 0.0
  %6754 = vmatpush1.msra.mxu0 0.0
  %6755 = vmatprep.subr.mxu0 0.0
  %6756 = vmatpush1.msra.mxu0 0.0
  %6757 = vmatprep.subr.mxu0 0.0
  %6758 = vmatpush1.msra.mxu0 0.0
  %6759 = vmatprep.subr.mxu0 0.0
  %6760 = vmatpush1.msra.mxu0 0.0
  %6761 = vmatprep.subr.mxu0 0.0
  %6762 = vmatpush1.msra.mxu0 0.0
  %6763 = vmatprep.subr.mxu0 0.0
  %6764 = vmatpush1.msra.mxu0 0.0
  %6765 = vmatprep.subr.mxu0 0.0
  %6766 = vmatpush1.msra.mxu0 0.0
  %6767 = vmatprep.subr.mxu0 0.0
  %6768 = vmatpush1.msra.mxu0 0.0
  %6769 = vmatprep.mubr.f32.mxu0 0.0
  %6770 = vmatmul.mubr.f32.gmra.mrb[0].mxu0 %v6561
  %v6771 = vpop.f32.mrb[0].mxu0
  %v6772 = vadd.f32 0.0, %v6771
  %v6773 = vpop.f32.mrb[0].mxu0
  %6774 = vdwg.mxu0
  %v6775 = vadd.f32 %v6554, %v6630
  %v6776 = vadd.f32 %v6555, %v6632
  %v6777 = vadd.f32 %v6556, %v6701
  %v6778 = vadd.f32 %v6557, %v6703
  %v6779 = vadd.f32 %v6558, %v6772
  %6780 = vrot.lane.b32.xlu0 %v4666, 1
  %v6781 = vpop.permute.xlu0 %6780
  %6782 = vrot.lane.b32.xlu0 %v4668, 1
  %v6783 = vpop.permute.xlu0 %6782
  %6784 = vrot.lane.b32.xlu0 %v4737, 1
  %v6785 = vpop.permute.xlu0 %6784
  %6786 = vrot.lane.b32.xlu0 %v4739, 1
  %v6787 = vpop.permute.xlu0 %6786
  %6788 = vrot.lane.b32.xlu0 %v4808, 1
  %v6789 = vpop.permute.xlu0 %6788
  %v6790 = vsel %vm829, %v6787, %v6789
  %v6791 = vsel %vm829, %v6785, %v6787
  %v6792 = vsel %vm829, %v6783, %v6785
  %v6793 = vsel %vm829, %v6781, %v6783
  %v6794 = vsel %vm829, %v6789, %v6781
  %6795 = vset.pattern.permute.xlu0 10
  %6796 = vperm.xlu0 %6795, %v6323
  %v6797 = vpop.permute.xlu0 %6796
  %v6799 = vlaneseq
  %v6800 = vshrl.u32 %v6799, 7
  %v6801 = vsub.s32 0, %v6800
  %v6802 = vrot.slane %v6794, %v6801
  %v6803 = vlaneseq
  %v6804 = vshrl.u32 %v6803, 7
  %v6805 = vsub.s32 0, %v6804
  %v6806 = vrot.slane %v6793, %v6805
  %v6807 = vlaneseq
  %v6808 = vshrl.u32 %v6807, 7
  %v6809 = vsub.s32 0, %v6808
  %v6810 = vrot.slane %v6792, %v6809
  %v6811 = vlaneseq
  %v6812 = vshrl.u32 %v6811, 7
  %v6813 = vsub.s32 0, %v6812
  %v6814 = vrot.slane %v6791, %v6813
  %v6815 = vlaneseq
  %v6816 = vshrl.u32 %v6815, 7
  %v6817 = vsub.s32 0, %v6816
  %v6818 = vrot.slane %v6790, %v6817
  %v6819 = vmul.f32 %v6797, %v6802
  %v6820 = vmul.f32 %v6797, %v6806
  %v6821 = vmul.f32 %v6797, %v6810
  %v6822 = vmul.f32 %v6797, %v6814
  %v6823 = vmul.f32 %v6797, %v6818
  %v6824 = vadd.f32 %v6775, %v6819
  %v6825 = vadd.f32 %v6776, %v6820
  %v6826 = vadd.f32 %v6777, %v6821
  %v6827 = vadd.f32 %v6778, %v6822
  %v6828 = vadd.f32 %v6779, %v6823
  %s6829 = scalar_lea.vmem %s4, 176
  %v6830 = vld [vmem:[%s6829] sm:$0xff]
  %v6832 = vsel %vm2405, %v6830, 0
  %6834 = vmatprep.subr.mxu0 %v4508
  %6835 = vmatpush1.msra.mxu0 %v4507
  %6836 = vmatprep.subr.mxu0 0.0
  %6837 = vmatpush1.msra.mxu0 0.0
  %6838 = vmatprep.subr.mxu0 0.0
  %6839 = vmatpush1.msra.mxu0 0.0
  %6840 = vmatprep.subr.mxu0 0.0
  %6841 = vmatpush1.msra.mxu0 0.0
  %6842 = vmatprep.subr.mxu0 0.0
  %6843 = vmatpush1.msra.mxu0 0.0
  %6844 = vmatprep.subr.mxu0 0.0
  %6845 = vmatpush1.msra.mxu0 0.0
  %6846 = vmatprep.subr.mxu0 0.0
  %6847 = vmatpush1.msra.mxu0 0.0
  %6848 = vmatprep.subr.mxu0 0.0
  %6849 = vmatpush1.msra.mxu0 0.0
  %6850 = vmatprep.subr.mxu0 0.0
  %6851 = vmatpush1.msra.mxu0 0.0
  %6852 = vmatprep.subr.mxu0 0.0
  %6853 = vmatpush1.msra.mxu0 0.0
  %6854 = vmatprep.subr.mxu0 0.0
  %6855 = vmatpush1.msra.mxu0 0.0
  %6856 = vmatprep.subr.mxu0 0.0
  %6857 = vmatpush1.msra.mxu0 0.0
  %6858 = vmatprep.subr.mxu0 0.0
  %6859 = vmatpush1.msra.mxu0 0.0
  %6860 = vmatprep.subr.mxu0 0.0
  %6861 = vmatpush1.msra.mxu0 0.0
  %6862 = vmatprep.subr.mxu0 0.0
  %6863 = vmatpush1.msra.mxu0 0.0
  %6864 = vmatprep.subr.mxu0 0.0
  %6865 = vmatpush1.msra.mxu0 0.0
  %6866 = vmatprep.subr.mxu0 0.0
  %6867 = vmatpush1.msra.mxu0 0.0
  %6868 = vmatprep.subr.mxu0 0.0
  %6869 = vmatpush1.msra.mxu0 0.0
  %6870 = vmatprep.subr.mxu0 0.0
  %6871 = vmatpush1.msra.mxu0 0.0
  %6872 = vmatprep.subr.mxu0 0.0
  %6873 = vmatpush1.msra.mxu0 0.0
  %6874 = vmatprep.subr.mxu0 0.0
  %6875 = vmatpush1.msra.mxu0 0.0
  %6876 = vmatprep.subr.mxu0 0.0
  %6877 = vmatpush1.msra.mxu0 0.0
  %6878 = vmatprep.subr.mxu0 0.0
  %6879 = vmatpush1.msra.mxu0 0.0
  %6880 = vmatprep.subr.mxu0 0.0
  %6881 = vmatpush1.msra.mxu0 0.0
  %6882 = vmatprep.subr.mxu0 0.0
  %6883 = vmatpush1.msra.mxu0 0.0
  %6884 = vmatprep.subr.mxu0 0.0
  %6885 = vmatpush1.msra.mxu0 0.0
  %6886 = vmatprep.subr.mxu0 0.0
  %6887 = vmatpush1.msra.mxu0 0.0
  %6888 = vmatprep.subr.mxu0 0.0
  %6889 = vmatpush1.msra.mxu0 0.0
  %6890 = vmatprep.subr.mxu0 0.0
  %6891 = vmatpush1.msra.mxu0 0.0
  %6892 = vmatprep.subr.mxu0 0.0
  %6893 = vmatpush1.msra.mxu0 0.0
  %6894 = vmatprep.subr.mxu0 0.0
  %6895 = vmatpush1.msra.mxu0 0.0
  %6896 = vmatprep.subr.mxu0 0.0
  %6897 = vmatpush1.msra.mxu0 0.0
  %6898 = vmatprep.mubr.f32.mxu0 0.0
  %6899 = vmatmul.mubr.f32.gmra.mrb[0].mxu0 %v6832
  %v6900 = vpop.f32.mrb[0].mxu0
  %v6901 = vadd.f32 0.0, %v6900
  %v6902 = vpop.f32.mrb[0].mxu0
  %v6903 = vadd.f32 0.0, %v6902
  %6904 = vdwg.mxu0
  %6905 = vmatprep.subr.mxu0 %v4510
  %6906 = vmatpush1.msra.mxu0 %v4509
  %6907 = vmatprep.subr.mxu0 0.0
  %6908 = vmatpush1.msra.mxu0 0.0
  %6909 = vmatprep.subr.mxu0 0.0
  %6910 = vmatpush1.msra.mxu0 0.0
  %6911 = vmatprep.subr.mxu0 0.0
  %6912 = vmatpush1.msra.mxu0 0.0
  %6913 = vmatprep.subr.mxu0 0.0
  %6914 = vmatpush1.msra.mxu0 0.0
  %6915 = vmatprep.subr.mxu0 0.0
  %6916 = vmatpush1.msra.mxu0 0.0
  %6917 = vmatprep.subr.mxu0 0.0
  %6918 = vmatpush1.msra.mxu0 0.0
  %6919 = vmatprep.subr.mxu0 0.0
  %6920 = vmatpush1.msra.mxu0 0.0
  %6921 = vmatprep.subr.mxu0 0.0
  %6922 = vmatpush1.msra.mxu0 0.0
  %6923 = vmatprep.subr.mxu0 0.0
  %6924 = vmatpush1.msra.mxu0 0.0
  %6925 = vmatprep.subr.mxu0 0.0
  %6926 = vmatpush1.msra.mxu0 0.0
  %6927 = vmatprep.subr.mxu0 0.0
  %6928 = vmatpush1.msra.mxu0 0.0
  %6929 = vmatprep.subr.mxu0 0.0
  %6930 = vmatpush1.msra.mxu0 0.0
  %6931 = vmatprep.subr.mxu0 0.0
  %6932 = vmatpush1.msra.mxu0 0.0
  %6933 = vmatprep.subr.mxu0 0.0
  %6934 = vmatpush1.msra.mxu0 0.0
  %6935 = vmatprep.subr.mxu0 0.0
  %6936 = vmatpush1.msra.mxu0 0.0
  %6937 = vmatprep.subr.mxu0 0.0
  %6938 = vmatpush1.msra.mxu0 0.0
  %6939 = vmatprep.subr.mxu0 0.0
  %6940 = vmatpush1.msra.mxu0 0.0
  %6941 = vmatprep.subr.mxu0 0.0
  %6942 = vmatpush1.msra.mxu0 0.0
  %6943 = vmatprep.subr.mxu0 0.0
  %6944 = vmatpush1.msra.mxu0 0.0
  %6945 = vmatprep.subr.mxu0 0.0
  %6946 = vmatpush1.msra.mxu0 0.0
  %6947 = vmatprep.subr.mxu0 0.0
  %6948 = vmatpush1.msra.mxu0 0.0
  %6949 = vmatprep.subr.mxu0 0.0
  %6950 = vmatpush1.msra.mxu0 0.0
  %6951 = vmatprep.subr.mxu0 0.0
  %6952 = vmatpush1.msra.mxu0 0.0
  %6953 = vmatprep.subr.mxu0 0.0
  %6954 = vmatpush1.msra.mxu0 0.0
  %6955 = vmatprep.subr.mxu0 0.0
  %6956 = vmatpush1.msra.mxu0 0.0
  %6957 = vmatprep.subr.mxu0 0.0
  %6958 = vmatpush1.msra.mxu0 0.0
  %6959 = vmatprep.subr.mxu0 0.0
  %6960 = vmatpush1.msra.mxu0 0.0
  %6961 = vmatprep.subr.mxu0 0.0
  %6962 = vmatpush1.msra.mxu0 0.0
  %6963 = vmatprep.subr.mxu0 0.0
  %6964 = vmatpush1.msra.mxu0 0.0
  %6965 = vmatprep.subr.mxu0 0.0
  %6966 = vmatpush1.msra.mxu0 0.0
  %6967 = vmatprep.subr.mxu0 0.0
  %6968 = vmatpush1.msra.mxu0 0.0
  %6969 = vmatprep.mubr.f32.mxu0 0.0
  %6970 = vmatmul.mubr.f32.gmra.mrb[0].mxu0 %v6832
  %v6971 = vpop.f32.mrb[0].mxu0
  %v6972 = vadd.f32 0.0, %v6971
  %v6973 = vpop.f32.mrb[0].mxu0
  %v6974 = vadd.f32 0.0, %v6973
  %6975 = vdwg.mxu0
  %6976 = vmatprep.subr.mxu0 0.0
  %6977 = vmatpush1.msra.mxu0 %v4511
  %6978 = vmatprep.subr.mxu0 0.0
  %6979 = vmatpush1.msra.mxu0 0.0
  %6980 = vmatprep.subr.mxu0 0.0
  %6981 = vmatpush1.msra.mxu0 0.0
  %6982 = vmatprep.subr.mxu0 0.0
  %6983 = vmatpush1.msra.mxu0 0.0
  %6984 = vmatprep.subr.mxu0 0.0
  %6985 = vmatpush1.msra.mxu0 0.0
  %6986 = vmatprep.subr.mxu0 0.0
  %6987 = vmatpush1.msra.mxu0 0.0
  %6988 = vmatprep.subr.mxu0 0.0
  %6989 = vmatpush1.msra.mxu0 0.0
  %6990 = vmatprep.subr.mxu0 0.0
  %6991 = vmatpush1.msra.mxu0 0.0
  %6992 = vmatprep.subr.mxu0 0.0
  %6993 = vmatpush1.msra.mxu0 0.0
  %6994 = vmatprep.subr.mxu0 0.0
  %6995 = vmatpush1.msra.mxu0 0.0
  %6996 = vmatprep.subr.mxu0 0.0
  %6997 = vmatpush1.msra.mxu0 0.0
  %6998 = vmatprep.subr.mxu0 0.0
  %6999 = vmatpush1.msra.mxu0 0.0
  %7000 = vmatprep.subr.mxu0 0.0
  %7001 = vmatpush1.msra.mxu0 0.0
  %7002 = vmatprep.subr.mxu0 0.0
  %7003 = vmatpush1.msra.mxu0 0.0
  %7004 = vmatprep.subr.mxu0 0.0
  %7005 = vmatpush1.msra.mxu0 0.0
  %7006 = vmatprep.subr.mxu0 0.0
  %7007 = vmatpush1.msra.mxu0 0.0
  %7008 = vmatprep.subr.mxu0 0.0
  %7009 = vmatpush1.msra.mxu0 0.0
  %7010 = vmatprep.subr.mxu0 0.0
  %7011 = vmatpush1.msra.mxu0 0.0
  %7012 = vmatprep.subr.mxu0 0.0
  %7013 = vmatpush1.msra.mxu0 0.0
  %7014 = vmatprep.subr.mxu0 0.0
  %7015 = vmatpush1.msra.mxu0 0.0
  %7016 = vmatprep.subr.mxu0 0.0
  %7017 = vmatpush1.msra.mxu0 0.0
  %7018 = vmatprep.subr.mxu0 0.0
  %7019 = vmatpush1.msra.mxu0 0.0
  %7020 = vmatprep.subr.mxu0 0.0
  %7021 = vmatpush1.msra.mxu0 0.0
  %7022 = vmatprep.subr.mxu0 0.0
  %7023 = vmatpush1.msra.mxu0 0.0
  %7024 = vmatprep.subr.mxu0 0.0
  %7025 = vmatpush1.msra.mxu0 0.0
  %7026 = vmatprep.subr.mxu0 0.0
  %7027 = vmatpush1.msra.mxu0 0.0
  %7028 = vmatprep.subr.mxu0 0.0
  %7029 = vmatpush1.msra.mxu0 0.0
  %7030 = vmatprep.subr.mxu0 0.0
  %7031 = vmatpush1.msra.mxu0 0.0
  %7032 = vmatprep.subr.mxu0 0.0
  %7033 = vmatpush1.msra.mxu0 0.0
  %7034 = vmatprep.subr.mxu0 0.0
  %7035 = vmatpush1.msra.mxu0 0.0
  %7036 = vmatprep.subr.mxu0 0.0
  %7037 = vmatpush1.msra.mxu0 0.0
  %7038 = vmatprep.subr.mxu0 0.0
  %7039 = vmatpush1.msra.mxu0 0.0
  %7040 = vmatprep.mubr.f32.mxu0 0.0
  %7041 = vmatmul.mubr.f32.gmra.mrb[0].mxu0 %v6832
  %v7042 = vpop.f32.mrb[0].mxu0
  %v7043 = vadd.f32 0.0, %v7042
  %v7044 = vpop.f32.mrb[0].mxu0
  %7045 = vdwg.mxu0
  %v7046 = vadd.f32 %v6824, %v6901
  %v7047 = vadd.f32 %v6825, %v6903
  %v7048 = vadd.f32 %v6826, %v6972
  %v7049 = vadd.f32 %v6827, %v6974
  %v7050 = vadd.f32 %v6828, %v7043
  %7051 = vrot.lane.b32.xlu0 %v6830, 120
  %v7052 = vpop.permute.xlu0 %7051
  %v7053 = vsel %vm102, %v7052, 0
  %7055 = vmatprep.subr.mxu0 %v1077
  %7056 = vmatpush1.msra.mxu0 %v1075
  %7057 = vmatprep.subr.mxu0 0.0
  %7058 = vmatpush1.msra.mxu0 0.0
  %7059 = vmatprep.subr.mxu0 0.0
  %7060 = vmatpush1.msra.mxu0 0.0
  %7061 = vmatprep.subr.mxu0 0.0
  %7062 = vmatpush1.msra.mxu0 0.0
  %7063 = vmatprep.subr.mxu0 0.0
  %7064 = vmatpush1.msra.mxu0 0.0
  %7065 = vmatprep.subr.mxu0 0.0
  %7066 = vmatpush1.msra.mxu0 0.0
  %7067 = vmatprep.subr.mxu0 0.0
  %7068 = vmatpush1.msra.mxu0 0.0
  %7069 = vmatprep.subr.mxu0 0.0
  %7070 = vmatpush1.msra.mxu0 0.0
  %7071 = vmatprep.subr.mxu0 0.0
  %7072 = vmatpush1.msra.mxu0 0.0
  %7073 = vmatprep.subr.mxu0 0.0
  %7074 = vmatpush1.msra.mxu0 0.0
  %7075 = vmatprep.subr.mxu0 0.0
  %7076 = vmatpush1.msra.mxu0 0.0
  %7077 = vmatprep.subr.mxu0 0.0
  %7078 = vmatpush1.msra.mxu0 0.0
  %7079 = vmatprep.subr.mxu0 0.0
  %7080 = vmatpush1.msra.mxu0 0.0
  %7081 = vmatprep.subr.mxu0 0.0
  %7082 = vmatpush1.msra.mxu0 0.0
  %7083 = vmatprep.subr.mxu0 0.0
  %7084 = vmatpush1.msra.mxu0 0.0
  %7085 = vmatprep.subr.mxu0 0.0
  %7086 = vmatpush1.msra.mxu0 0.0
  %7087 = vmatprep.subr.mxu0 0.0
  %7088 = vmatpush1.msra.mxu0 0.0
  %7089 = vmatprep.subr.mxu0 0.0
  %7090 = vmatpush1.msra.mxu0 0.0
  %7091 = vmatprep.subr.mxu0 0.0
  %7092 = vmatpush1.msra.mxu0 0.0
  %7093 = vmatprep.subr.mxu0 0.0
  %7094 = vmatpush1.msra.mxu0 0.0
  %7095 = vmatprep.subr.mxu0 0.0
  %7096 = vmatpush1.msra.mxu0 0.0
  %7097 = vmatprep.subr.mxu0 0.0
  %7098 = vmatpush1.msra.mxu0 0.0
  %7099 = vmatprep.subr.mxu0 0.0
  %7100 = vmatpush1.msra.mxu0 0.0
  %7101 = vmatprep.subr.mxu0 0.0
  %7102 = vmatpush1.msra.mxu0 0.0
  %7103 = vmatprep.subr.mxu0 0.0
  %7104 = vmatpush1.msra.mxu0 0.0
  %7105 = vmatprep.subr.mxu0 0.0
  %7106 = vmatpush1.msra.mxu0 0.0
  %7107 = vmatprep.subr.mxu0 0.0
  %7108 = vmatpush1.msra.mxu0 0.0
  %7109 = vmatprep.subr.mxu0 0.0
  %7110 = vmatpush1.msra.mxu0 0.0
  %7111 = vmatprep.subr.mxu0 0.0
  %7112 = vmatpush1.msra.mxu0 0.0
  %7113 = vmatprep.subr.mxu0 0.0
  %7114 = vmatpush1.msra.mxu0 0.0
  %7115 = vmatprep.subr.mxu0 0.0
  %7116 = vmatpush1.msra.mxu0 0.0
  %7117 = vmatprep.subr.mxu0 0.0
  %7118 = vmatpush1.msra.mxu0 0.0
  %7119 = vmatprep.mubr.f32.mxu0 0.0
  %7120 = vmatmul.mubr.f32.gmra.mrb[0].mxu0 %v7053
  %v7121 = vpop.f32.mrb[0].mxu0
  %v7122 = vadd.f32 0.0, %v7121
  %v7123 = vpop.f32.mrb[0].mxu0
  %v7124 = vadd.f32 0.0, %v7123
  %7125 = vdwg.mxu0
  %7126 = vmatprep.subr.mxu0 %v1081
  %7127 = vmatpush1.msra.mxu0 %v1079
  %7128 = vmatprep.subr.mxu0 0.0
  %7129 = vmatpush1.msra.mxu0 0.0
  %7130 = vmatprep.subr.mxu0 0.0
  %7131 = vmatpush1.msra.mxu0 0.0
  %7132 = vmatprep.subr.mxu0 0.0
  %7133 = vmatpush1.msra.mxu0 0.0
  %7134 = vmatprep.subr.mxu0 0.0
  %7135 = vmatpush1.msra.mxu0 0.0
  %7136 = vmatprep.subr.mxu0 0.0
  %7137 = vmatpush1.msra.mxu0 0.0
  %7138 = vmatprep.subr.mxu0 0.0
  %7139 = vmatpush1.msra.mxu0 0.0
  %7140 = vmatprep.subr.mxu0 0.0
  %7141 = vmatpush1.msra.mxu0 0.0
  %7142 = vmatprep.subr.mxu0 0.0
  %7143 = vmatpush1.msra.mxu0 0.0
  %7144 = vmatprep.subr.mxu0 0.0
  %7145 = vmatpush1.msra.mxu0 0.0
  %7146 = vmatprep.subr.mxu0 0.0
  %7147 = vmatpush1.msra.mxu0 0.0
  %7148 = vmatprep.subr.mxu0 0.0
  %7149 = vmatpush1.msra.mxu0 0.0
  %7150 = vmatprep.subr.mxu0 0.0
  %7151 = vmatpush1.msra.mxu0 0.0
  %7152 = vmatprep.subr.mxu0 0.0
  %7153 = vmatpush1.msra.mxu0 0.0
  %7154 = vmatprep.subr.mxu0 0.0
  %7155 = vmatpush1.msra.mxu0 0.0
  %7156 = vmatprep.subr.mxu0 0.0
  %7157 = vmatpush1.msra.mxu0 0.0
  %7158 = vmatprep.subr.mxu0 0.0
  %7159 = vmatpush1.msra.mxu0 0.0
  %7160 = vmatprep.subr.mxu0 0.0
  %7161 = vmatpush1.msra.mxu0 0.0
  %7162 = vmatprep.subr.mxu0 0.0
  %7163 = vmatpush1.msra.mxu0 0.0
  %7164 = vmatprep.subr.mxu0 0.0
  %7165 = vmatpush1.msra.mxu0 0.0
  %7166 = vmatprep.subr.mxu0 0.0
  %7167 = vmatpush1.msra.mxu0 0.0
  %7168 = vmatprep.subr.mxu0 0.0
  %7169 = vmatpush1.msra.mxu0 0.0
  %7170 = vmatprep.subr.mxu0 0.0
  %7171 = vmatpush1.msra.mxu0 0.0
  %7172 = vmatprep.subr.mxu0 0.0
  %7173 = vmatpush1.msra.mxu0 0.0
  %7174 = vmatprep.subr.mxu0 0.0
  %7175 = vmatpush1.msra.mxu0 0.0
  %7176 = vmatprep.subr.mxu0 0.0
  %7177 = vmatpush1.msra.mxu0 0.0
  %7178 = vmatprep.subr.mxu0 0.0
  %7179 = vmatpush1.msra.mxu0 0.0
  %7180 = vmatprep.subr.mxu0 0.0
  %7181 = vmatpush1.msra.mxu0 0.0
  %7182 = vmatprep.subr.mxu0 0.0
  %7183 = vmatpush1.msra.mxu0 0.0
  %7184 = vmatprep.subr.mxu0 0.0
  %7185 = vmatpush1.msra.mxu0 0.0
  %7186 = vmatprep.subr.mxu0 0.0
  %7187 = vmatpush1.msra.mxu0 0.0
  %7188 = vmatprep.subr.mxu0 0.0
  %7189 = vmatpush1.msra.mxu0 0.0
  %7190 = vmatprep.mubr.f32.mxu0 0.0
  %7191 = vmatmul.mubr.f32.gmra.mrb[0].mxu0 %v7053
  %v7192 = vpop.f32.mrb[0].mxu0
  %v7193 = vadd.f32 0.0, %v7192
  %v7194 = vpop.f32.mrb[0].mxu0
  %v7195 = vadd.f32 0.0, %v7194
  %7196 = vdwg.mxu0
  %7197 = vmatprep.subr.mxu0 0.0
  %7198 = vmatpush1.msra.mxu0 %v1083
  %7199 = vmatprep.subr.mxu0 0.0
  %7200 = vmatpush1.msra.mxu0 0.0
  %7201 = vmatprep.subr.mxu0 0.0
  %7202 = vmatpush1.msra.mxu0 0.0
  %7203 = vmatprep.subr.mxu0 0.0
  %7204 = vmatpush1.msra.mxu0 0.0
  %7205 = vmatprep.subr.mxu0 0.0
  %7206 = vmatpush1.msra.mxu0 0.0
  %7207 = vmatprep.subr.mxu0 0.0
  %7208 = vmatpush1.msra.mxu0 0.0
  %7209 = vmatprep.subr.mxu0 0.0
  %7210 = vmatpush1.msra.mxu0 0.0
  %7211 = vmatprep.subr.mxu0 0.0
  %7212 = vmatpush1.msra.mxu0 0.0
  %7213 = vmatprep.subr.mxu0 0.0
  %7214 = vmatpush1.msra.mxu0 0.0
  %7215 = vmatprep.subr.mxu0 0.0
  %7216 = vmatpush1.msra.mxu0 0.0
  %7217 = vmatprep.subr.mxu0 0.0
  %7218 = vmatpush1.msra.mxu0 0.0
  %7219 = vmatprep.subr.mxu0 0.0
  %7220 = vmatpush1.msra.mxu0 0.0
  %7221 = vmatprep.subr.mxu0 0.0
  %7222 = vmatpush1.msra.mxu0 0.0
  %7223 = vmatprep.subr.mxu0 0.0
  %7224 = vmatpush1.msra.mxu0 0.0
  %7225 = vmatprep.subr.mxu0 0.0
  %7226 = vmatpush1.msra.mxu0 0.0
  %7227 = vmatprep.subr.mxu0 0.0
  %7228 = vmatpush1.msra.mxu0 0.0
  %7229 = vmatprep.subr.mxu0 0.0
  %7230 = vmatpush1.msra.mxu0 0.0
  %7231 = vmatprep.subr.mxu0 0.0
  %7232 = vmatpush1.msra.mxu0 0.0
  %7233 = vmatprep.subr.mxu0 0.0
  %7234 = vmatpush1.msra.mxu0 0.0
  %7235 = vmatprep.subr.mxu0 0.0
  %7236 = vmatpush1.msra.mxu0 0.0
  %7237 = vmatprep.subr.mxu0 0.0
  %7238 = vmatpush1.msra.mxu0 0.0
  %7239 = vmatprep.subr.mxu0 0.0
  %7240 = vmatpush1.msra.mxu0 0.0
  %7241 = vmatprep.subr.mxu0 0.0
  %7242 = vmatpush1.msra.mxu0 0.0
  %7243 = vmatprep.subr.mxu0 0.0
  %7244 = vmatpush1.msra.mxu0 0.0
  %7245 = vmatprep.subr.mxu0 0.0
  %7246 = vmatpush1.msra.mxu0 0.0
  %7247 = vmatprep.subr.mxu0 0.0
  %7248 = vmatpush1.msra.mxu0 0.0
  %7249 = vmatprep.subr.mxu0 0.0
  %7250 = vmatpush1.msra.mxu0 0.0
  %7251 = vmatprep.subr.mxu0 0.0
  %7252 = vmatpush1.msra.mxu0 0.0
  %7253 = vmatprep.subr.mxu0 0.0
  %7254 = vmatpush1.msra.mxu0 0.0
  %7255 = vmatprep.subr.mxu0 0.0
  %7256 = vmatpush1.msra.mxu0 0.0
  %7257 = vmatprep.subr.mxu0 0.0
  %7258 = vmatpush1.msra.mxu0 0.0
  %7259 = vmatprep.subr.mxu0 0.0
  %7260 = vmatpush1.msra.mxu0 0.0
  %7261 = vmatprep.mubr.f32.mxu0 0.0
  %7262 = vmatmul.mubr.f32.gmra.mrb[0].mxu0 %v7053
  %v7263 = vpop.f32.mrb[0].mxu0
  %v7264 = vadd.f32 0.0, %v7263
  %v7265 = vpop.f32.mrb[0].mxu0
  %7266 = vdwg.mxu0
  %v7267 = vadd.f32 %v7046, %v7122
  %v7268 = vadd.f32 %v7047, %v7124
  %v7269 = vadd.f32 %v7048, %v7193
  %v7270 = vadd.f32 %v7049, %v7195
  %v7271 = vadd.f32 %v7050, %v7264
  %7272 = vset.pattern.permute.xlu0 10
  %7273 = vperm.xlu0 %7272, %v6830
  %v7274 = vpop.permute.xlu0 %7273
  %v7276 = vlaneseq
  %v7277 = vshrl.u32 %v7276, 7
  %v7278 = vsub.s32 0, %v7277
  %v7279 = vrot.slane %v4666, %v7278
  %v7280 = vlaneseq
  %v7281 = vshrl.u32 %v7280, 7
  %v7282 = vsub.s32 0, %v7281
  %v7283 = vrot.slane %v4668, %v7282
  %v7284 = vlaneseq
  %v7285 = vshrl.u32 %v7284, 7
  %v7286 = vsub.s32 0, %v7285
  %v7287 = vrot.slane %v4737, %v7286
  %v7288 = vlaneseq
  %v7289 = vshrl.u32 %v7288, 7
  %v7290 = vsub.s32 0, %v7289
  %v7291 = vrot.slane %v4739, %v7290
  %v7292 = vlaneseq
  %v7293 = vshrl.u32 %v7292, 7
  %v7294 = vsub.s32 0, %v7293
  %v7295 = vrot.slane %v4808, %v7294
  %v7296 = vmul.f32 %v7274, %v7279
  %v7297 = vmul.f32 %v7274, %v7283
  %v7298 = vmul.f32 %v7274, %v7287
  %v7299 = vmul.f32 %v7274, %v7291
  %v7300 = vmul.f32 %v7274, %v7295
  %v7301 = vadd.f32 %v7267, %v7296
  %v7302 = vadd.f32 %v7268, %v7297
  %v7303 = vadd.f32 %v7269, %v7298
  %v7304 = vadd.f32 %v7270, %v7299
  %v7305 = vadd.f32 %v7271, %v7300
  %s7306 = scalar_lea.vmem %s4, 184
  %v7307 = vld [vmem:[%s7306] sm:$0xff]
  %7308 = vrot.lane.b32.xlu0 %v4507, 127
  %v7309 = vpop.permute.xlu0 %7308
  %7310 = vrot.lane.b32.xlu0 %v4508, 127
  %v7311 = vpop.permute.xlu0 %7310
  %7312 = vrot.lane.b32.xlu0 %v4509, 127
  %v7313 = vpop.permute.xlu0 %7312
  %7314 = vrot.lane.b32.xlu0 %v4510, 127
  %v7315 = vpop.permute.xlu0 %7314
  %7316 = vrot.lane.b32.xlu0 %v4511, 127
  %v7317 = vpop.permute.xlu0 %7316
  %v7318 = vsel %vm1314, %v7315, %v7317
  %v7319 = vsel %vm1314, %v7313, %v7315
  %v7320 = vsel %vm1314, %v7311, %v7313
  %v7321 = vsel %vm1314, %v7309, %v7311
  %v7322 = vsel %vm1314, %v7317, %v7309
  %v7324 = vsel %vm2405, %v7307, 0
  %7326 = vmatprep.subr.mxu0 %v7320
  %7327 = vmatpush1.msra.mxu0 %v7321
  %7328 = vmatprep.subr.mxu0 0.0
  %7329 = vmatpush1.msra.mxu0 0.0
  %7330 = vmatprep.subr.mxu0 0.0
  %7331 = vmatpush1.msra.mxu0 0.0
  %7332 = vmatprep.subr.mxu0 0.0
  %7333 = vmatpush1.msra.mxu0 0.0
  %7334 = vmatprep.subr.mxu0 0.0
  %7335 = vmatpush1.msra.mxu0 0.0
  %7336 = vmatprep.subr.mxu0 0.0
  %7337 = vmatpush1.msra.mxu0 0.0
  %7338 = vmatprep.subr.mxu0 0.0
  %7339 = vmatpush1.msra.mxu0 0.0
  %7340 = vmatprep.subr.mxu0 0.0
  %7341 = vmatpush1.msra.mxu0 0.0
  %7342 = vmatprep.subr.mxu0 0.0
  %7343 = vmatpush1.msra.mxu0 0.0
  %7344 = vmatprep.subr.mxu0 0.0
  %7345 = vmatpush1.msra.mxu0 0.0
  %7346 = vmatprep.subr.mxu0 0.0
  %7347 = vmatpush1.msra.mxu0 0.0
  %7348 = vmatprep.subr.mxu0 0.0
  %7349 = vmatpush1.msra.mxu0 0.0
  %7350 = vmatprep.subr.mxu0 0.0
  %7351 = vmatpush1.msra.mxu0 0.0
  %7352 = vmatprep.subr.mxu0 0.0
  %7353 = vmatpush1.msra.mxu0 0.0
  %7354 = vmatprep.subr.mxu0 0.0
  %7355 = vmatpush1.msra.mxu0 0.0
  %7356 = vmatprep.subr.mxu0 0.0
  %7357 = vmatpush1.msra.mxu0 0.0
  %7358 = vmatprep.subr.mxu0 0.0
  %7359 = vmatpush1.msra.mxu0 0.0
  %7360 = vmatprep.subr.mxu0 0.0
  %7361 = vmatpush1.msra.mxu0 0.0
  %7362 = vmatprep.subr.mxu0 0.0
  %7363 = vmatpush1.msra.mxu0 0.0
  %7364 = vmatprep.subr.mxu0 0.0
  %7365 = vmatpush1.msra.mxu0 0.0
  %7366 = vmatprep.subr.mxu0 0.0
  %7367 = vmatpush1.msra.mxu0 0.0
  %7368 = vmatprep.subr.mxu0 0.0
  %7369 = vmatpush1.msra.mxu0 0.0
  %7370 = vmatprep.subr.mxu0 0.0
  %7371 = vmatpush1.msra.mxu0 0.0
  %7372 = vmatprep.subr.mxu0 0.0
  %7373 = vmatpush1.msra.mxu0 0.0
  %7374 = vmatprep.subr.mxu0 0.0
  %7375 = vmatpush1.msra.mxu0 0.0
  %7376 = vmatprep.subr.mxu0 0.0
  %7377 = vmatpush1.msra.mxu0 0.0
  %7378 = vmatprep.subr.mxu0 0.0
  %7379 = vmatpush1.msra.mxu0 0.0
  %7380 = vmatprep.subr.mxu0 0.0
  %7381 = vmatpush1.msra.mxu0 0.0
  %7382 = vmatprep.subr.mxu0 0.0
  %7383 = vmatpush1.msra.mxu0 0.0
  %7384 = vmatprep.subr.mxu0 0.0
  %7385 = vmatpush1.msra.mxu0 0.0
  %7386 = vmatprep.subr.mxu0 0.0
  %7387 = vmatpush1.msra.mxu0 0.0
  %7388 = vmatprep.subr.mxu0 0.0
  %7389 = vmatpush1.msra.mxu0 0.0
  %7390 = vmatprep.mubr.f32.mxu0 0.0
  %7391 = vmatmul.mubr.f32.gmra.mrb[0].mxu0 %v7324
  %v7392 = vpop.f32.mrb[0].mxu0
  %v7393 = vadd.f32 0.0, %v7392
  %v7394 = vpop.f32.mrb[0].mxu0
  %v7395 = vadd.f32 0.0, %v7394
  %7396 = vdwg.mxu0
  %7397 = vmatprep.subr.mxu0 %v7318
  %7398 = vmatpush1.msra.mxu0 %v7319
  %7399 = vmatprep.subr.mxu0 0.0
  %7400 = vmatpush1.msra.mxu0 0.0
  %7401 = vmatprep.subr.mxu0 0.0
  %7402 = vmatpush1.msra.mxu0 0.0
  %7403 = vmatprep.subr.mxu0 0.0
  %7404 = vmatpush1.msra.mxu0 0.0
  %7405 = vmatprep.subr.mxu0 0.0
  %7406 = vmatpush1.msra.mxu0 0.0
  %7407 = vmatprep.subr.mxu0 0.0
  %7408 = vmatpush1.msra.mxu0 0.0
  %7409 = vmatprep.subr.mxu0 0.0
  %7410 = vmatpush1.msra.mxu0 0.0
  %7411 = vmatprep.subr.mxu0 0.0
  %7412 = vmatpush1.msra.mxu0 0.0
  %7413 = vmatprep.subr.mxu0 0.0
  %7414 = vmatpush1.msra.mxu0 0.0
  %7415 = vmatprep.subr.mxu0 0.0
  %7416 = vmatpush1.msra.mxu0 0.0
  %7417 = vmatprep.subr.mxu0 0.0
  %7418 = vmatpush1.msra.mxu0 0.0
  %7419 = vmatprep.subr.mxu0 0.0
  %7420 = vmatpush1.msra.mxu0 0.0
  %7421 = vmatprep.subr.mxu0 0.0
  %7422 = vmatpush1.msra.mxu0 0.0
  %7423 = vmatprep.subr.mxu0 0.0
  %7424 = vmatpush1.msra.mxu0 0.0
  %7425 = vmatprep.subr.mxu0 0.0
  %7426 = vmatpush1.msra.mxu0 0.0
  %7427 = vmatprep.subr.mxu0 0.0
  %7428 = vmatpush1.msra.mxu0 0.0
  %7429 = vmatprep.subr.mxu0 0.0
  %7430 = vmatpush1.msra.mxu0 0.0
  %7431 = vmatprep.subr.mxu0 0.0
  %7432 = vmatpush1.msra.mxu0 0.0
  %7433 = vmatprep.subr.mxu0 0.0
  %7434 = vmatpush1.msra.mxu0 0.0
  %7435 = vmatprep.subr.mxu0 0.0
  %7436 = vmatpush1.msra.mxu0 0.0
  %7437 = vmatprep.subr.mxu0 0.0
  %7438 = vmatpush1.msra.mxu0 0.0
  %7439 = vmatprep.subr.mxu0 0.0
  %7440 = vmatpush1.msra.mxu0 0.0
  %7441 = vmatprep.subr.mxu0 0.0
  %7442 = vmatpush1.msra.mxu0 0.0
  %7443 = vmatprep.subr.mxu0 0.0
  %7444 = vmatpush1.msra.mxu0 0.0
  %7445 = vmatprep.subr.mxu0 0.0
  %7446 = vmatpush1.msra.mxu0 0.0
  %7447 = vmatprep.subr.mxu0 0.0
  %7448 = vmatpush1.msra.mxu0 0.0
  %7449 = vmatprep.subr.mxu0 0.0
  %7450 = vmatpush1.msra.mxu0 0.0
  %7451 = vmatprep.subr.mxu0 0.0
  %7452 = vmatpush1.msra.mxu0 0.0
  %7453 = vmatprep.subr.mxu0 0.0
  %7454 = vmatpush1.msra.mxu0 0.0
  %7455 = vmatprep.subr.mxu0 0.0
  %7456 = vmatpush1.msra.mxu0 0.0
  %7457 = vmatprep.subr.mxu0 0.0
  %7458 = vmatpush1.msra.mxu0 0.0
  %7459 = vmatprep.subr.mxu0 0.0
  %7460 = vmatpush1.msra.mxu0 0.0
  %7461 = vmatprep.mubr.f32.mxu0 0.0
  %7462 = vmatmul.mubr.f32.gmra.mrb[0].mxu0 %v7324
  %v7463 = vpop.f32.mrb[0].mxu0
  %v7464 = vadd.f32 0.0, %v7463
  %v7465 = vpop.f32.mrb[0].mxu0
  %v7466 = vadd.f32 0.0, %v7465
  %7467 = vdwg.mxu0
  %7468 = vmatprep.subr.mxu0 0.0
  %7469 = vmatpush1.msra.mxu0 %v7322
  %7470 = vmatprep.subr.mxu0 0.0
  %7471 = vmatpush1.msra.mxu0 0.0
  %7472 = vmatprep.subr.mxu0 0.0
  %7473 = vmatpush1.msra.mxu0 0.0
  %7474 = vmatprep.subr.mxu0 0.0
  %7475 = vmatpush1.msra.mxu0 0.0
  %7476 = vmatprep.subr.mxu0 0.0
  %7477 = vmatpush1.msra.mxu0 0.0
  %7478 = vmatprep.subr.mxu0 0.0
  %7479 = vmatpush1.msra.mxu0 0.0
  %7480 = vmatprep.subr.mxu0 0.0
  %7481 = vmatpush1.msra.mxu0 0.0
  %7482 = vmatprep.subr.mxu0 0.0
  %7483 = vmatpush1.msra.mxu0 0.0
  %7484 = vmatprep.subr.mxu0 0.0
  %7485 = vmatpush1.msra.mxu0 0.0
  %7486 = vmatprep.subr.mxu0 0.0
  %7487 = vmatpush1.msra.mxu0 0.0
  %7488 = vmatprep.subr.mxu0 0.0
  %7489 = vmatpush1.msra.mxu0 0.0
  %7490 = vmatprep.subr.mxu0 0.0
  %7491 = vmatpush1.msra.mxu0 0.0
  %7492 = vmatprep.subr.mxu0 0.0
  %7493 = vmatpush1.msra.mxu0 0.0
  %7494 = vmatprep.subr.mxu0 0.0
  %7495 = vmatpush1.msra.mxu0 0.0
  %7496 = vmatprep.subr.mxu0 0.0
  %7497 = vmatpush1.msra.mxu0 0.0
  %7498 = vmatprep.subr.mxu0 0.0
  %7499 = vmatpush1.msra.mxu0 0.0
  %7500 = vmatprep.subr.mxu0 0.0
  %7501 = vmatpush1.msra.mxu0 0.0
  %7502 = vmatprep.subr.mxu0 0.0
  %7503 = vmatpush1.msra.mxu0 0.0
  %7504 = vmatprep.subr.mxu0 0.0
  %7505 = vmatpush1.msra.mxu0 0.0
  %7506 = vmatprep.subr.mxu0 0.0
  %7507 = vmatpush1.msra.mxu0 0.0
  %7508 = vmatprep.subr.mxu0 0.0
  %7509 = vmatpush1.msra.mxu0 0.0
  %7510 = vmatprep.subr.mxu0 0.0
  %7511 = vmatpush1.msra.mxu0 0.0
  %7512 = vmatprep.subr.mxu0 0.0
  %7513 = vmatpush1.msra.mxu0 0.0
  %7514 = vmatprep.subr.mxu0 0.0
  %7515 = vmatpush1.msra.mxu0 0.0
  %7516 = vmatprep.subr.mxu0 0.0
  %7517 = vmatpush1.msra.mxu0 0.0
  %7518 = vmatprep.subr.mxu0 0.0
  %7519 = vmatpush1.msra.mxu0 0.0
  %7520 = vmatprep.subr.mxu0 0.0
  %7521 = vmatpush1.msra.mxu0 0.0
  %7522 = vmatprep.subr.mxu0 0.0
  %7523 = vmatpush1.msra.mxu0 0.0
  %7524 = vmatprep.subr.mxu0 0.0
  %7525 = vmatpush1.msra.mxu0 0.0
  %7526 = vmatprep.subr.mxu0 0.0
  %7527 = vmatpush1.msra.mxu0 0.0
  %7528 = vmatprep.subr.mxu0 0.0
  %7529 = vmatpush1.msra.mxu0 0.0
  %7530 = vmatprep.subr.mxu0 0.0
  %7531 = vmatpush1.msra.mxu0 0.0
  %7532 = vmatprep.mubr.f32.mxu0 0.0
  %7533 = vmatmul.mubr.f32.gmra.mrb[0].mxu0 %v7324
  %v7534 = vpop.f32.mrb[0].mxu0
  %v7535 = vadd.f32 0.0, %v7534
  %v7536 = vpop.f32.mrb[0].mxu0
  %7537 = vdwg.mxu0
  %v7538 = vadd.f32 %v7301, %v7393
  %v7539 = vadd.f32 %v7302, %v7395
  %v7540 = vadd.f32 %v7303, %v7464
  %v7541 = vadd.f32 %v7304, %v7466
  %v7542 = vadd.f32 %v7305, %v7535
  %7543 = vrot.lane.b32.xlu0 %v7307, 120
  %v7544 = vpop.permute.xlu0 %7543
  %v7545 = vsel %vm102, %v7544, 0
  %7547 = vmatprep.subr.mxu0 %v1327
  %7548 = vmatpush1.msra.mxu0 %v1324
  %7549 = vmatprep.subr.mxu0 0.0
  %7550 = vmatpush1.msra.mxu0 0.0
  %7551 = vmatprep.subr.mxu0 0.0
  %7552 = vmatpush1.msra.mxu0 0.0
  %7553 = vmatprep.subr.mxu0 0.0
  %7554 = vmatpush1.msra.mxu0 0.0
  %7555 = vmatprep.subr.mxu0 0.0
  %7556 = vmatpush1.msra.mxu0 0.0
  %7557 = vmatprep.subr.mxu0 0.0
  %7558 = vmatpush1.msra.mxu0 0.0
  %7559 = vmatprep.subr.mxu0 0.0
  %7560 = vmatpush1.msra.mxu0 0.0
  %7561 = vmatprep.subr.mxu0 0.0
  %7562 = vmatpush1.msra.mxu0 0.0
  %7563 = vmatprep.subr.mxu0 0.0
  %7564 = vmatpush1.msra.mxu0 0.0
  %7565 = vmatprep.subr.mxu0 0.0
  %7566 = vmatpush1.msra.mxu0 0.0
  %7567 = vmatprep.subr.mxu0 0.0
  %7568 = vmatpush1.msra.mxu0 0.0
  %7569 = vmatprep.subr.mxu0 0.0
  %7570 = vmatpush1.msra.mxu0 0.0
  %7571 = vmatprep.subr.mxu0 0.0
  %7572 = vmatpush1.msra.mxu0 0.0
  %7573 = vmatprep.subr.mxu0 0.0
  %7574 = vmatpush1.msra.mxu0 0.0
  %7575 = vmatprep.subr.mxu0 0.0
  %7576 = vmatpush1.msra.mxu0 0.0
  %7577 = vmatprep.subr.mxu0 0.0
  %7578 = vmatpush1.msra.mxu0 0.0
  %7579 = vmatprep.subr.mxu0 0.0
  %7580 = vmatpush1.msra.mxu0 0.0
  %7581 = vmatprep.subr.mxu0 0.0
  %7582 = vmatpush1.msra.mxu0 0.0
  %7583 = vmatprep.subr.mxu0 0.0
  %7584 = vmatpush1.msra.mxu0 0.0
  %7585 = vmatprep.subr.mxu0 0.0
  %7586 = vmatpush1.msra.mxu0 0.0
  %7587 = vmatprep.subr.mxu0 0.0
  %7588 = vmatpush1.msra.mxu0 0.0
  %7589 = vmatprep.subr.mxu0 0.0
  %7590 = vmatpush1.msra.mxu0 0.0
  %7591 = vmatprep.subr.mxu0 0.0
  %7592 = vmatpush1.msra.mxu0 0.0
  %7593 = vmatprep.subr.mxu0 0.0
  %7594 = vmatpush1.msra.mxu0 0.0
  %7595 = vmatprep.subr.mxu0 0.0
  %7596 = vmatpush1.msra.mxu0 0.0
  %7597 = vmatprep.subr.mxu0 0.0
  %7598 = vmatpush1.msra.mxu0 0.0
  %7599 = vmatprep.subr.mxu0 0.0
  %7600 = vmatpush1.msra.mxu0 0.0
  %7601 = vmatprep.subr.mxu0 0.0
  %7602 = vmatpush1.msra.mxu0 0.0
  %7603 = vmatprep.subr.mxu0 0.0
  %7604 = vmatpush1.msra.mxu0 0.0
  %7605 = vmatprep.subr.mxu0 0.0
  %7606 = vmatpush1.msra.mxu0 0.0
  %7607 = vmatprep.subr.mxu0 0.0
  %7608 = vmatpush1.msra.mxu0 0.0
  %7609 = vmatprep.subr.mxu0 0.0
  %7610 = vmatpush1.msra.mxu0 0.0
  %7611 = vmatprep.mubr.f32.mxu0 0.0
  %7612 = vmatmul.mubr.f32.gmra.mrb[0].mxu0 %v7545
  %v7613 = vpop.f32.mrb[0].mxu0
  %v7614 = vadd.f32 0.0, %v7613
  %v7615 = vpop.f32.mrb[0].mxu0
  %v7616 = vadd.f32 0.0, %v7615
  %7617 = vdwg.mxu0
  %7618 = vmatprep.subr.mxu0 %v1333
  %7619 = vmatpush1.msra.mxu0 %v1330
  %7620 = vmatprep.subr.mxu0 0.0
  %7621 = vmatpush1.msra.mxu0 0.0
  %7622 = vmatprep.subr.mxu0 0.0
  %7623 = vmatpush1.msra.mxu0 0.0
  %7624 = vmatprep.subr.mxu0 0.0
  %7625 = vmatpush1.msra.mxu0 0.0
  %7626 = vmatprep.subr.mxu0 0.0
  %7627 = vmatpush1.msra.mxu0 0.0
  %7628 = vmatprep.subr.mxu0 0.0
  %7629 = vmatpush1.msra.mxu0 0.0
  %7630 = vmatprep.subr.mxu0 0.0
  %7631 = vmatpush1.msra.mxu0 0.0
  %7632 = vmatprep.subr.mxu0 0.0
  %7633 = vmatpush1.msra.mxu0 0.0
  %7634 = vmatprep.subr.mxu0 0.0
  %7635 = vmatpush1.msra.mxu0 0.0
  %7636 = vmatprep.subr.mxu0 0.0
  %7637 = vmatpush1.msra.mxu0 0.0
  %7638 = vmatprep.subr.mxu0 0.0
  %7639 = vmatpush1.msra.mxu0 0.0
  %7640 = vmatprep.subr.mxu0 0.0
  %7641 = vmatpush1.msra.mxu0 0.0
  %7642 = vmatprep.subr.mxu0 0.0
  %7643 = vmatpush1.msra.mxu0 0.0
  %7644 = vmatprep.subr.mxu0 0.0
  %7645 = vmatpush1.msra.mxu0 0.0
  %7646 = vmatprep.subr.mxu0 0.0
  %7647 = vmatpush1.msra.mxu0 0.0
  %7648 = vmatprep.subr.mxu0 0.0
  %7649 = vmatpush1.msra.mxu0 0.0
  %7650 = vmatprep.subr.mxu0 0.0
  %7651 = vmatpush1.msra.mxu0 0.0
  %7652 = vmatprep.subr.mxu0 0.0
  %7653 = vmatpush1.msra.mxu0 0.0
  %7654 = vmatprep.subr.mxu0 0.0
  %7655 = vmatpush1.msra.mxu0 0.0
  %7656 = vmatprep.subr.mxu0 0.0
  %7657 = vmatpush1.msra.mxu0 0.0
  %7658 = vmatprep.subr.mxu0 0.0
  %7659 = vmatpush1.msra.mxu0 0.0
  %7660 = vmatprep.subr.mxu0 0.0
  %7661 = vmatpush1.msra.mxu0 0.0
  %7662 = vmatprep.subr.mxu0 0.0
  %7663 = vmatpush1.msra.mxu0 0.0
  %7664 = vmatprep.subr.mxu0 0.0
  %7665 = vmatpush1.msra.mxu0 0.0
  %7666 = vmatprep.subr.mxu0 0.0
  %7667 = vmatpush1.msra.mxu0 0.0
  %7668 = vmatprep.subr.mxu0 0.0
  %7669 = vmatpush1.msra.mxu0 0.0
  %7670 = vmatprep.subr.mxu0 0.0
  %7671 = vmatpush1.msra.mxu0 0.0
  %7672 = vmatprep.subr.mxu0 0.0
  %7673 = vmatpush1.msra.mxu0 0.0
  %7674 = vmatprep.subr.mxu0 0.0
  %7675 = vmatpush1.msra.mxu0 0.0
  %7676 = vmatprep.subr.mxu0 0.0
  %7677 = vmatpush1.msra.mxu0 0.0
  %7678 = vmatprep.subr.mxu0 0.0
  %7679 = vmatpush1.msra.mxu0 0.0
  %7680 = vmatprep.subr.mxu0 0.0
  %7681 = vmatpush1.msra.mxu0 0.0
  %7682 = vmatprep.mubr.f32.mxu0 0.0
  %7683 = vmatmul.mubr.f32.gmra.mrb[0].mxu0 %v7545
  %v7684 = vpop.f32.mrb[0].mxu0
  %v7685 = vadd.f32 0.0, %v7684
  %v7686 = vpop.f32.mrb[0].mxu0
  %v7687 = vadd.f32 0.0, %v7686
  %7688 = vdwg.mxu0
  %7689 = vmatprep.subr.mxu0 0.0
  %7690 = vmatpush1.msra.mxu0 %v1336
  %7691 = vmatprep.subr.mxu0 0.0
  %7692 = vmatpush1.msra.mxu0 0.0
  %7693 = vmatprep.subr.mxu0 0.0
  %7694 = vmatpush1.msra.mxu0 0.0
  %7695 = vmatprep.subr.mxu0 0.0
  %7696 = vmatpush1.msra.mxu0 0.0
  %7697 = vmatprep.subr.mxu0 0.0
  %7698 = vmatpush1.msra.mxu0 0.0
  %7699 = vmatprep.subr.mxu0 0.0
  %7700 = vmatpush1.msra.mxu0 0.0
  %7701 = vmatprep.subr.mxu0 0.0
  %7702 = vmatpush1.msra.mxu0 0.0
  %7703 = vmatprep.subr.mxu0 0.0
  %7704 = vmatpush1.msra.mxu0 0.0
  %7705 = vmatprep.subr.mxu0 0.0
  %7706 = vmatpush1.msra.mxu0 0.0
  %7707 = vmatprep.subr.mxu0 0.0
  %7708 = vmatpush1.msra.mxu0 0.0
  %7709 = vmatprep.subr.mxu0 0.0
  %7710 = vmatpush1.msra.mxu0 0.0
  %7711 = vmatprep.subr.mxu0 0.0
  %7712 = vmatpush1.msra.mxu0 0.0
  %7713 = vmatprep.subr.mxu0 0.0
  %7714 = vmatpush1.msra.mxu0 0.0
  %7715 = vmatprep.subr.mxu0 0.0
  %7716 = vmatpush1.msra.mxu0 0.0
  %7717 = vmatprep.subr.mxu0 0.0
  %7718 = vmatpush1.msra.mxu0 0.0
  %7719 = vmatprep.subr.mxu0 0.0
  %7720 = vmatpush1.msra.mxu0 0.0
  %7721 = vmatprep.subr.mxu0 0.0
  %7722 = vmatpush1.msra.mxu0 0.0
  %7723 = vmatprep.subr.mxu0 0.0
  %7724 = vmatpush1.msra.mxu0 0.0
  %7725 = vmatprep.subr.mxu0 0.0
  %7726 = vmatpush1.msra.mxu0 0.0
  %7727 = vmatprep.subr.mxu0 0.0
  %7728 = vmatpush1.msra.mxu0 0.0
  %7729 = vmatprep.subr.mxu0 0.0
  %7730 = vmatpush1.msra.mxu0 0.0
  %7731 = vmatprep.subr.mxu0 0.0
  %7732 = vmatpush1.msra.mxu0 0.0
  %7733 = vmatprep.subr.mxu0 0.0
  %7734 = vmatpush1.msra.mxu0 0.0
  %7735 = vmatprep.subr.mxu0 0.0
  %7736 = vmatpush1.msra.mxu0 0.0
  %7737 = vmatprep.subr.mxu0 0.0
  %7738 = vmatpush1.msra.mxu0 0.0
  %7739 = vmatprep.subr.mxu0 0.0
  %7740 = vmatpush1.msra.mxu0 0.0
  %7741 = vmatprep.subr.mxu0 0.0
  %7742 = vmatpush1.msra.mxu0 0.0
  %7743 = vmatprep.subr.mxu0 0.0
  %7744 = vmatpush1.msra.mxu0 0.0
  %7745 = vmatprep.subr.mxu0 0.0
  %7746 = vmatpush1.msra.mxu0 0.0
  %7747 = vmatprep.subr.mxu0 0.0
  %7748 = vmatpush1.msra.mxu0 0.0
  %7749 = vmatprep.subr.mxu0 0.0
  %7750 = vmatpush1.msra.mxu0 0.0
  %7751 = vmatprep.subr.mxu0 0.0
  %7752 = vmatpush1.msra.mxu0 0.0
  %7753 = vmatprep.mubr.f32.mxu0 0.0
  %7754 = vmatmul.mubr.f32.gmra.mrb[0].mxu0 %v7545
  %v7755 = vpop.f32.mrb[0].mxu0
  %v7756 = vadd.f32 0.0, %v7755
  %v7757 = vpop.f32.mrb[0].mxu0
  %7758 = vdwg.mxu0
  %v7759 = vadd.f32 %v7538, %v7614
  %v7760 = vadd.f32 %v7539, %v7616
  %v7761 = vadd.f32 %v7540, %v7685
  %v7762 = vadd.f32 %v7541, %v7687
  %v7763 = vadd.f32 %v7542, %v7756
  %7764 = vrot.lane.b32.xlu0 %v4666, 127
  %v7765 = vpop.permute.xlu0 %7764
  %7766 = vrot.lane.b32.xlu0 %v4668, 127
  %v7767 = vpop.permute.xlu0 %7766
  %7768 = vrot.lane.b32.xlu0 %v4737, 127
  %v7769 = vpop.permute.xlu0 %7768
  %7770 = vrot.lane.b32.xlu0 %v4739, 127
  %v7771 = vpop.permute.xlu0 %7770
  %7772 = vrot.lane.b32.xlu0 %v4808, 127
  %v7773 = vpop.permute.xlu0 %7772
  %v7774 = vsel %vm1314, %v7771, %v7773
  %v7775 = vsel %vm1314, %v7769, %v7771
  %v7776 = vsel %vm1314, %v7767, %v7769
  %v7777 = vsel %vm1314, %v7765, %v7767
  %v7778 = vsel %vm1314, %v7773, %v7765
  %7779 = vset.pattern.permute.xlu0 10
  %7780 = vperm.xlu0 %7779, %v7307
  %v7781 = vpop.permute.xlu0 %7780
  %v7783 = vlaneseq
  %v7784 = vshrl.u32 %v7783, 7
  %v7785 = vsub.s32 0, %v7784
  %v7786 = vrot.slane %v7777, %v7785
  %v7787 = vlaneseq
  %v7788 = vshrl.u32 %v7787, 7
  %v7789 = vsub.s32 0, %v7788
  %v7790 = vrot.slane %v7776, %v7789
  %v7791 = vlaneseq
  %v7792 = vshrl.u32 %v7791, 7
  %v7793 = vsub.s32 0, %v7792
  %v7794 = vrot.slane %v7775, %v7793
  %v7795 = vlaneseq
  %v7796 = vshrl.u32 %v7795, 7
  %v7797 = vsub.s32 0, %v7796
  %v7798 = vrot.slane %v7774, %v7797
  %v7799 = vlaneseq
  %v7800 = vshrl.u32 %v7799, 7
  %v7801 = vsub.s32 0, %v7800
  %v7802 = vrot.slane %v7778, %v7801
  %v7803 = vmul.f32 %v7781, %v7786
  %v7804 = vmul.f32 %v7781, %v7790
  %v7805 = vmul.f32 %v7781, %v7794
  %v7806 = vmul.f32 %v7781, %v7798
  %v7807 = vmul.f32 %v7781, %v7802
  %v7808 = vadd.f32 %v7759, %v7803
  %v7809 = vadd.f32 %v7760, %v7804
  %v7810 = vadd.f32 %v7761, %v7805
  %v7811 = vadd.f32 %v7762, %v7806
  %v7812 = vadd.f32 %v7763, %v7807
  %s7813 = scalar_lea.vmem %s4, 192
  %v7814 = vld [vmem:[%s7813] sm:$0xff]
  %7815 = vrot.lane.b32.xlu0 %v4507, 116
  %v7816 = vpop.permute.xlu0 %7815
  %7817 = vrot.lane.b32.xlu0 %v4508, 116
  %v7818 = vpop.permute.xlu0 %7817
  %7819 = vrot.lane.b32.xlu0 %v4509, 116
  %v7820 = vpop.permute.xlu0 %7819
  %7821 = vrot.lane.b32.xlu0 %v4510, 116
  %v7822 = vpop.permute.xlu0 %7821
  %7823 = vrot.lane.b32.xlu0 %v4511, 116
  %v7824 = vpop.permute.xlu0 %7823
  %v7825 = vsel %vm1567, %v7822, %v7824
  %v7826 = vsel %vm1567, %v7820, %v7822
  %v7827 = vsel %vm1567, %v7818, %v7820
  %v7828 = vsel %vm1567, %v7816, %v7818
  %v7829 = vsel %vm1567, %v7824, %v7816
  %v7831 = vsel %vm2405, %v7814, 0
  %7833 = vmatprep.subr.mxu0 %v7827
  %7834 = vmatpush1.msra.mxu0 %v7828
  %7835 = vmatprep.subr.mxu0 0.0
  %7836 = vmatpush1.msra.mxu0 0.0
  %7837 = vmatprep.subr.mxu0 0.0
  %7838 = vmatpush1.msra.mxu0 0.0
  %7839 = vmatprep.subr.mxu0 0.0
  %7840 = vmatpush1.msra.mxu0 0.0
  %7841 = vmatprep.subr.mxu0 0.0
  %7842 = vmatpush1.msra.mxu0 0.0
  %7843 = vmatprep.subr.mxu0 0.0
  %7844 = vmatpush1.msra.mxu0 0.0
  %7845 = vmatprep.subr.mxu0 0.0
  %7846 = vmatpush1.msra.mxu0 0.0
  %7847 = vmatprep.subr.mxu0 0.0
  %7848 = vmatpush1.msra.mxu0 0.0
  %7849 = vmatprep.subr.mxu0 0.0
  %7850 = vmatpush1.msra.mxu0 0.0
  %7851 = vmatprep.subr.mxu0 0.0
  %7852 = vmatpush1.msra.mxu0 0.0
  %7853 = vmatprep.subr.mxu0 0.0
  %7854 = vmatpush1.msra.mxu0 0.0
  %7855 = vmatprep.subr.mxu0 0.0
  %7856 = vmatpush1.msra.mxu0 0.0
  %7857 = vmatprep.subr.mxu0 0.0
  %7858 = vmatpush1.msra.mxu0 0.0
  %7859 = vmatprep.subr.mxu0 0.0
  %7860 = vmatpush1.msra.mxu0 0.0
  %7861 = vmatprep.subr.mxu0 0.0
  %7862 = vmatpush1.msra.mxu0 0.0
  %7863 = vmatprep.subr.mxu0 0.0
  %7864 = vmatpush1.msra.mxu0 0.0
  %7865 = vmatprep.subr.mxu0 0.0
  %7866 = vmatpush1.msra.mxu0 0.0
  %7867 = vmatprep.subr.mxu0 0.0
  %7868 = vmatpush1.msra.mxu0 0.0
  %7869 = vmatprep.subr.mxu0 0.0
  %7870 = vmatpush1.msra.mxu0 0.0
  %7871 = vmatprep.subr.mxu0 0.0
  %7872 = vmatpush1.msra.mxu0 0.0
  %7873 = vmatprep.subr.mxu0 0.0
  %7874 = vmatpush1.msra.mxu0 0.0
  %7875 = vmatprep.subr.mxu0 0.0
  %7876 = vmatpush1.msra.mxu0 0.0
  %7877 = vmatprep.subr.mxu0 0.0
  %7878 = vmatpush1.msra.mxu0 0.0
  %7879 = vmatprep.subr.mxu0 0.0
  %7880 = vmatpush1.msra.mxu0 0.0
  %7881 = vmatprep.subr.mxu0 0.0
  %7882 = vmatpush1.msra.mxu0 0.0
  %7883 = vmatprep.subr.mxu0 0.0
  %7884 = vmatpush1.msra.mxu0 0.0
  %7885 = vmatprep.subr.mxu0 0.0
  %7886 = vmatpush1.msra.mxu0 0.0
  %7887 = vmatprep.subr.mxu0 0.0
  %7888 = vmatpush1.msra.mxu0 0.0
  %7889 = vmatprep.subr.mxu0 0.0
  %7890 = vmatpush1.msra.mxu0 0.0
  %7891 = vmatprep.subr.mxu0 0.0
  %7892 = vmatpush1.msra.mxu0 0.0
  %7893 = vmatprep.subr.mxu0 0.0
  %7894 = vmatpush1.msra.mxu0 0.0
  %7895 = vmatprep.subr.mxu0 0.0
  %7896 = vmatpush1.msra.mxu0 0.0
  %7897 = vmatprep.mubr.f32.mxu0 0.0
  %7898 = vmatmul.mubr.f32.gmra.mrb[0].mxu0 %v7831
  %v7899 = vpop.f32.mrb[0].mxu0
  %v7900 = vadd.f32 0.0, %v7899
  %v7901 = vpop.f32.mrb[0].mxu0
  %v7902 = vadd.f32 0.0, %v7901
  %7903 = vdwg.mxu0
  %7904 = vmatprep.subr.mxu0 %v7825
  %7905 = vmatpush1.msra.mxu0 %v7826
  %7906 = vmatprep.subr.mxu0 0.0
  %7907 = vmatpush1.msra.mxu0 0.0
  %7908 = vmatprep.subr.mxu0 0.0
  %7909 = vmatpush1.msra.mxu0 0.0
  %7910 = vmatprep.subr.mxu0 0.0
  %7911 = vmatpush1.msra.mxu0 0.0
  %7912 = vmatprep.subr.mxu0 0.0
  %7913 = vmatpush1.msra.mxu0 0.0
  %7914 = vmatprep.subr.mxu0 0.0
  %7915 = vmatpush1.msra.mxu0 0.0
  %7916 = vmatprep.subr.mxu0 0.0
  %7917 = vmatpush1.msra.mxu0 0.0
  %7918 = vmatprep.subr.mxu0 0.0
  %7919 = vmatpush1.msra.mxu0 0.0
  %7920 = vmatprep.subr.mxu0 0.0
  %7921 = vmatpush1.msra.mxu0 0.0
  %7922 = vmatprep.subr.mxu0 0.0
  %7923 = vmatpush1.msra.mxu0 0.0
  %7924 = vmatprep.subr.mxu0 0.0
  %7925 = vmatpush1.msra.mxu0 0.0
  %7926 = vmatprep.subr.mxu0 0.0
  %7927 = vmatpush1.msra.mxu0 0.0
  %7928 = vmatprep.subr.mxu0 0.0
  %7929 = vmatpush1.msra.mxu0 0.0
  %7930 = vmatprep.subr.mxu0 0.0
  %7931 = vmatpush1.msra.mxu0 0.0
  %7932 = vmatprep.subr.mxu0 0.0
  %7933 = vmatpush1.msra.mxu0 0.0
  %7934 = vmatprep.subr.mxu0 0.0
  %7935 = vmatpush1.msra.mxu0 0.0
  %7936 = vmatprep.subr.mxu0 0.0
  %7937 = vmatpush1.msra.mxu0 0.0
  %7938 = vmatprep.subr.mxu0 0.0
  %7939 = vmatpush1.msra.mxu0 0.0
  %7940 = vmatprep.subr.mxu0 0.0
  %7941 = vmatpush1.msra.mxu0 0.0
  %7942 = vmatprep.subr.mxu0 0.0
  %7943 = vmatpush1.msra.mxu0 0.0
  %7944 = vmatprep.subr.mxu0 0.0
  %7945 = vmatpush1.msra.mxu0 0.0
  %7946 = vmatprep.subr.mxu0 0.0
  %7947 = vmatpush1.msra.mxu0 0.0
  %7948 = vmatprep.subr.mxu0 0.0
  %7949 = vmatpush1.msra.mxu0 0.0
  %7950 = vmatprep.subr.mxu0 0.0
  %7951 = vmatpush1.msra.mxu0 0.0
  %7952 = vmatprep.subr.mxu0 0.0
  %7953 = vmatpush1.msra.mxu0 0.0
  %7954 = vmatprep.subr.mxu0 0.0
  %7955 = vmatpush1.msra.mxu0 0.0
  %7956 = vmatprep.subr.mxu0 0.0
  %7957 = vmatpush1.msra.mxu0 0.0
  %7958 = vmatprep.subr.mxu0 0.0
  %7959 = vmatpush1.msra.mxu0 0.0
  %7960 = vmatprep.subr.mxu0 0.0
  %7961 = vmatpush1.msra.mxu0 0.0
  %7962 = vmatprep.subr.mxu0 0.0
  %7963 = vmatpush1.msra.mxu0 0.0
  %7964 = vmatprep.subr.mxu0 0.0
  %7965 = vmatpush1.msra.mxu0 0.0
  %7966 = vmatprep.subr.mxu0 0.0
  %7967 = vmatpush1.msra.mxu0 0.0
  %7968 = vmatprep.mubr.f32.mxu0 0.0
  %7969 = vmatmul.mubr.f32.gmra.mrb[0].mxu0 %v7831
  %v7970 = vpop.f32.mrb[0].mxu0
  %v7971 = vadd.f32 0.0, %v7970
  %v7972 = vpop.f32.mrb[0].mxu0
  %v7973 = vadd.f32 0.0, %v7972
  %7974 = vdwg.mxu0
  %7975 = vmatprep.subr.mxu0 0.0
  %7976 = vmatpush1.msra.mxu0 %v7829
  %7977 = vmatprep.subr.mxu0 0.0
  %7978 = vmatpush1.msra.mxu0 0.0
  %7979 = vmatprep.subr.mxu0 0.0
  %7980 = vmatpush1.msra.mxu0 0.0
  %7981 = vmatprep.subr.mxu0 0.0
  %7982 = vmatpush1.msra.mxu0 0.0
  %7983 = vmatprep.subr.mxu0 0.0
  %7984 = vmatpush1.msra.mxu0 0.0
  %7985 = vmatprep.subr.mxu0 0.0
  %7986 = vmatpush1.msra.mxu0 0.0
  %7987 = vmatprep.subr.mxu0 0.0
  %7988 = vmatpush1.msra.mxu0 0.0
  %7989 = vmatprep.subr.mxu0 0.0
  %7990 = vmatpush1.msra.mxu0 0.0
  %7991 = vmatprep.subr.mxu0 0.0
  %7992 = vmatpush1.msra.mxu0 0.0
  %7993 = vmatprep.subr.mxu0 0.0
  %7994 = vmatpush1.msra.mxu0 0.0
  %7995 = vmatprep.subr.mxu0 0.0
  %7996 = vmatpush1.msra.mxu0 0.0
  %7997 = vmatprep.subr.mxu0 0.0
  %7998 = vmatpush1.msra.mxu0 0.0
  %7999 = vmatprep.subr.mxu0 0.0
  %8000 = vmatpush1.msra.mxu0 0.0
  %8001 = vmatprep.subr.mxu0 0.0
  %8002 = vmatpush1.msra.mxu0 0.0
  %8003 = vmatprep.subr.mxu0 0.0
  %8004 = vmatpush1.msra.mxu0 0.0
  %8005 = vmatprep.subr.mxu0 0.0
  %8006 = vmatpush1.msra.mxu0 0.0
  %8007 = vmatprep.subr.mxu0 0.0
  %8008 = vmatpush1.msra.mxu0 0.0
  %8009 = vmatprep.subr.mxu0 0.0
  %8010 = vmatpush1.msra.mxu0 0.0
  %8011 = vmatprep.subr.mxu0 0.0
  %8012 = vmatpush1.msra.mxu0 0.0
  %8013 = vmatprep.subr.mxu0 0.0
  %8014 = vmatpush1.msra.mxu0 0.0
  %8015 = vmatprep.subr.mxu0 0.0
  %8016 = vmatpush1.msra.mxu0 0.0
  %8017 = vmatprep.subr.mxu0 0.0
  %8018 = vmatpush1.msra.mxu0 0.0
  %8019 = vmatprep.subr.mxu0 0.0
  %8020 = vmatpush1.msra.mxu0 0.0
  %8021 = vmatprep.subr.mxu0 0.0
  %8022 = vmatpush1.msra.mxu0 0.0
  %8023 = vmatprep.subr.mxu0 0.0
  %8024 = vmatpush1.msra.mxu0 0.0
  %8025 = vmatprep.subr.mxu0 0.0
  %8026 = vmatpush1.msra.mxu0 0.0
  %8027 = vmatprep.subr.mxu0 0.0
  %8028 = vmatpush1.msra.mxu0 0.0
  %8029 = vmatprep.subr.mxu0 0.0
  %8030 = vmatpush1.msra.mxu0 0.0
  %8031 = vmatprep.subr.mxu0 0.0
  %8032 = vmatpush1.msra.mxu0 0.0
  %8033 = vmatprep.subr.mxu0 0.0
  %8034 = vmatpush1.msra.mxu0 0.0
  %8035 = vmatprep.subr.mxu0 0.0
  %8036 = vmatpush1.msra.mxu0 0.0
  %8037 = vmatprep.subr.mxu0 0.0
  %8038 = vmatpush1.msra.mxu0 0.0
  %8039 = vmatprep.mubr.f32.mxu0 0.0
  %8040 = vmatmul.mubr.f32.gmra.mrb[0].mxu0 %v7831
  %v8041 = vpop.f32.mrb[0].mxu0
  %v8042 = vadd.f32 0.0, %v8041
  %v8043 = vpop.f32.mrb[0].mxu0
  %8044 = vdwg.mxu0
  %v8045 = vadd.f32 %v7808, %v7900
  %v8046 = vadd.f32 %v7809, %v7902
  %v8047 = vadd.f32 %v7810, %v7971
  %v8048 = vadd.f32 %v7811, %v7973
  %v8049 = vadd.f32 %v7812, %v8042
  %8050 = vrot.lane.b32.xlu0 %v7814, 120
  %v8051 = vpop.permute.xlu0 %8050
  %v8052 = vsel %vm102, %v8051, 0
  %8054 = vmatprep.subr.mxu0 %v1580
  %8055 = vmatpush1.msra.mxu0 %v1577
  %8056 = vmatprep.subr.mxu0 0.0
  %8057 = vmatpush1.msra.mxu0 0.0
  %8058 = vmatprep.subr.mxu0 0.0
  %8059 = vmatpush1.msra.mxu0 0.0
  %8060 = vmatprep.subr.mxu0 0.0
  %8061 = vmatpush1.msra.mxu0 0.0
  %8062 = vmatprep.subr.mxu0 0.0
  %8063 = vmatpush1.msra.mxu0 0.0
  %8064 = vmatprep.subr.mxu0 0.0
  %8065 = vmatpush1.msra.mxu0 0.0
  %8066 = vmatprep.subr.mxu0 0.0
  %8067 = vmatpush1.msra.mxu0 0.0
  %8068 = vmatprep.subr.mxu0 0.0
  %8069 = vmatpush1.msra.mxu0 0.0
  %8070 = vmatprep.subr.mxu0 0.0
  %8071 = vmatpush1.msra.mxu0 0.0
  %8072 = vmatprep.subr.mxu0 0.0
  %8073 = vmatpush1.msra.mxu0 0.0
  %8074 = vmatprep.subr.mxu0 0.0
  %8075 = vmatpush1.msra.mxu0 0.0
  %8076 = vmatprep.subr.mxu0 0.0
  %8077 = vmatpush1.msra.mxu0 0.0
  %8078 = vmatprep.subr.mxu0 0.0
  %8079 = vmatpush1.msra.mxu0 0.0
  %8080 = vmatprep.subr.mxu0 0.0
  %8081 = vmatpush1.msra.mxu0 0.0
  %8082 = vmatprep.subr.mxu0 0.0
  %8083 = vmatpush1.msra.mxu0 0.0
  %8084 = vmatprep.subr.mxu0 0.0
  %8085 = vmatpush1.msra.mxu0 0.0
  %8086 = vmatprep.subr.mxu0 0.0
  %8087 = vmatpush1.msra.mxu0 0.0
  %8088 = vmatprep.subr.mxu0 0.0
  %8089 = vmatpush1.msra.mxu0 0.0
  %8090 = vmatprep.subr.mxu0 0.0
  %8091 = vmatpush1.msra.mxu0 0.0
  %8092 = vmatprep.subr.mxu0 0.0
  %8093 = vmatpush1.msra.mxu0 0.0
  %8094 = vmatprep.subr.mxu0 0.0
  %8095 = vmatpush1.msra.mxu0 0.0
  %8096 = vmatprep.subr.mxu0 0.0
  %8097 = vmatpush1.msra.mxu0 0.0
  %8098 = vmatprep.subr.mxu0 0.0
  %8099 = vmatpush1.msra.mxu0 0.0
  %8100 = vmatprep.subr.mxu0 0.0
  %8101 = vmatpush1.msra.mxu0 0.0
  %8102 = vmatprep.subr.mxu0 0.0
  %8103 = vmatpush1.msra.mxu0 0.0
  %8104 = vmatprep.subr.mxu0 0.0
  %8105 = vmatpush1.msra.mxu0 0.0
  %8106 = vmatprep.subr.mxu0 0.0
  %8107 = vmatpush1.msra.mxu0 0.0
  %8108 = vmatprep.subr.mxu0 0.0
  %8109 = vmatpush1.msra.mxu0 0.0
  %8110 = vmatprep.subr.mxu0 0.0
  %8111 = vmatpush1.msra.mxu0 0.0
  %8112 = vmatprep.subr.mxu0 0.0
  %8113 = vmatpush1.msra.mxu0 0.0
  %8114 = vmatprep.subr.mxu0 0.0
  %8115 = vmatpush1.msra.mxu0 0.0
  %8116 = vmatprep.subr.mxu0 0.0
  %8117 = vmatpush1.msra.mxu0 0.0
  %8118 = vmatprep.mubr.f32.mxu0 0.0
  %8119 = vmatmul.mubr.f32.gmra.mrb[0].mxu0 %v8052
  %v8120 = vpop.f32.mrb[0].mxu0
  %v8121 = vadd.f32 0.0, %v8120
  %v8122 = vpop.f32.mrb[0].mxu0
  %v8123 = vadd.f32 0.0, %v8122
  %8124 = vdwg.mxu0
  %8125 = vmatprep.subr.mxu0 %v1586
  %8126 = vmatpush1.msra.mxu0 %v1583
  %8127 = vmatprep.subr.mxu0 0.0
  %8128 = vmatpush1.msra.mxu0 0.0
  %8129 = vmatprep.subr.mxu0 0.0
  %8130 = vmatpush1.msra.mxu0 0.0
  %8131 = vmatprep.subr.mxu0 0.0
  %8132 = vmatpush1.msra.mxu0 0.0
  %8133 = vmatprep.subr.mxu0 0.0
  %8134 = vmatpush1.msra.mxu0 0.0
  %8135 = vmatprep.subr.mxu0 0.0
  %8136 = vmatpush1.msra.mxu0 0.0
  %8137 = vmatprep.subr.mxu0 0.0
  %8138 = vmatpush1.msra.mxu0 0.0
  %8139 = vmatprep.subr.mxu0 0.0
  %8140 = vmatpush1.msra.mxu0 0.0
  %8141 = vmatprep.subr.mxu0 0.0
  %8142 = vmatpush1.msra.mxu0 0.0
  %8143 = vmatprep.subr.mxu0 0.0
  %8144 = vmatpush1.msra.mxu0 0.0
  %8145 = vmatprep.subr.mxu0 0.0
  %8146 = vmatpush1.msra.mxu0 0.0
  %8147 = vmatprep.subr.mxu0 0.0
  %8148 = vmatpush1.msra.mxu0 0.0
  %8149 = vmatprep.subr.mxu0 0.0
  %8150 = vmatpush1.msra.mxu0 0.0
  %8151 = vmatprep.subr.mxu0 0.0
  %8152 = vmatpush1.msra.mxu0 0.0
  %8153 = vmatprep.subr.mxu0 0.0
  %8154 = vmatpush1.msra.mxu0 0.0
  %8155 = vmatprep.subr.mxu0 0.0
  %8156 = vmatpush1.msra.mxu0 0.0
  %8157 = vmatprep.subr.mxu0 0.0
  %8158 = vmatpush1.msra.mxu0 0.0
  %8159 = vmatprep.subr.mxu0 0.0
  %8160 = vmatpush1.msra.mxu0 0.0
  %8161 = vmatprep.subr.mxu0 0.0
  %8162 = vmatpush1.msra.mxu0 0.0
  %8163 = vmatprep.subr.mxu0 0.0
  %8164 = vmatpush1.msra.mxu0 0.0
  %8165 = vmatprep.subr.mxu0 0.0
  %8166 = vmatpush1.msra.mxu0 0.0
  %8167 = vmatprep.subr.mxu0 0.0
  %8168 = vmatpush1.msra.mxu0 0.0
  %8169 = vmatprep.subr.mxu0 0.0
  %8170 = vmatpush1.msra.mxu0 0.0
  %8171 = vmatprep.subr.mxu0 0.0
  %8172 = vmatpush1.msra.mxu0 0.0
  %8173 = vmatprep.subr.mxu0 0.0
  %8174 = vmatpush1.msra.mxu0 0.0
  %8175 = vmatprep.subr.mxu0 0.0
  %8176 = vmatpush1.msra.mxu0 0.0
  %8177 = vmatprep.subr.mxu0 0.0
  %8178 = vmatpush1.msra.mxu0 0.0
  %8179 = vmatprep.subr.mxu0 0.0
  %8180 = vmatpush1.msra.mxu0 0.0
  %8181 = vmatprep.subr.mxu0 0.0
  %8182 = vmatpush1.msra.mxu0 0.0
  %8183 = vmatprep.subr.mxu0 0.0
  %8184 = vmatpush1.msra.mxu0 0.0
  %8185 = vmatprep.subr.mxu0 0.0
  %8186 = vmatpush1.msra.mxu0 0.0
  %8187 = vmatprep.subr.mxu0 0.0
  %8188 = vmatpush1.msra.mxu0 0.0
  %8189 = vmatprep.mubr.f32.mxu0 0.0
  %8190 = vmatmul.mubr.f32.gmra.mrb[0].mxu0 %v8052
  %v8191 = vpop.f32.mrb[0].mxu0
  %v8192 = vadd.f32 0.0, %v8191
  %v8193 = vpop.f32.mrb[0].mxu0
  %v8194 = vadd.f32 0.0, %v8193
  %8195 = vdwg.mxu0
  %8196 = vmatprep.subr.mxu0 0.0
  %8197 = vmatpush1.msra.mxu0 %v1589
  %8198 = vmatprep.subr.mxu0 0.0
  %8199 = vmatpush1.msra.mxu0 0.0
  %8200 = vmatprep.subr.mxu0 0.0
  %8201 = vmatpush1.msra.mxu0 0.0
  %8202 = vmatprep.subr.mxu0 0.0
  %8203 = vmatpush1.msra.mxu0 0.0
  %8204 = vmatprep.subr.mxu0 0.0
  %8205 = vmatpush1.msra.mxu0 0.0
  %8206 = vmatprep.subr.mxu0 0.0
  %8207 = vmatpush1.msra.mxu0 0.0
  %8208 = vmatprep.subr.mxu0 0.0
  %8209 = vmatpush1.msra.mxu0 0.0
  %8210 = vmatprep.subr.mxu0 0.0
  %8211 = vmatpush1.msra.mxu0 0.0
  %8212 = vmatprep.subr.mxu0 0.0
  %8213 = vmatpush1.msra.mxu0 0.0
  %8214 = vmatprep.subr.mxu0 0.0
  %8215 = vmatpush1.msra.mxu0 0.0
  %8216 = vmatprep.subr.mxu0 0.0
  %8217 = vmatpush1.msra.mxu0 0.0
  %8218 = vmatprep.subr.mxu0 0.0
  %8219 = vmatpush1.msra.mxu0 0.0
  %8220 = vmatprep.subr.mxu0 0.0
  %8221 = vmatpush1.msra.mxu0 0.0
  %8222 = vmatprep.subr.mxu0 0.0
  %8223 = vmatpush1.msra.mxu0 0.0
  %8224 = vmatprep.subr.mxu0 0.0
  %8225 = vmatpush1.msra.mxu0 0.0
  %8226 = vmatprep.subr.mxu0 0.0
  %8227 = vmatpush1.msra.mxu0 0.0
  %8228 = vmatprep.subr.mxu0 0.0
  %8229 = vmatpush1.msra.mxu0 0.0
  %8230 = vmatprep.subr.mxu0 0.0
  %8231 = vmatpush1.msra.mxu0 0.0
  %8232 = vmatprep.subr.mxu0 0.0
  %8233 = vmatpush1.msra.mxu0 0.0
  %8234 = vmatprep.subr.mxu0 0.0
  %8235 = vmatpush1.msra.mxu0 0.0
  %8236 = vmatprep.subr.mxu0 0.0
  %8237 = vmatpush1.msra.mxu0 0.0
  %8238 = vmatprep.subr.mxu0 0.0
  %8239 = vmatpush1.msra.mxu0 0.0
  %8240 = vmatprep.subr.mxu0 0.0
  %8241 = vmatpush1.msra.mxu0 0.0
  %8242 = vmatprep.subr.mxu0 0.0
  %8243 = vmatpush1.msra.mxu0 0.0
  %8244 = vmatprep.subr.mxu0 0.0
  %8245 = vmatpush1.msra.mxu0 0.0
  %8246 = vmatprep.subr.mxu0 0.0
  %8247 = vmatpush1.msra.mxu0 0.0
  %8248 = vmatprep.subr.mxu0 0.0
  %8249 = vmatpush1.msra.mxu0 0.0
  %8250 = vmatprep.subr.mxu0 0.0
  %8251 = vmatpush1.msra.mxu0 0.0
  %8252 = vmatprep.subr.mxu0 0.0
  %8253 = vmatpush1.msra.mxu0 0.0
  %8254 = vmatprep.subr.mxu0 0.0
  %8255 = vmatpush1.msra.mxu0 0.0
  %8256 = vmatprep.subr.mxu0 0.0
  %8257 = vmatpush1.msra.mxu0 0.0
  %8258 = vmatprep.subr.mxu0 0.0
  %8259 = vmatpush1.msra.mxu0 0.0
  %8260 = vmatprep.mubr.f32.mxu0 0.0
  %8261 = vmatmul.mubr.f32.gmra.mrb[0].mxu0 %v8052
  %v8262 = vpop.f32.mrb[0].mxu0
  %v8263 = vadd.f32 0.0, %v8262
  %v8264 = vpop.f32.mrb[0].mxu0
  %8265 = vdwg.mxu0
  %v8266 = vadd.f32 %v8045, %v8121
  %v8267 = vadd.f32 %v8046, %v8123
  %v8268 = vadd.f32 %v8047, %v8192
  %v8269 = vadd.f32 %v8048, %v8194
  %v8270 = vadd.f32 %v8049, %v8263
  %8271 = vrot.lane.b32.xlu0 %v4666, 116
  %v8272 = vpop.permute.xlu0 %8271
  %8273 = vrot.lane.b32.xlu0 %v4668, 116
  %v8274 = vpop.permute.xlu0 %8273
  %8275 = vrot.lane.b32.xlu0 %v4737, 116
  %v8276 = vpop.permute.xlu0 %8275
  %8277 = vrot.lane.b32.xlu0 %v4739, 116
  %v8278 = vpop.permute.xlu0 %8277
  %8279 = vrot.lane.b32.xlu0 %v4808, 116
  %v8280 = vpop.permute.xlu0 %8279
  %v8281 = vsel %vm1567, %v8278, %v8280
  %v8282 = vsel %vm1567, %v8276, %v8278
  %v8283 = vsel %vm1567, %v8274, %v8276
  %v8284 = vsel %vm1567, %v8272, %v8274
  %v8285 = vsel %vm1567, %v8280, %v8272
  %8286 = vset.pattern.permute.xlu0 10
  %8287 = vperm.xlu0 %8286, %v7814
  %v8288 = vpop.permute.xlu0 %8287
  %v8290 = vlaneseq
  %v8291 = vshrl.u32 %v8290, 7
  %v8292 = vsub.s32 0, %v8291
  %v8293 = vrot.slane %v8284, %v8292
  %v8294 = vlaneseq
  %v8295 = vshrl.u32 %v8294, 7
  %v8296 = vsub.s32 0, %v8295
  %v8297 = vrot.slane %v8283, %v8296
  %v8298 = vlaneseq
  %v8299 = vshrl.u32 %v8298, 7
  %v8300 = vsub.s32 0, %v8299
  %v8301 = vrot.slane %v8282, %v8300
  %v8302 = vlaneseq
  %v8303 = vshrl.u32 %v8302, 7
  %v8304 = vsub.s32 0, %v8303
  %v8305 = vrot.slane %v8281, %v8304
  %v8306 = vlaneseq
  %v8307 = vshrl.u32 %v8306, 7
  %v8308 = vsub.s32 0, %v8307
  %v8309 = vrot.slane %v8285, %v8308
  %v8310 = vmul.f32 %v8288, %v8293
  %v8311 = vmul.f32 %v8288, %v8297
  %v8312 = vmul.f32 %v8288, %v8301
  %v8313 = vmul.f32 %v8288, %v8305
  %v8314 = vmul.f32 %v8288, %v8309
  %v8315 = vadd.f32 %v8266, %v8310
  %v8316 = vadd.f32 %v8267, %v8311
  %v8317 = vadd.f32 %v8268, %v8312
  %v8318 = vadd.f32 %v8269, %v8313
  %v8319 = vadd.f32 %v8270, %v8314
  %s8320 = scalar_lea.vmem %s4, 200
  %v8321 = vld [vmem:[%s8320] sm:$0xff]
  %8322 = vrot.lane.b32.xlu0 %v4507, 115
  %v8323 = vpop.permute.xlu0 %8322
  %8324 = vrot.lane.b32.xlu0 %v4508, 115
  %v8325 = vpop.permute.xlu0 %8324
  %8326 = vrot.lane.b32.xlu0 %v4509, 115
  %v8327 = vpop.permute.xlu0 %8326
  %8328 = vrot.lane.b32.xlu0 %v4510, 115
  %v8329 = vpop.permute.xlu0 %8328
  %8330 = vrot.lane.b32.xlu0 %v4511, 115
  %v8331 = vpop.permute.xlu0 %8330
  %v8332 = vsel %vm1820, %v8329, %v8331
  %v8333 = vsel %vm1820, %v8327, %v8329
  %v8334 = vsel %vm1820, %v8325, %v8327
  %v8335 = vsel %vm1820, %v8323, %v8325
  %v8336 = vsel %vm1820, %v8331, %v8323
  %v8338 = vsel %vm2405, %v8321, 0
  %8340 = vmatprep.subr.mxu0 %v8334
  %8341 = vmatpush1.msra.mxu0 %v8335
  %8342 = vmatprep.subr.mxu0 0.0
  %8343 = vmatpush1.msra.mxu0 0.0
  %8344 = vmatprep.subr.mxu0 0.0
  %8345 = vmatpush1.msra.mxu0 0.0
  %8346 = vmatprep.subr.mxu0 0.0
  %8347 = vmatpush1.msra.mxu0 0.0
  %8348 = vmatprep.subr.mxu0 0.0
  %8349 = vmatpush1.msra.mxu0 0.0
  %8350 = vmatprep.subr.mxu0 0.0
  %8351 = vmatpush1.msra.mxu0 0.0
  %8352 = vmatprep.subr.mxu0 0.0
  %8353 = vmatpush1.msra.mxu0 0.0
  %8354 = vmatprep.subr.mxu0 0.0
  %8355 = vmatpush1.msra.mxu0 0.0
  %8356 = vmatprep.subr.mxu0 0.0
  %8357 = vmatpush1.msra.mxu0 0.0
  %8358 = vmatprep.subr.mxu0 0.0
  %8359 = vmatpush1.msra.mxu0 0.0
  %8360 = vmatprep.subr.mxu0 0.0
  %8361 = vmatpush1.msra.mxu0 0.0
  %8362 = vmatprep.subr.mxu0 0.0
  %8363 = vmatpush1.msra.mxu0 0.0
  %8364 = vmatprep.subr.mxu0 0.0
  %8365 = vmatpush1.msra.mxu0 0.0
  %8366 = vmatprep.subr.mxu0 0.0
  %8367 = vmatpush1.msra.mxu0 0.0
  %8368 = vmatprep.subr.mxu0 0.0
  %8369 = vmatpush1.msra.mxu0 0.0
  %8370 = vmatprep.subr.mxu0 0.0
  %8371 = vmatpush1.msra.mxu0 0.0
  %8372 = vmatprep.subr.mxu0 0.0
  %8373 = vmatpush1.msra.mxu0 0.0
  %8374 = vmatprep.subr.mxu0 0.0
  %8375 = vmatpush1.msra.mxu0 0.0
  %8376 = vmatprep.subr.mxu0 0.0
  %8377 = vmatpush1.msra.mxu0 0.0
  %8378 = vmatprep.subr.mxu0 0.0
  %8379 = vmatpush1.msra.mxu0 0.0
  %8380 = vmatprep.subr.mxu0 0.0
  %8381 = vmatpush1.msra.mxu0 0.0
  %8382 = vmatprep.subr.mxu0 0.0
  %8383 = vmatpush1.msra.mxu0 0.0
  %8384 = vmatprep.subr.mxu0 0.0
  %8385 = vmatpush1.msra.mxu0 0.0
  %8386 = vmatprep.subr.mxu0 0.0
  %8387 = vmatpush1.msra.mxu0 0.0
  %8388 = vmatprep.subr.mxu0 0.0
  %8389 = vmatpush1.msra.mxu0 0.0
  %8390 = vmatprep.subr.mxu0 0.0
  %8391 = vmatpush1.msra.mxu0 0.0
  %8392 = vmatprep.subr.mxu0 0.0
  %8393 = vmatpush1.msra.mxu0 0.0
  %8394 = vmatprep.subr.mxu0 0.0
  %8395 = vmatpush1.msra.mxu0 0.0
  %8396 = vmatprep.subr.mxu0 0.0
  %8397 = vmatpush1.msra.mxu0 0.0
  %8398 = vmatprep.subr.mxu0 0.0
  %8399 = vmatpush1.msra.mxu0 0.0
  %8400 = vmatprep.subr.mxu0 0.0
  %8401 = vmatpush1.msra.mxu0 0.0
  %8402 = vmatprep.subr.mxu0 0.0
  %8403 = vmatpush1.msra.mxu0 0.0
  %8404 = vmatprep.mubr.f32.mxu0 0.0
  %8405 = vmatmul.mubr.f32.gmra.mrb[0].mxu0 %v8338
  %v8406 = vpop.f32.mrb[0].mxu0
  %v8407 = vadd.f32 0.0, %v8406
  %v8408 = vpop.f32.mrb[0].mxu0
  %v8409 = vadd.f32 0.0, %v8408
  %8410 = vdwg.mxu0
  %8411 = vmatprep.subr.mxu0 %v8332
  %8412 = vmatpush1.msra.mxu0 %v8333
  %8413 = vmatprep.subr.mxu0 0.0
  %8414 = vmatpush1.msra.mxu0 0.0
  %8415 = vmatprep.subr.mxu0 0.0
  %8416 = vmatpush1.msra.mxu0 0.0
  %8417 = vmatprep.subr.mxu0 0.0
  %8418 = vmatpush1.msra.mxu0 0.0
  %8419 = vmatprep.subr.mxu0 0.0
  %8420 = vmatpush1.msra.mxu0 0.0
  %8421 = vmatprep.subr.mxu0 0.0
  %8422 = vmatpush1.msra.mxu0 0.0
  %8423 = vmatprep.subr.mxu0 0.0
  %8424 = vmatpush1.msra.mxu0 0.0
  %8425 = vmatprep.subr.mxu0 0.0
  %8426 = vmatpush1.msra.mxu0 0.0
  %8427 = vmatprep.subr.mxu0 0.0
  %8428 = vmatpush1.msra.mxu0 0.0
  %8429 = vmatprep.subr.mxu0 0.0
  %8430 = vmatpush1.msra.mxu0 0.0
  %8431 = vmatprep.subr.mxu0 0.0
  %8432 = vmatpush1.msra.mxu0 0.0
  %8433 = vmatprep.subr.mxu0 0.0
  %8434 = vmatpush1.msra.mxu0 0.0
  %8435 = vmatprep.subr.mxu0 0.0
  %8436 = vmatpush1.msra.mxu0 0.0
  %8437 = vmatprep.subr.mxu0 0.0
  %8438 = vmatpush1.msra.mxu0 0.0
  %8439 = vmatprep.subr.mxu0 0.0
  %8440 = vmatpush1.msra.mxu0 0.0
  %8441 = vmatprep.subr.mxu0 0.0
  %8442 = vmatpush1.msra.mxu0 0.0
  %8443 = vmatprep.subr.mxu0 0.0
  %8444 = vmatpush1.msra.mxu0 0.0
  %8445 = vmatprep.subr.mxu0 0.0
  %8446 = vmatpush1.msra.mxu0 0.0
  %8447 = vmatprep.subr.mxu0 0.0
  %8448 = vmatpush1.msra.mxu0 0.0
  %8449 = vmatprep.subr.mxu0 0.0
  %8450 = vmatpush1.msra.mxu0 0.0
  %8451 = vmatprep.subr.mxu0 0.0
  %8452 = vmatpush1.msra.mxu0 0.0
  %8453 = vmatprep.subr.mxu0 0.0
  %8454 = vmatpush1.msra.mxu0 0.0
  %8455 = vmatprep.subr.mxu0 0.0
  %8456 = vmatpush1.msra.mxu0 0.0
  %8457 = vmatprep.subr.mxu0 0.0
  %8458 = vmatpush1.msra.mxu0 0.0
  %8459 = vmatprep.subr.mxu0 0.0
  %8460 = vmatpush1.msra.mxu0 0.0
  %8461 = vmatprep.subr.mxu0 0.0
  %8462 = vmatpush1.msra.mxu0 0.0
  %8463 = vmatprep.subr.mxu0 0.0
  %8464 = vmatpush1.msra.mxu0 0.0
  %8465 = vmatprep.subr.mxu0 0.0
  %8466 = vmatpush1.msra.mxu0 0.0
  %8467 = vmatprep.subr.mxu0 0.0
  %8468 = vmatpush1.msra.mxu0 0.0
  %8469 = vmatprep.subr.mxu0 0.0
  %8470 = vmatpush1.msra.mxu0 0.0
  %8471 = vmatprep.subr.mxu0 0.0
  %8472 = vmatpush1.msra.mxu0 0.0
  %8473 = vmatprep.subr.mxu0 0.0
  %8474 = vmatpush1.msra.mxu0 0.0
  %8475 = vmatprep.mubr.f32.mxu0 0.0
  %8476 = vmatmul.mubr.f32.gmra.mrb[0].mxu0 %v8338
  %v8477 = vpop.f32.mrb[0].mxu0
  %v8478 = vadd.f32 0.0, %v8477
  %v8479 = vpop.f32.mrb[0].mxu0
  %v8480 = vadd.f32 0.0, %v8479
  %8481 = vdwg.mxu0
  %8482 = vmatprep.subr.mxu0 0.0
  %8483 = vmatpush1.msra.mxu0 %v8336
  %8484 = vmatprep.subr.mxu0 0.0
  %8485 = vmatpush1.msra.mxu0 0.0
  %8486 = vmatprep.subr.mxu0 0.0
  %8487 = vmatpush1.msra.mxu0 0.0
  %8488 = vmatprep.subr.mxu0 0.0
  %8489 = vmatpush1.msra.mxu0 0.0
  %8490 = vmatprep.subr.mxu0 0.0
  %8491 = vmatpush1.msra.mxu0 0.0
  %8492 = vmatprep.subr.mxu0 0.0
  %8493 = vmatpush1.msra.mxu0 0.0
  %8494 = vmatprep.subr.mxu0 0.0
  %8495 = vmatpush1.msra.mxu0 0.0
  %8496 = vmatprep.subr.mxu0 0.0
  %8497 = vmatpush1.msra.mxu0 0.0
  %8498 = vmatprep.subr.mxu0 0.0
  %8499 = vmatpush1.msra.mxu0 0.0
  %8500 = vmatprep.subr.mxu0 0.0
  %8501 = vmatpush1.msra.mxu0 0.0
  %8502 = vmatprep.subr.mxu0 0.0
  %8503 = vmatpush1.msra.mxu0 0.0
  %8504 = vmatprep.subr.mxu0 0.0
  %8505 = vmatpush1.msra.mxu0 0.0
  %8506 = vmatprep.subr.mxu0 0.0
  %8507 = vmatpush1.msra.mxu0 0.0
  %8508 = vmatprep.subr.mxu0 0.0
  %8509 = vmatpush1.msra.mxu0 0.0
  %8510 = vmatprep.subr.mxu0 0.0
  %8511 = vmatpush1.msra.mxu0 0.0
  %8512 = vmatprep.subr.mxu0 0.0
  %8513 = vmatpush1.msra.mxu0 0.0
  %8514 = vmatprep.subr.mxu0 0.0
  %8515 = vmatpush1.msra.mxu0 0.0
  %8516 = vmatprep.subr.mxu0 0.0
  %8517 = vmatpush1.msra.mxu0 0.0
  %8518 = vmatprep.subr.mxu0 0.0
  %8519 = vmatpush1.msra.mxu0 0.0
  %8520 = vmatprep.subr.mxu0 0.0
  %8521 = vmatpush1.msra.mxu0 0.0
  %8522 = vmatprep.subr.mxu0 0.0
  %8523 = vmatpush1.msra.mxu0 0.0
  %8524 = vmatprep.subr.mxu0 0.0
  %8525 = vmatpush1.msra.mxu0 0.0
  %8526 = vmatprep.subr.mxu0 0.0
  %8527 = vmatpush1.msra.mxu0 0.0
  %8528 = vmatprep.subr.mxu0 0.0
  %8529 = vmatpush1.msra.mxu0 0.0
  %8530 = vmatprep.subr.mxu0 0.0
  %8531 = vmatpush1.msra.mxu0 0.0
  %8532 = vmatprep.subr.mxu0 0.0
  %8533 = vmatpush1.msra.mxu0 0.0
  %8534 = vmatprep.subr.mxu0 0.0
  %8535 = vmatpush1.msra.mxu0 0.0
  %8536 = vmatprep.subr.mxu0 0.0
  %8537 = vmatpush1.msra.mxu0 0.0
  %8538 = vmatprep.subr.mxu0 0.0
  %8539 = vmatpush1.msra.mxu0 0.0
  %8540 = vmatprep.subr.mxu0 0.0
  %8541 = vmatpush1.msra.mxu0 0.0
  %8542 = vmatprep.subr.mxu0 0.0
  %8543 = vmatpush1.msra.mxu0 0.0
  %8544 = vmatprep.subr.mxu0 0.0
  %8545 = vmatpush1.msra.mxu0 0.0
  %8546 = vmatprep.mubr.f32.mxu0 0.0
  %8547 = vmatmul.mubr.f32.gmra.mrb[0].mxu0 %v8338
  %v8548 = vpop.f32.mrb[0].mxu0
  %v8549 = vadd.f32 0.0, %v8548
  %v8550 = vpop.f32.mrb[0].mxu0
  %8551 = vdwg.mxu0
  %v8552 = vadd.f32 %v8315, %v8407
  %v8553 = vadd.f32 %v8316, %v8409
  %v8554 = vadd.f32 %v8317, %v8478
  %v8555 = vadd.f32 %v8318, %v8480
  %v8556 = vadd.f32 %v8319, %v8549
  %8557 = vrot.lane.b32.xlu0 %v8321, 120
  %v8558 = vpop.permute.xlu0 %8557
  %v8559 = vsel %vm102, %v8558, 0
  %8561 = vmatprep.subr.mxu0 %v1833
  %8562 = vmatpush1.msra.mxu0 %v1830
  %8563 = vmatprep.subr.mxu0 0.0
  %8564 = vmatpush1.msra.mxu0 0.0
  %8565 = vmatprep.subr.mxu0 0.0
  %8566 = vmatpush1.msra.mxu0 0.0
  %8567 = vmatprep.subr.mxu0 0.0
  %8568 = vmatpush1.msra.mxu0 0.0
  %8569 = vmatprep.subr.mxu0 0.0
  %8570 = vmatpush1.msra.mxu0 0.0
  %8571 = vmatprep.subr.mxu0 0.0
  %8572 = vmatpush1.msra.mxu0 0.0
  %8573 = vmatprep.subr.mxu0 0.0
  %8574 = vmatpush1.msra.mxu0 0.0
  %8575 = vmatprep.subr.mxu0 0.0
  %8576 = vmatpush1.msra.mxu0 0.0
  %8577 = vmatprep.subr.mxu0 0.0
  %8578 = vmatpush1.msra.mxu0 0.0
  %8579 = vmatprep.subr.mxu0 0.0
  %8580 = vmatpush1.msra.mxu0 0.0
  %8581 = vmatprep.subr.mxu0 0.0
  %8582 = vmatpush1.msra.mxu0 0.0
  %8583 = vmatprep.subr.mxu0 0.0
  %8584 = vmatpush1.msra.mxu0 0.0
  %8585 = vmatprep.subr.mxu0 0.0
  %8586 = vmatpush1.msra.mxu0 0.0
  %8587 = vmatprep.subr.mxu0 0.0
  %8588 = vmatpush1.msra.mxu0 0.0
  %8589 = vmatprep.subr.mxu0 0.0
  %8590 = vmatpush1.msra.mxu0 0.0
  %8591 = vmatprep.subr.mxu0 0.0
  %8592 = vmatpush1.msra.mxu0 0.0
  %8593 = vmatprep.subr.mxu0 0.0
  %8594 = vmatpush1.msra.mxu0 0.0
  %8595 = vmatprep.subr.mxu0 0.0
  %8596 = vmatpush1.msra.mxu0 0.0
  %8597 = vmatprep.subr.mxu0 0.0
  %8598 = vmatpush1.msra.mxu0 0.0
  %8599 = vmatprep.subr.mxu0 0.0
  %8600 = vmatpush1.msra.mxu0 0.0
  %8601 = vmatprep.subr.mxu0 0.0
  %8602 = vmatpush1.msra.mxu0 0.0
  %8603 = vmatprep.subr.mxu0 0.0
  %8604 = vmatpush1.msra.mxu0 0.0
  %8605 = vmatprep.subr.mxu0 0.0
  %8606 = vmatpush1.msra.mxu0 0.0
  %8607 = vmatprep.subr.mxu0 0.0
  %8608 = vmatpush1.msra.mxu0 0.0
  %8609 = vmatprep.subr.mxu0 0.0
  %8610 = vmatpush1.msra.mxu0 0.0
  %8611 = vmatprep.subr.mxu0 0.0
  %8612 = vmatpush1.msra.mxu0 0.0
  %8613 = vmatprep.subr.mxu0 0.0
  %8614 = vmatpush1.msra.mxu0 0.0
  %8615 = vmatprep.subr.mxu0 0.0
  %8616 = vmatpush1.msra.mxu0 0.0
  %8617 = vmatprep.subr.mxu0 0.0
  %8618 = vmatpush1.msra.mxu0 0.0
  %8619 = vmatprep.subr.mxu0 0.0
  %8620 = vmatpush1.msra.mxu0 0.0
  %8621 = vmatprep.subr.mxu0 0.0
  %8622 = vmatpush1.msra.mxu0 0.0
  %8623 = vmatprep.subr.mxu0 0.0
  %8624 = vmatpush1.msra.mxu0 0.0
  %8625 = vmatprep.mubr.f32.mxu0 0.0
  %8626 = vmatmul.mubr.f32.gmra.mrb[0].mxu0 %v8559
  %v8627 = vpop.f32.mrb[0].mxu0
  %v8628 = vadd.f32 0.0, %v8627
  %v8629 = vpop.f32.mrb[0].mxu0
  %v8630 = vadd.f32 0.0, %v8629
  %8631 = vdwg.mxu0
  %8632 = vmatprep.subr.mxu0 %v1839
  %8633 = vmatpush1.msra.mxu0 %v1836
  %8634 = vmatprep.subr.mxu0 0.0
  %8635 = vmatpush1.msra.mxu0 0.0
  %8636 = vmatprep.subr.mxu0 0.0
  %8637 = vmatpush1.msra.mxu0 0.0
  %8638 = vmatprep.subr.mxu0 0.0
  %8639 = vmatpush1.msra.mxu0 0.0
  %8640 = vmatprep.subr.mxu0 0.0
  %8641 = vmatpush1.msra.mxu0 0.0
  %8642 = vmatprep.subr.mxu0 0.0
  %8643 = vmatpush1.msra.mxu0 0.0
  %8644 = vmatprep.subr.mxu0 0.0
  %8645 = vmatpush1.msra.mxu0 0.0
  %8646 = vmatprep.subr.mxu0 0.0
  %8647 = vmatpush1.msra.mxu0 0.0
  %8648 = vmatprep.subr.mxu0 0.0
  %8649 = vmatpush1.msra.mxu0 0.0
  %8650 = vmatprep.subr.mxu0 0.0
  %8651 = vmatpush1.msra.mxu0 0.0
  %8652 = vmatprep.subr.mxu0 0.0
  %8653 = vmatpush1.msra.mxu0 0.0
  %8654 = vmatprep.subr.mxu0 0.0
  %8655 = vmatpush1.msra.mxu0 0.0
  %8656 = vmatprep.subr.mxu0 0.0
  %8657 = vmatpush1.msra.mxu0 0.0
  %8658 = vmatprep.subr.mxu0 0.0
  %8659 = vmatpush1.msra.mxu0 0.0
  %8660 = vmatprep.subr.mxu0 0.0
  %8661 = vmatpush1.msra.mxu0 0.0
  %8662 = vmatprep.subr.mxu0 0.0
  %8663 = vmatpush1.msra.mxu0 0.0
  %8664 = vmatprep.subr.mxu0 0.0
  %8665 = vmatpush1.msra.mxu0 0.0
  %8666 = vmatprep.subr.mxu0 0.0
  %8667 = vmatpush1.msra.mxu0 0.0
  %8668 = vmatprep.subr.mxu0 0.0
  %8669 = vmatpush1.msra.mxu0 0.0
  %8670 = vmatprep.subr.mxu0 0.0
  %8671 = vmatpush1.msra.mxu0 0.0
  %8672 = vmatprep.subr.mxu0 0.0
  %8673 = vmatpush1.msra.mxu0 0.0
  %8674 = vmatprep.subr.mxu0 0.0
  %8675 = vmatpush1.msra.mxu0 0.0
  %8676 = vmatprep.subr.mxu0 0.0
  %8677 = vmatpush1.msra.mxu0 0.0
  %8678 = vmatprep.subr.mxu0 0.0
  %8679 = vmatpush1.msra.mxu0 0.0
  %8680 = vmatprep.subr.mxu0 0.0
  %8681 = vmatpush1.msra.mxu0 0.0
  %8682 = vmatprep.subr.mxu0 0.0
  %8683 = vmatpush1.msra.mxu0 0.0
  %8684 = vmatprep.subr.mxu0 0.0
  %8685 = vmatpush1.msra.mxu0 0.0
  %8686 = vmatprep.subr.mxu0 0.0
  %8687 = vmatpush1.msra.mxu0 0.0
  %8688 = vmatprep.subr.mxu0 0.0
  %8689 = vmatpush1.msra.mxu0 0.0
  %8690 = vmatprep.subr.mxu0 0.0
  %8691 = vmatpush1.msra.mxu0 0.0
  %8692 = vmatprep.subr.mxu0 0.0
  %8693 = vmatpush1.msra.mxu0 0.0
  %8694 = vmatprep.subr.mxu0 0.0
  %8695 = vmatpush1.msra.mxu0 0.0
  %8696 = vmatprep.mubr.f32.mxu0 0.0
  %8697 = vmatmul.mubr.f32.gmra.mrb[0].mxu0 %v8559
  %v8698 = vpop.f32.mrb[0].mxu0
  %v8699 = vadd.f32 0.0, %v8698
  %v8700 = vpop.f32.mrb[0].mxu0
  %v8701 = vadd.f32 0.0, %v8700
  %8702 = vdwg.mxu0
  %8703 = vmatprep.subr.mxu0 0.0
  %8704 = vmatpush1.msra.mxu0 %v1842
  %8705 = vmatprep.subr.mxu0 0.0
  %8706 = vmatpush1.msra.mxu0 0.0
  %8707 = vmatprep.subr.mxu0 0.0
  %8708 = vmatpush1.msra.mxu0 0.0
  %8709 = vmatprep.subr.mxu0 0.0
  %8710 = vmatpush1.msra.mxu0 0.0
  %8711 = vmatprep.subr.mxu0 0.0
  %8712 = vmatpush1.msra.mxu0 0.0
  %8713 = vmatprep.subr.mxu0 0.0
  %8714 = vmatpush1.msra.mxu0 0.0
  %8715 = vmatprep.subr.mxu0 0.0
  %8716 = vmatpush1.msra.mxu0 0.0
  %8717 = vmatprep.subr.mxu0 0.0
  %8718 = vmatpush1.msra.mxu0 0.0
  %8719 = vmatprep.subr.mxu0 0.0
  %8720 = vmatpush1.msra.mxu0 0.0
  %8721 = vmatprep.subr.mxu0 0.0
  %8722 = vmatpush1.msra.mxu0 0.0
  %8723 = vmatprep.subr.mxu0 0.0
  %8724 = vmatpush1.msra.mxu0 0.0
  %8725 = vmatprep.subr.mxu0 0.0
  %8726 = vmatpush1.msra.mxu0 0.0
  %8727 = vmatprep.subr.mxu0 0.0
  %8728 = vmatpush1.msra.mxu0 0.0
  %8729 = vmatprep.subr.mxu0 0.0
  %8730 = vmatpush1.msra.mxu0 0.0
  %8731 = vmatprep.subr.mxu0 0.0
  %8732 = vmatpush1.msra.mxu0 0.0
  %8733 = vmatprep.subr.mxu0 0.0
  %8734 = vmatpush1.msra.mxu0 0.0
  %8735 = vmatprep.subr.mxu0 0.0
  %8736 = vmatpush1.msra.mxu0 0.0
  %8737 = vmatprep.subr.mxu0 0.0
  %8738 = vmatpush1.msra.mxu0 0.0
  %8739 = vmatprep.subr.mxu0 0.0
  %8740 = vmatpush1.msra.mxu0 0.0
  %8741 = vmatprep.subr.mxu0 0.0
  %8742 = vmatpush1.msra.mxu0 0.0
  %8743 = vmatprep.subr.mxu0 0.0
  %8744 = vmatpush1.msra.mxu0 0.0
  %8745 = vmatprep.subr.mxu0 0.0
  %8746 = vmatpush1.msra.mxu0 0.0
  %8747 = vmatprep.subr.mxu0 0.0
  %8748 = vmatpush1.msra.mxu0 0.0
  %8749 = vmatprep.subr.mxu0 0.0
  %8750 = vmatpush1.msra.mxu0 0.0
  %8751 = vmatprep.subr.mxu0 0.0
  %8752 = vmatpush1.msra.mxu0 0.0
  %8753 = vmatprep.subr.mxu0 0.0
  %8754 = vmatpush1.msra.mxu0 0.0
  %8755 = vmatprep.subr.mxu0 0.0
  %8756 = vmatpush1.msra.mxu0 0.0
  %8757 = vmatprep.subr.mxu0 0.0
  %8758 = vmatpush1.msra.mxu0 0.0
  %8759 = vmatprep.subr.mxu0 0.0
  %8760 = vmatpush1.msra.mxu0 0.0
  %8761 = vmatprep.subr.mxu0 0.0
  %8762 = vmatpush1.msra.mxu0 0.0
  %8763 = vmatprep.subr.mxu0 0.0
  %8764 = vmatpush1.msra.mxu0 0.0
  %8765 = vmatprep.subr.mxu0 0.0
  %8766 = vmatpush1.msra.mxu0 0.0
  %8767 = vmatprep.mubr.f32.mxu0 0.0
  %8768 = vmatmul.mubr.f32.gmra.mrb[0].mxu0 %v8559
  %v8769 = vpop.f32.mrb[0].mxu0
  %v8770 = vadd.f32 0.0, %v8769
  %v8771 = vpop.f32.mrb[0].mxu0
  %8772 = vdwg.mxu0
  %v8773 = vadd.f32 %v8552, %v8628
  %v8774 = vadd.f32 %v8553, %v8630
  %v8775 = vadd.f32 %v8554, %v8699
  %v8776 = vadd.f32 %v8555, %v8701
  %v8777 = vadd.f32 %v8556, %v8770
  %8778 = vrot.lane.b32.xlu0 %v4666, 115
  %v8779 = vpop.permute.xlu0 %8778
  %8780 = vrot.lane.b32.xlu0 %v4668, 115
  %v8781 = vpop.permute.xlu0 %8780
  %8782 = vrot.lane.b32.xlu0 %v4737, 115
  %v8783 = vpop.permute.xlu0 %8782
  %8784 = vrot.lane.b32.xlu0 %v4739, 115
  %v8785 = vpop.permute.xlu0 %8784
  %8786 = vrot.lane.b32.xlu0 %v4808, 115
  %v8787 = vpop.permute.xlu0 %8786
  %v8788 = vsel %vm1820, %v8785, %v8787
  %v8789 = vsel %vm1820, %v8783, %v8785
  %v8790 = vsel %vm1820, %v8781, %v8783
  %v8791 = vsel %vm1820, %v8779, %v8781
  %v8792 = vsel %vm1820, %v8787, %v8779
  %8793 = vset.pattern.permute.xlu0 10
  %8794 = vperm.xlu0 %8793, %v8321
  %v8795 = vpop.permute.xlu0 %8794
  %v8797 = vlaneseq
  %v8798 = vshrl.u32 %v8797, 7
  %v8799 = vsub.s32 0, %v8798
  %v8800 = vrot.slane %v8791, %v8799
  %v8801 = vlaneseq
  %v8802 = vshrl.u32 %v8801, 7
  %v8803 = vsub.s32 0, %v8802
  %v8804 = vrot.slane %v8790, %v8803
  %v8805 = vlaneseq
  %v8806 = vshrl.u32 %v8805, 7
  %v8807 = vsub.s32 0, %v8806
  %v8808 = vrot.slane %v8789, %v8807
  %v8809 = vlaneseq
  %v8810 = vshrl.u32 %v8809, 7
  %v8811 = vsub.s32 0, %v8810
  %v8812 = vrot.slane %v8788, %v8811
  %v8813 = vlaneseq
  %v8814 = vshrl.u32 %v8813, 7
  %v8815 = vsub.s32 0, %v8814
  %v8816 = vrot.slane %v8792, %v8815
  %v8817 = vmul.f32 %v8795, %v8800
  %v8818 = vmul.f32 %v8795, %v8804
  %v8819 = vmul.f32 %v8795, %v8808
  %v8820 = vmul.f32 %v8795, %v8812
  %v8821 = vmul.f32 %v8795, %v8816
  %v8822 = vadd.f32 %v8773, %v8817
  %v8823 = vadd.f32 %v8774, %v8818
  %v8824 = vadd.f32 %v8775, %v8819
  %v8825 = vadd.f32 %v8776, %v8820
  %v8826 = vadd.f32 %v8777, %v8821
  %s8827 = scalar_lea.vmem %s4, 208
  %v8828 = vld [vmem:[%s8827] sm:$0xff]
  %8829 = vrot.lane.b32.xlu0 %v4507, 114
  %v8830 = vpop.permute.xlu0 %8829
  %8831 = vrot.lane.b32.xlu0 %v4508, 114
  %v8832 = vpop.permute.xlu0 %8831
  %8833 = vrot.lane.b32.xlu0 %v4509, 114
  %v8834 = vpop.permute.xlu0 %8833
  %8835 = vrot.lane.b32.xlu0 %v4510, 114
  %v8836 = vpop.permute.xlu0 %8835
  %8837 = vrot.lane.b32.xlu0 %v4511, 114
  %v8838 = vpop.permute.xlu0 %8837
  %v8839 = vsel %vm2073, %v8836, %v8838
  %v8840 = vsel %vm2073, %v8834, %v8836
  %v8841 = vsel %vm2073, %v8832, %v8834
  %v8842 = vsel %vm2073, %v8830, %v8832
  %v8843 = vsel %vm2073, %v8838, %v8830
  %v8845 = vsel %vm2405, %v8828, 0
  %8847 = vmatprep.subr.mxu0 %v8841
  %8848 = vmatpush1.msra.mxu0 %v8842
  %8849 = vmatprep.subr.mxu0 0.0
  %8850 = vmatpush1.msra.mxu0 0.0
  %8851 = vmatprep.subr.mxu0 0.0
  %8852 = vmatpush1.msra.mxu0 0.0
  %8853 = vmatprep.subr.mxu0 0.0
  %8854 = vmatpush1.msra.mxu0 0.0
  %8855 = vmatprep.subr.mxu0 0.0
  %8856 = vmatpush1.msra.mxu0 0.0
  %8857 = vmatprep.subr.mxu0 0.0
  %8858 = vmatpush1.msra.mxu0 0.0
  %8859 = vmatprep.subr.mxu0 0.0
  %8860 = vmatpush1.msra.mxu0 0.0
  %8861 = vmatprep.subr.mxu0 0.0
  %8862 = vmatpush1.msra.mxu0 0.0
  %8863 = vmatprep.subr.mxu0 0.0
  %8864 = vmatpush1.msra.mxu0 0.0
  %8865 = vmatprep.subr.mxu0 0.0
  %8866 = vmatpush1.msra.mxu0 0.0
  %8867 = vmatprep.subr.mxu0 0.0
  %8868 = vmatpush1.msra.mxu0 0.0
  %8869 = vmatprep.subr.mxu0 0.0
  %8870 = vmatpush1.msra.mxu0 0.0
  %8871 = vmatprep.subr.mxu0 0.0
  %8872 = vmatpush1.msra.mxu0 0.0
  %8873 = vmatprep.subr.mxu0 0.0
  %8874 = vmatpush1.msra.mxu0 0.0
  %8875 = vmatprep.subr.mxu0 0.0
  %8876 = vmatpush1.msra.mxu0 0.0
  %8877 = vmatprep.subr.mxu0 0.0
  %8878 = vmatpush1.msra.mxu0 0.0
  %8879 = vmatprep.subr.mxu0 0.0
  %8880 = vmatpush1.msra.mxu0 0.0
  %8881 = vmatprep.subr.mxu0 0.0
  %8882 = vmatpush1.msra.mxu0 0.0
  %8883 = vmatprep.subr.mxu0 0.0
  %8884 = vmatpush1.msra.mxu0 0.0
  %8885 = vmatprep.subr.mxu0 0.0
  %8886 = vmatpush1.msra.mxu0 0.0
  %8887 = vmatprep.subr.mxu0 0.0
  %8888 = vmatpush1.msra.mxu0 0.0
  %8889 = vmatprep.subr.mxu0 0.0
  %8890 = vmatpush1.msra.mxu0 0.0
  %8891 = vmatprep.subr.mxu0 0.0
  %8892 = vmatpush1.msra.mxu0 0.0
  %8893 = vmatprep.subr.mxu0 0.0
  %8894 = vmatpush1.msra.mxu0 0.0
  %8895 = vmatprep.subr.mxu0 0.0
  %8896 = vmatpush1.msra.mxu0 0.0
  %8897 = vmatprep.subr.mxu0 0.0
  %8898 = vmatpush1.msra.mxu0 0.0
  %8899 = vmatprep.subr.mxu0 0.0
  %8900 = vmatpush1.msra.mxu0 0.0
  %8901 = vmatprep.subr.mxu0 0.0
  %8902 = vmatpush1.msra.mxu0 0.0
  %8903 = vmatprep.subr.mxu0 0.0
  %8904 = vmatpush1.msra.mxu0 0.0
  %8905 = vmatprep.subr.mxu0 0.0
  %8906 = vmatpush1.msra.mxu0 0.0
  %8907 = vmatprep.subr.mxu0 0.0
  %8908 = vmatpush1.msra.mxu0 0.0
  %8909 = vmatprep.subr.mxu0 0.0
  %8910 = vmatpush1.msra.mxu0 0.0
  %8911 = vmatprep.mubr.f32.mxu0 0.0
  %8912 = vmatmul.mubr.f32.gmra.mrb[0].mxu0 %v8845
  %v8913 = vpop.f32.mrb[0].mxu0
  %v8914 = vadd.f32 0.0, %v8913
  %v8915 = vpop.f32.mrb[0].mxu0
  %v8916 = vadd.f32 0.0, %v8915
  %8917 = vdwg.mxu0
  %8918 = vmatprep.subr.mxu0 %v8839
  %8919 = vmatpush1.msra.mxu0 %v8840
  %8920 = vmatprep.subr.mxu0 0.0
  %8921 = vmatpush1.msra.mxu0 0.0
  %8922 = vmatprep.subr.mxu0 0.0
  %8923 = vmatpush1.msra.mxu0 0.0
  %8924 = vmatprep.subr.mxu0 0.0
  %8925 = vmatpush1.msra.mxu0 0.0
  %8926 = vmatprep.subr.mxu0 0.0
  %8927 = vmatpush1.msra.mxu0 0.0
  %8928 = vmatprep.subr.mxu0 0.0
  %8929 = vmatpush1.msra.mxu0 0.0
  %8930 = vmatprep.subr.mxu0 0.0
  %8931 = vmatpush1.msra.mxu0 0.0
  %8932 = vmatprep.subr.mxu0 0.0
  %8933 = vmatpush1.msra.mxu0 0.0
  %8934 = vmatprep.subr.mxu0 0.0
  %8935 = vmatpush1.msra.mxu0 0.0
  %8936 = vmatprep.subr.mxu0 0.0
  %8937 = vmatpush1.msra.mxu0 0.0
  %8938 = vmatprep.subr.mxu0 0.0
  %8939 = vmatpush1.msra.mxu0 0.0
  %8940 = vmatprep.subr.mxu0 0.0
  %8941 = vmatpush1.msra.mxu0 0.0
  %8942 = vmatprep.subr.mxu0 0.0
  %8943 = vmatpush1.msra.mxu0 0.0
  %8944 = vmatprep.subr.mxu0 0.0
  %8945 = vmatpush1.msra.mxu0 0.0
  %8946 = vmatprep.subr.mxu0 0.0
  %8947 = vmatpush1.msra.mxu0 0.0
  %8948 = vmatprep.subr.mxu0 0.0
  %8949 = vmatpush1.msra.mxu0 0.0
  %8950 = vmatprep.subr.mxu0 0.0
  %8951 = vmatpush1.msra.mxu0 0.0
  %8952 = vmatprep.subr.mxu0 0.0
  %8953 = vmatpush1.msra.mxu0 0.0
  %8954 = vmatprep.subr.mxu0 0.0
  %8955 = vmatpush1.msra.mxu0 0.0
  %8956 = vmatprep.subr.mxu0 0.0
  %8957 = vmatpush1.msra.mxu0 0.0
  %8958 = vmatprep.subr.mxu0 0.0
  %8959 = vmatpush1.msra.mxu0 0.0
  %8960 = vmatprep.subr.mxu0 0.0
  %8961 = vmatpush1.msra.mxu0 0.0
  %8962 = vmatprep.subr.mxu0 0.0
  %8963 = vmatpush1.msra.mxu0 0.0
  %8964 = vmatprep.subr.mxu0 0.0
  %8965 = vmatpush1.msra.mxu0 0.0
  %8966 = vmatprep.subr.mxu0 0.0
  %8967 = vmatpush1.msra.mxu0 0.0
  %8968 = vmatprep.subr.mxu0 0.0
  %8969 = vmatpush1.msra.mxu0 0.0
  %8970 = vmatprep.subr.mxu0 0.0
  %8971 = vmatpush1.msra.mxu0 0.0
  %8972 = vmatprep.subr.mxu0 0.0
  %8973 = vmatpush1.msra.mxu0 0.0
  %8974 = vmatprep.subr.mxu0 0.0
  %8975 = vmatpush1.msra.mxu0 0.0
  %8976 = vmatprep.subr.mxu0 0.0
  %8977 = vmatpush1.msra.mxu0 0.0
  %8978 = vmatprep.subr.mxu0 0.0
  %8979 = vmatpush1.msra.mxu0 0.0
  %8980 = vmatprep.subr.mxu0 0.0
  %8981 = vmatpush1.msra.mxu0 0.0
  %8982 = vmatprep.mubr.f32.mxu0 0.0
  %8983 = vmatmul.mubr.f32.gmra.mrb[0].mxu0 %v8845
  %v8984 = vpop.f32.mrb[0].mxu0
  %v8985 = vadd.f32 0.0, %v8984
  %v8986 = vpop.f32.mrb[0].mxu0
  %v8987 = vadd.f32 0.0, %v8986
  %8988 = vdwg.mxu0
  %8989 = vmatprep.subr.mxu0 0.0
  %8990 = vmatpush1.msra.mxu0 %v8843
  %8991 = vmatprep.subr.mxu0 0.0
  %8992 = vmatpush1.msra.mxu0 0.0
  %8993 = vmatprep.subr.mxu0 0.0
  %8994 = vmatpush1.msra.mxu0 0.0
  %8995 = vmatprep.subr.mxu0 0.0
  %8996 = vmatpush1.msra.mxu0 0.0
  %8997 = vmatprep.subr.mxu0 0.0
  %8998 = vmatpush1.msra.mxu0 0.0
  %8999 = vmatprep.subr.mxu0 0.0
  %9000 = vmatpush1.msra.mxu0 0.0
  %9001 = vmatprep.subr.mxu0 0.0
  %9002 = vmatpush1.msra.mxu0 0.0
  %9003 = vmatprep.subr.mxu0 0.0
  %9004 = vmatpush1.msra.mxu0 0.0
  %9005 = vmatprep.subr.mxu0 0.0
  %9006 = vmatpush1.msra.mxu0 0.0
  %9007 = vmatprep.subr.mxu0 0.0
  %9008 = vmatpush1.msra.mxu0 0.0
  %9009 = vmatprep.subr.mxu0 0.0
  %9010 = vmatpush1.msra.mxu0 0.0
  %9011 = vmatprep.subr.mxu0 0.0
  %9012 = vmatpush1.msra.mxu0 0.0
  %9013 = vmatprep.subr.mxu0 0.0
  %9014 = vmatpush1.msra.mxu0 0.0
  %9015 = vmatprep.subr.mxu0 0.0
  %9016 = vmatpush1.msra.mxu0 0.0
  %9017 = vmatprep.subr.mxu0 0.0
  %9018 = vmatpush1.msra.mxu0 0.0
  %9019 = vmatprep.subr.mxu0 0.0
  %9020 = vmatpush1.msra.mxu0 0.0
  %9021 = vmatprep.subr.mxu0 0.0
  %9022 = vmatpush1.msra.mxu0 0.0
  %9023 = vmatprep.subr.mxu0 0.0
  %9024 = vmatpush1.msra.mxu0 0.0
  %9025 = vmatprep.subr.mxu0 0.0
  %9026 = vmatpush1.msra.mxu0 0.0
  %9027 = vmatprep.subr.mxu0 0.0
  %9028 = vmatpush1.msra.mxu0 0.0
  %9029 = vmatprep.subr.mxu0 0.0
  %9030 = vmatpush1.msra.mxu0 0.0
  %9031 = vmatprep.subr.mxu0 0.0
  %9032 = vmatpush1.msra.mxu0 0.0
  %9033 = vmatprep.subr.mxu0 0.0
  %9034 = vmatpush1.msra.mxu0 0.0
  %9035 = vmatprep.subr.mxu0 0.0
  %9036 = vmatpush1.msra.mxu0 0.0
  %9037 = vmatprep.subr.mxu0 0.0
  %9038 = vmatpush1.msra.mxu0 0.0
  %9039 = vmatprep.subr.mxu0 0.0
  %9040 = vmatpush1.msra.mxu0 0.0
  %9041 = vmatprep.subr.mxu0 0.0
  %9042 = vmatpush1.msra.mxu0 0.0
  %9043 = vmatprep.subr.mxu0 0.0
  %9044 = vmatpush1.msra.mxu0 0.0
  %9045 = vmatprep.subr.mxu0 0.0
  %9046 = vmatpush1.msra.mxu0 0.0
  %9047 = vmatprep.subr.mxu0 0.0
  %9048 = vmatpush1.msra.mxu0 0.0
  %9049 = vmatprep.subr.mxu0 0.0
  %9050 = vmatpush1.msra.mxu0 0.0
  %9051 = vmatprep.subr.mxu0 0.0
  %9052 = vmatpush1.msra.mxu0 0.0
  %9053 = vmatprep.mubr.f32.mxu0 0.0
  %9054 = vmatmul.mubr.f32.gmra.mrb[0].mxu0 %v8845
  %v9055 = vpop.f32.mrb[0].mxu0
  %v9056 = vadd.f32 0.0, %v9055
  %v9057 = vpop.f32.mrb[0].mxu0
  %9058 = vdwg.mxu0
  %v9059 = vadd.f32 %v8822, %v8914
  %v9060 = vadd.f32 %v8823, %v8916
  %v9061 = vadd.f32 %v8824, %v8985
  %v9062 = vadd.f32 %v8825, %v8987
  %v9063 = vadd.f32 %v8826, %v9056
  %9064 = vrot.lane.b32.xlu0 %v8828, 120
  %v9065 = vpop.permute.xlu0 %9064
  %v9066 = vsel %vm102, %v9065, 0
  %9068 = vmatprep.subr.mxu0 %v2086
  %9069 = vmatpush1.msra.mxu0 %v2083
  %9070 = vmatprep.subr.mxu0 0.0
  %9071 = vmatpush1.msra.mxu0 0.0
  %9072 = vmatprep.subr.mxu0 0.0
  %9073 = vmatpush1.msra.mxu0 0.0
  %9074 = vmatprep.subr.mxu0 0.0
  %9075 = vmatpush1.msra.mxu0 0.0
  %9076 = vmatprep.subr.mxu0 0.0
  %9077 = vmatpush1.msra.mxu0 0.0
  %9078 = vmatprep.subr.mxu0 0.0
  %9079 = vmatpush1.msra.mxu0 0.0
  %9080 = vmatprep.subr.mxu0 0.0
  %9081 = vmatpush1.msra.mxu0 0.0
  %9082 = vmatprep.subr.mxu0 0.0
  %9083 = vmatpush1.msra.mxu0 0.0
  %9084 = vmatprep.subr.mxu0 0.0
  %9085 = vmatpush1.msra.mxu0 0.0
  %9086 = vmatprep.subr.mxu0 0.0
  %9087 = vmatpush1.msra.mxu0 0.0
  %9088 = vmatprep.subr.mxu0 0.0
  %9089 = vmatpush1.msra.mxu0 0.0
  %9090 = vmatprep.subr.mxu0 0.0
  %9091 = vmatpush1.msra.mxu0 0.0
  %9092 = vmatprep.subr.mxu0 0.0
  %9093 = vmatpush1.msra.mxu0 0.0
  %9094 = vmatprep.subr.mxu0 0.0
  %9095 = vmatpush1.msra.mxu0 0.0
  %9096 = vmatprep.subr.mxu0 0.0
  %9097 = vmatpush1.msra.mxu0 0.0
  %9098 = vmatprep.subr.mxu0 0.0
  %9099 = vmatpush1.msra.mxu0 0.0
  %9100 = vmatprep.subr.mxu0 0.0
  %9101 = vmatpush1.msra.mxu0 0.0
  %9102 = vmatprep.subr.mxu0 0.0
  %9103 = vmatpush1.msra.mxu0 0.0
  %9104 = vmatprep.subr.mxu0 0.0
  %9105 = vmatpush1.msra.mxu0 0.0
  %9106 = vmatprep.subr.mxu0 0.0
  %9107 = vmatpush1.msra.mxu0 0.0
  %9108 = vmatprep.subr.mxu0 0.0
  %9109 = vmatpush1.msra.mxu0 0.0
  %9110 = vmatprep.subr.mxu0 0.0
  %9111 = vmatpush1.msra.mxu0 0.0
  %9112 = vmatprep.subr.mxu0 0.0
  %9113 = vmatpush1.msra.mxu0 0.0
  %9114 = vmatprep.subr.mxu0 0.0
  %9115 = vmatpush1.msra.mxu0 0.0
  %9116 = vmatprep.subr.mxu0 0.0
  %9117 = vmatpush1.msra.mxu0 0.0
  %9118 = vmatprep.subr.mxu0 0.0
  %9119 = vmatpush1.msra.mxu0 0.0
  %9120 = vmatprep.subr.mxu0 0.0
  %9121 = vmatpush1.msra.mxu0 0.0
  %9122 = vmatprep.subr.mxu0 0.0
  %9123 = vmatpush1.msra.mxu0 0.0
  %9124 = vmatprep.subr.mxu0 0.0
  %9125 = vmatpush1.msra.mxu0 0.0
  %9126 = vmatprep.subr.mxu0 0.0
  %9127 = vmatpush1.msra.mxu0 0.0
  %9128 = vmatprep.subr.mxu0 0.0
  %9129 = vmatpush1.msra.mxu0 0.0
  %9130 = vmatprep.subr.mxu0 0.0
  %9131 = vmatpush1.msra.mxu0 0.0
  %9132 = vmatprep.mubr.f32.mxu0 0.0
  %9133 = vmatmul.mubr.f32.gmra.mrb[0].mxu0 %v9066
  %v9134 = vpop.f32.mrb[0].mxu0
  %v9135 = vadd.f32 0.0, %v9134
  %v9136 = vpop.f32.mrb[0].mxu0
  %v9137 = vadd.f32 0.0, %v9136
  %9138 = vdwg.mxu0
  %9139 = vmatprep.subr.mxu0 %v2092
  %9140 = vmatpush1.msra.mxu0 %v2089
  %9141 = vmatprep.subr.mxu0 0.0
  %9142 = vmatpush1.msra.mxu0 0.0
  %9143 = vmatprep.subr.mxu0 0.0
  %9144 = vmatpush1.msra.mxu0 0.0
  %9145 = vmatprep.subr.mxu0 0.0
  %9146 = vmatpush1.msra.mxu0 0.0
  %9147 = vmatprep.subr.mxu0 0.0
  %9148 = vmatpush1.msra.mxu0 0.0
  %9149 = vmatprep.subr.mxu0 0.0
  %9150 = vmatpush1.msra.mxu0 0.0
  %9151 = vmatprep.subr.mxu0 0.0
  %9152 = vmatpush1.msra.mxu0 0.0
  %9153 = vmatprep.subr.mxu0 0.0
  %9154 = vmatpush1.msra.mxu0 0.0
  %9155 = vmatprep.subr.mxu0 0.0
  %9156 = vmatpush1.msra.mxu0 0.0
  %9157 = vmatprep.subr.mxu0 0.0
  %9158 = vmatpush1.msra.mxu0 0.0
  %9159 = vmatprep.subr.mxu0 0.0
  %9160 = vmatpush1.msra.mxu0 0.0
  %9161 = vmatprep.subr.mxu0 0.0
  %9162 = vmatpush1.msra.mxu0 0.0
  %9163 = vmatprep.subr.mxu0 0.0
  %9164 = vmatpush1.msra.mxu0 0.0
  %9165 = vmatprep.subr.mxu0 0.0
  %9166 = vmatpush1.msra.mxu0 0.0
  %9167 = vmatprep.subr.mxu0 0.0
  %9168 = vmatpush1.msra.mxu0 0.0
  %9169 = vmatprep.subr.mxu0 0.0
  %9170 = vmatpush1.msra.mxu0 0.0
  %9171 = vmatprep.subr.mxu0 0.0
  %9172 = vmatpush1.msra.mxu0 0.0
  %9173 = vmatprep.subr.mxu0 0.0
  %9174 = vmatpush1.msra.mxu0 0.0
  %9175 = vmatprep.subr.mxu0 0.0
  %9176 = vmatpush1.msra.mxu0 0.0
  %9177 = vmatprep.subr.mxu0 0.0
  %9178 = vmatpush1.msra.mxu0 0.0
  %9179 = vmatprep.subr.mxu0 0.0
  %9180 = vmatpush1.msra.mxu0 0.0
  %9181 = vmatprep.subr.mxu0 0.0
  %9182 = vmatpush1.msra.mxu0 0.0
  %9183 = vmatprep.subr.mxu0 0.0
  %9184 = vmatpush1.msra.mxu0 0.0
  %9185 = vmatprep.subr.mxu0 0.0
  %9186 = vmatpush1.msra.mxu0 0.0
  %9187 = vmatprep.subr.mxu0 0.0
  %9188 = vmatpush1.msra.mxu0 0.0
  %9189 = vmatprep.subr.mxu0 0.0
  %9190 = vmatpush1.msra.mxu0 0.0
  %9191 = vmatprep.subr.mxu0 0.0
  %9192 = vmatpush1.msra.mxu0 0.0
  %9193 = vmatprep.subr.mxu0 0.0
  %9194 = vmatpush1.msra.mxu0 0.0
  %9195 = vmatprep.subr.mxu0 0.0
  %9196 = vmatpush1.msra.mxu0 0.0
  %9197 = vmatprep.subr.mxu0 0.0
  %9198 = vmatpush1.msra.mxu0 0.0
  %9199 = vmatprep.subr.mxu0 0.0
  %9200 = vmatpush1.msra.mxu0 0.0
  %9201 = vmatprep.subr.mxu0 0.0
  %9202 = vmatpush1.msra.mxu0 0.0
  %9203 = vmatprep.mubr.f32.mxu0 0.0
  %9204 = vmatmul.mubr.f32.gmra.mrb[0].mxu0 %v9066
  %v9205 = vpop.f32.mrb[0].mxu0
  %v9206 = vadd.f32 0.0, %v9205
  %v9207 = vpop.f32.mrb[0].mxu0
  %v9208 = vadd.f32 0.0, %v9207
  %9209 = vdwg.mxu0
  %9210 = vmatprep.subr.mxu0 0.0
  %9211 = vmatpush1.msra.mxu0 %v2095
  %9212 = vmatprep.subr.mxu0 0.0
  %9213 = vmatpush1.msra.mxu0 0.0
  %9214 = vmatprep.subr.mxu0 0.0
  %9215 = vmatpush1.msra.mxu0 0.0
  %9216 = vmatprep.subr.mxu0 0.0
  %9217 = vmatpush1.msra.mxu0 0.0
  %9218 = vmatprep.subr.mxu0 0.0
  %9219 = vmatpush1.msra.mxu0 0.0
  %9220 = vmatprep.subr.mxu0 0.0
  %9221 = vmatpush1.msra.mxu0 0.0
  %9222 = vmatprep.subr.mxu0 0.0
  %9223 = vmatpush1.msra.mxu0 0.0
  %9224 = vmatprep.subr.mxu0 0.0
  %9225 = vmatpush1.msra.mxu0 0.0
  %9226 = vmatprep.subr.mxu0 0.0
  %9227 = vmatpush1.msra.mxu0 0.0
  %9228 = vmatprep.subr.mxu0 0.0
  %9229 = vmatpush1.msra.mxu0 0.0
  %9230 = vmatprep.subr.mxu0 0.0
  %9231 = vmatpush1.msra.mxu0 0.0
  %9232 = vmatprep.subr.mxu0 0.0
  %9233 = vmatpush1.msra.mxu0 0.0
  %9234 = vmatprep.subr.mxu0 0.0
  %9235 = vmatpush1.msra.mxu0 0.0
  %9236 = vmatprep.subr.mxu0 0.0
  %9237 = vmatpush1.msra.mxu0 0.0
  %9238 = vmatprep.subr.mxu0 0.0
  %9239 = vmatpush1.msra.mxu0 0.0
  %9240 = vmatprep.subr.mxu0 0.0
  %9241 = vmatpush1.msra.mxu0 0.0
  %9242 = vmatprep.subr.mxu0 0.0
  %9243 = vmatpush1.msra.mxu0 0.0
  %9244 = vmatprep.subr.mxu0 0.0
  %9245 = vmatpush1.msra.mxu0 0.0
  %9246 = vmatprep.subr.mxu0 0.0
  %9247 = vmatpush1.msra.mxu0 0.0
  %9248 = vmatprep.subr.mxu0 0.0
  %9249 = vmatpush1.msra.mxu0 0.0
  %9250 = vmatprep.subr.mxu0 0.0
  %9251 = vmatpush1.msra.mxu0 0.0
  %9252 = vmatprep.subr.mxu0 0.0
  %9253 = vmatpush1.msra.mxu0 0.0
  %9254 = vmatprep.subr.mxu0 0.0
  %9255 = vmatpush1.msra.mxu0 0.0
  %9256 = vmatprep.subr.mxu0 0.0
  %9257 = vmatpush1.msra.mxu0 0.0
  %9258 = vmatprep.subr.mxu0 0.0
  %9259 = vmatpush1.msra.mxu0 0.0
  %9260 = vmatprep.subr.mxu0 0.0
  %9261 = vmatpush1.msra.mxu0 0.0
  %9262 = vmatprep.subr.mxu0 0.0
  %9263 = vmatpush1.msra.mxu0 0.0
  %9264 = vmatprep.subr.mxu0 0.0
  %9265 = vmatpush1.msra.mxu0 0.0
  %9266 = vmatprep.subr.mxu0 0.0
  %9267 = vmatpush1.msra.mxu0 0.0
  %9268 = vmatprep.subr.mxu0 0.0
  %9269 = vmatpush1.msra.mxu0 0.0
  %9270 = vmatprep.subr.mxu0 0.0
  %9271 = vmatpush1.msra.mxu0 0.0
  %9272 = vmatprep.subr.mxu0 0.0
  %9273 = vmatpush1.msra.mxu0 0.0
  %9274 = vmatprep.mubr.f32.mxu0 0.0
  %9275 = vmatmul.mubr.f32.gmra.mrb[0].mxu0 %v9066
  %v9276 = vpop.f32.mrb[0].mxu0
  %v9277 = vadd.f32 0.0, %v9276
  %v9278 = vpop.f32.mrb[0].mxu0
  %9279 = vdwg.mxu0
  %v9280 = vadd.f32 %v9059, %v9135
  %v9281 = vadd.f32 %v9060, %v9137
  %v9282 = vadd.f32 %v9061, %v9206
  %v9283 = vadd.f32 %v9062, %v9208
  %v9284 = vadd.f32 %v9063, %v9277
  %9285 = vrot.lane.b32.xlu0 %v4666, 114
  %v9286 = vpop.permute.xlu0 %9285
  %9287 = vrot.lane.b32.xlu0 %v4668, 114
  %v9288 = vpop.permute.xlu0 %9287
  %9289 = vrot.lane.b32.xlu0 %v4737, 114
  %v9290 = vpop.permute.xlu0 %9289
  %9291 = vrot.lane.b32.xlu0 %v4739, 114
  %v9292 = vpop.permute.xlu0 %9291
  %9293 = vrot.lane.b32.xlu0 %v4808, 114
  %v9294 = vpop.permute.xlu0 %9293
  %v9295 = vsel %vm2073, %v9292, %v9294
  %v9296 = vsel %vm2073, %v9290, %v9292
  %v9297 = vsel %vm2073, %v9288, %v9290
  %v9298 = vsel %vm2073, %v9286, %v9288
  %v9299 = vsel %vm2073, %v9294, %v9286
  %9300 = vset.pattern.permute.xlu0 10
  %9301 = vperm.xlu0 %9300, %v8828
  %v9302 = vpop.permute.xlu0 %9301
  %v9304 = vlaneseq
  %v9305 = vshrl.u32 %v9304, 7
  %v9306 = vsub.s32 0, %v9305
  %v9307 = vrot.slane %v9298, %v9306
  %v9308 = vlaneseq
  %v9309 = vshrl.u32 %v9308, 7
  %v9310 = vsub.s32 0, %v9309
  %v9311 = vrot.slane %v9297, %v9310
  %v9312 = vlaneseq
  %v9313 = vshrl.u32 %v9312, 7
  %v9314 = vsub.s32 0, %v9313
  %v9315 = vrot.slane %v9296, %v9314
  %v9316 = vlaneseq
  %v9317 = vshrl.u32 %v9316, 7
  %v9318 = vsub.s32 0, %v9317
  %v9319 = vrot.slane %v9295, %v9318
  %v9320 = vlaneseq
  %v9321 = vshrl.u32 %v9320, 7
  %v9322 = vsub.s32 0, %v9321
  %v9323 = vrot.slane %v9299, %v9322
  %v9324 = vmul.f32 %v9302, %v9307
  %v9325 = vmul.f32 %v9302, %v9311
  %v9326 = vmul.f32 %v9302, %v9315
  %v9327 = vmul.f32 %v9302, %v9319
  %v9328 = vmul.f32 %v9302, %v9323
  %v9329 = vadd.f32 %v9280, %v9324
  %v9330 = vadd.f32 %v9281, %v9325
  %v9331 = vadd.f32 %v9282, %v9326
  %v9332 = vadd.f32 %v9283, %v9327
  %v9333 = vadd.f32 %v9284, %v9328
  %s9334 = scalar_lea.vmem %s5, 16
  %v9335 = vld [vmem:[%s9334] sm:$0xff]
  %9337 = vset.pattern.permute.xlu0 0
  %9338 = vperm.xlu0 %9337, %v9335
  %v9339 = vpop.permute.xlu0 %9338
  %v9341 = vadd.f32 %v9329, %v9339
  %v9342 = vadd.f32 %v9330, %v9339
  %v9343 = vadd.f32 %v9331, %v9339
  %v9344 = vadd.f32 %v9332, %v9339
  %v9345 = vadd.f32 %v9333, %v9339
  %vm9346 = vcmp.gt.f32.partialorder %v9341, 0.0
  %vm9347 = vcmp.gt.f32.partialorder %v9342, 0.0
  %vm9348 = vcmp.gt.f32.partialorder %v9343, 0.0
  %vm9349 = vcmp.gt.f32.partialorder %v9344, 0.0
  %vm9350 = vcmp.gt.f32.partialorder %v9345, 0.0
  %v9351 = vmul.f32 %v9341, 0.01
  %v9352 = vmul.f32 %v9342, 0.01
  %v9353 = vmul.f32 %v9343, 0.01
  %v9354 = vmul.f32 %v9344, 0.01
  %v9355 = vmul.f32 %v9345, 0.01
  %v9356 = vsel %vm9346, %v9341, %v9351
  %v9357 = vsel %vm9347, %v9342, %v9352
  %v9358 = vsel %vm9348, %v9343, %v9353
  %v9359 = vsel %vm9349, %v9344, %v9354
  %v9360 = vsel %vm9350, %v9345, %v9355
  %v9361 = vmul.f32 %v9356, %v2344
  %v9362 = vmul.f32 %v9357, %v2348
  %v9363 = vmul.f32 %v9358, %v2352
  %v9364 = vmul.f32 %v9359, %v2356
  %v9365 = vmul.f32 %v9360, %v2360
  %s9366 = scalar_lea.vmem %s4, 216
  %v9367 = vld [vmem:[%s9366] sm:$0xff]
  %9368 = vrot.lane.b32.xlu0 %v9361, 14
  %v9369 = vpop.permute.xlu0 %9368
  %9370 = vrot.lane.b32.xlu0 %v9362, 14
  %v9371 = vpop.permute.xlu0 %9370
  %9372 = vrot.lane.b32.xlu0 %v9363, 14
  %v9373 = vpop.permute.xlu0 %9372
  %9374 = vrot.lane.b32.xlu0 %v9364, 14
  %v9375 = vpop.permute.xlu0 %9374
  %9376 = vrot.lane.b32.xlu0 %v9365, 14
  %v9377 = vpop.permute.xlu0 %9376
  %v9378 = vsel %vm78, %v9375, %v9377
  %v9379 = vsel %vm78, %v9373, %v9375
  %v9380 = vsel %vm78, %v9371, %v9373
  %v9381 = vsel %vm78, %v9369, %v9371
  %v9382 = vsel %vm78, %v9377, %v9369
  %s9383 = scalar_lea.vmem %s4, 224
  %v9384 = vld [vmem:[%s9383] sm:$0xff]
  %9385 = vrot.lane.b32.xlu0 %v9361, 13
  %v9386 = vpop.permute.xlu0 %9385
  %9387 = vrot.lane.b32.xlu0 %v9362, 13
  %v9388 = vpop.permute.xlu0 %9387
  %9389 = vrot.lane.b32.xlu0 %v9363, 13
  %v9390 = vpop.permute.xlu0 %9389
  %9391 = vrot.lane.b32.xlu0 %v9364, 13
  %v9392 = vpop.permute.xlu0 %9391
  %9393 = vrot.lane.b32.xlu0 %v9365, 13
  %v9394 = vpop.permute.xlu0 %9393
  %v9395 = vsel %vm96, %v9392, %v9394
  %v9396 = vsel %vm96, %v9390, %v9392
  %v9397 = vsel %vm96, %v9388, %v9390
  %v9398 = vsel %vm96, %v9386, %v9388
  %v9399 = vsel %vm96, %v9394, %v9386
  %v9401 = vsel %vm2405, %v9384, 0
  %9403 = vmatprep.subr.mxu0 %v9398
  %9404 = vmatpush1.msra.mxu0 %v9399
  %9405 = vmatprep.subr.mxu0 0.0
  %9406 = vmatpush1.msra.mxu0 0.0
  %9407 = vmatprep.subr.mxu0 0.0
  %9408 = vmatpush1.msra.mxu0 0.0
  %9409 = vmatprep.subr.mxu0 0.0
  %9410 = vmatpush1.msra.mxu0 0.0
  %9411 = vmatprep.subr.mxu0 0.0
  %9412 = vmatpush1.msra.mxu0 0.0
  %9413 = vmatprep.subr.mxu0 0.0
  %9414 = vmatpush1.msra.mxu0 0.0
  %9415 = vmatprep.subr.mxu0 0.0
  %9416 = vmatpush1.msra.mxu0 0.0
  %9417 = vmatprep.subr.mxu0 0.0
  %9418 = vmatpush1.msra.mxu0 0.0
  %9419 = vmatprep.subr.mxu0 0.0
  %9420 = vmatpush1.msra.mxu0 0.0
  %9421 = vmatprep.subr.mxu0 0.0
  %9422 = vmatpush1.msra.mxu0 0.0
  %9423 = vmatprep.subr.mxu0 0.0
  %9424 = vmatpush1.msra.mxu0 0.0
  %9425 = vmatprep.subr.mxu0 0.0
  %9426 = vmatpush1.msra.mxu0 0.0
  %9427 = vmatprep.subr.mxu0 0.0
  %9428 = vmatpush1.msra.mxu0 0.0
  %9429 = vmatprep.subr.mxu0 0.0
  %9430 = vmatpush1.msra.mxu0 0.0
  %9431 = vmatprep.subr.mxu0 0.0
  %9432 = vmatpush1.msra.mxu0 0.0
  %9433 = vmatprep.subr.mxu0 0.0
  %9434 = vmatpush1.msra.mxu0 0.0
  %9435 = vmatprep.subr.mxu0 0.0
  %9436 = vmatpush1.msra.mxu0 0.0
  %9437 = vmatprep.subr.mxu0 0.0
  %9438 = vmatpush1.msra.mxu0 0.0
  %9439 = vmatprep.subr.mxu0 0.0
  %9440 = vmatpush1.msra.mxu0 0.0
  %9441 = vmatprep.subr.mxu0 0.0
  %9442 = vmatpush1.msra.mxu0 0.0
  %9443 = vmatprep.subr.mxu0 0.0
  %9444 = vmatpush1.msra.mxu0 0.0
  %9445 = vmatprep.subr.mxu0 0.0
  %9446 = vmatpush1.msra.mxu0 0.0
  %9447 = vmatprep.subr.mxu0 0.0
  %9448 = vmatpush1.msra.mxu0 0.0
  %9449 = vmatprep.subr.mxu0 0.0
  %9450 = vmatpush1.msra.mxu0 0.0
  %9451 = vmatprep.subr.mxu0 0.0
  %9452 = vmatpush1.msra.mxu0 0.0
  %9453 = vmatprep.subr.mxu0 0.0
  %9454 = vmatpush1.msra.mxu0 0.0
  %9455 = vmatprep.subr.mxu0 0.0
  %9456 = vmatpush1.msra.mxu0 0.0
  %9457 = vmatprep.subr.mxu0 0.0
  %9458 = vmatpush1.msra.mxu0 0.0
  %9459 = vmatprep.subr.mxu0 0.0
  %9460 = vmatpush1.msra.mxu0 0.0
  %9461 = vmatprep.subr.mxu0 0.0
  %9462 = vmatpush1.msra.mxu0 0.0
  %9463 = vmatprep.subr.mxu0 0.0
  %9464 = vmatpush1.msra.mxu0 0.0
  %9465 = vmatprep.subr.mxu0 0.0
  %9466 = vmatpush1.msra.mxu0 0.0
  %9467 = vmatprep.mubr.f32.mxu0 0.0
  %9468 = vmatmul.mubr.f32.gmra.mrb[0].mxu0 %v9401
  %v9469 = vpop.f32.mrb[0].mxu0
  %v9470 = vadd.f32 0.0, %v9469
  %v9471 = vpop.f32.mrb[0].mxu0
  %v9472 = vadd.f32 0.0, %v9471
  %9473 = vdwg.mxu0
  %9474 = vmatprep.subr.mxu0 %v9396
  %9475 = vmatpush1.msra.mxu0 %v9397
  %9476 = vmatprep.subr.mxu0 0.0
  %9477 = vmatpush1.msra.mxu0 0.0
  %9478 = vmatprep.subr.mxu0 0.0
  %9479 = vmatpush1.msra.mxu0 0.0
  %9480 = vmatprep.subr.mxu0 0.0
  %9481 = vmatpush1.msra.mxu0 0.0
  %9482 = vmatprep.subr.mxu0 0.0
  %9483 = vmatpush1.msra.mxu0 0.0
  %9484 = vmatprep.subr.mxu0 0.0
  %9485 = vmatpush1.msra.mxu0 0.0
  %9486 = vmatprep.subr.mxu0 0.0
  %9487 = vmatpush1.msra.mxu0 0.0
  %9488 = vmatprep.subr.mxu0 0.0
  %9489 = vmatpush1.msra.mxu0 0.0
  %9490 = vmatprep.subr.mxu0 0.0
  %9491 = vmatpush1.msra.mxu0 0.0
  %9492 = vmatprep.subr.mxu0 0.0
  %9493 = vmatpush1.msra.mxu0 0.0
  %9494 = vmatprep.subr.mxu0 0.0
  %9495 = vmatpush1.msra.mxu0 0.0
  %9496 = vmatprep.subr.mxu0 0.0
  %9497 = vmatpush1.msra.mxu0 0.0
  %9498 = vmatprep.subr.mxu0 0.0
  %9499 = vmatpush1.msra.mxu0 0.0
  %9500 = vmatprep.subr.mxu0 0.0
  %9501 = vmatpush1.msra.mxu0 0.0
  %9502 = vmatprep.subr.mxu0 0.0
  %9503 = vmatpush1.msra.mxu0 0.0
  %9504 = vmatprep.subr.mxu0 0.0
  %9505 = vmatpush1.msra.mxu0 0.0
  %9506 = vmatprep.subr.mxu0 0.0
  %9507 = vmatpush1.msra.mxu0 0.0
  %9508 = vmatprep.subr.mxu0 0.0
  %9509 = vmatpush1.msra.mxu0 0.0
  %9510 = vmatprep.subr.mxu0 0.0
  %9511 = vmatpush1.msra.mxu0 0.0
  %9512 = vmatprep.subr.mxu0 0.0
  %9513 = vmatpush1.msra.mxu0 0.0
  %9514 = vmatprep.subr.mxu0 0.0
  %9515 = vmatpush1.msra.mxu0 0.0
  %9516 = vmatprep.subr.mxu0 0.0
  %9517 = vmatpush1.msra.mxu0 0.0
  %9518 = vmatprep.subr.mxu0 0.0
  %9519 = vmatpush1.msra.mxu0 0.0
  %9520 = vmatprep.subr.mxu0 0.0
  %9521 = vmatpush1.msra.mxu0 0.0
  %9522 = vmatprep.subr.mxu0 0.0
  %9523 = vmatpush1.msra.mxu0 0.0
  %9524 = vmatprep.subr.mxu0 0.0
  %9525 = vmatpush1.msra.mxu0 0.0
  %9526 = vmatprep.subr.mxu0 0.0
  %9527 = vmatpush1.msra.mxu0 0.0
  %9528 = vmatprep.subr.mxu0 0.0
  %9529 = vmatpush1.msra.mxu0 0.0
  %9530 = vmatprep.subr.mxu0 0.0
  %9531 = vmatpush1.msra.mxu0 0.0
  %9532 = vmatprep.subr.mxu0 0.0
  %9533 = vmatpush1.msra.mxu0 0.0
  %9534 = vmatprep.subr.mxu0 0.0
  %9535 = vmatpush1.msra.mxu0 0.0
  %9536 = vmatprep.subr.mxu0 0.0
  %9537 = vmatpush1.msra.mxu0 0.0
  %9538 = vmatprep.mubr.f32.mxu0 0.0
  %9539 = vmatmul.mubr.f32.gmra.mrb[0].mxu0 %v9401
  %v9540 = vpop.f32.mrb[0].mxu0
  %v9541 = vadd.f32 0.0, %v9540
  %v9542 = vpop.f32.mrb[0].mxu0
  %v9543 = vadd.f32 0.0, %v9542
  %9544 = vdwg.mxu0
  %9545 = vmatprep.subr.mxu0 0.0
  %9546 = vmatpush1.msra.mxu0 %v9395
  %9547 = vmatprep.subr.mxu0 0.0
  %9548 = vmatpush1.msra.mxu0 0.0
  %9549 = vmatprep.subr.mxu0 0.0
  %9550 = vmatpush1.msra.mxu0 0.0
  %9551 = vmatprep.subr.mxu0 0.0
  %9552 = vmatpush1.msra.mxu0 0.0
  %9553 = vmatprep.subr.mxu0 0.0
  %9554 = vmatpush1.msra.mxu0 0.0
  %9555 = vmatprep.subr.mxu0 0.0
  %9556 = vmatpush1.msra.mxu0 0.0
  %9557 = vmatprep.subr.mxu0 0.0
  %9558 = vmatpush1.msra.mxu0 0.0
  %9559 = vmatprep.subr.mxu0 0.0
  %9560 = vmatpush1.msra.mxu0 0.0
  %9561 = vmatprep.subr.mxu0 0.0
  %9562 = vmatpush1.msra.mxu0 0.0
  %9563 = vmatprep.subr.mxu0 0.0
  %9564 = vmatpush1.msra.mxu0 0.0
  %9565 = vmatprep.subr.mxu0 0.0
  %9566 = vmatpush1.msra.mxu0 0.0
  %9567 = vmatprep.subr.mxu0 0.0
  %9568 = vmatpush1.msra.mxu0 0.0
  %9569 = vmatprep.subr.mxu0 0.0
  %9570 = vmatpush1.msra.mxu0 0.0
  %9571 = vmatprep.subr.mxu0 0.0
  %9572 = vmatpush1.msra.mxu0 0.0
  %9573 = vmatprep.subr.mxu0 0.0
  %9574 = vmatpush1.msra.mxu0 0.0
  %9575 = vmatprep.subr.mxu0 0.0
  %9576 = vmatpush1.msra.mxu0 0.0
  %9577 = vmatprep.subr.mxu0 0.0
  %9578 = vmatpush1.msra.mxu0 0.0
  %9579 = vmatprep.subr.mxu0 0.0
  %9580 = vmatpush1.msra.mxu0 0.0
  %9581 = vmatprep.subr.mxu0 0.0
  %9582 = vmatpush1.msra.mxu0 0.0
  %9583 = vmatprep.subr.mxu0 0.0
  %9584 = vmatpush1.msra.mxu0 0.0
  %9585 = vmatprep.subr.mxu0 0.0
  %9586 = vmatpush1.msra.mxu0 0.0
  %9587 = vmatprep.subr.mxu0 0.0
  %9588 = vmatpush1.msra.mxu0 0.0
  %9589 = vmatprep.subr.mxu0 0.0
  %9590 = vmatpush1.msra.mxu0 0.0
  %9591 = vmatprep.subr.mxu0 0.0
  %9592 = vmatpush1.msra.mxu0 0.0
  %9593 = vmatprep.subr.mxu0 0.0
  %9594 = vmatpush1.msra.mxu0 0.0
  %9595 = vmatprep.subr.mxu0 0.0
  %9596 = vmatpush1.msra.mxu0 0.0
  %9597 = vmatprep.subr.mxu0 0.0
  %9598 = vmatpush1.msra.mxu0 0.0
  %9599 = vmatprep.subr.mxu0 0.0
  %9600 = vmatpush1.msra.mxu0 0.0
  %9601 = vmatprep.subr.mxu0 0.0
  %9602 = vmatpush1.msra.mxu0 0.0
  %9603 = vmatprep.subr.mxu0 0.0
  %9604 = vmatpush1.msra.mxu0 0.0
  %9605 = vmatprep.subr.mxu0 0.0
  %9606 = vmatpush1.msra.mxu0 0.0
  %9607 = vmatprep.subr.mxu0 0.0
  %9608 = vmatpush1.msra.mxu0 0.0
  %9609 = vmatprep.mubr.f32.mxu0 0.0
  %9610 = vmatmul.mubr.f32.gmra.mrb[0].mxu0 %v9401
  %v9611 = vpop.f32.mrb[0].mxu0
  %v9612 = vadd.f32 0.0, %v9611
  %v9613 = vpop.f32.mrb[0].mxu0
  %9614 = vdwg.mxu0
  %v9616 = vsel %vm2405, %v9367, 0
  %9618 = vmatprep.subr.mxu0 %v9381
  %9619 = vmatpush1.msra.mxu0 %v9382
  %9620 = vmatprep.subr.mxu0 0.0
  %9621 = vmatpush1.msra.mxu0 0.0
  %9622 = vmatprep.subr.mxu0 0.0
  %9623 = vmatpush1.msra.mxu0 0.0
  %9624 = vmatprep.subr.mxu0 0.0
  %9625 = vmatpush1.msra.mxu0 0.0
  %9626 = vmatprep.subr.mxu0 0.0
  %9627 = vmatpush1.msra.mxu0 0.0
  %9628 = vmatprep.subr.mxu0 0.0
  %9629 = vmatpush1.msra.mxu0 0.0
  %9630 = vmatprep.subr.mxu0 0.0
  %9631 = vmatpush1.msra.mxu0 0.0
  %9632 = vmatprep.subr.mxu0 0.0
  %9633 = vmatpush1.msra.mxu0 0.0
  %9634 = vmatprep.subr.mxu0 0.0
  %9635 = vmatpush1.msra.mxu0 0.0
  %9636 = vmatprep.subr.mxu0 0.0
  %9637 = vmatpush1.msra.mxu0 0.0
  %9638 = vmatprep.subr.mxu0 0.0
  %9639 = vmatpush1.msra.mxu0 0.0
  %9640 = vmatprep.subr.mxu0 0.0
  %9641 = vmatpush1.msra.mxu0 0.0
  %9642 = vmatprep.subr.mxu0 0.0
  %9643 = vmatpush1.msra.mxu0 0.0
  %9644 = vmatprep.subr.mxu0 0.0
  %9645 = vmatpush1.msra.mxu0 0.0
  %9646 = vmatprep.subr.mxu0 0.0
  %9647 = vmatpush1.msra.mxu0 0.0
  %9648 = vmatprep.subr.mxu0 0.0
  %9649 = vmatpush1.msra.mxu0 0.0
  %9650 = vmatprep.subr.mxu0 0.0
  %9651 = vmatpush1.msra.mxu0 0.0
  %9652 = vmatprep.subr.mxu0 0.0
  %9653 = vmatpush1.msra.mxu0 0.0
  %9654 = vmatprep.subr.mxu0 0.0
  %9655 = vmatpush1.msra.mxu0 0.0
  %9656 = vmatprep.subr.mxu0 0.0
  %9657 = vmatpush1.msra.mxu0 0.0
  %9658 = vmatprep.subr.mxu0 0.0
  %9659 = vmatpush1.msra.mxu0 0.0
  %9660 = vmatprep.subr.mxu0 0.0
  %9661 = vmatpush1.msra.mxu0 0.0
  %9662 = vmatprep.subr.mxu0 0.0
  %9663 = vmatpush1.msra.mxu0 0.0
  %9664 = vmatprep.subr.mxu0 0.0
  %9665 = vmatpush1.msra.mxu0 0.0
  %9666 = vmatprep.subr.mxu0 0.0
  %9667 = vmatpush1.msra.mxu0 0.0
  %9668 = vmatprep.subr.mxu0 0.0
  %9669 = vmatpush1.msra.mxu0 0.0
  %9670 = vmatprep.subr.mxu0 0.0
  %9671 = vmatpush1.msra.mxu0 0.0
  %9672 = vmatprep.subr.mxu0 0.0
  %9673 = vmatpush1.msra.mxu0 0.0
  %9674 = vmatprep.subr.mxu0 0.0
  %9675 = vmatpush1.msra.mxu0 0.0
  %9676 = vmatprep.subr.mxu0 0.0
  %9677 = vmatpush1.msra.mxu0 0.0
  %9678 = vmatprep.subr.mxu0 0.0
  %9679 = vmatpush1.msra.mxu0 0.0
  %9680 = vmatprep.subr.mxu0 0.0
  %9681 = vmatpush1.msra.mxu0 0.0
  %9682 = vmatprep.mubr.f32.mxu0 0.0
  %9683 = vmatmul.mubr.f32.gmra.mrb[0].mxu0 %v9616
  %v9684 = vpop.f32.mrb[0].mxu0
  %v9685 = vadd.f32 %v9470, %v9684
  %v9686 = vpop.f32.mrb[0].mxu0
  %v9687 = vadd.f32 %v9472, %v9686
  %9688 = vdwg.mxu0
  %9689 = vmatprep.subr.mxu0 %v9379
  %9690 = vmatpush1.msra.mxu0 %v9380
  %9691 = vmatprep.subr.mxu0 0.0
  %9692 = vmatpush1.msra.mxu0 0.0
  %9693 = vmatprep.subr.mxu0 0.0
  %9694 = vmatpush1.msra.mxu0 0.0
  %9695 = vmatprep.subr.mxu0 0.0
  %9696 = vmatpush1.msra.mxu0 0.0
  %9697 = vmatprep.subr.mxu0 0.0
  %9698 = vmatpush1.msra.mxu0 0.0
  %9699 = vmatprep.subr.mxu0 0.0
  %9700 = vmatpush1.msra.mxu0 0.0
  %9701 = vmatprep.subr.mxu0 0.0
  %9702 = vmatpush1.msra.mxu0 0.0
  %9703 = vmatprep.subr.mxu0 0.0
  %9704 = vmatpush1.msra.mxu0 0.0
  %9705 = vmatprep.subr.mxu0 0.0
  %9706 = vmatpush1.msra.mxu0 0.0
  %9707 = vmatprep.subr.mxu0 0.0
  %9708 = vmatpush1.msra.mxu0 0.0
  %9709 = vmatprep.subr.mxu0 0.0
  %9710 = vmatpush1.msra.mxu0 0.0
  %9711 = vmatprep.subr.mxu0 0.0
  %9712 = vmatpush1.msra.mxu0 0.0
  %9713 = vmatprep.subr.mxu0 0.0
  %9714 = vmatpush1.msra.mxu0 0.0
  %9715 = vmatprep.subr.mxu0 0.0
  %9716 = vmatpush1.msra.mxu0 0.0
  %9717 = vmatprep.subr.mxu0 0.0
  %9718 = vmatpush1.msra.mxu0 0.0
  %9719 = vmatprep.subr.mxu0 0.0
  %9720 = vmatpush1.msra.mxu0 0.0
  %9721 = vmatprep.subr.mxu0 0.0
  %9722 = vmatpush1.msra.mxu0 0.0
  %9723 = vmatprep.subr.mxu0 0.0
  %9724 = vmatpush1.msra.mxu0 0.0
  %9725 = vmatprep.subr.mxu0 0.0
  %9726 = vmatpush1.msra.mxu0 0.0
  %9727 = vmatprep.subr.mxu0 0.0
  %9728 = vmatpush1.msra.mxu0 0.0
  %9729 = vmatprep.subr.mxu0 0.0
  %9730 = vmatpush1.msra.mxu0 0.0
  %9731 = vmatprep.subr.mxu0 0.0
  %9732 = vmatpush1.msra.mxu0 0.0
  %9733 = vmatprep.subr.mxu0 0.0
  %9734 = vmatpush1.msra.mxu0 0.0
  %9735 = vmatprep.subr.mxu0 0.0
  %9736 = vmatpush1.msra.mxu0 0.0
  %9737 = vmatprep.subr.mxu0 0.0
  %9738 = vmatpush1.msra.mxu0 0.0
  %9739 = vmatprep.subr.mxu0 0.0
  %9740 = vmatpush1.msra.mxu0 0.0
  %9741 = vmatprep.subr.mxu0 0.0
  %9742 = vmatpush1.msra.mxu0 0.0
  %9743 = vmatprep.subr.mxu0 0.0
  %9744 = vmatpush1.msra.mxu0 0.0
  %9745 = vmatprep.subr.mxu0 0.0
  %9746 = vmatpush1.msra.mxu0 0.0
  %9747 = vmatprep.subr.mxu0 0.0
  %9748 = vmatpush1.msra.mxu0 0.0
  %9749 = vmatprep.subr.mxu0 0.0
  %9750 = vmatpush1.msra.mxu0 0.0
  %9751 = vmatprep.subr.mxu0 0.0
  %9752 = vmatpush1.msra.mxu0 0.0
  %9753 = vmatprep.mubr.f32.mxu0 0.0
  %9754 = vmatmul.mubr.f32.gmra.mrb[0].mxu0 %v9616
  %v9755 = vpop.f32.mrb[0].mxu0
  %v9756 = vadd.f32 %v9541, %v9755
  %v9757 = vpop.f32.mrb[0].mxu0
  %v9758 = vadd.f32 %v9543, %v9757
  %9759 = vdwg.mxu0
  %9760 = vmatprep.subr.mxu0 0.0
  %9761 = vmatpush1.msra.mxu0 %v9378
  %9762 = vmatprep.subr.mxu0 0.0
  %9763 = vmatpush1.msra.mxu0 0.0
  %9764 = vmatprep.subr.mxu0 0.0
  %9765 = vmatpush1.msra.mxu0 0.0
  %9766 = vmatprep.subr.mxu0 0.0
  %9767 = vmatpush1.msra.mxu0 0.0
  %9768 = vmatprep.subr.mxu0 0.0
  %9769 = vmatpush1.msra.mxu0 0.0
  %9770 = vmatprep.subr.mxu0 0.0
  %9771 = vmatpush1.msra.mxu0 0.0
  %9772 = vmatprep.subr.mxu0 0.0
  %9773 = vmatpush1.msra.mxu0 0.0
  %9774 = vmatprep.subr.mxu0 0.0
  %9775 = vmatpush1.msra.mxu0 0.0
  %9776 = vmatprep.subr.mxu0 0.0
  %9777 = vmatpush1.msra.mxu0 0.0
  %9778 = vmatprep.subr.mxu0 0.0
  %9779 = vmatpush1.msra.mxu0 0.0
  %9780 = vmatprep.subr.mxu0 0.0
  %9781 = vmatpush1.msra.mxu0 0.0
  %9782 = vmatprep.subr.mxu0 0.0
  %9783 = vmatpush1.msra.mxu0 0.0
  %9784 = vmatprep.subr.mxu0 0.0
  %9785 = vmatpush1.msra.mxu0 0.0
  %9786 = vmatprep.subr.mxu0 0.0
  %9787 = vmatpush1.msra.mxu0 0.0
  %9788 = vmatprep.subr.mxu0 0.0
  %9789 = vmatpush1.msra.mxu0 0.0
  %9790 = vmatprep.subr.mxu0 0.0
  %9791 = vmatpush1.msra.mxu0 0.0
  %9792 = vmatprep.subr.mxu0 0.0
  %9793 = vmatpush1.msra.mxu0 0.0
  %9794 = vmatprep.subr.mxu0 0.0
  %9795 = vmatpush1.msra.mxu0 0.0
  %9796 = vmatprep.subr.mxu0 0.0
  %9797 = vmatpush1.msra.mxu0 0.0
  %9798 = vmatprep.subr.mxu0 0.0
  %9799 = vmatpush1.msra.mxu0 0.0
  %9800 = vmatprep.subr.mxu0 0.0
  %9801 = vmatpush1.msra.mxu0 0.0
  %9802 = vmatprep.subr.mxu0 0.0
  %9803 = vmatpush1.msra.mxu0 0.0
  %9804 = vmatprep.subr.mxu0 0.0
  %9805 = vmatpush1.msra.mxu0 0.0
  %9806 = vmatprep.subr.mxu0 0.0
  %9807 = vmatpush1.msra.mxu0 0.0
  %9808 = vmatprep.subr.mxu0 0.0
  %9809 = vmatpush1.msra.mxu0 0.0
  %9810 = vmatprep.subr.mxu0 0.0
  %9811 = vmatpush1.msra.mxu0 0.0
  %9812 = vmatprep.subr.mxu0 0.0
  %9813 = vmatpush1.msra.mxu0 0.0
  %9814 = vmatprep.subr.mxu0 0.0
  %9815 = vmatpush1.msra.mxu0 0.0
  %9816 = vmatprep.subr.mxu0 0.0
  %9817 = vmatpush1.msra.mxu0 0.0
  %9818 = vmatprep.subr.mxu0 0.0
  %9819 = vmatpush1.msra.mxu0 0.0
  %9820 = vmatprep.subr.mxu0 0.0
  %9821 = vmatpush1.msra.mxu0 0.0
  %9822 = vmatprep.subr.mxu0 0.0
  %9823 = vmatpush1.msra.mxu0 0.0
  %9824 = vmatprep.mubr.f32.mxu0 0.0
  %9825 = vmatmul.mubr.f32.gmra.mrb[0].mxu0 %v9616
  %v9826 = vpop.f32.mrb[0].mxu0
  %v9827 = vadd.f32 %v9612, %v9826
  %v9828 = vpop.f32.mrb[0].mxu0
  %9829 = vdwg.mxu0
  %s9830 = scalar_lea.vmem %s4, 232
  %v9831 = vld [vmem:[%s9830] sm:$0xff]
  %9832 = vrot.lane.b32.xlu0 %v9361, 12
  %v9833 = vpop.permute.xlu0 %9832
  %9834 = vrot.lane.b32.xlu0 %v9362, 12
  %v9835 = vpop.permute.xlu0 %9834
  %9836 = vrot.lane.b32.xlu0 %v9363, 12
  %v9837 = vpop.permute.xlu0 %9836
  %9838 = vrot.lane.b32.xlu0 %v9364, 12
  %v9839 = vpop.permute.xlu0 %9838
  %9840 = vrot.lane.b32.xlu0 %v9365, 12
  %v9841 = vpop.permute.xlu0 %9840
  %v9842 = vsel %vm576, %v9839, %v9841
  %v9843 = vsel %vm576, %v9837, %v9839
  %v9844 = vsel %vm576, %v9835, %v9837
  %v9845 = vsel %vm576, %v9833, %v9835
  %v9846 = vsel %vm576, %v9841, %v9833
  %v9848 = vsel %vm2405, %v9831, 0
  %9850 = vmatprep.subr.mxu0 %v9845
  %9851 = vmatpush1.msra.mxu0 %v9846
  %9852 = vmatprep.subr.mxu0 0.0
  %9853 = vmatpush1.msra.mxu0 0.0
  %9854 = vmatprep.subr.mxu0 0.0
  %9855 = vmatpush1.msra.mxu0 0.0
  %9856 = vmatprep.subr.mxu0 0.0
  %9857 = vmatpush1.msra.mxu0 0.0
  %9858 = vmatprep.subr.mxu0 0.0
  %9859 = vmatpush1.msra.mxu0 0.0
  %9860 = vmatprep.subr.mxu0 0.0
  %9861 = vmatpush1.msra.mxu0 0.0
  %9862 = vmatprep.subr.mxu0 0.0
  %9863 = vmatpush1.msra.mxu0 0.0
  %9864 = vmatprep.subr.mxu0 0.0
  %9865 = vmatpush1.msra.mxu0 0.0
  %9866 = vmatprep.subr.mxu0 0.0
  %9867 = vmatpush1.msra.mxu0 0.0
  %9868 = vmatprep.subr.mxu0 0.0
  %9869 = vmatpush1.msra.mxu0 0.0
  %9870 = vmatprep.subr.mxu0 0.0
  %9871 = vmatpush1.msra.mxu0 0.0
  %9872 = vmatprep.subr.mxu0 0.0
  %9873 = vmatpush1.msra.mxu0 0.0
  %9874 = vmatprep.subr.mxu0 0.0
  %9875 = vmatpush1.msra.mxu0 0.0
  %9876 = vmatprep.subr.mxu0 0.0
  %9877 = vmatpush1.msra.mxu0 0.0
  %9878 = vmatprep.subr.mxu0 0.0
  %9879 = vmatpush1.msra.mxu0 0.0
  %9880 = vmatprep.subr.mxu0 0.0
  %9881 = vmatpush1.msra.mxu0 0.0
  %9882 = vmatprep.subr.mxu0 0.0
  %9883 = vmatpush1.msra.mxu0 0.0
  %9884 = vmatprep.subr.mxu0 0.0
  %9885 = vmatpush1.msra.mxu0 0.0
  %9886 = vmatprep.subr.mxu0 0.0
  %9887 = vmatpush1.msra.mxu0 0.0
  %9888 = vmatprep.subr.mxu0 0.0
  %9889 = vmatpush1.msra.mxu0 0.0
  %9890 = vmatprep.subr.mxu0 0.0
  %9891 = vmatpush1.msra.mxu0 0.0
  %9892 = vmatprep.subr.mxu0 0.0
  %9893 = vmatpush1.msra.mxu0 0.0
  %9894 = vmatprep.subr.mxu0 0.0
  %9895 = vmatpush1.msra.mxu0 0.0
  %9896 = vmatprep.subr.mxu0 0.0
  %9897 = vmatpush1.msra.mxu0 0.0
  %9898 = vmatprep.subr.mxu0 0.0
  %9899 = vmatpush1.msra.mxu0 0.0
  %9900 = vmatprep.subr.mxu0 0.0
  %9901 = vmatpush1.msra.mxu0 0.0
  %9902 = vmatprep.subr.mxu0 0.0
  %9903 = vmatpush1.msra.mxu0 0.0
  %9904 = vmatprep.subr.mxu0 0.0
  %9905 = vmatpush1.msra.mxu0 0.0
  %9906 = vmatprep.subr.mxu0 0.0
  %9907 = vmatpush1.msra.mxu0 0.0
  %9908 = vmatprep.subr.mxu0 0.0
  %9909 = vmatpush1.msra.mxu0 0.0
  %9910 = vmatprep.subr.mxu0 0.0
  %9911 = vmatpush1.msra.mxu0 0.0
  %9912 = vmatprep.subr.mxu0 0.0
  %9913 = vmatpush1.msra.mxu0 0.0
  %9914 = vmatprep.mubr.f32.mxu0 0.0
  %9915 = vmatmul.mubr.f32.gmra.mrb[0].mxu0 %v9848
  %v9916 = vpop.f32.mrb[0].mxu0
  %v9917 = vadd.f32 0.0, %v9916
  %v9918 = vpop.f32.mrb[0].mxu0
  %v9919 = vadd.f32 0.0, %v9918
  %9920 = vdwg.mxu0
  %9921 = vmatprep.subr.mxu0 %v9843
  %9922 = vmatpush1.msra.mxu0 %v9844
  %9923 = vmatprep.subr.mxu0 0.0
  %9924 = vmatpush1.msra.mxu0 0.0
  %9925 = vmatprep.subr.mxu0 0.0
  %9926 = vmatpush1.msra.mxu0 0.0
  %9927 = vmatprep.subr.mxu0 0.0
  %9928 = vmatpush1.msra.mxu0 0.0
  %9929 = vmatprep.subr.mxu0 0.0
  %9930 = vmatpush1.msra.mxu0 0.0
  %9931 = vmatprep.subr.mxu0 0.0
  %9932 = vmatpush1.msra.mxu0 0.0
  %9933 = vmatprep.subr.mxu0 0.0
  %9934 = vmatpush1.msra.mxu0 0.0
  %9935 = vmatprep.subr.mxu0 0.0
  %9936 = vmatpush1.msra.mxu0 0.0
  %9937 = vmatprep.subr.mxu0 0.0
  %9938 = vmatpush1.msra.mxu0 0.0
  %9939 = vmatprep.subr.mxu0 0.0
  %9940 = vmatpush1.msra.mxu0 0.0
  %9941 = vmatprep.subr.mxu0 0.0
  %9942 = vmatpush1.msra.mxu0 0.0
  %9943 = vmatprep.subr.mxu0 0.0
  %9944 = vmatpush1.msra.mxu0 0.0
  %9945 = vmatprep.subr.mxu0 0.0
  %9946 = vmatpush1.msra.mxu0 0.0
  %9947 = vmatprep.subr.mxu0 0.0
  %9948 = vmatpush1.msra.mxu0 0.0
  %9949 = vmatprep.subr.mxu0 0.0
  %9950 = vmatpush1.msra.mxu0 0.0
  %9951 = vmatprep.subr.mxu0 0.0
  %9952 = vmatpush1.msra.mxu0 0.0
  %9953 = vmatprep.subr.mxu0 0.0
  %9954 = vmatpush1.msra.mxu0 0.0
  %9955 = vmatprep.subr.mxu0 0.0
  %9956 = vmatpush1.msra.mxu0 0.0
  %9957 = vmatprep.subr.mxu0 0.0
  %9958 = vmatpush1.msra.mxu0 0.0
  %9959 = vmatprep.subr.mxu0 0.0
  %9960 = vmatpush1.msra.mxu0 0.0
  %9961 = vmatprep.subr.mxu0 0.0
  %9962 = vmatpush1.msra.mxu0 0.0
  %9963 = vmatprep.subr.mxu0 0.0
  %9964 = vmatpush1.msra.mxu0 0.0
  %9965 = vmatprep.subr.mxu0 0.0
  %9966 = vmatpush1.msra.mxu0 0.0
  %9967 = vmatprep.subr.mxu0 0.0
  %9968 = vmatpush1.msra.mxu0 0.0
  %9969 = vmatprep.subr.mxu0 0.0
  %9970 = vmatpush1.msra.mxu0 0.0
  %9971 = vmatprep.subr.mxu0 0.0
  %9972 = vmatpush1.msra.mxu0 0.0
  %9973 = vmatprep.subr.mxu0 0.0
  %9974 = vmatpush1.msra.mxu0 0.0
  %9975 = vmatprep.subr.mxu0 0.0
  %9976 = vmatpush1.msra.mxu0 0.0
  %9977 = vmatprep.subr.mxu0 0.0
  %9978 = vmatpush1.msra.mxu0 0.0
  %9979 = vmatprep.subr.mxu0 0.0
  %9980 = vmatpush1.msra.mxu0 0.0
  %9981 = vmatprep.subr.mxu0 0.0
  %9982 = vmatpush1.msra.mxu0 0.0
  %9983 = vmatprep.subr.mxu0 0.0
  %9984 = vmatpush1.msra.mxu0 0.0
  %9985 = vmatprep.mubr.f32.mxu0 0.0
  %9986 = vmatmul.mubr.f32.gmra.mrb[0].mxu0 %v9848
  %v9987 = vpop.f32.mrb[0].mxu0
  %v9988 = vadd.f32 0.0, %v9987
  %v9989 = vpop.f32.mrb[0].mxu0
  %v9990 = vadd.f32 0.0, %v9989
  %9991 = vdwg.mxu0
  %9992 = vmatprep.subr.mxu0 0.0
  %9993 = vmatpush1.msra.mxu0 %v9842
  %9994 = vmatprep.subr.mxu0 0.0
  %9995 = vmatpush1.msra.mxu0 0.0
  %9996 = vmatprep.subr.mxu0 0.0
  %9997 = vmatpush1.msra.mxu0 0.0
  %9998 = vmatprep.subr.mxu0 0.0
  %9999 = vmatpush1.msra.mxu0 0.0
  %10000 = vmatprep.subr.mxu0 0.0
  %10001 = vmatpush1.msra.mxu0 0.0
  %10002 = vmatprep.subr.mxu0 0.0
  %10003 = vmatpush1.msra.mxu0 0.0
  %10004 = vmatprep.subr.mxu0 0.0
  %10005 = vmatpush1.msra.mxu0 0.0
  %10006 = vmatprep.subr.mxu0 0.0
  %10007 = vmatpush1.msra.mxu0 0.0
  %10008 = vmatprep.subr.mxu0 0.0
  %10009 = vmatpush1.msra.mxu0 0.0
  %10010 = vmatprep.subr.mxu0 0.0
  %10011 = vmatpush1.msra.mxu0 0.0
  %10012 = vmatprep.subr.mxu0 0.0
  %10013 = vmatpush1.msra.mxu0 0.0
  %10014 = vmatprep.subr.mxu0 0.0
  %10015 = vmatpush1.msra.mxu0 0.0
  %10016 = vmatprep.subr.mxu0 0.0
  %10017 = vmatpush1.msra.mxu0 0.0
  %10018 = vmatprep.subr.mxu0 0.0
  %10019 = vmatpush1.msra.mxu0 0.0
  %10020 = vmatprep.subr.mxu0 0.0
  %10021 = vmatpush1.msra.mxu0 0.0
  %10022 = vmatprep.subr.mxu0 0.0
  %10023 = vmatpush1.msra.mxu0 0.0
  %10024 = vmatprep.subr.mxu0 0.0
  %10025 = vmatpush1.msra.mxu0 0.0
  %10026 = vmatprep.subr.mxu0 0.0
  %10027 = vmatpush1.msra.mxu0 0.0
  %10028 = vmatprep.subr.mxu0 0.0
  %10029 = vmatpush1.msra.mxu0 0.0
  %10030 = vmatprep.subr.mxu0 0.0
  %10031 = vmatpush1.msra.mxu0 0.0
  %10032 = vmatprep.subr.mxu0 0.0
  %10033 = vmatpush1.msra.mxu0 0.0
  %10034 = vmatprep.subr.mxu0 0.0
  %10035 = vmatpush1.msra.mxu0 0.0
  %10036 = vmatprep.subr.mxu0 0.0
  %10037 = vmatpush1.msra.mxu0 0.0
  %10038 = vmatprep.subr.mxu0 0.0
  %10039 = vmatpush1.msra.mxu0 0.0
  %10040 = vmatprep.subr.mxu0 0.0
  %10041 = vmatpush1.msra.mxu0 0.0
  %10042 = vmatprep.subr.mxu0 0.0
  %10043 = vmatpush1.msra.mxu0 0.0
  %10044 = vmatprep.subr.mxu0 0.0
  %10045 = vmatpush1.msra.mxu0 0.0
  %10046 = vmatprep.subr.mxu0 0.0
  %10047 = vmatpush1.msra.mxu0 0.0
  %10048 = vmatprep.subr.mxu0 0.0
  %10049 = vmatpush1.msra.mxu0 0.0
  %10050 = vmatprep.subr.mxu0 0.0
  %10051 = vmatpush1.msra.mxu0 0.0
  %10052 = vmatprep.subr.mxu0 0.0
  %10053 = vmatpush1.msra.mxu0 0.0
  %10054 = vmatprep.subr.mxu0 0.0
  %10055 = vmatpush1.msra.mxu0 0.0
  %10056 = vmatprep.mubr.f32.mxu0 0.0
  %10057 = vmatmul.mubr.f32.gmra.mrb[0].mxu0 %v9848
  %v10058 = vpop.f32.mrb[0].mxu0
  %v10059 = vadd.f32 0.0, %v10058
  %v10060 = vpop.f32.mrb[0].mxu0
  %10061 = vdwg.mxu0
  %v10062 = vadd.f32 %v9685, %v9917
  %v10063 = vadd.f32 %v9687, %v9919
  %v10064 = vadd.f32 %v9756, %v9988
  %v10065 = vadd.f32 %v9758, %v9990
  %v10066 = vadd.f32 %v9827, %v10059
  %s10067 = scalar_lea.vmem %s4, 240
  %v10068 = vld [vmem:[%s10067] sm:$0xff]
  %10069 = vrot.lane.b32.xlu0 %v9361, 1
  %v10070 = vpop.permute.xlu0 %10069
  %10071 = vrot.lane.b32.xlu0 %v9362, 1
  %v10072 = vpop.permute.xlu0 %10071
  %10073 = vrot.lane.b32.xlu0 %v9363, 1
  %v10074 = vpop.permute.xlu0 %10073
  %10075 = vrot.lane.b32.xlu0 %v9364, 1
  %v10076 = vpop.permute.xlu0 %10075
  %10077 = vrot.lane.b32.xlu0 %v9365, 1
  %v10078 = vpop.permute.xlu0 %10077
  %v10079 = vsel %vm829, %v10076, %v10078
  %v10080 = vsel %vm829, %v10074, %v10076
  %v10081 = vsel %vm829, %v10072, %v10074
  %v10082 = vsel %vm829, %v10070, %v10072
  %v10083 = vsel %vm829, %v10078, %v10070
  %v10085 = vsel %vm2405, %v10068, 0
  %10087 = vmatprep.subr.mxu0 %v10082
  %10088 = vmatpush1.msra.mxu0 %v10083
  %10089 = vmatprep.subr.mxu0 0.0
  %10090 = vmatpush1.msra.mxu0 0.0
  %10091 = vmatprep.subr.mxu0 0.0
  %10092 = vmatpush1.msra.mxu0 0.0
  %10093 = vmatprep.subr.mxu0 0.0
  %10094 = vmatpush1.msra.mxu0 0.0
  %10095 = vmatprep.subr.mxu0 0.0
  %10096 = vmatpush1.msra.mxu0 0.0
  %10097 = vmatprep.subr.mxu0 0.0
  %10098 = vmatpush1.msra.mxu0 0.0
  %10099 = vmatprep.subr.mxu0 0.0
  %10100 = vmatpush1.msra.mxu0 0.0
  %10101 = vmatprep.subr.mxu0 0.0
  %10102 = vmatpush1.msra.mxu0 0.0
  %10103 = vmatprep.subr.mxu0 0.0
  %10104 = vmatpush1.msra.mxu0 0.0
  %10105 = vmatprep.subr.mxu0 0.0
  %10106 = vmatpush1.msra.mxu0 0.0
  %10107 = vmatprep.subr.mxu0 0.0
  %10108 = vmatpush1.msra.mxu0 0.0
  %10109 = vmatprep.subr.mxu0 0.0
  %10110 = vmatpush1.msra.mxu0 0.0
  %10111 = vmatprep.subr.mxu0 0.0
  %10112 = vmatpush1.msra.mxu0 0.0
  %10113 = vmatprep.subr.mxu0 0.0
  %10114 = vmatpush1.msra.mxu0 0.0
  %10115 = vmatprep.subr.mxu0 0.0
  %10116 = vmatpush1.msra.mxu0 0.0
  %10117 = vmatprep.subr.mxu0 0.0
  %10118 = vmatpush1.msra.mxu0 0.0
  %10119 = vmatprep.subr.mxu0 0.0
  %10120 = vmatpush1.msra.mxu0 0.0
  %10121 = vmatprep.subr.mxu0 0.0
  %10122 = vmatpush1.msra.mxu0 0.0
  %10123 = vmatprep.subr.mxu0 0.0
  %10124 = vmatpush1.msra.mxu0 0.0
  %10125 = vmatprep.subr.mxu0 0.0
  %10126 = vmatpush1.msra.mxu0 0.0
  %10127 = vmatprep.subr.mxu0 0.0
  %10128 = vmatpush1.msra.mxu0 0.0
  %10129 = vmatprep.subr.mxu0 0.0
  %10130 = vmatpush1.msra.mxu0 0.0
  %10131 = vmatprep.subr.mxu0 0.0
  %10132 = vmatpush1.msra.mxu0 0.0
  %10133 = vmatprep.subr.mxu0 0.0
  %10134 = vmatpush1.msra.mxu0 0.0
  %10135 = vmatprep.subr.mxu0 0.0
  %10136 = vmatpush1.msra.mxu0 0.0
  %10137 = vmatprep.subr.mxu0 0.0
  %10138 = vmatpush1.msra.mxu0 0.0
  %10139 = vmatprep.subr.mxu0 0.0
  %10140 = vmatpush1.msra.mxu0 0.0
  %10141 = vmatprep.subr.mxu0 0.0
  %10142 = vmatpush1.msra.mxu0 0.0
  %10143 = vmatprep.subr.mxu0 0.0
  %10144 = vmatpush1.msra.mxu0 0.0
  %10145 = vmatprep.subr.mxu0 0.0
  %10146 = vmatpush1.msra.mxu0 0.0
  %10147 = vmatprep.subr.mxu0 0.0
  %10148 = vmatpush1.msra.mxu0 0.0
  %10149 = vmatprep.subr.mxu0 0.0
  %10150 = vmatpush1.msra.mxu0 0.0
  %10151 = vmatprep.mubr.f32.mxu0 0.0
  %10152 = vmatmul.mubr.f32.gmra.mrb[0].mxu0 %v10085
  %v10153 = vpop.f32.mrb[0].mxu0
  %v10154 = vadd.f32 0.0, %v10153
  %v10155 = vpop.f32.mrb[0].mxu0
  %v10156 = vadd.f32 0.0, %v10155
  %10157 = vdwg.mxu0
  %10158 = vmatprep.subr.mxu0 %v10080
  %10159 = vmatpush1.msra.mxu0 %v10081
  %10160 = vmatprep.subr.mxu0 0.0
  %10161 = vmatpush1.msra.mxu0 0.0
  %10162 = vmatprep.subr.mxu0 0.0
  %10163 = vmatpush1.msra.mxu0 0.0
  %10164 = vmatprep.subr.mxu0 0.0
  %10165 = vmatpush1.msra.mxu0 0.0
  %10166 = vmatprep.subr.mxu0 0.0
  %10167 = vmatpush1.msra.mxu0 0.0
  %10168 = vmatprep.subr.mxu0 0.0
  %10169 = vmatpush1.msra.mxu0 0.0
  %10170 = vmatprep.subr.mxu0 0.0
  %10171 = vmatpush1.msra.mxu0 0.0
  %10172 = vmatprep.subr.mxu0 0.0
  %10173 = vmatpush1.msra.mxu0 0.0
  %10174 = vmatprep.subr.mxu0 0.0
  %10175 = vmatpush1.msra.mxu0 0.0
  %10176 = vmatprep.subr.mxu0 0.0
  %10177 = vmatpush1.msra.mxu0 0.0
  %10178 = vmatprep.subr.mxu0 0.0
  %10179 = vmatpush1.msra.mxu0 0.0
  %10180 = vmatprep.subr.mxu0 0.0
  %10181 = vmatpush1.msra.mxu0 0.0
  %10182 = vmatprep.subr.mxu0 0.0
  %10183 = vmatpush1.msra.mxu0 0.0
  %10184 = vmatprep.subr.mxu0 0.0
  %10185 = vmatpush1.msra.mxu0 0.0
  %10186 = vmatprep.subr.mxu0 0.0
  %10187 = vmatpush1.msra.mxu0 0.0
  %10188 = vmatprep.subr.mxu0 0.0
  %10189 = vmatpush1.msra.mxu0 0.0
  %10190 = vmatprep.subr.mxu0 0.0
  %10191 = vmatpush1.msra.mxu0 0.0
  %10192 = vmatprep.subr.mxu0 0.0
  %10193 = vmatpush1.msra.mxu0 0.0
  %10194 = vmatprep.subr.mxu0 0.0
  %10195 = vmatpush1.msra.mxu0 0.0
  %10196 = vmatprep.subr.mxu0 0.0
  %10197 = vmatpush1.msra.mxu0 0.0
  %10198 = vmatprep.subr.mxu0 0.0
  %10199 = vmatpush1.msra.mxu0 0.0
  %10200 = vmatprep.subr.mxu0 0.0
  %10201 = vmatpush1.msra.mxu0 0.0
  %10202 = vmatprep.subr.mxu0 0.0
  %10203 = vmatpush1.msra.mxu0 0.0
  %10204 = vmatprep.subr.mxu0 0.0
  %10205 = vmatpush1.msra.mxu0 0.0
  %10206 = vmatprep.subr.mxu0 0.0
  %10207 = vmatpush1.msra.mxu0 0.0
  %10208 = vmatprep.subr.mxu0 0.0
  %10209 = vmatpush1.msra.mxu0 0.0
  %10210 = vmatprep.subr.mxu0 0.0
  %10211 = vmatpush1.msra.mxu0 0.0
  %10212 = vmatprep.subr.mxu0 0.0
  %10213 = vmatpush1.msra.mxu0 0.0
  %10214 = vmatprep.subr.mxu0 0.0
  %10215 = vmatpush1.msra.mxu0 0.0
  %10216 = vmatprep.subr.mxu0 0.0
  %10217 = vmatpush1.msra.mxu0 0.0
  %10218 = vmatprep.subr.mxu0 0.0
  %10219 = vmatpush1.msra.mxu0 0.0
  %10220 = vmatprep.subr.mxu0 0.0
  %10221 = vmatpush1.msra.mxu0 0.0
  %10222 = vmatprep.mubr.f32.mxu0 0.0
  %10223 = vmatmul.mubr.f32.gmra.mrb[0].mxu0 %v10085
  %v10224 = vpop.f32.mrb[0].mxu0
  %v10225 = vadd.f32 0.0, %v10224
  %v10226 = vpop.f32.mrb[0].mxu0
  %v10227 = vadd.f32 0.0, %v10226
  %10228 = vdwg.mxu0
  %10229 = vmatprep.subr.mxu0 0.0
  %10230 = vmatpush1.msra.mxu0 %v10079
  %10231 = vmatprep.subr.mxu0 0.0
  %10232 = vmatpush1.msra.mxu0 0.0
  %10233 = vmatprep.subr.mxu0 0.0
  %10234 = vmatpush1.msra.mxu0 0.0
  %10235 = vmatprep.subr.mxu0 0.0
  %10236 = vmatpush1.msra.mxu0 0.0
  %10237 = vmatprep.subr.mxu0 0.0
  %10238 = vmatpush1.msra.mxu0 0.0
  %10239 = vmatprep.subr.mxu0 0.0
  %10240 = vmatpush1.msra.mxu0 0.0
  %10241 = vmatprep.subr.mxu0 0.0
  %10242 = vmatpush1.msra.mxu0 0.0
  %10243 = vmatprep.subr.mxu0 0.0
  %10244 = vmatpush1.msra.mxu0 0.0
  %10245 = vmatprep.subr.mxu0 0.0
  %10246 = vmatpush1.msra.mxu0 0.0
  %10247 = vmatprep.subr.mxu0 0.0
  %10248 = vmatpush1.msra.mxu0 0.0
  %10249 = vmatprep.subr.mxu0 0.0
  %10250 = vmatpush1.msra.mxu0 0.0
  %10251 = vmatprep.subr.mxu0 0.0
  %10252 = vmatpush1.msra.mxu0 0.0
  %10253 = vmatprep.subr.mxu0 0.0
  %10254 = vmatpush1.msra.mxu0 0.0
  %10255 = vmatprep.subr.mxu0 0.0
  %10256 = vmatpush1.msra.mxu0 0.0
  %10257 = vmatprep.subr.mxu0 0.0
  %10258 = vmatpush1.msra.mxu0 0.0
  %10259 = vmatprep.subr.mxu0 0.0
  %10260 = vmatpush1.msra.mxu0 0.0
  %10261 = vmatprep.subr.mxu0 0.0
  %10262 = vmatpush1.msra.mxu0 0.0
  %10263 = vmatprep.subr.mxu0 0.0
  %10264 = vmatpush1.msra.mxu0 0.0
  %10265 = vmatprep.subr.mxu0 0.0
  %10266 = vmatpush1.msra.mxu0 0.0
  %10267 = vmatprep.subr.mxu0 0.0
  %10268 = vmatpush1.msra.mxu0 0.0
  %10269 = vmatprep.subr.mxu0 0.0
  %10270 = vmatpush1.msra.mxu0 0.0
  %10271 = vmatprep.subr.mxu0 0.0
  %10272 = vmatpush1.msra.mxu0 0.0
  %10273 = vmatprep.subr.mxu0 0.0
  %10274 = vmatpush1.msra.mxu0 0.0
  %10275 = vmatprep.subr.mxu0 0.0
  %10276 = vmatpush1.msra.mxu0 0.0
  %10277 = vmatprep.subr.mxu0 0.0
  %10278 = vmatpush1.msra.mxu0 0.0
  %10279 = vmatprep.subr.mxu0 0.0
  %10280 = vmatpush1.msra.mxu0 0.0
  %10281 = vmatprep.subr.mxu0 0.0
  %10282 = vmatpush1.msra.mxu0 0.0
  %10283 = vmatprep.subr.mxu0 0.0
  %10284 = vmatpush1.msra.mxu0 0.0
  %10285 = vmatprep.subr.mxu0 0.0
  %10286 = vmatpush1.msra.mxu0 0.0
  %10287 = vmatprep.subr.mxu0 0.0
  %10288 = vmatpush1.msra.mxu0 0.0
  %10289 = vmatprep.subr.mxu0 0.0
  %10290 = vmatpush1.msra.mxu0 0.0
  %10291 = vmatprep.subr.mxu0 0.0
  %10292 = vmatpush1.msra.mxu0 0.0
  %10293 = vmatprep.mubr.f32.mxu0 0.0
  %10294 = vmatmul.mubr.f32.gmra.mrb[0].mxu0 %v10085
  %v10295 = vpop.f32.mrb[0].mxu0
  %v10296 = vadd.f32 0.0, %v10295
  %v10297 = vpop.f32.mrb[0].mxu0
  %10298 = vdwg.mxu0
  %v10299 = vadd.f32 %v10062, %v10154
  %v10300 = vadd.f32 %v10063, %v10156
  %v10301 = vadd.f32 %v10064, %v10225
  %v10302 = vadd.f32 %v10065, %v10227
  %v10303 = vadd.f32 %v10066, %v10296
  %s10304 = scalar_lea.vmem %s4, 248
  %v10305 = vld [vmem:[%s10304] sm:$0xff]
  %v10307 = vsel %vm2405, %v10305, 0
  %10309 = vmatprep.subr.mxu0 %v9362
  %10310 = vmatpush1.msra.mxu0 %v9361
  %10311 = vmatprep.subr.mxu0 0.0
  %10312 = vmatpush1.msra.mxu0 0.0
  %10313 = vmatprep.subr.mxu0 0.0
  %10314 = vmatpush1.msra.mxu0 0.0
  %10315 = vmatprep.subr.mxu0 0.0
  %10316 = vmatpush1.msra.mxu0 0.0
  %10317 = vmatprep.subr.mxu0 0.0
  %10318 = vmatpush1.msra.mxu0 0.0
  %10319 = vmatprep.subr.mxu0 0.0
  %10320 = vmatpush1.msra.mxu0 0.0
  %10321 = vmatprep.subr.mxu0 0.0
  %10322 = vmatpush1.msra.mxu0 0.0
  %10323 = vmatprep.subr.mxu0 0.0
  %10324 = vmatpush1.msra.mxu0 0.0
  %10325 = vmatprep.subr.mxu0 0.0
  %10326 = vmatpush1.msra.mxu0 0.0
  %10327 = vmatprep.subr.mxu0 0.0
  %10328 = vmatpush1.msra.mxu0 0.0
  %10329 = vmatprep.subr.mxu0 0.0
  %10330 = vmatpush1.msra.mxu0 0.0
  %10331 = vmatprep.subr.mxu0 0.0
  %10332 = vmatpush1.msra.mxu0 0.0
  %10333 = vmatprep.subr.mxu0 0.0
  %10334 = vmatpush1.msra.mxu0 0.0
  %10335 = vmatprep.subr.mxu0 0.0
  %10336 = vmatpush1.msra.mxu0 0.0
  %10337 = vmatprep.subr.mxu0 0.0
  %10338 = vmatpush1.msra.mxu0 0.0
  %10339 = vmatprep.subr.mxu0 0.0
  %10340 = vmatpush1.msra.mxu0 0.0
  %10341 = vmatprep.subr.mxu0 0.0
  %10342 = vmatpush1.msra.mxu0 0.0
  %10343 = vmatprep.subr.mxu0 0.0
  %10344 = vmatpush1.msra.mxu0 0.0
  %10345 = vmatprep.subr.mxu0 0.0
  %10346 = vmatpush1.msra.mxu0 0.0
  %10347 = vmatprep.subr.mxu0 0.0
  %10348 = vmatpush1.msra.mxu0 0.0
  %10349 = vmatprep.subr.mxu0 0.0
  %10350 = vmatpush1.msra.mxu0 0.0
  %10351 = vmatprep.subr.mxu0 0.0
  %10352 = vmatpush1.msra.mxu0 0.0
  %10353 = vmatprep.subr.mxu0 0.0
  %10354 = vmatpush1.msra.mxu0 0.0
  %10355 = vmatprep.subr.mxu0 0.0
  %10356 = vmatpush1.msra.mxu0 0.0
  %10357 = vmatprep.subr.mxu0 0.0
  %10358 = vmatpush1.msra.mxu0 0.0
  %10359 = vmatprep.subr.mxu0 0.0
  %10360 = vmatpush1.msra.mxu0 0.0
  %10361 = vmatprep.subr.mxu0 0.0
  %10362 = vmatpush1.msra.mxu0 0.0
  %10363 = vmatprep.subr.mxu0 0.0
  %10364 = vmatpush1.msra.mxu0 0.0
  %10365 = vmatprep.subr.mxu0 0.0
  %10366 = vmatpush1.msra.mxu0 0.0
  %10367 = vmatprep.subr.mxu0 0.0
  %10368 = vmatpush1.msra.mxu0 0.0
  %10369 = vmatprep.subr.mxu0 0.0
  %10370 = vmatpush1.msra.mxu0 0.0
  %10371 = vmatprep.subr.mxu0 0.0
  %10372 = vmatpush1.msra.mxu0 0.0
  %10373 = vmatprep.mubr.f32.mxu0 0.0
  %10374 = vmatmul.mubr.f32.gmra.mrb[0].mxu0 %v10307
  %v10375 = vpop.f32.mrb[0].mxu0
  %v10376 = vadd.f32 0.0, %v10375
  %v10377 = vpop.f32.mrb[0].mxu0
  %v10378 = vadd.f32 0.0, %v10377
  %10379 = vdwg.mxu0
  %10380 = vmatprep.subr.mxu0 %v9364
  %10381 = vmatpush1.msra.mxu0 %v9363
  %10382 = vmatprep.subr.mxu0 0.0
  %10383 = vmatpush1.msra.mxu0 0.0
  %10384 = vmatprep.subr.mxu0 0.0
  %10385 = vmatpush1.msra.mxu0 0.0
  %10386 = vmatprep.subr.mxu0 0.0
  %10387 = vmatpush1.msra.mxu0 0.0
  %10388 = vmatprep.subr.mxu0 0.0
  %10389 = vmatpush1.msra.mxu0 0.0
  %10390 = vmatprep.subr.mxu0 0.0
  %10391 = vmatpush1.msra.mxu0 0.0
  %10392 = vmatprep.subr.mxu0 0.0
  %10393 = vmatpush1.msra.mxu0 0.0
  %10394 = vmatprep.subr.mxu0 0.0
  %10395 = vmatpush1.msra.mxu0 0.0
  %10396 = vmatprep.subr.mxu0 0.0
  %10397 = vmatpush1.msra.mxu0 0.0
  %10398 = vmatprep.subr.mxu0 0.0
  %10399 = vmatpush1.msra.mxu0 0.0
  %10400 = vmatprep.subr.mxu0 0.0
  %10401 = vmatpush1.msra.mxu0 0.0
  %10402 = vmatprep.subr.mxu0 0.0
  %10403 = vmatpush1.msra.mxu0 0.0
  %10404 = vmatprep.subr.mxu0 0.0
  %10405 = vmatpush1.msra.mxu0 0.0
  %10406 = vmatprep.subr.mxu0 0.0
  %10407 = vmatpush1.msra.mxu0 0.0
  %10408 = vmatprep.subr.mxu0 0.0
  %10409 = vmatpush1.msra.mxu0 0.0
  %10410 = vmatprep.subr.mxu0 0.0
  %10411 = vmatpush1.msra.mxu0 0.0
  %10412 = vmatprep.subr.mxu0 0.0
  %10413 = vmatpush1.msra.mxu0 0.0
  %10414 = vmatprep.subr.mxu0 0.0
  %10415 = vmatpush1.msra.mxu0 0.0
  %10416 = vmatprep.subr.mxu0 0.0
  %10417 = vmatpush1.msra.mxu0 0.0
  %10418 = vmatprep.subr.mxu0 0.0
  %10419 = vmatpush1.msra.mxu0 0.0
  %10420 = vmatprep.subr.mxu0 0.0
  %10421 = vmatpush1.msra.mxu0 0.0
  %10422 = vmatprep.subr.mxu0 0.0
  %10423 = vmatpush1.msra.mxu0 0.0
  %10424 = vmatprep.subr.mxu0 0.0
  %10425 = vmatpush1.msra.mxu0 0.0
  %10426 = vmatprep.subr.mxu0 0.0
  %10427 = vmatpush1.msra.mxu0 0.0
  %10428 = vmatprep.subr.mxu0 0.0
  %10429 = vmatpush1.msra.mxu0 0.0
  %10430 = vmatprep.subr.mxu0 0.0
  %10431 = vmatpush1.msra.mxu0 0.0
  %10432 = vmatprep.subr.mxu0 0.0
  %10433 = vmatpush1.msra.mxu0 0.0
  %10434 = vmatprep.subr.mxu0 0.0
  %10435 = vmatpush1.msra.mxu0 0.0
  %10436 = vmatprep.subr.mxu0 0.0
  %10437 = vmatpush1.msra.mxu0 0.0
  %10438 = vmatprep.subr.mxu0 0.0
  %10439 = vmatpush1.msra.mxu0 0.0
  %10440 = vmatprep.subr.mxu0 0.0
  %10441 = vmatpush1.msra.mxu0 0.0
  %10442 = vmatprep.subr.mxu0 0.0
  %10443 = vmatpush1.msra.mxu0 0.0
  %10444 = vmatprep.mubr.f32.mxu0 0.0
  %10445 = vmatmul.mubr.f32.gmra.mrb[0].mxu0 %v10307
  %v10446 = vpop.f32.mrb[0].mxu0
  %v10447 = vadd.f32 0.0, %v10446
  %v10448 = vpop.f32.mrb[0].mxu0
  %v10449 = vadd.f32 0.0, %v10448
  %10450 = vdwg.mxu0
  %10451 = vmatprep.subr.mxu0 0.0
  %10452 = vmatpush1.msra.mxu0 %v9365
  %10453 = vmatprep.subr.mxu0 0.0
  %10454 = vmatpush1.msra.mxu0 0.0
  %10455 = vmatprep.subr.mxu0 0.0
  %10456 = vmatpush1.msra.mxu0 0.0
  %10457 = vmatprep.subr.mxu0 0.0
  %10458 = vmatpush1.msra.mxu0 0.0
  %10459 = vmatprep.subr.mxu0 0.0
  %10460 = vmatpush1.msra.mxu0 0.0
  %10461 = vmatprep.subr.mxu0 0.0
  %10462 = vmatpush1.msra.mxu0 0.0
  %10463 = vmatprep.subr.mxu0 0.0
  %10464 = vmatpush1.msra.mxu0 0.0
  %10465 = vmatprep.subr.mxu0 0.0
  %10466 = vmatpush1.msra.mxu0 0.0
  %10467 = vmatprep.subr.mxu0 0.0
  %10468 = vmatpush1.msra.mxu0 0.0
  %10469 = vmatprep.subr.mxu0 0.0
  %10470 = vmatpush1.msra.mxu0 0.0
  %10471 = vmatprep.subr.mxu0 0.0
  %10472 = vmatpush1.msra.mxu0 0.0
  %10473 = vmatprep.subr.mxu0 0.0
  %10474 = vmatpush1.msra.mxu0 0.0
  %10475 = vmatprep.subr.mxu0 0.0
  %10476 = vmatpush1.msra.mxu0 0.0
  %10477 = vmatprep.subr.mxu0 0.0
  %10478 = vmatpush1.msra.mxu0 0.0
  %10479 = vmatprep.subr.mxu0 0.0
  %10480 = vmatpush1.msra.mxu0 0.0
  %10481 = vmatprep.subr.mxu0 0.0
  %10482 = vmatpush1.msra.mxu0 0.0
  %10483 = vmatprep.subr.mxu0 0.0
  %10484 = vmatpush1.msra.mxu0 0.0
  %10485 = vmatprep.subr.mxu0 0.0
  %10486 = vmatpush1.msra.mxu0 0.0
  %10487 = vmatprep.subr.mxu0 0.0
  %10488 = vmatpush1.msra.mxu0 0.0
  %10489 = vmatprep.subr.mxu0 0.0
  %10490 = vmatpush1.msra.mxu0 0.0
  %10491 = vmatprep.subr.mxu0 0.0
  %10492 = vmatpush1.msra.mxu0 0.0
  %10493 = vmatprep.subr.mxu0 0.0
  %10494 = vmatpush1.msra.mxu0 0.0
  %10495 = vmatprep.subr.mxu0 0.0
  %10496 = vmatpush1.msra.mxu0 0.0
  %10497 = vmatprep.subr.mxu0 0.0
  %10498 = vmatpush1.msra.mxu0 0.0
  %10499 = vmatprep.subr.mxu0 0.0
  %10500 = vmatpush1.msra.mxu0 0.0
  %10501 = vmatprep.subr.mxu0 0.0
  %10502 = vmatpush1.msra.mxu0 0.0
  %10503 = vmatprep.subr.mxu0 0.0
  %10504 = vmatpush1.msra.mxu0 0.0
  %10505 = vmatprep.subr.mxu0 0.0
  %10506 = vmatpush1.msra.mxu0 0.0
  %10507 = vmatprep.subr.mxu0 0.0
  %10508 = vmatpush1.msra.mxu0 0.0
  %10509 = vmatprep.subr.mxu0 0.0
  %10510 = vmatpush1.msra.mxu0 0.0
  %10511 = vmatprep.subr.mxu0 0.0
  %10512 = vmatpush1.msra.mxu0 0.0
  %10513 = vmatprep.subr.mxu0 0.0
  %10514 = vmatpush1.msra.mxu0 0.0
  %10515 = vmatprep.mubr.f32.mxu0 0.0
  %10516 = vmatmul.mubr.f32.gmra.mrb[0].mxu0 %v10307
  %v10517 = vpop.f32.mrb[0].mxu0
  %v10518 = vadd.f32 0.0, %v10517
  %v10519 = vpop.f32.mrb[0].mxu0
  %10520 = vdwg.mxu0
  %v10521 = vadd.f32 %v10299, %v10376
  %v10522 = vadd.f32 %v10300, %v10378
  %v10523 = vadd.f32 %v10301, %v10447
  %v10524 = vadd.f32 %v10302, %v10449
  %v10525 = vadd.f32 %v10303, %v10518
  %s10526 = scalar_lea.vmem %s4, 256
  %v10527 = vld [vmem:[%s10526] sm:$0xff]
  %10528 = vrot.lane.b32.xlu0 %v9361, 127
  %v10529 = vpop.permute.xlu0 %10528
  %10530 = vrot.lane.b32.xlu0 %v9362, 127
  %v10531 = vpop.permute.xlu0 %10530
  %10532 = vrot.lane.b32.xlu0 %v9363, 127
  %v10533 = vpop.permute.xlu0 %10532
  %10534 = vrot.lane.b32.xlu0 %v9364, 127
  %v10535 = vpop.permute.xlu0 %10534
  %10536 = vrot.lane.b32.xlu0 %v9365, 127
  %v10537 = vpop.permute.xlu0 %10536
  %v10538 = vsel %vm1314, %v10535, %v10537
  %v10539 = vsel %vm1314, %v10533, %v10535
  %v10540 = vsel %vm1314, %v10531, %v10533
  %v10541 = vsel %vm1314, %v10529, %v10531
  %v10542 = vsel %vm1314, %v10537, %v10529
  %v10544 = vsel %vm2405, %v10527, 0
  %10546 = vmatprep.subr.mxu0 %v10540
  %10547 = vmatpush1.msra.mxu0 %v10541
  %10548 = vmatprep.subr.mxu0 0.0
  %10549 = vmatpush1.msra.mxu0 0.0
  %10550 = vmatprep.subr.mxu0 0.0
  %10551 = vmatpush1.msra.mxu0 0.0
  %10552 = vmatprep.subr.mxu0 0.0
  %10553 = vmatpush1.msra.mxu0 0.0
  %10554 = vmatprep.subr.mxu0 0.0
  %10555 = vmatpush1.msra.mxu0 0.0
  %10556 = vmatprep.subr.mxu0 0.0
  %10557 = vmatpush1.msra.mxu0 0.0
  %10558 = vmatprep.subr.mxu0 0.0
  %10559 = vmatpush1.msra.mxu0 0.0
  %10560 = vmatprep.subr.mxu0 0.0
  %10561 = vmatpush1.msra.mxu0 0.0
  %10562 = vmatprep.subr.mxu0 0.0
  %10563 = vmatpush1.msra.mxu0 0.0
  %10564 = vmatprep.subr.mxu0 0.0
  %10565 = vmatpush1.msra.mxu0 0.0
  %10566 = vmatprep.subr.mxu0 0.0
  %10567 = vmatpush1.msra.mxu0 0.0
  %10568 = vmatprep.subr.mxu0 0.0
  %10569 = vmatpush1.msra.mxu0 0.0
  %10570 = vmatprep.subr.mxu0 0.0
  %10571 = vmatpush1.msra.mxu0 0.0
  %10572 = vmatprep.subr.mxu0 0.0
  %10573 = vmatpush1.msra.mxu0 0.0
  %10574 = vmatprep.subr.mxu0 0.0
  %10575 = vmatpush1.msra.mxu0 0.0
  %10576 = vmatprep.subr.mxu0 0.0
  %10577 = vmatpush1.msra.mxu0 0.0
  %10578 = vmatprep.subr.mxu0 0.0
  %10579 = vmatpush1.msra.mxu0 0.0
  %10580 = vmatprep.subr.mxu0 0.0
  %10581 = vmatpush1.msra.mxu0 0.0
  %10582 = vmatprep.subr.mxu0 0.0
  %10583 = vmatpush1.msra.mxu0 0.0
  %10584 = vmatprep.subr.mxu0 0.0
  %10585 = vmatpush1.msra.mxu0 0.0
  %10586 = vmatprep.subr.mxu0 0.0
  %10587 = vmatpush1.msra.mxu0 0.0
  %10588 = vmatprep.subr.mxu0 0.0
  %10589 = vmatpush1.msra.mxu0 0.0
  %10590 = vmatprep.subr.mxu0 0.0
  %10591 = vmatpush1.msra.mxu0 0.0
  %10592 = vmatprep.subr.mxu0 0.0
  %10593 = vmatpush1.msra.mxu0 0.0
  %10594 = vmatprep.subr.mxu0 0.0
  %10595 = vmatpush1.msra.mxu0 0.0
  %10596 = vmatprep.subr.mxu0 0.0
  %10597 = vmatpush1.msra.mxu0 0.0
  %10598 = vmatprep.subr.mxu0 0.0
  %10599 = vmatpush1.msra.mxu0 0.0
  %10600 = vmatprep.subr.mxu0 0.0
  %10601 = vmatpush1.msra.mxu0 0.0
  %10602 = vmatprep.subr.mxu0 0.0
  %10603 = vmatpush1.msra.mxu0 0.0
  %10604 = vmatprep.subr.mxu0 0.0
  %10605 = vmatpush1.msra.mxu0 0.0
  %10606 = vmatprep.subr.mxu0 0.0
  %10607 = vmatpush1.msra.mxu0 0.0
  %10608 = vmatprep.subr.mxu0 0.0
  %10609 = vmatpush1.msra.mxu0 0.0
  %10610 = vmatprep.mubr.f32.mxu0 0.0
  %10611 = vmatmul.mubr.f32.gmra.mrb[0].mxu0 %v10544
  %v10612 = vpop.f32.mrb[0].mxu0
  %v10613 = vadd.f32 0.0, %v10612
  %v10614 = vpop.f32.mrb[0].mxu0
  %v10615 = vadd.f32 0.0, %v10614
  %10616 = vdwg.mxu0
  %10617 = vmatprep.subr.mxu0 %v10538
  %10618 = vmatpush1.msra.mxu0 %v10539
  %10619 = vmatprep.subr.mxu0 0.0
  %10620 = vmatpush1.msra.mxu0 0.0
  %10621 = vmatprep.subr.mxu0 0.0
  %10622 = vmatpush1.msra.mxu0 0.0
  %10623 = vmatprep.subr.mxu0 0.0
  %10624 = vmatpush1.msra.mxu0 0.0
  %10625 = vmatprep.subr.mxu0 0.0
  %10626 = vmatpush1.msra.mxu0 0.0
  %10627 = vmatprep.subr.mxu0 0.0
  %10628 = vmatpush1.msra.mxu0 0.0
  %10629 = vmatprep.subr.mxu0 0.0
  %10630 = vmatpush1.msra.mxu0 0.0
  %10631 = vmatprep.subr.mxu0 0.0
  %10632 = vmatpush1.msra.mxu0 0.0
  %10633 = vmatprep.subr.mxu0 0.0
  %10634 = vmatpush1.msra.mxu0 0.0
  %10635 = vmatprep.subr.mxu0 0.0
  %10636 = vmatpush1.msra.mxu0 0.0
  %10637 = vmatprep.subr.mxu0 0.0
  %10638 = vmatpush1.msra.mxu0 0.0
  %10639 = vmatprep.subr.mxu0 0.0
  %10640 = vmatpush1.msra.mxu0 0.0
  %10641 = vmatprep.subr.mxu0 0.0
  %10642 = vmatpush1.msra.mxu0 0.0
  %10643 = vmatprep.subr.mxu0 0.0
  %10644 = vmatpush1.msra.mxu0 0.0
  %10645 = vmatprep.subr.mxu0 0.0
  %10646 = vmatpush1.msra.mxu0 0.0
  %10647 = vmatprep.subr.mxu0 0.0
  %10648 = vmatpush1.msra.mxu0 0.0
  %10649 = vmatprep.subr.mxu0 0.0
  %10650 = vmatpush1.msra.mxu0 0.0
  %10651 = vmatprep.subr.mxu0 0.0
  %10652 = vmatpush1.msra.mxu0 0.0
  %10653 = vmatprep.subr.mxu0 0.0
  %10654 = vmatpush1.msra.mxu0 0.0
  %10655 = vmatprep.subr.mxu0 0.0
  %10656 = vmatpush1.msra.mxu0 0.0
  %10657 = vmatprep.subr.mxu0 0.0
  %10658 = vmatpush1.msra.mxu0 0.0
  %10659 = vmatprep.subr.mxu0 0.0
  %10660 = vmatpush1.msra.mxu0 0.0
  %10661 = vmatprep.subr.mxu0 0.0
  %10662 = vmatpush1.msra.mxu0 0.0
  %10663 = vmatprep.subr.mxu0 0.0
  %10664 = vmatpush1.msra.mxu0 0.0
  %10665 = vmatprep.subr.mxu0 0.0
  %10666 = vmatpush1.msra.mxu0 0.0
  %10667 = vmatprep.subr.mxu0 0.0
  %10668 = vmatpush1.msra.mxu0 0.0
  %10669 = vmatprep.subr.mxu0 0.0
  %10670 = vmatpush1.msra.mxu0 0.0
  %10671 = vmatprep.subr.mxu0 0.0
  %10672 = vmatpush1.msra.mxu0 0.0
  %10673 = vmatprep.subr.mxu0 0.0
  %10674 = vmatpush1.msra.mxu0 0.0
  %10675 = vmatprep.subr.mxu0 0.0
  %10676 = vmatpush1.msra.mxu0 0.0
  %10677 = vmatprep.subr.mxu0 0.0
  %10678 = vmatpush1.msra.mxu0 0.0
  %10679 = vmatprep.subr.mxu0 0.0
  %10680 = vmatpush1.msra.mxu0 0.0
  %10681 = vmatprep.mubr.f32.mxu0 0.0
  %10682 = vmatmul.mubr.f32.gmra.mrb[0].mxu0 %v10544
  %v10683 = vpop.f32.mrb[0].mxu0
  %v10684 = vadd.f32 0.0, %v10683
  %v10685 = vpop.f32.mrb[0].mxu0
  %v10686 = vadd.f32 0.0, %v10685
  %10687 = vdwg.mxu0
  %10688 = vmatprep.subr.mxu0 0.0
  %10689 = vmatpush1.msra.mxu0 %v10542
  %10690 = vmatprep.subr.mxu0 0.0
  %10691 = vmatpush1.msra.mxu0 0.0
  %10692 = vmatprep.subr.mxu0 0.0
  %10693 = vmatpush1.msra.mxu0 0.0
  %10694 = vmatprep.subr.mxu0 0.0
  %10695 = vmatpush1.msra.mxu0 0.0
  %10696 = vmatprep.subr.mxu0 0.0
  %10697 = vmatpush1.msra.mxu0 0.0
  %10698 = vmatprep.subr.mxu0 0.0
  %10699 = vmatpush1.msra.mxu0 0.0
  %10700 = vmatprep.subr.mxu0 0.0
  %10701 = vmatpush1.msra.mxu0 0.0
  %10702 = vmatprep.subr.mxu0 0.0
  %10703 = vmatpush1.msra.mxu0 0.0
  %10704 = vmatprep.subr.mxu0 0.0
  %10705 = vmatpush1.msra.mxu0 0.0
  %10706 = vmatprep.subr.mxu0 0.0
  %10707 = vmatpush1.msra.mxu0 0.0
  %10708 = vmatprep.subr.mxu0 0.0
  %10709 = vmatpush1.msra.mxu0 0.0
  %10710 = vmatprep.subr.mxu0 0.0
  %10711 = vmatpush1.msra.mxu0 0.0
  %10712 = vmatprep.subr.mxu0 0.0
  %10713 = vmatpush1.msra.mxu0 0.0
  %10714 = vmatprep.subr.mxu0 0.0
  %10715 = vmatpush1.msra.mxu0 0.0
  %10716 = vmatprep.subr.mxu0 0.0
  %10717 = vmatpush1.msra.mxu0 0.0
  %10718 = vmatprep.subr.mxu0 0.0
  %10719 = vmatpush1.msra.mxu0 0.0
  %10720 = vmatprep.subr.mxu0 0.0
  %10721 = vmatpush1.msra.mxu0 0.0
  %10722 = vmatprep.subr.mxu0 0.0
  %10723 = vmatpush1.msra.mxu0 0.0
  %10724 = vmatprep.subr.mxu0 0.0
  %10725 = vmatpush1.msra.mxu0 0.0
  %10726 = vmatprep.subr.mxu0 0.0
  %10727 = vmatpush1.msra.mxu0 0.0
  %10728 = vmatprep.subr.mxu0 0.0
  %10729 = vmatpush1.msra.mxu0 0.0
  %10730 = vmatprep.subr.mxu0 0.0
  %10731 = vmatpush1.msra.mxu0 0.0
  %10732 = vmatprep.subr.mxu0 0.0
  %10733 = vmatpush1.msra.mxu0 0.0
  %10734 = vmatprep.subr.mxu0 0.0
  %10735 = vmatpush1.msra.mxu0 0.0
  %10736 = vmatprep.subr.mxu0 0.0
  %10737 = vmatpush1.msra.mxu0 0.0
  %10738 = vmatprep.subr.mxu0 0.0
  %10739 = vmatpush1.msra.mxu0 0.0
  %10740 = vmatprep.subr.mxu0 0.0
  %10741 = vmatpush1.msra.mxu0 0.0
  %10742 = vmatprep.subr.mxu0 0.0
  %10743 = vmatpush1.msra.mxu0 0.0
  %10744 = vmatprep.subr.mxu0 0.0
  %10745 = vmatpush1.msra.mxu0 0.0
  %10746 = vmatprep.subr.mxu0 0.0
  %10747 = vmatpush1.msra.mxu0 0.0
  %10748 = vmatprep.subr.mxu0 0.0
  %10749 = vmatpush1.msra.mxu0 0.0
  %10750 = vmatprep.subr.mxu0 0.0
  %10751 = vmatpush1.msra.mxu0 0.0
  %10752 = vmatprep.mubr.f32.mxu0 0.0
  %10753 = vmatmul.mubr.f32.gmra.mrb[0].mxu0 %v10544
  %v10754 = vpop.f32.mrb[0].mxu0
  %v10755 = vadd.f32 0.0, %v10754
  %v10756 = vpop.f32.mrb[0].mxu0
  %10757 = vdwg.mxu0
  %v10758 = vadd.f32 %v10521, %v10613
  %v10759 = vadd.f32 %v10522, %v10615
  %v10760 = vadd.f32 %v10523, %v10684
  %v10761 = vadd.f32 %v10524, %v10686
  %v10762 = vadd.f32 %v10525, %v10755
  %s10763 = scalar_lea.vmem %s4, 264
  %v10764 = vld [vmem:[%s10763] sm:$0xff]
  %10765 = vrot.lane.b32.xlu0 %v9361, 116
  %v10766 = vpop.permute.xlu0 %10765
  %10767 = vrot.lane.b32.xlu0 %v9362, 116
  %v10768 = vpop.permute.xlu0 %10767
  %10769 = vrot.lane.b32.xlu0 %v9363, 116
  %v10770 = vpop.permute.xlu0 %10769
  %10771 = vrot.lane.b32.xlu0 %v9364, 116
  %v10772 = vpop.permute.xlu0 %10771
  %10773 = vrot.lane.b32.xlu0 %v9365, 116
  %v10774 = vpop.permute.xlu0 %10773
  %v10775 = vsel %vm1567, %v10772, %v10774
  %v10776 = vsel %vm1567, %v10770, %v10772
  %v10777 = vsel %vm1567, %v10768, %v10770
  %v10778 = vsel %vm1567, %v10766, %v10768
  %v10779 = vsel %vm1567, %v10774, %v10766
  %v10781 = vsel %vm2405, %v10764, 0
  %10783 = vmatprep.subr.mxu0 %v10777
  %10784 = vmatpush1.msra.mxu0 %v10778
  %10785 = vmatprep.subr.mxu0 0.0
  %10786 = vmatpush1.msra.mxu0 0.0
  %10787 = vmatprep.subr.mxu0 0.0
  %10788 = vmatpush1.msra.mxu0 0.0
  %10789 = vmatprep.subr.mxu0 0.0
  %10790 = vmatpush1.msra.mxu0 0.0
  %10791 = vmatprep.subr.mxu0 0.0
  %10792 = vmatpush1.msra.mxu0 0.0
  %10793 = vmatprep.subr.mxu0 0.0
  %10794 = vmatpush1.msra.mxu0 0.0
  %10795 = vmatprep.subr.mxu0 0.0
  %10796 = vmatpush1.msra.mxu0 0.0
  %10797 = vmatprep.subr.mxu0 0.0
  %10798 = vmatpush1.msra.mxu0 0.0
  %10799 = vmatprep.subr.mxu0 0.0
  %10800 = vmatpush1.msra.mxu0 0.0
  %10801 = vmatprep.subr.mxu0 0.0
  %10802 = vmatpush1.msra.mxu0 0.0
  %10803 = vmatprep.subr.mxu0 0.0
  %10804 = vmatpush1.msra.mxu0 0.0
  %10805 = vmatprep.subr.mxu0 0.0
  %10806 = vmatpush1.msra.mxu0 0.0
  %10807 = vmatprep.subr.mxu0 0.0
  %10808 = vmatpush1.msra.mxu0 0.0
  %10809 = vmatprep.subr.mxu0 0.0
  %10810 = vmatpush1.msra.mxu0 0.0
  %10811 = vmatprep.subr.mxu0 0.0
  %10812 = vmatpush1.msra.mxu0 0.0
  %10813 = vmatprep.subr.mxu0 0.0
  %10814 = vmatpush1.msra.mxu0 0.0
  %10815 = vmatprep.subr.mxu0 0.0
  %10816 = vmatpush1.msra.mxu0 0.0
  %10817 = vmatprep.subr.mxu0 0.0
  %10818 = vmatpush1.msra.mxu0 0.0
  %10819 = vmatprep.subr.mxu0 0.0
  %10820 = vmatpush1.msra.mxu0 0.0
  %10821 = vmatprep.subr.mxu0 0.0
  %10822 = vmatpush1.msra.mxu0 0.0
  %10823 = vmatprep.subr.mxu0 0.0
  %10824 = vmatpush1.msra.mxu0 0.0
  %10825 = vmatprep.subr.mxu0 0.0
  %10826 = vmatpush1.msra.mxu0 0.0
  %10827 = vmatprep.subr.mxu0 0.0
  %10828 = vmatpush1.msra.mxu0 0.0
  %10829 = vmatprep.subr.mxu0 0.0
  %10830 = vmatpush1.msra.mxu0 0.0
  %10831 = vmatprep.subr.mxu0 0.0
  %10832 = vmatpush1.msra.mxu0 0.0
  %10833 = vmatprep.subr.mxu0 0.0
  %10834 = vmatpush1.msra.mxu0 0.0
  %10835 = vmatprep.subr.mxu0 0.0
  %10836 = vmatpush1.msra.mxu0 0.0
  %10837 = vmatprep.subr.mxu0 0.0
  %10838 = vmatpush1.msra.mxu0 0.0
  %10839 = vmatprep.subr.mxu0 0.0
  %10840 = vmatpush1.msra.mxu0 0.0
  %10841 = vmatprep.subr.mxu0 0.0
  %10842 = vmatpush1.msra.mxu0 0.0
  %10843 = vmatprep.subr.mxu0 0.0
  %10844 = vmatpush1.msra.mxu0 0.0
  %10845 = vmatprep.subr.mxu0 0.0
  %10846 = vmatpush1.msra.mxu0 0.0
  %10847 = vmatprep.mubr.f32.mxu0 0.0
  %10848 = vmatmul.mubr.f32.gmra.mrb[0].mxu0 %v10781
  %v10849 = vpop.f32.mrb[0].mxu0
  %v10850 = vadd.f32 0.0, %v10849
  %v10851 = vpop.f32.mrb[0].mxu0
  %v10852 = vadd.f32 0.0, %v10851
  %10853 = vdwg.mxu0
  %10854 = vmatprep.subr.mxu0 %v10775
  %10855 = vmatpush1.msra.mxu0 %v10776
  %10856 = vmatprep.subr.mxu0 0.0
  %10857 = vmatpush1.msra.mxu0 0.0
  %10858 = vmatprep.subr.mxu0 0.0
  %10859 = vmatpush1.msra.mxu0 0.0
  %10860 = vmatprep.subr.mxu0 0.0
  %10861 = vmatpush1.msra.mxu0 0.0
  %10862 = vmatprep.subr.mxu0 0.0
  %10863 = vmatpush1.msra.mxu0 0.0
  %10864 = vmatprep.subr.mxu0 0.0
  %10865 = vmatpush1.msra.mxu0 0.0
  %10866 = vmatprep.subr.mxu0 0.0
  %10867 = vmatpush1.msra.mxu0 0.0
  %10868 = vmatprep.subr.mxu0 0.0
  %10869 = vmatpush1.msra.mxu0 0.0
  %10870 = vmatprep.subr.mxu0 0.0
  %10871 = vmatpush1.msra.mxu0 0.0
  %10872 = vmatprep.subr.mxu0 0.0
  %10873 = vmatpush1.msra.mxu0 0.0
  %10874 = vmatprep.subr.mxu0 0.0
  %10875 = vmatpush1.msra.mxu0 0.0
  %10876 = vmatprep.subr.mxu0 0.0
  %10877 = vmatpush1.msra.mxu0 0.0
  %10878 = vmatprep.subr.mxu0 0.0
  %10879 = vmatpush1.msra.mxu0 0.0
  %10880 = vmatprep.subr.mxu0 0.0
  %10881 = vmatpush1.msra.mxu0 0.0
  %10882 = vmatprep.subr.mxu0 0.0
  %10883 = vmatpush1.msra.mxu0 0.0
  %10884 = vmatprep.subr.mxu0 0.0
  %10885 = vmatpush1.msra.mxu0 0.0
  %10886 = vmatprep.subr.mxu0 0.0
  %10887 = vmatpush1.msra.mxu0 0.0
  %10888 = vmatprep.subr.mxu0 0.0
  %10889 = vmatpush1.msra.mxu0 0.0
  %10890 = vmatprep.subr.mxu0 0.0
  %10891 = vmatpush1.msra.mxu0 0.0
  %10892 = vmatprep.subr.mxu0 0.0
  %10893 = vmatpush1.msra.mxu0 0.0
  %10894 = vmatprep.subr.mxu0 0.0
  %10895 = vmatpush1.msra.mxu0 0.0
  %10896 = vmatprep.subr.mxu0 0.0
  %10897 = vmatpush1.msra.mxu0 0.0
  %10898 = vmatprep.subr.mxu0 0.0
  %10899 = vmatpush1.msra.mxu0 0.0
  %10900 = vmatprep.subr.mxu0 0.0
  %10901 = vmatpush1.msra.mxu0 0.0
  %10902 = vmatprep.subr.mxu0 0.0
  %10903 = vmatpush1.msra.mxu0 0.0
  %10904 = vmatprep.subr.mxu0 0.0
  %10905 = vmatpush1.msra.mxu0 0.0
  %10906 = vmatprep.subr.mxu0 0.0
  %10907 = vmatpush1.msra.mxu0 0.0
  %10908 = vmatprep.subr.mxu0 0.0
  %10909 = vmatpush1.msra.mxu0 0.0
  %10910 = vmatprep.subr.mxu0 0.0
  %10911 = vmatpush1.msra.mxu0 0.0
  %10912 = vmatprep.subr.mxu0 0.0
  %10913 = vmatpush1.msra.mxu0 0.0
  %10914 = vmatprep.subr.mxu0 0.0
  %10915 = vmatpush1.msra.mxu0 0.0
  %10916 = vmatprep.subr.mxu0 0.0
  %10917 = vmatpush1.msra.mxu0 0.0
  %10918 = vmatprep.mubr.f32.mxu0 0.0
  %10919 = vmatmul.mubr.f32.gmra.mrb[0].mxu0 %v10781
  %v10920 = vpop.f32.mrb[0].mxu0
  %v10921 = vadd.f32 0.0, %v10920
  %v10922 = vpop.f32.mrb[0].mxu0
  %v10923 = vadd.f32 0.0, %v10922
  %10924 = vdwg.mxu0
  %10925 = vmatprep.subr.mxu0 0.0
  %10926 = vmatpush1.msra.mxu0 %v10779
  %10927 = vmatprep.subr.mxu0 0.0
  %10928 = vmatpush1.msra.mxu0 0.0
  %10929 = vmatprep.subr.mxu0 0.0
  %10930 = vmatpush1.msra.mxu0 0.0
  %10931 = vmatprep.subr.mxu0 0.0
  %10932 = vmatpush1.msra.mxu0 0.0
  %10933 = vmatprep.subr.mxu0 0.0
  %10934 = vmatpush1.msra.mxu0 0.0
  %10935 = vmatprep.subr.mxu0 0.0
  %10936 = vmatpush1.msra.mxu0 0.0
  %10937 = vmatprep.subr.mxu0 0.0
  %10938 = vmatpush1.msra.mxu0 0.0
  %10939 = vmatprep.subr.mxu0 0.0
  %10940 = vmatpush1.msra.mxu0 0.0
  %10941 = vmatprep.subr.mxu0 0.0
  %10942 = vmatpush1.msra.mxu0 0.0
  %10943 = vmatprep.subr.mxu0 0.0
  %10944 = vmatpush1.msra.mxu0 0.0
  %10945 = vmatprep.subr.mxu0 0.0
  %10946 = vmatpush1.msra.mxu0 0.0
  %10947 = vmatprep.subr.mxu0 0.0
  %10948 = vmatpush1.msra.mxu0 0.0
  %10949 = vmatprep.subr.mxu0 0.0
  %10950 = vmatpush1.msra.mxu0 0.0
  %10951 = vmatprep.subr.mxu0 0.0
  %10952 = vmatpush1.msra.mxu0 0.0
  %10953 = vmatprep.subr.mxu0 0.0
  %10954 = vmatpush1.msra.mxu0 0.0
  %10955 = vmatprep.subr.mxu0 0.0
  %10956 = vmatpush1.msra.mxu0 0.0
  %10957 = vmatprep.subr.mxu0 0.0
  %10958 = vmatpush1.msra.mxu0 0.0
  %10959 = vmatprep.subr.mxu0 0.0
  %10960 = vmatpush1.msra.mxu0 0.0
  %10961 = vmatprep.subr.mxu0 0.0
  %10962 = vmatpush1.msra.mxu0 0.0
  %10963 = vmatprep.subr.mxu0 0.0
  %10964 = vmatpush1.msra.mxu0 0.0
  %10965 = vmatprep.subr.mxu0 0.0
  %10966 = vmatpush1.msra.mxu0 0.0
  %10967 = vmatprep.subr.mxu0 0.0
  %10968 = vmatpush1.msra.mxu0 0.0
  %10969 = vmatprep.subr.mxu0 0.0
  %10970 = vmatpush1.msra.mxu0 0.0
  %10971 = vmatprep.subr.mxu0 0.0
  %10972 = vmatpush1.msra.mxu0 0.0
  %10973 = vmatprep.subr.mxu0 0.0
  %10974 = vmatpush1.msra.mxu0 0.0
  %10975 = vmatprep.subr.mxu0 0.0
  %10976 = vmatpush1.msra.mxu0 0.0
  %10977 = vmatprep.subr.mxu0 0.0
  %10978 = vmatpush1.msra.mxu0 0.0
  %10979 = vmatprep.subr.mxu0 0.0
  %10980 = vmatpush1.msra.mxu0 0.0
  %10981 = vmatprep.subr.mxu0 0.0
  %10982 = vmatpush1.msra.mxu0 0.0
  %10983 = vmatprep.subr.mxu0 0.0
  %10984 = vmatpush1.msra.mxu0 0.0
  %10985 = vmatprep.subr.mxu0 0.0
  %10986 = vmatpush1.msra.mxu0 0.0
  %10987 = vmatprep.subr.mxu0 0.0
  %10988 = vmatpush1.msra.mxu0 0.0
  %10989 = vmatprep.mubr.f32.mxu0 0.0
  %10990 = vmatmul.mubr.f32.gmra.mrb[0].mxu0 %v10781
  %v10991 = vpop.f32.mrb[0].mxu0
  %v10992 = vadd.f32 0.0, %v10991
  %v10993 = vpop.f32.mrb[0].mxu0
  %10994 = vdwg.mxu0
  %v10995 = vadd.f32 %v10758, %v10850
  %v10996 = vadd.f32 %v10759, %v10852
  %v10997 = vadd.f32 %v10760, %v10921
  %v10998 = vadd.f32 %v10761, %v10923
  %v10999 = vadd.f32 %v10762, %v10992
  %s11000 = scalar_lea.vmem %s4, 272
  %v11001 = vld [vmem:[%s11000] sm:$0xff]
  %11002 = vrot.lane.b32.xlu0 %v9361, 115
  %v11003 = vpop.permute.xlu0 %11002
  %11004 = vrot.lane.b32.xlu0 %v9362, 115
  %v11005 = vpop.permute.xlu0 %11004
  %11006 = vrot.lane.b32.xlu0 %v9363, 115
  %v11007 = vpop.permute.xlu0 %11006
  %11008 = vrot.lane.b32.xlu0 %v9364, 115
  %v11009 = vpop.permute.xlu0 %11008
  %11010 = vrot.lane.b32.xlu0 %v9365, 115
  %v11011 = vpop.permute.xlu0 %11010
  %v11012 = vsel %vm1820, %v11009, %v11011
  %v11013 = vsel %vm1820, %v11007, %v11009
  %v11014 = vsel %vm1820, %v11005, %v11007
  %v11015 = vsel %vm1820, %v11003, %v11005
  %v11016 = vsel %vm1820, %v11011, %v11003
  %v11018 = vsel %vm2405, %v11001, 0
  %11020 = vmatprep.subr.mxu0 %v11014
  %11021 = vmatpush1.msra.mxu0 %v11015
  %11022 = vmatprep.subr.mxu0 0.0
  %11023 = vmatpush1.msra.mxu0 0.0
  %11024 = vmatprep.subr.mxu0 0.0
  %11025 = vmatpush1.msra.mxu0 0.0
  %11026 = vmatprep.subr.mxu0 0.0
  %11027 = vmatpush1.msra.mxu0 0.0
  %11028 = vmatprep.subr.mxu0 0.0
  %11029 = vmatpush1.msra.mxu0 0.0
  %11030 = vmatprep.subr.mxu0 0.0
  %11031 = vmatpush1.msra.mxu0 0.0
  %11032 = vmatprep.subr.mxu0 0.0
  %11033 = vmatpush1.msra.mxu0 0.0
  %11034 = vmatprep.subr.mxu0 0.0
  %11035 = vmatpush1.msra.mxu0 0.0
  %11036 = vmatprep.subr.mxu0 0.0
  %11037 = vmatpush1.msra.mxu0 0.0
  %11038 = vmatprep.subr.mxu0 0.0
  %11039 = vmatpush1.msra.mxu0 0.0
  %11040 = vmatprep.subr.mxu0 0.0
  %11041 = vmatpush1.msra.mxu0 0.0
  %11042 = vmatprep.subr.mxu0 0.0
  %11043 = vmatpush1.msra.mxu0 0.0
  %11044 = vmatprep.subr.mxu0 0.0
  %11045 = vmatpush1.msra.mxu0 0.0
  %11046 = vmatprep.subr.mxu0 0.0
  %11047 = vmatpush1.msra.mxu0 0.0
  %11048 = vmatprep.subr.mxu0 0.0
  %11049 = vmatpush1.msra.mxu0 0.0
  %11050 = vmatprep.subr.mxu0 0.0
  %11051 = vmatpush1.msra.mxu0 0.0
  %11052 = vmatprep.subr.mxu0 0.0
  %11053 = vmatpush1.msra.mxu0 0.0
  %11054 = vmatprep.subr.mxu0 0.0
  %11055 = vmatpush1.msra.mxu0 0.0
  %11056 = vmatprep.subr.mxu0 0.0
  %11057 = vmatpush1.msra.mxu0 0.0
  %11058 = vmatprep.subr.mxu0 0.0
  %11059 = vmatpush1.msra.mxu0 0.0
  %11060 = vmatprep.subr.mxu0 0.0
  %11061 = vmatpush1.msra.mxu0 0.0
  %11062 = vmatprep.subr.mxu0 0.0
  %11063 = vmatpush1.msra.mxu0 0.0
  %11064 = vmatprep.subr.mxu0 0.0
  %11065 = vmatpush1.msra.mxu0 0.0
  %11066 = vmatprep.subr.mxu0 0.0
  %11067 = vmatpush1.msra.mxu0 0.0
  %11068 = vmatprep.subr.mxu0 0.0
  %11069 = vmatpush1.msra.mxu0 0.0
  %11070 = vmatprep.subr.mxu0 0.0
  %11071 = vmatpush1.msra.mxu0 0.0
  %11072 = vmatprep.subr.mxu0 0.0
  %11073 = vmatpush1.msra.mxu0 0.0
  %11074 = vmatprep.subr.mxu0 0.0
  %11075 = vmatpush1.msra.mxu0 0.0
  %11076 = vmatprep.subr.mxu0 0.0
  %11077 = vmatpush1.msra.mxu0 0.0
  %11078 = vmatprep.subr.mxu0 0.0
  %11079 = vmatpush1.msra.mxu0 0.0
  %11080 = vmatprep.subr.mxu0 0.0
  %11081 = vmatpush1.msra.mxu0 0.0
  %11082 = vmatprep.subr.mxu0 0.0
  %11083 = vmatpush1.msra.mxu0 0.0
  %11084 = vmatprep.mubr.f32.mxu0 0.0
  %11085 = vmatmul.mubr.f32.gmra.mrb[0].mxu0 %v11018
  %v11086 = vpop.f32.mrb[0].mxu0
  %v11087 = vadd.f32 0.0, %v11086
  %v11088 = vpop.f32.mrb[0].mxu0
  %v11089 = vadd.f32 0.0, %v11088
  %11090 = vdwg.mxu0
  %11091 = vmatprep.subr.mxu0 %v11012
  %11092 = vmatpush1.msra.mxu0 %v11013
  %11093 = vmatprep.subr.mxu0 0.0
  %11094 = vmatpush1.msra.mxu0 0.0
  %11095 = vmatprep.subr.mxu0 0.0
  %11096 = vmatpush1.msra.mxu0 0.0
  %11097 = vmatprep.subr.mxu0 0.0
  %11098 = vmatpush1.msra.mxu0 0.0
  %11099 = vmatprep.subr.mxu0 0.0
  %11100 = vmatpush1.msra.mxu0 0.0
  %11101 = vmatprep.subr.mxu0 0.0
  %11102 = vmatpush1.msra.mxu0 0.0
  %11103 = vmatprep.subr.mxu0 0.0
  %11104 = vmatpush1.msra.mxu0 0.0
  %11105 = vmatprep.subr.mxu0 0.0
  %11106 = vmatpush1.msra.mxu0 0.0
  %11107 = vmatprep.subr.mxu0 0.0
  %11108 = vmatpush1.msra.mxu0 0.0
  %11109 = vmatprep.subr.mxu0 0.0
  %11110 = vmatpush1.msra.mxu0 0.0
  %11111 = vmatprep.subr.mxu0 0.0
  %11112 = vmatpush1.msra.mxu0 0.0
  %11113 = vmatprep.subr.mxu0 0.0
  %11114 = vmatpush1.msra.mxu0 0.0
  %11115 = vmatprep.subr.mxu0 0.0
  %11116 = vmatpush1.msra.mxu0 0.0
  %11117 = vmatprep.subr.mxu0 0.0
  %11118 = vmatpush1.msra.mxu0 0.0
  %11119 = vmatprep.subr.mxu0 0.0
  %11120 = vmatpush1.msra.mxu0 0.0
  %11121 = vmatprep.subr.mxu0 0.0
  %11122 = vmatpush1.msra.mxu0 0.0
  %11123 = vmatprep.subr.mxu0 0.0
  %11124 = vmatpush1.msra.mxu0 0.0
  %11125 = vmatprep.subr.mxu0 0.0
  %11126 = vmatpush1.msra.mxu0 0.0
  %11127 = vmatprep.subr.mxu0 0.0
  %11128 = vmatpush1.msra.mxu0 0.0
  %11129 = vmatprep.subr.mxu0 0.0
  %11130 = vmatpush1.msra.mxu0 0.0
  %11131 = vmatprep.subr.mxu0 0.0
  %11132 = vmatpush1.msra.mxu0 0.0
  %11133 = vmatprep.subr.mxu0 0.0
  %11134 = vmatpush1.msra.mxu0 0.0
  %11135 = vmatprep.subr.mxu0 0.0
  %11136 = vmatpush1.msra.mxu0 0.0
  %11137 = vmatprep.subr.mxu0 0.0
  %11138 = vmatpush1.msra.mxu0 0.0
  %11139 = vmatprep.subr.mxu0 0.0
  %11140 = vmatpush1.msra.mxu0 0.0
  %11141 = vmatprep.subr.mxu0 0.0
  %11142 = vmatpush1.msra.mxu0 0.0
  %11143 = vmatprep.subr.mxu0 0.0
  %11144 = vmatpush1.msra.mxu0 0.0
  %11145 = vmatprep.subr.mxu0 0.0
  %11146 = vmatpush1.msra.mxu0 0.0
  %11147 = vmatprep.subr.mxu0 0.0
  %11148 = vmatpush1.msra.mxu0 0.0
  %11149 = vmatprep.subr.mxu0 0.0
  %11150 = vmatpush1.msra.mxu0 0.0
  %11151 = vmatprep.subr.mxu0 0.0
  %11152 = vmatpush1.msra.mxu0 0.0
  %11153 = vmatprep.subr.mxu0 0.0
  %11154 = vmatpush1.msra.mxu0 0.0
  %11155 = vmatprep.mubr.f32.mxu0 0.0
  %11156 = vmatmul.mubr.f32.gmra.mrb[0].mxu0 %v11018
  %v11157 = vpop.f32.mrb[0].mxu0
  %v11158 = vadd.f32 0.0, %v11157
  %v11159 = vpop.f32.mrb[0].mxu0
  %v11160 = vadd.f32 0.0, %v11159
  %11161 = vdwg.mxu0
  %11162 = vmatprep.subr.mxu0 0.0
  %11163 = vmatpush1.msra.mxu0 %v11016
  %11164 = vmatprep.subr.mxu0 0.0
  %11165 = vmatpush1.msra.mxu0 0.0
  %11166 = vmatprep.subr.mxu0 0.0
  %11167 = vmatpush1.msra.mxu0 0.0
  %11168 = vmatprep.subr.mxu0 0.0
  %11169 = vmatpush1.msra.mxu0 0.0
  %11170 = vmatprep.subr.mxu0 0.0
  %11171 = vmatpush1.msra.mxu0 0.0
  %11172 = vmatprep.subr.mxu0 0.0
  %11173 = vmatpush1.msra.mxu0 0.0
  %11174 = vmatprep.subr.mxu0 0.0
  %11175 = vmatpush1.msra.mxu0 0.0
  %11176 = vmatprep.subr.mxu0 0.0
  %11177 = vmatpush1.msra.mxu0 0.0
  %11178 = vmatprep.subr.mxu0 0.0
  %11179 = vmatpush1.msra.mxu0 0.0
  %11180 = vmatprep.subr.mxu0 0.0
  %11181 = vmatpush1.msra.mxu0 0.0
  %11182 = vmatprep.subr.mxu0 0.0
  %11183 = vmatpush1.msra.mxu0 0.0
  %11184 = vmatprep.subr.mxu0 0.0
  %11185 = vmatpush1.msra.mxu0 0.0
  %11186 = vmatprep.subr.mxu0 0.0
  %11187 = vmatpush1.msra.mxu0 0.0
  %11188 = vmatprep.subr.mxu0 0.0
  %11189 = vmatpush1.msra.mxu0 0.0
  %11190 = vmatprep.subr.mxu0 0.0
  %11191 = vmatpush1.msra.mxu0 0.0
  %11192 = vmatprep.subr.mxu0 0.0
  %11193 = vmatpush1.msra.mxu0 0.0
  %11194 = vmatprep.subr.mxu0 0.0
  %11195 = vmatpush1.msra.mxu0 0.0
  %11196 = vmatprep.subr.mxu0 0.0
  %11197 = vmatpush1.msra.mxu0 0.0
  %11198 = vmatprep.subr.mxu0 0.0
  %11199 = vmatpush1.msra.mxu0 0.0
  %11200 = vmatprep.subr.mxu0 0.0
  %11201 = vmatpush1.msra.mxu0 0.0
  %11202 = vmatprep.subr.mxu0 0.0
  %11203 = vmatpush1.msra.mxu0 0.0
  %11204 = vmatprep.subr.mxu0 0.0
  %11205 = vmatpush1.msra.mxu0 0.0
  %11206 = vmatprep.subr.mxu0 0.0
  %11207 = vmatpush1.msra.mxu0 0.0
  %11208 = vmatprep.subr.mxu0 0.0
  %11209 = vmatpush1.msra.mxu0 0.0
  %11210 = vmatprep.subr.mxu0 0.0
  %11211 = vmatpush1.msra.mxu0 0.0
  %11212 = vmatprep.subr.mxu0 0.0
  %11213 = vmatpush1.msra.mxu0 0.0
  %11214 = vmatprep.subr.mxu0 0.0
  %11215 = vmatpush1.msra.mxu0 0.0
  %11216 = vmatprep.subr.mxu0 0.0
  %11217 = vmatpush1.msra.mxu0 0.0
  %11218 = vmatprep.subr.mxu0 0.0
  %11219 = vmatpush1.msra.mxu0 0.0
  %11220 = vmatprep.subr.mxu0 0.0
  %11221 = vmatpush1.msra.mxu0 0.0
  %11222 = vmatprep.subr.mxu0 0.0
  %11223 = vmatpush1.msra.mxu0 0.0
  %11224 = vmatprep.subr.mxu0 0.0
  %11225 = vmatpush1.msra.mxu0 0.0
  %11226 = vmatprep.mubr.f32.mxu0 0.0
  %11227 = vmatmul.mubr.f32.gmra.mrb[0].mxu0 %v11018
  %v11228 = vpop.f32.mrb[0].mxu0
  %v11229 = vadd.f32 0.0, %v11228
  %v11230 = vpop.f32.mrb[0].mxu0
  %11231 = vdwg.mxu0
  %v11232 = vadd.f32 %v10995, %v11087
  %v11233 = vadd.f32 %v10996, %v11089
  %v11234 = vadd.f32 %v10997, %v11158
  %v11235 = vadd.f32 %v10998, %v11160
  %v11236 = vadd.f32 %v10999, %v11229
  %s11237 = scalar_lea.vmem %s4, 280
  %v11238 = vld [vmem:[%s11237] sm:$0xff]
  %11239 = vrot.lane.b32.xlu0 %v9361, 114
  %v11240 = vpop.permute.xlu0 %11239
  %11241 = vrot.lane.b32.xlu0 %v9362, 114
  %v11242 = vpop.permute.xlu0 %11241
  %11243 = vrot.lane.b32.xlu0 %v9363, 114
  %v11244 = vpop.permute.xlu0 %11243
  %11245 = vrot.lane.b32.xlu0 %v9364, 114
  %v11246 = vpop.permute.xlu0 %11245
  %11247 = vrot.lane.b32.xlu0 %v9365, 114
  %v11248 = vpop.permute.xlu0 %11247
  %v11249 = vsel %vm2073, %v11246, %v11248
  %v11250 = vsel %vm2073, %v11244, %v11246
  %v11251 = vsel %vm2073, %v11242, %v11244
  %v11252 = vsel %vm2073, %v11240, %v11242
  %v11253 = vsel %vm2073, %v11248, %v11240
  %v11255 = vsel %vm2405, %v11238, 0
  %11257 = vmatprep.subr.mxu0 %v11251
  %11258 = vmatpush1.msra.mxu0 %v11252
  %11259 = vmatprep.subr.mxu0 0.0
  %11260 = vmatpush1.msra.mxu0 0.0
  %11261 = vmatprep.subr.mxu0 0.0
  %11262 = vmatpush1.msra.mxu0 0.0
  %11263 = vmatprep.subr.mxu0 0.0
  %11264 = vmatpush1.msra.mxu0 0.0
  %11265 = vmatprep.subr.mxu0 0.0
  %11266 = vmatpush1.msra.mxu0 0.0
  %11267 = vmatprep.subr.mxu0 0.0
  %11268 = vmatpush1.msra.mxu0 0.0
  %11269 = vmatprep.subr.mxu0 0.0
  %11270 = vmatpush1.msra.mxu0 0.0
  %11271 = vmatprep.subr.mxu0 0.0
  %11272 = vmatpush1.msra.mxu0 0.0
  %11273 = vmatprep.subr.mxu0 0.0
  %11274 = vmatpush1.msra.mxu0 0.0
  %11275 = vmatprep.subr.mxu0 0.0
  %11276 = vmatpush1.msra.mxu0 0.0
  %11277 = vmatprep.subr.mxu0 0.0
  %11278 = vmatpush1.msra.mxu0 0.0
  %11279 = vmatprep.subr.mxu0 0.0
  %11280 = vmatpush1.msra.mxu0 0.0
  %11281 = vmatprep.subr.mxu0 0.0
  %11282 = vmatpush1.msra.mxu0 0.0
  %11283 = vmatprep.subr.mxu0 0.0
  %11284 = vmatpush1.msra.mxu0 0.0
  %11285 = vmatprep.subr.mxu0 0.0
  %11286 = vmatpush1.msra.mxu0 0.0
  %11287 = vmatprep.subr.mxu0 0.0
  %11288 = vmatpush1.msra.mxu0 0.0
  %11289 = vmatprep.subr.mxu0 0.0
  %11290 = vmatpush1.msra.mxu0 0.0
  %11291 = vmatprep.subr.mxu0 0.0
  %11292 = vmatpush1.msra.mxu0 0.0
  %11293 = vmatprep.subr.mxu0 0.0
  %11294 = vmatpush1.msra.mxu0 0.0
  %11295 = vmatprep.subr.mxu0 0.0
  %11296 = vmatpush1.msra.mxu0 0.0
  %11297 = vmatprep.subr.mxu0 0.0
  %11298 = vmatpush1.msra.mxu0 0.0
  %11299 = vmatprep.subr.mxu0 0.0
  %11300 = vmatpush1.msra.mxu0 0.0
  %11301 = vmatprep.subr.mxu0 0.0
  %11302 = vmatpush1.msra.mxu0 0.0
  %11303 = vmatprep.subr.mxu0 0.0
  %11304 = vmatpush1.msra.mxu0 0.0
  %11305 = vmatprep.subr.mxu0 0.0
  %11306 = vmatpush1.msra.mxu0 0.0
  %11307 = vmatprep.subr.mxu0 0.0
  %11308 = vmatpush1.msra.mxu0 0.0
  %11309 = vmatprep.subr.mxu0 0.0
  %11310 = vmatpush1.msra.mxu0 0.0
  %11311 = vmatprep.subr.mxu0 0.0
  %11312 = vmatpush1.msra.mxu0 0.0
  %11313 = vmatprep.subr.mxu0 0.0
  %11314 = vmatpush1.msra.mxu0 0.0
  %11315 = vmatprep.subr.mxu0 0.0
  %11316 = vmatpush1.msra.mxu0 0.0
  %11317 = vmatprep.subr.mxu0 0.0
  %11318 = vmatpush1.msra.mxu0 0.0
  %11319 = vmatprep.subr.mxu0 0.0
  %11320 = vmatpush1.msra.mxu0 0.0
  %11321 = vmatprep.mubr.f32.mxu0 0.0
  %11322 = vmatmul.mubr.f32.gmra.mrb[0].mxu0 %v11255
  %v11323 = vpop.f32.mrb[0].mxu0
  %v11324 = vadd.f32 0.0, %v11323
  %v11325 = vpop.f32.mrb[0].mxu0
  %v11326 = vadd.f32 0.0, %v11325
  %11327 = vdwg.mxu0
  %11328 = vmatprep.subr.mxu0 %v11249
  %11329 = vmatpush1.msra.mxu0 %v11250
  %11330 = vmatprep.subr.mxu0 0.0
  %11331 = vmatpush1.msra.mxu0 0.0
  %11332 = vmatprep.subr.mxu0 0.0
  %11333 = vmatpush1.msra.mxu0 0.0
  %11334 = vmatprep.subr.mxu0 0.0
  %11335 = vmatpush1.msra.mxu0 0.0
  %11336 = vmatprep.subr.mxu0 0.0
  %11337 = vmatpush1.msra.mxu0 0.0
  %11338 = vmatprep.subr.mxu0 0.0
  %11339 = vmatpush1.msra.mxu0 0.0
  %11340 = vmatprep.subr.mxu0 0.0
  %11341 = vmatpush1.msra.mxu0 0.0
  %11342 = vmatprep.subr.mxu0 0.0
  %11343 = vmatpush1.msra.mxu0 0.0
  %11344 = vmatprep.subr.mxu0 0.0
  %11345 = vmatpush1.msra.mxu0 0.0
  %11346 = vmatprep.subr.mxu0 0.0
  %11347 = vmatpush1.msra.mxu0 0.0
  %11348 = vmatprep.subr.mxu0 0.0
  %11349 = vmatpush1.msra.mxu0 0.0
  %11350 = vmatprep.subr.mxu0 0.0
  %11351 = vmatpush1.msra.mxu0 0.0
  %11352 = vmatprep.subr.mxu0 0.0
  %11353 = vmatpush1.msra.mxu0 0.0
  %11354 = vmatprep.subr.mxu0 0.0
  %11355 = vmatpush1.msra.mxu0 0.0
  %11356 = vmatprep.subr.mxu0 0.0
  %11357 = vmatpush1.msra.mxu0 0.0
  %11358 = vmatprep.subr.mxu0 0.0
  %11359 = vmatpush1.msra.mxu0 0.0
  %11360 = vmatprep.subr.mxu0 0.0
  %11361 = vmatpush1.msra.mxu0 0.0
  %11362 = vmatprep.subr.mxu0 0.0
  %11363 = vmatpush1.msra.mxu0 0.0
  %11364 = vmatprep.subr.mxu0 0.0
  %11365 = vmatpush1.msra.mxu0 0.0
  %11366 = vmatprep.subr.mxu0 0.0
  %11367 = vmatpush1.msra.mxu0 0.0
  %11368 = vmatprep.subr.mxu0 0.0
  %11369 = vmatpush1.msra.mxu0 0.0
  %11370 = vmatprep.subr.mxu0 0.0
  %11371 = vmatpush1.msra.mxu0 0.0
  %11372 = vmatprep.subr.mxu0 0.0
  %11373 = vmatpush1.msra.mxu0 0.0
  %11374 = vmatprep.subr.mxu0 0.0
  %11375 = vmatpush1.msra.mxu0 0.0
  %11376 = vmatprep.subr.mxu0 0.0
  %11377 = vmatpush1.msra.mxu0 0.0
  %11378 = vmatprep.subr.mxu0 0.0
  %11379 = vmatpush1.msra.mxu0 0.0
  %11380 = vmatprep.subr.mxu0 0.0
  %11381 = vmatpush1.msra.mxu0 0.0
  %11382 = vmatprep.subr.mxu0 0.0
  %11383 = vmatpush1.msra.mxu0 0.0
  %11384 = vmatprep.subr.mxu0 0.0
  %11385 = vmatpush1.msra.mxu0 0.0
  %11386 = vmatprep.subr.mxu0 0.0
  %11387 = vmatpush1.msra.mxu0 0.0
  %11388 = vmatprep.subr.mxu0 0.0
  %11389 = vmatpush1.msra.mxu0 0.0
  %11390 = vmatprep.subr.mxu0 0.0
  %11391 = vmatpush1.msra.mxu0 0.0
  %11392 = vmatprep.mubr.f32.mxu0 0.0
  %11393 = vmatmul.mubr.f32.gmra.mrb[0].mxu0 %v11255
  %v11394 = vpop.f32.mrb[0].mxu0
  %v11395 = vadd.f32 0.0, %v11394
  %v11396 = vpop.f32.mrb[0].mxu0
  %v11397 = vadd.f32 0.0, %v11396
  %11398 = vdwg.mxu0
  %11399 = vmatprep.subr.mxu0 0.0
  %11400 = vmatpush1.msra.mxu0 %v11253
  %11401 = vmatprep.subr.mxu0 0.0
  %11402 = vmatpush1.msra.mxu0 0.0
  %11403 = vmatprep.subr.mxu0 0.0
  %11404 = vmatpush1.msra.mxu0 0.0
  %11405 = vmatprep.subr.mxu0 0.0
  %11406 = vmatpush1.msra.mxu0 0.0
  %11407 = vmatprep.subr.mxu0 0.0
  %11408 = vmatpush1.msra.mxu0 0.0
  %11409 = vmatprep.subr.mxu0 0.0
  %11410 = vmatpush1.msra.mxu0 0.0
  %11411 = vmatprep.subr.mxu0 0.0
  %11412 = vmatpush1.msra.mxu0 0.0
  %11413 = vmatprep.subr.mxu0 0.0
  %11414 = vmatpush1.msra.mxu0 0.0
  %11415 = vmatprep.subr.mxu0 0.0
  %11416 = vmatpush1.msra.mxu0 0.0
  %11417 = vmatprep.subr.mxu0 0.0
  %11418 = vmatpush1.msra.mxu0 0.0
  %11419 = vmatprep.subr.mxu0 0.0
  %11420 = vmatpush1.msra.mxu0 0.0
  %11421 = vmatprep.subr.mxu0 0.0
  %11422 = vmatpush1.msra.mxu0 0.0
  %11423 = vmatprep.subr.mxu0 0.0
  %11424 = vmatpush1.msra.mxu0 0.0
  %11425 = vmatprep.subr.mxu0 0.0
  %11426 = vmatpush1.msra.mxu0 0.0
  %11427 = vmatprep.subr.mxu0 0.0
  %11428 = vmatpush1.msra.mxu0 0.0
  %11429 = vmatprep.subr.mxu0 0.0
  %11430 = vmatpush1.msra.mxu0 0.0
  %11431 = vmatprep.subr.mxu0 0.0
  %11432 = vmatpush1.msra.mxu0 0.0
  %11433 = vmatprep.subr.mxu0 0.0
  %11434 = vmatpush1.msra.mxu0 0.0
  %11435 = vmatprep.subr.mxu0 0.0
  %11436 = vmatpush1.msra.mxu0 0.0
  %11437 = vmatprep.subr.mxu0 0.0
  %11438 = vmatpush1.msra.mxu0 0.0
  %11439 = vmatprep.subr.mxu0 0.0
  %11440 = vmatpush1.msra.mxu0 0.0
  %11441 = vmatprep.subr.mxu0 0.0
  %11442 = vmatpush1.msra.mxu0 0.0
  %11443 = vmatprep.subr.mxu0 0.0
  %11444 = vmatpush1.msra.mxu0 0.0
  %11445 = vmatprep.subr.mxu0 0.0
  %11446 = vmatpush1.msra.mxu0 0.0
  %11447 = vmatprep.subr.mxu0 0.0
  %11448 = vmatpush1.msra.mxu0 0.0
  %11449 = vmatprep.subr.mxu0 0.0
  %11450 = vmatpush1.msra.mxu0 0.0
  %11451 = vmatprep.subr.mxu0 0.0
  %11452 = vmatpush1.msra.mxu0 0.0
  %11453 = vmatprep.subr.mxu0 0.0
  %11454 = vmatpush1.msra.mxu0 0.0
  %11455 = vmatprep.subr.mxu0 0.0
  %11456 = vmatpush1.msra.mxu0 0.0
  %11457 = vmatprep.subr.mxu0 0.0
  %11458 = vmatpush1.msra.mxu0 0.0
  %11459 = vmatprep.subr.mxu0 0.0
  %11460 = vmatpush1.msra.mxu0 0.0
  %11461 = vmatprep.subr.mxu0 0.0
  %11462 = vmatpush1.msra.mxu0 0.0
  %11463 = vmatprep.mubr.f32.mxu0 0.0
  %11464 = vmatmul.mubr.f32.gmra.mrb[0].mxu0 %v11255
  %v11465 = vpop.f32.mrb[0].mxu0
  %v11466 = vadd.f32 0.0, %v11465
  %v11467 = vpop.f32.mrb[0].mxu0
  %11468 = vdwg.mxu0
  %v11469 = vadd.f32 %v11232, %v11324
  %v11470 = vadd.f32 %v11233, %v11326
  %v11471 = vadd.f32 %v11234, %v11395
  %v11472 = vadd.f32 %v11235, %v11397
  %v11473 = vadd.f32 %v11236, %v11466
  %s11474 = scalar_lea.vmem %s5, 24
  %v11475 = vld [vmem:[%s11474] sm:$0xff]
  %11477 = vset.pattern.permute.xlu0 0
  %11478 = vperm.xlu0 %11477, %v11475
  %v11479 = vpop.permute.xlu0 %11478
  %v11481 = vadd.f32 %v11469, %v11479
  %v11482 = vadd.f32 %v11470, %v11479
  %v11483 = vadd.f32 %v11471, %v11479
  %v11484 = vadd.f32 %v11472, %v11479
  %v11485 = vadd.f32 %v11473, %v11479
  %v11491 = vcombine.low %v11481, %v11482
  %v11492 = vcombine.low %v11483, %v11484
  %v11494 = vunpack.c.l.s4 1983009808
  %v11495 = vunpack.c.0.s8 %v11494
  %v11496 = vlaneseq
  %v11497 = vshrl.u32 %v11496, 7
  %v11498 = vsub.s32 %v11495, %v11497
  %v11499 = vrot.slane %v11491, %v11498
  %v11501 = vunpack.c.l.s4 1983009808
  %v11502 = vunpack.c.0.s8 %v11501
  %v11503 = vlaneseq
  %v11504 = vshrl.u32 %v11503, 7
  %v11505 = vsub.s32 %v11502, %v11504
  %v11506 = vrot.slane %v11492, %v11505
  %v11507 = vcombine.low %v11499, %v11506
  %v11509 = vunpack.c.l.s4 1983009808
  %v11510 = vunpack.c.0.s8 %v11509
  %v11511 = vlaneseq
  %v11512 = vshrl.u32 %v11511, 7
  %v11513 = vsub.s32 %v11510, %v11512
  %v11514 = vrot.slane %v11485, %v11513
  %11517 = vst [vmem:[%s6] sm:$0xff] %v11507
  %11518 = vst [vmem:[%s6 + $0x8] sm:$0x3] %v11514
  // Predicated region
  $region26: #{_lambda_.1} parent=0 // pred_check
    _
  $region27: #{_lambda_.1} parent=0 // pred_check_branch
    %11520 = sbr.rel (0) target = $region29
  $region28: #{_lambda_.1} parent=0 // pred_region
    _
  $region29: #{_lambda_.1} parent=0 // pred_fallthru
    _
  // Predicated region
  $region30: #{_lambda_.1} parent=0 // pred_check
    _
  $region31: #{_lambda_.1} parent=0 // pred_check_branch
    %11522 = sbr.rel (0) target = $region33
  $region32: #{_lambda_.1} parent=0 // pred_region
    _
  $region33: #{_lambda_.1} parent=0 // pred_fallthru
    _

</llo_original>
